<compile_context>
chip_gen: v7x
topology: tpu7x:2x2x1
jax: 0.10.0
libtpu: 0.0.40
codegen_flags: <defaults>
</compile_context>

<pallas_src>
import jax
import jax.numpy as jnp
from jax import lax
from jax.experimental import pallas as pl
from jax.experimental.pallas import tpu as pltpu

LANE = 128  # lane-dense output width for the conv kernels


# ---------------------------------------------------------------------------
# Conv matmul kernel: o = relu(x @ w + b), single K step, M split over the grid.
# ---------------------------------------------------------------------------
def _conv_mm_kernel(x_ref, w_ref, b_ref, o_ref):
    y = jnp.dot(x_ref[...], w_ref[...], preferred_element_type=jnp.float32)
    o_ref[...] = jnp.maximum(y + b_ref[...], 0.0).astype(o_ref.dtype)


def conv_matmul_bias_relu(patches, w, b, *, m_split=2):
    """relu(patches @ w + b); the grid splits M so v7x's two cores share the work."""
    M, K = patches.shape
    Kw, N = w.shape
    assert K == Kw
    if M % m_split != 0 or (M // m_split) % 8 != 0:
        m_split = 1
    mb = M // m_split
    b2 = b.reshape(1, N)
    return pl.pallas_call(
        _conv_mm_kernel,
        out_shape=jax.ShapeDtypeStruct((M, N), jnp.float32),
        grid_spec=pltpu.PrefetchScalarGridSpec(
            num_scalar_prefetch=0,
            grid=(m_split,),
            in_specs=[
                pl.BlockSpec((mb, K), lambda i: (i, 0)),
                pl.BlockSpec((K, N), lambda i: (0, 0)),
                pl.BlockSpec((1, N), lambda i: (0, 0)),
            ],
            out_specs=pl.BlockSpec((mb, N), lambda i: (i, 0)),
        ),
        compiler_params=pltpu.CompilerParams(
            dimension_semantics=("parallel",)),
    )(patches, w, b2)


# ---------------------------------------------------------------------------
# Fused fc1 + ReLU + fc2 kernel.
#   Grid = (J=2 fc1-unit halves [parallel], K tiles [arbitrary]).
#   Each half accumulates its 64 fc1 units over K in a small VMEM scratch, then on the
#   last K step applies bias+ReLU and its slice of fc2, emitting a (B, 10) partial-logit
#   block.  Output block index is constant across K, so it stays VMEM-resident.
# ---------------------------------------------------------------------------
def _fc_fused_kernel(x_ref, w1_ref, b1_ref, w2_ref, o_ref, acc_ref):
    k = pl.program_id(1)

    @pl.when(k == 0)
    def _():
        acc_ref[...] = jnp.zeros_like(acc_ref)

    acc_ref[...] += jnp.dot(x_ref[...], w1_ref[0],
                            preferred_element_type=jnp.float32)

    @pl.when(k == pl.num_programs(1) - 1)
    def _():
        h = jnp.maximum(acc_ref[...] + b1_ref[0], 0.0)          # (B, 64)
        o_ref[0] = jnp.dot(h, w2_ref[0],
                           preferred_element_type=jnp.float32).astype(o_ref.dtype)


def fc1_relu_fc2_partial(xf, w1, b1, w2, *, k_tile):
    """xf: (B, K); w1: (J, K, Nh); b1: (J, 1, Nh); w2: (J, Nh, O).
    Returns (J, B, O) partial logits (fc2 bias NOT included); sum over J outside."""
    B, K = xf.shape
    J, Kw, Nh = w1.shape
    O = w2.shape[-1]
    assert K == Kw and K % k_tile == 0
    nk = K // k_tile
    return pl.pallas_call(
        _fc_fused_kernel,
        out_shape=jax.ShapeDtypeStruct((J, B, O), jnp.float32),
        grid_spec=pltpu.PrefetchScalarGridSpec(
            num_scalar_prefetch=0,
            grid=(J, nk),
            in_specs=[
                pl.BlockSpec((B, k_tile), lambda j, k: (0, k)),
                pl.BlockSpec((1, k_tile, Nh), lambda j, k: (j, k, 0)),
                pl.BlockSpec((1, 1, Nh), lambda j, k: (j, 0, 0)),
                pl.BlockSpec((1, Nh, O), lambda j, k: (j, 0, 0)),
            ],
            out_specs=pl.BlockSpec((1, B, O), lambda j, k: (j, 0, 0)),
            scratch_shapes=[pltpu.VMEM((B, Nh), jnp.float32)],
        ),
        compiler_params=pltpu.CompilerParams(
            dimension_semantics=("parallel", "arbitrary")),
    )(xf, w1, b1, w2)


# ---------------------------------------------------------------------------
# JAX glue: im2col for 3x3 stride-1 pad-1 conv, column order (ky, kx, cin).
# ---------------------------------------------------------------------------
def _im2col_3x3_same(x_nhwc):
    B, H, W, C = x_nhwc.shape
    xp = jnp.pad(x_nhwc, ((0, 0), (1, 1), (1, 1), (0, 0)))
    cols = [xp[:, ky:ky + H, kx:kx + W, :] for ky in range(3) for kx in range(3)]
    patches = jnp.stack(cols, axis=3)                  # (B, H, W, 9, C)
    return patches.reshape(B * H * W, 9 * C)


# ---------------------------------------------------------------------------
# Parameters (PyTorch-default-style init) and one-time kernel-ready preparation.
# ---------------------------------------------------------------------------
def init_params(key):
    ks = jax.random.split(key, 8)

    def unif(k, shape, fan_in):
        bound = 1.0 / jnp.sqrt(jnp.float32(fan_in))
        return jax.random.uniform(k, shape, jnp.float32, -bound, bound)

    return {
        "conv1_w": unif(ks[0], (16, 1, 3, 3), 1 * 9),
        "conv1_b": unif(ks[1], (16,), 1 * 9),
        "conv2_w": unif(ks[2], (32, 16, 3, 3), 16 * 9),
        "conv2_b": unif(ks[3], (32,), 16 * 9),
        "fc1_w": unif(ks[4], (128, 32 * 28 * 28), 32 * 28 * 28),
        "fc1_b": unif(ks[5], (128,), 32 * 28 * 28),
        "fc2_w": unif(ks[6], (10, 128), 128),
        "fc2_b": unif(ks[7], (10,), 128),
    }


def _pad_cols(a, n):
    return jnp.pad(a, ((0, 0), (0, n - a.shape[1])))


def prepare_params(p):
    """One-time layout prep: conv weights as (9*Cin, 128) lane-dense matrices (padded bias
    = 0 so ReLU keeps padded lanes at exactly 0), fc1 rows permuted to the activations'
    (h, w, c) flatten order and split into two 64-column halves, fc2 split to match."""
    w1 = jnp.transpose(p["conv1_w"], (2, 3, 1, 0)).reshape(9 * 1, 16)      # rows = (ky,kx,cin)
    w1 = _pad_cols(w1, LANE)
    b1 = jnp.pad(p["conv1_b"], (0, LANE - 16))

    w2 = jnp.transpose(p["conv2_w"], (2, 3, 1, 0)).reshape(9 * 16, 32)
    w2 = _pad_cols(w2, LANE)
    b2 = jnp.pad(p["conv2_b"], (0, LANE - 32))

    # fc1: PyTorch flatten order is (c, h, w); our activations flatten as (h, w, c).
    w_fc1 = p["fc1_w"].reshape(128, 32, 28, 28)                             # (out, c, h, w)
    w_fc1 = jnp.transpose(w_fc1, (2, 3, 1, 0)).reshape(28 * 28 * 32, 128)   # (hwc, out)
    w_fc1 = jnp.transpose(w_fc1.reshape(28 * 28 * 32, 2, 64), (1, 0, 2))    # (2, 25088, 64)
    b_fc1 = p["fc1_b"].reshape(2, 1, 64)

    w_fc2 = jnp.transpose(p["fc2_w"], (1, 0)).reshape(2, 64, 10)            # (2, 64, 10)
    b_fc2 = p["fc2_b"]

    return {"conv1_w": w1, "conv1_b": b1, "conv2_w": w2, "conv2_b": b2,
            "fc1_w": w_fc1, "fc1_b": b_fc1, "fc2_w": w_fc2, "fc2_b": b_fc2}


# ---------------------------------------------------------------------------
# Forward pass.
# ---------------------------------------------------------------------------
def conv_nn_forward(prep, x_nchw):
    B = x_nchw.shape[0]
    x = jnp.transpose(x_nchw, (0, 2, 3, 1))                              # (B,28,28,1)

    p1 = _im2col_3x3_same(x)                                             # (B*784, 9)
    y1 = conv_matmul_bias_relu(p1, prep["conv1_w"], prep["conv1_b"])     # (B*784, 128)

    y1 = y1.reshape(B, 28, 28, LANE)[..., :16]                           # (B,28,28,16)
    p2 = _im2col_3x3_same(y1)                                            # (B*784, 144)
    y2 = conv_matmul_bias_relu(p2, prep["conv2_w"], prep["conv2_b"])     # (B*784, 128)

    xf = y2[:, :32].reshape(B, 28 * 28 * 32)                             # (B, 25088) (h,w,c)
    part = fc1_relu_fc2_partial(xf, prep["fc1_w"], prep["fc1_b"],
                                prep["fc2_w"], k_tile=12544)             # (2, B, 10)
    return part.sum(axis=0) + prep["fc2_b"]


def conv_nn_reference(params, x_nchw):
    """Pure-JAX (XLA) reference of the same forward pass, for a correctness check."""
    def conv(x, w, b):
        y = lax.conv_general_dilated(x, w, (1, 1), ((1, 1), (1, 1)),
                                     dimension_numbers=("NCHW", "OIHW", "NCHW"))
        return jnp.maximum(y + b[None, :, None, None], 0.0)

    x = conv(x_nchw, params["conv1_w"], params["conv1_b"])
    x = conv(x, params["conv2_w"], params["conv2_b"])
    x = x.reshape(x.shape[0], -1)
    x = jnp.maximum(x @ params["fc1_w"].T + params["fc1_b"], 0.0)
    return x @ params["fc2_w"].T + params["fc2_b"]


if __name__ == "__main__":
    key = jax.random.PRNGKey(0)
    pkey, xkey = jax.random.split(key)
    params = init_params(pkey)
    prep = prepare_params(params)
    # MNIST-shaped input (fc1 = 32*28*28 forces H=W=28, C=1); small batch = 2.
    x = jax.random.normal(xkey, (2, 1, 28, 28), jnp.float32)

    fwd = jax.jit(conv_nn_forward)
    out = jax.block_until_ready(fwd(prep, x))
    ref = jax.block_until_ready(conv_nn_reference(params, x))
    assert out.shape == (2, 10), out.shape
    assert jnp.allclose(out, ref, atol=2e-3, rtol=2e-3), \
        float(jnp.max(jnp.abs(out - ref)))
    print("KERNEL_OK")
</pallas_src>

<mosaic_0001>
module attributes {stable_mosaic.version = 11 : i64} {
  func.func @_conv_mm_kernel(%arg0: i32, %arg1: memref<784x9xf32, #tpu.memory_space<vmem>>, %arg2: memref<9x128xf32, #tpu.memory_space<vmem>>, %arg3: memref<1x128xf32, #tpu.memory_space<vmem>>, %arg4: memref<784x128xf32, #tpu.memory_space<vmem>>) attributes {dimension_semantics = [#tpu.dimension_semantics<parallel>], iteration_bounds = array<i64: 2>, scalar_prefetch = 0 : i64, scratch_operands = 0 : i64, tpu.core_type = #tpu.core_type<tc>, window_params = [{transform_indices = @transform_0, window_bounds = array<i64: 784, 9>}, {pipeline_mode = #tpu.pipeline_mode<synchronous>, transform_indices = @transform_1, window_bounds = array<i64: 9, 128>}, {pipeline_mode = #tpu.pipeline_mode<synchronous>, transform_indices = @transform_2, window_bounds = array<i64: 1, 128>}, {transform_indices = @transform_3, window_bounds = array<i64: 784, 128>}]} {
    %c0 = arith.constant 0 : index
    %c0_0 = arith.constant 0 : index
    %0 = vector.load %arg1[%c0, %c0_0] : memref<784x9xf32, #tpu.memory_space<vmem>>, vector<784x9xf32>
    %c0_1 = arith.constant 0 : index
    %c0_2 = arith.constant 0 : index
    %1 = vector.load %arg2[%c0_1, %c0_2] : memref<9x128xf32, #tpu.memory_space<vmem>>, vector<9x128xf32>
    %cst = arith.constant dense<0.000000e+00> : vector<784x128xf32>
    %2 = tpu.matmul %0, %1, %cst {dimension_numbers = #tpu.dot_dimension_numbers<[1], [0], [0], [1], [0, 0, 1, 1], [], []>} : vector<784x9xf32>, vector<9x128xf32>, vector<784x128xf32> -> vector<784x128xf32>
    %c0_3 = arith.constant 0 : index
    %c0_4 = arith.constant 0 : index
    %3 = vector.load %arg3[%c0_3, %c0_4] : memref<1x128xf32, #tpu.memory_space<vmem>>, vector<1x128xf32>
    %4 = vector.broadcast %3 : vector<1x128xf32> to vector<784x128xf32>
    %5 = arith.addf %2, %4 : vector<784x128xf32>
    %cst_5 = arith.constant 0.000000e+00 : f32
    %6 = vector.broadcast %cst_5 : f32 to vector<784x128xf32>
    %7 = arith.maximumf %5, %6 : vector<784x128xf32>
    %c0_6 = arith.constant 0 : index
    %c0_7 = arith.constant 0 : index
    %8 = vector.load %arg4[%c0_6, %c0_7] : memref<784x128xf32, #tpu.memory_space<vmem>>, vector<784x128xf32>
    tpu.vector_store %arg4[%c0_6, %c0_7], %7 {strides = array<i32>} : memref<784x128xf32, #tpu.memory_space<vmem>>, vector<784x128xf32>,
    return
  }
  func.func @transform_0(%arg0: i32) -> (i32, i32) {
    %c0_i32 = arith.constant 0 : i32
    %c0_i32_0 = arith.constant 0 : i32
    return %arg0, %c0_i32 : i32, i32
  }
  func.func @transform_1(%arg0: i32) -> (i32, i32) {
    %c0_i32 = arith.constant 0 : i32
    %c0_i32_0 = arith.constant 0 : i32
    %c0_i32_1 = arith.constant 0 : i32
    return %c0_i32, %c0_i32_0 : i32, i32
  }
  func.func @transform_2(%arg0: i32) -> (i32, i32) {
    %c0_i32 = arith.constant 0 : i32
    %c0_i32_0 = arith.constant 0 : i32
    %c0_i32_1 = arith.constant 0 : i32
    return %c0_i32, %c0_i32_0 : i32, i32
  }
  func.func @transform_3(%arg0: i32) -> (i32, i32) {
    %c0_i32 = arith.constant 0 : i32
    %c0_i32_0 = arith.constant 0 : i32
    return %arg0, %c0_i32 : i32, i32
  }
}

module attributes {stable_mosaic.version = 11 : i64} {
  func.func @_conv_mm_kernel(%arg0: i32, %arg1: memref<784x144xf32, #tpu.memory_space<vmem>>, %arg2: memref<144x128xf32, #tpu.memory_space<vmem>>, %arg3: memref<1x128xf32, #tpu.memory_space<vmem>>, %arg4: memref<784x128xf32, #tpu.memory_space<vmem>>) attributes {dimension_semantics = [#tpu.dimension_semantics<parallel>], iteration_bounds = array<i64: 2>, scalar_prefetch = 0 : i64, scratch_operands = 0 : i64, tpu.core_type = #tpu.core_type<tc>, window_params = [{transform_indices = @transform_0, window_bounds = array<i64: 784, 144>}, {pipeline_mode = #tpu.pipeline_mode<synchronous>, transform_indices = @transform_1, window_bounds = array<i64: 144, 128>}, {pipeline_mode = #tpu.pipeline_mode<synchronous>, transform_indices = @transform_2, window_bounds = array<i64: 1, 128>}, {transform_indices = @transform_3, window_bounds = array<i64: 784, 128>}]} {
    %c0 = arith.constant 0 : index
    %c0_0 = arith.constant 0 : index
    %0 = vector.load %arg1[%c0, %c0_0] : memref<784x144xf32, #tpu.memory_space<vmem>>, vector<784x144xf32>
    %c0_1 = arith.constant 0 : index
    %c0_2 = arith.constant 0 : index
    %1 = vector.load %arg2[%c0_1, %c0_2] : memref<144x128xf32, #tpu.memory_space<vmem>>, vector<144x128xf32>
    %cst = arith.constant dense<0.000000e+00> : vector<784x128xf32>
    %2 = tpu.matmul %0, %1, %cst {dimension_numbers = #tpu.dot_dimension_numbers<[1], [0], [0], [1], [0, 0, 1, 1], [], []>} : vector<784x144xf32>, vector<144x128xf32>, vector<784x128xf32> -> vector<784x128xf32>
    %c0_3 = arith.constant 0 : index
    %c0_4 = arith.constant 0 : index
    %3 = vector.load %arg3[%c0_3, %c0_4] : memref<1x128xf32, #tpu.memory_space<vmem>>, vector<1x128xf32>
    %4 = vector.broadcast %3 : vector<1x128xf32> to vector<784x128xf32>
    %5 = arith.addf %2, %4 : vector<784x128xf32>
    %cst_5 = arith.constant 0.000000e+00 : f32
    %6 = vector.broadcast %cst_5 : f32 to vector<784x128xf32>
    %7 = arith.maximumf %5, %6 : vector<784x128xf32>
    %c0_6 = arith.constant 0 : index
    %c0_7 = arith.constant 0 : index
    %8 = vector.load %arg4[%c0_6, %c0_7] : memref<784x128xf32, #tpu.memory_space<vmem>>, vector<784x128xf32>
    tpu.vector_store %arg4[%c0_6, %c0_7], %7 {strides = array<i32>} : memref<784x128xf32, #tpu.memory_space<vmem>>, vector<784x128xf32>,
    return
  }
  func.func @transform_0(%arg0: i32) -> (i32, i32) {
    %c0_i32 = arith.constant 0 : i32
    %c0_i32_0 = arith.constant 0 : i32
    return %arg0, %c0_i32 : i32, i32
  }
  func.func @transform_1(%arg0: i32) -> (i32, i32) {
    %c0_i32 = arith.constant 0 : i32
    %c0_i32_0 = arith.constant 0 : i32
    %c0_i32_1 = arith.constant 0 : i32
    return %c0_i32, %c0_i32_0 : i32, i32
  }
  func.func @transform_2(%arg0: i32) -> (i32, i32) {
    %c0_i32 = arith.constant 0 : i32
    %c0_i32_0 = arith.constant 0 : i32
    %c0_i32_1 = arith.constant 0 : i32
    return %c0_i32, %c0_i32_0 : i32, i32
  }
  func.func @transform_3(%arg0: i32) -> (i32, i32) {
    %c0_i32 = arith.constant 0 : i32
    %c0_i32_0 = arith.constant 0 : i32
    return %arg0, %c0_i32 : i32, i32
  }
}

module attributes {stable_mosaic.version = 11 : i64} {
  func.func @_fc_fused_kernel(%arg0: i32, %arg1: i32, %arg2: memref<2x12544xf32, #tpu.memory_space<vmem>>, %arg3: memref<1x12544x64xf32, #tpu.memory_space<vmem>>, %arg4: memref<1x1x64xf32, #tpu.memory_space<vmem>>, %arg5: memref<1x64x10xf32, #tpu.memory_space<vmem>>, %arg6: memref<1x2x10xf32, #tpu.memory_space<vmem>>, %arg7: memref<2x64xf32, #tpu.memory_space<vmem>>) attributes {dimension_semantics = [#tpu.dimension_semantics<parallel>, #tpu.dimension_semantics<arbitrary>], iteration_bounds = array<i64: 2, 2>, scalar_prefetch = 0 : i64, scratch_operands = 1 : i64, tpu.core_type = #tpu.core_type<tc>, window_params = [{transform_indices = @transform_0, window_bounds = array<i64: 2, 12544>}, {transform_indices = @transform_1, window_bounds = array<i64: 1, 12544, 64>}, {transform_indices = @transform_2, window_bounds = array<i64: 1, 1, 64>}, {transform_indices = @transform_3, window_bounds = array<i64: 1, 64, 10>}, {transform_indices = @transform_4, window_bounds = array<i64: 1, 2, 10>}]} {
    %c0_i32 = arith.constant 0 : i32
    %0 = arith.cmpi eq, %arg1, %c0_i32 : i32
    %1 = arith.extui %0 : i1 to i32
    %c0_i32_0 = arith.constant 0 : i32
    %2 = arith.cmpi ne, %1, %c0_i32_0 : i32
    scf.if %2 {
      %cst_10 = arith.constant 0.000000e+00 : f32
      %13 = vector.broadcast %cst_10 : f32 to vector<2x64xf32>
      %c0_11 = arith.constant 0 : index
      %c0_12 = arith.constant 0 : index
      %14 = vector.load %arg7[%c0_11, %c0_12] : memref<2x64xf32, #tpu.memory_space<vmem>>, vector<2x64xf32>
      tpu.vector_store %arg7[%c0_11, %c0_12], %13 {strides = array<i32>} : memref<2x64xf32, #tpu.memory_space<vmem>>, vector<2x64xf32>,
    } else {
    }
    %c0 = arith.constant 0 : index
    %c0_1 = arith.constant 0 : index
    %3 = vector.load %arg7[%c0, %c0_1] : memref<2x64xf32, #tpu.memory_space<vmem>>, vector<2x64xf32>
    %c0_2 = arith.constant 0 : index
    %c0_3 = arith.constant 0 : index
    %4 = vector.load %arg2[%c0_2, %c0_3] : memref<2x12544xf32, #tpu.memory_space<vmem>>, vector<2x12544xf32>
    %c0_4 = arith.constant 0 : index
    %c0_5 = arith.constant 0 : index
    %c0_6 = arith.constant 0 : index
    %5 = vector.load %arg3[%c0_4, %c0_5, %c0_6] : memref<1x12544x64xf32, #tpu.memory_space<vmem>>, vector<1x12544x64xf32>
    %6 = vector.shape_cast %5 : vector<1x12544x64xf32> to vector<12544x64xf32>
    %cst = arith.constant dense<0.000000e+00> : vector<2x64xf32>
    %7 = tpu.matmul %4, %6, %cst {dimension_numbers = #tpu.dot_dimension_numbers<[1], [0], [0], [1], [0, 0, 1, 1], [], []>} : vector<2x12544xf32>, vector<12544x64xf32>, vector<2x64xf32> -> vector<2x64xf32>
    %8 = arith.addf %3, %7 : vector<2x64xf32>
    %c0_7 = arith.constant 0 : index
    %c0_8 = arith.constant 0 : index
    %9 = vector.load %arg7[%c0_7, %c0_8] : memref<2x64xf32, #tpu.memory_space<vmem>>, vector<2x64xf32>
    tpu.vector_store %arg7[%c0_7, %c0_8], %8 {strides = array<i32>} : memref<2x64xf32, #tpu.memory_space<vmem>>, vector<2x64xf32>,
    %c1_i32 = arith.constant 1 : i32
    %10 = arith.cmpi eq, %arg1, %c1_i32 : i32
    %11 = arith.extui %10 : i1 to i32
    %c0_i32_9 = arith.constant 0 : i32
    %12 = arith.cmpi ne, %11, %c0_i32_9 : i32
    scf.if %12 {
      %c0_10 = arith.constant 0 : index
      %c0_11 = arith.constant 0 : index
      %13 = vector.load %arg7[%c0_10, %c0_11] : memref<2x64xf32, #tpu.memory_space<vmem>>, vector<2x64xf32>
      %c0_12 = arith.constant 0 : index
      %c0_13 = arith.constant 0 : index
      %c0_14 = arith.constant 0 : index
      %14 = vector.load %arg4[%c0_12, %c0_13, %c0_14] : memref<1x1x64xf32, #tpu.memory_space<vmem>>, vector<1x1x64xf32>
      %15 = vector.shape_cast %14 : vector<1x1x64xf32> to vector<1x64xf32>
      %16 = vector.broadcast %15 : vector<1x64xf32> to vector<2x64xf32>
      %17 = arith.addf %13, %16 : vector<2x64xf32>
      %cst_15 = arith.constant 0.000000e+00 : f32
      %18 = vector.broadcast %cst_15 : f32 to vector<2x64xf32>
      %19 = arith.maximumf %17, %18 : vector<2x64xf32>
      %c0_16 = arith.constant 0 : index
      %c0_17 = arith.constant 0 : index
      %c0_18 = arith.constant 0 : index
      %20 = vector.load %arg5[%c0_16, %c0_17, %c0_18] : memref<1x64x10xf32, #tpu.memory_space<vmem>>, vector<1x64x10xf32>
      %21 = vector.shape_cast %20 : vector<1x64x10xf32> to vector<64x10xf32>
      %cst_19 = arith.constant dense<0.000000e+00> : vector<2x10xf32>
      %22 = tpu.matmul %19, %21, %cst_19 {dimension_numbers = #tpu.dot_dimension_numbers<[1], [0], [0], [1], [0, 0, 1, 1], [], []>} : vector<2x64xf32>, vector<64x10xf32>, vector<2x10xf32> -> vector<2x10xf32>
      %c0_20 = arith.constant 0 : index
      %c0_21 = arith.constant 0 : index
      %c0_22 = arith.constant 0 : index
      %23 = vector.load %arg6[%c0_20, %c0_21, %c0_22] : memref<1x2x10xf32, #tpu.memory_space<vmem>>, vector<1x2x10xf32>
      %24 = vector.shape_cast %23 : vector<1x2x10xf32> to vector<2x10xf32>
      %25 = vector.shape_cast %22 : vector<2x10xf32> to vector<1x2x10xf32>
      tpu.vector_store %arg6[%c0_20, %c0_21, %c0_22], %25 {strides = array<i32>} : memref<1x2x10xf32, #tpu.memory_space<vmem>>, vector<1x2x10xf32>,
    } else {
    }
    return
  }
  func.func @transform_0(%arg0: i32, %arg1: i32) -> (i32, i32) {
    %c0_i32 = arith.constant 0 : i32
    %c0_i32_0 = arith.constant 0 : i32
    return %c0_i32, %arg1 : i32, i32
  }
  func.func @transform_1(%arg0: i32, %arg1: i32) -> (i32, i32, i32) {
    %c0_i32 = arith.constant 0 : i32
    %c0_i32_0 = arith.constant 0 : i32
    return %arg0, %arg1, %c0_i32 : i32, i32, i32
  }
  func.func @transform_2(%arg0: i32, %arg1: i32) -> (i32, i32, i32) {
    %c0_i32 = arith.constant 0 : i32
    %c0_i32_0 = arith.constant 0 : i32
    %c0_i32_1 = arith.constant 0 : i32
    return %arg0, %c0_i32, %c0_i32_0 : i32, i32, i32
  }
  func.func @transform_3(%arg0: i32, %arg1: i32) -> (i32, i32, i32) {
    %c0_i32 = arith.constant 0 : i32
    %c0_i32_0 = arith.constant 0 : i32
    %c0_i32_1 = arith.constant 0 : i32
    return %arg0, %c0_i32, %c0_i32_0 : i32, i32, i32
  }
  func.func @transform_4(%arg0: i32, %arg1: i32) -> (i32, i32, i32) {
    %c0_i32 = arith.constant 0 : i32
    %c0_i32_0 = arith.constant 0 : i32
    %c0_i32_1 = arith.constant 0 : i32
    return %arg0, %c0_i32, %c0_i32_0 : i32, i32, i32
  }
}

</mosaic_0001>

<llo_original>
// kernel: conv_nn_forward.3
$region0: #{conv_nn_forward.3}
  #allocation0 [shape = 'u32[]', space=smem, size = 0x4, offset = 0x4, fixed_abs, tag = 'smem constant byte address 0x4 - core index']
  #allocation1 [shape = 'u32[144,128]{1,0:T(1,128)}', space=vmem, size = 0x12000, scoped, tag = 'internal scratch']
  %s0 = inlined_call_operand.vmem [shape: f32[1568,9], index: 0, kind: input, shape index: {}]
  %s1 = inlined_call_operand.hbm [shape: f32[9,128], index: 1, kind: input, shape index: {}]
  %s2 = inlined_call_operand.hbm [shape: f32[1,128], index: 2, kind: input, shape index: {}]
  %s3 = inlined_call_operand.vmem [shape: f32[1568,128], index: 3, kind: output, shape index: {}]
  %s4 = sld [smem:[#allocation0]]
  $region53: #{conv_nn_forward.3} parent=0
    _
  %s6 = ssub.s32 1, %s4
  %s7 = scalar_select 0, %s6, %s4
  $region1: #{conv_nn_forward.3} parent=0
    #allocation2 [shape = 'u8[8192]{0}', space=vmem, size = 0x2000, scoped, tag = 'input window, operand 1, single buffered']
    #allocation3 [shape = 's32[2]{0}', space=sflag, size = 0x8, scoped, tag = 'scoped memory for conv_nn_forward.3']
    #allocation4 [shape = 'u8[512]{0}', space=vmem, size = 0x400, scoped, tag = 'input window, operand 2, single buffered']
    #allocation5 [shape = 's32[1]{0}', space=sflag, size = 0x4, scoped, tag = 'scoped memory for conv_nn_forward.3']
    %8 = vsyncpa [#allocation3], 0
    %9 = vsyncpa [#allocation5], 0
    loop: start=0, step=1, limit=4
    $region2: #{conv_nn_forward.3} parent=1 // loop_pre_header
      _
    $region3: #{conv_nn_forward.3} parent=1 // loop_header
      %s11 = sphi 0, %s15
      %p12 = scmp.ge.s32.totalorder %s11, 4
      %s21 = sphi 0, %s23
      %s24 = sphi 0, %s21
      %s25 = sphi 0, %s24
      %s41 = sphi 0, %s25
      %s45 = sphi 0, %s45
      %s47 = sphi 0, %s45
      %s48 = sphi 0, %s47
      %s62 = sphi 0, %s48
      %s66 = sphi 0, %s66
      %s68 = sphi 0, %s66
      %s69 = sphi 0, %s68
      %s83 = sphi 0, %s69
      %s89 = sphi 0, %s91
      %s92 = sphi 0, %s89
      %s93 = sphi 0, %s92
      %s109 = sphi 0, %s93
    $region4: #{conv_nn_forward.3} parent=1 // loop_header_branch
      %14 = sbr.rel (%p12) target = $region8
    $region5: #{conv_nn_forward.3} parent=1 // loop_body
      %s16 = ssub.s32 %s11, 1
      %s17 = ssub.s32 %s11, 2
      %s18 = sadd.s32 %s11, 1
      %s19 = ssub.s32 %s11, %s18
      %p20 = scmp.eq.s32.totalorder %s19, 0
      %s22 = sadd.s32 %s21, 1
      %s23 = scalar_select %p20, %s21, %s22
      %p26 = pneg %p20
      %p27 = scmp.eq.s32.totalorder %s11, 1
      %p28 = por %p26, %p27
      %p29 = scmp.ne.s32.totalorder %s21, %s24
      %p30 = scmp.eq.s32.totalorder %s11, 0
      %p31 = por %p29, %p30
      %p32 = scmp.ne.s32.totalorder %s21, %s24
      %p33 = scmp.eq.s32.totalorder %s16, 1
      %p34 = por %p32, %p33
      %p35 = scmp.ne.s32.totalorder %s24, %s25
      %p36 = scmp.eq.s32.totalorder %s16, 0
      %p37 = por %p35, %p36
      %p38 = scmp.ne.s32.totalorder %s24, %s25
      %p39 = scmp.eq.s32.totalorder %s17, 1
      %p40 = por %p38, %p39
      %p42 = scmp.ne.s32.totalorder %s25, %s41
      %p43 = scmp.eq.s32.totalorder %s17, 0
      %p44 = por %p42, %p43
      %s46 = sadd.s32 %s45, 1
      %p49 = scmp.eq.s32.totalorder %s11, 1
      %p50 = scmp.ne.s32.totalorder %s45, %s47
      %p51 = scmp.eq.s32.totalorder %s11, 0
      %p52 = por %p50, %p51
      %p53 = scmp.ne.s32.totalorder %s45, %s47
      %p54 = scmp.eq.s32.totalorder %s16, 1
      %p55 = por %p53, %p54
      %p56 = scmp.ne.s32.totalorder %s47, %s48
      %p57 = scmp.eq.s32.totalorder %s16, 0
      %p58 = por %p56, %p57
      %p59 = scmp.ne.s32.totalorder %s47, %s48
      %p60 = scmp.eq.s32.totalorder %s17, 1
      %p61 = por %p59, %p60
      %p63 = scmp.ne.s32.totalorder %s48, %s62
      %p64 = scmp.eq.s32.totalorder %s17, 0
      %p65 = por %p63, %p64
      %s67 = sadd.s32 %s66, 1
      %p70 = scmp.eq.s32.totalorder %s11, 1
      %p71 = scmp.ne.s32.totalorder %s66, %s68
      %p72 = scmp.eq.s32.totalorder %s11, 0
      %p73 = por %p71, %p72
      %p74 = scmp.ne.s32.totalorder %s66, %s68
      %p75 = scmp.eq.s32.totalorder %s16, 1
      %p76 = por %p74, %p75
      %p77 = scmp.ne.s32.totalorder %s68, %s69
      %p78 = scmp.eq.s32.totalorder %s16, 0
      %p79 = por %p77, %p78
      %p80 = scmp.ne.s32.totalorder %s68, %s69
      %p81 = scmp.eq.s32.totalorder %s17, 1
      %p82 = por %p80, %p81
      %p84 = scmp.ne.s32.totalorder %s69, %s83
      %p85 = scmp.eq.s32.totalorder %s17, 0
      %p86 = por %p84, %p85
      %s87 = ssub.s32 %s11, %s18
      %p88 = scmp.eq.s32.totalorder %s87, 0
      %s90 = sadd.s32 %s89, 1
      %s91 = scalar_select %p88, %s89, %s90
      %p94 = pneg %p88
      %p95 = scmp.eq.s32.totalorder %s11, 1
      %p96 = por %p94, %p95
      %p97 = scmp.ne.s32.totalorder %s89, %s92
      %p98 = scmp.eq.s32.totalorder %s11, 0
      %p99 = por %p97, %p98
      %p100 = scmp.ne.s32.totalorder %s89, %s92
      %p101 = scmp.eq.s32.totalorder %s16, 1
      %p102 = por %p100, %p101
      %p103 = scmp.ne.s32.totalorder %s92, %s93
      %p104 = scmp.eq.s32.totalorder %s16, 0
      %p105 = por %p103, %p104
      %p106 = scmp.ne.s32.totalorder %s92, %s93
      %p107 = scmp.eq.s32.totalorder %s17, 1
      %p108 = por %p106, %p107
      %p110 = scmp.ne.s32.totalorder %s93, %s109
      %p111 = scmp.eq.s32.totalorder %s17, 0
      %p112 = por %p110, %p111
      %p113 = scmp.le.s32.totalorder 1, %s11
      %p114 = scmp.lt.s32.totalorder %s11, 3
      %p115 = pnand %p113, %p114
      %p116 = pneg %p115
      // Predicated region
      $region9: #{conv_nn_forward.3} parent=5 // pred_check
        _
      $region10: #{conv_nn_forward.3} parent=5 // pred_check_branch
        %118 = sbr.rel (%p115) target = $region12
      $region11: #{conv_nn_forward.3} parent=5 // pred_region
        %s119 = ssub.s32 %s11, 1
        // Predicated region
        $region13: #{conv_nn_forward.3} parent=11 // pred_check
          %p120 = pneg %p58
        $region14: #{conv_nn_forward.3} parent=11 // pred_check_branch
          %122 = sbr.rel (%p120) target = $region16
        $region15: #{conv_nn_forward.3} parent=11 // pred_region
          %s124 = ssub.s32 256, 256
          %125 = vsyncadd [#allocation3], %s124
          %s126 = sshll.u32 [#allocation2], 4
          %s127 = int_to_ptr.vmem [resolvable:$true] %s126
          %132 = dma.hbm_to_vmem [thread:$0]  %s1, 256, %s127, [#allocation3], 128, 128, 8
        $region16: #{conv_nn_forward.3} parent=11 // pred_fallthru
          _
        // Predicated region
        $region17: #{conv_nn_forward.3} parent=11 // pred_check
          %p133 = pneg %p79
        $region18: #{conv_nn_forward.3} parent=11 // pred_check_branch
          %135 = sbr.rel (%p133) target = $region20
        $region19: #{conv_nn_forward.3} parent=11 // pred_region
          %s137 = ssub.s32 16, 16
          %138 = vsyncadd [#allocation5], %s137
          %s140 = sshll.u32 [#allocation4], 4
          %s141 = int_to_ptr.vmem [resolvable:$true] %s140
          %143 = dma.hbm_to_vmem [thread:$0]  %s2, 16, %s141, [#allocation5]
        $region20: #{conv_nn_forward.3} parent=11 // pred_fallthru
          _
      $region12: #{conv_nn_forward.3} parent=5 // pred_fallthru
        _
      %p144 = scmp.lt.s32.totalorder %s11, 2
      // Predicated region
      $region21: #{conv_nn_forward.3} parent=5 // pred_check
        %p145 = pneg %p144
      $region22: #{conv_nn_forward.3} parent=5 // pred_check_branch
        %147 = sbr.rel (%p145) target = $region24
      $region23: #{conv_nn_forward.3} parent=5 // pred_region
        // Predicated region
        $region25: #{conv_nn_forward.3} parent=23 // pred_check
          %p148 = pneg %p31
        $region26: #{conv_nn_forward.3} parent=23 // pred_check_branch
          %150 = sbr.rel (%p148) target = $region28
        $region27: #{conv_nn_forward.3} parent=23 // pred_region
          %s151 = smul.u32 98, %s11
          %p152 = scmp.lt.s32.totalorder %s151, 195
          %s153 = scalar_select %p152, %s151, 195
          %s154 = smul.addr %s153, 8
          %s155 = scalar_lea.vmem %s0, %s154
          %s156 = smul.u32 98, %s11
        $region28: #{conv_nn_forward.3} parent=23 // pred_fallthru
          _
      $region24: #{conv_nn_forward.3} parent=5 // pred_fallthru
        _
      %p157 = scmp.le.s32.totalorder 1, %s11
      %p158 = scmp.lt.s32.totalorder %s11, 3
      %p159 = pnand %p157, %p158
      %p160 = pneg %p159
      // Predicated region
      $region29: #{conv_nn_forward.3} parent=5 // pred_check
        _
      $region30: #{conv_nn_forward.3} parent=5 // pred_check_branch
        %162 = sbr.rel (%p159) target = $region32
      $region31: #{conv_nn_forward.3} parent=5 // pred_region
        %s163 = ssub.s32 %s11, 1
        // Predicated region
        $region33: #{conv_nn_forward.3} parent=31 // pred_check
          %p164 = pneg %p58
        $region34: #{conv_nn_forward.3} parent=31 // pred_check_branch
          %166 = sbr.rel (%p164) target = $region36
        $region35: #{conv_nn_forward.3} parent=31 // pred_region
          %167 = dma.done [#allocation3], 256
        $region36: #{conv_nn_forward.3} parent=31 // pred_fallthru
          _
        // Predicated region
        $region37: #{conv_nn_forward.3} parent=31 // pred_check
          %p168 = pneg %p79
        $region38: #{conv_nn_forward.3} parent=31 // pred_check_branch
          %170 = sbr.rel (%p168) target = $region40
        $region39: #{conv_nn_forward.3} parent=31 // pred_region
          %171 = dma.done [#allocation5], 16
        $region40: #{conv_nn_forward.3} parent=31 // pred_fallthru
          _
        %s172 = smul.u32 98, %s16
        %p173 = scmp.lt.s32.totalorder %s172, 195
        %s174 = scalar_select %p173, %s172, 195
        %s175 = smul.addr %s174, 8
        %s176 = scalar_lea.vmem %s0, %s175
        %p177 = pneg %p37
        %p178 = pneg %p34
        %p179 = pneg %p58
        %p180 = pneg %p55
        %p181 = pneg %p79
        %p182 = pneg %p76
        %p183 = pneg %p105
        %p184 = pneg %p102
        %s185 = smul.u32 98, %s16
        %p186 = scmp.lt.s32.totalorder %s185, 195
        %s187 = scalar_select %p186, %s185, 195
        %s188 = smul.addr %s187, 8
        %s189 = scalar_lea.vmem %s3, %s188
        %s190 = smul.u32 98, %s16
        %p191 = scmp.lt.s32.totalorder %s190, 195
        %s192 = scalar_select %p191, %s190, 195
        %s193 = smul.addr %s192, 8
        %s194 = scalar_lea.vmem %s0, %s193
        %s195 = smul.u32 98, %s16
        %s196 = smul.u32 98, %s16
        %p197 = scmp.lt.s32.totalorder %s196, 195
        %s198 = scalar_select %p197, %s196, 195
        %s199 = smul.addr %s198, 8
        %s200 = scalar_lea.vmem %s3, %s199
        %s201 = smul.u32 98, %s16
        %v202 = vld [vmem:[%s194] sm:$0xff]
        %v203 = vld [vmem:[%s194 + $0x8] sm:$0xff]
        %v204 = vld [vmem:[%s194 + $0x10] sm:$0xff]
        %v205 = vld [vmem:[%s194 + $0x18] sm:$0xff]
        %v206 = vld [vmem:[%s194 + $0x20] sm:$0xff]
        %v207 = vld [vmem:[%s194 + $0x28] sm:$0xff]
        %v208 = vld [vmem:[%s194 + $0x30] sm:$0xff]
        %v209 = vld [vmem:[%s194 + $0x38] sm:$0xff]
        %v210 = vld [vmem:[%s194 + $0x40] sm:$0xff]
        %v211 = vld [vmem:[%s194 + $0x48] sm:$0xff]
        %v212 = vld [vmem:[%s194 + $0x50] sm:$0xff]
        %v213 = vld [vmem:[%s194 + $0x58] sm:$0xff]
        %v214 = vld [vmem:[%s194 + $0x60] sm:$0xff]
        %v215 = vld [vmem:[%s194 + $0x68] sm:$0xff]
        %v216 = vld [vmem:[%s194 + $0x70] sm:$0xff]
        %v217 = vld [vmem:[%s194 + $0x78] sm:$0xff]
        %v218 = vld [vmem:[%s194 + $0x80] sm:$0xff]
        %v219 = vld [vmem:[%s194 + $0x88] sm:$0xff]
        %v220 = vld [vmem:[%s194 + $0x90] sm:$0xff]
        %v221 = vld [vmem:[%s194 + $0x98] sm:$0xff]
        %v222 = vld [vmem:[%s194 + $0xa0] sm:$0xff]
        %v223 = vld [vmem:[%s194 + $0xa8] sm:$0xff]
        %v224 = vld [vmem:[%s194 + $0xb0] sm:$0xff]
        %v225 = vld [vmem:[%s194 + $0xb8] sm:$0xff]
        %v226 = vld [vmem:[%s194 + $0xc0] sm:$0xff]
        %v227 = vld [vmem:[%s194 + $0xc8] sm:$0xff]
        %v228 = vld [vmem:[%s194 + $0xd0] sm:$0xff]
        %v229 = vld [vmem:[%s194 + $0xd8] sm:$0xff]
        %v230 = vld [vmem:[%s194 + $0xe0] sm:$0xff]
        %v231 = vld [vmem:[%s194 + $0xe8] sm:$0xff]
        %v232 = vld [vmem:[%s194 + $0xf0] sm:$0xff]
        %v233 = vld [vmem:[%s194 + $0xf8] sm:$0xff]
        %v234 = vld [vmem:[%s194 + $0x100] sm:$0xff]
        %v235 = vld [vmem:[%s194 + $0x108] sm:$0xff]
        %v236 = vld [vmem:[%s194 + $0x110] sm:$0xff]
        %v237 = vld [vmem:[%s194 + $0x118] sm:$0xff]
        %v238 = vld [vmem:[%s194 + $0x120] sm:$0xff]
        %v239 = vld [vmem:[%s194 + $0x128] sm:$0xff]
        %v240 = vld [vmem:[%s194 + $0x130] sm:$0xff]
        %v241 = vld [vmem:[%s194 + $0x138] sm:$0xff]
        %v242 = vld [vmem:[%s194 + $0x140] sm:$0xff]
        %v243 = vld [vmem:[%s194 + $0x148] sm:$0xff]
        %v244 = vld [vmem:[%s194 + $0x150] sm:$0xff]
        %v245 = vld [vmem:[%s194 + $0x158] sm:$0xff]
        %v246 = vld [vmem:[%s194 + $0x160] sm:$0xff]
        %v247 = vld [vmem:[%s194 + $0x168] sm:$0xff]
        %v248 = vld [vmem:[%s194 + $0x170] sm:$0xff]
        %v249 = vld [vmem:[%s194 + $0x178] sm:$0xff]
        %v250 = vld [vmem:[%s194 + $0x180] sm:$0xff]
        %v251 = vld [vmem:[%s194 + $0x188] sm:$0xff]
        %v252 = vld [vmem:[%s194 + $0x190] sm:$0xff]
        %v253 = vld [vmem:[%s194 + $0x198] sm:$0xff]
        %v254 = vld [vmem:[%s194 + $0x1a0] sm:$0xff]
        %v255 = vld [vmem:[%s194 + $0x1a8] sm:$0xff]
        %v256 = vld [vmem:[%s194 + $0x1b0] sm:$0xff]
        %v257 = vld [vmem:[%s194 + $0x1b8] sm:$0xff]
        %v258 = vld [vmem:[%s194 + $0x1c0] sm:$0xff]
        %v259 = vld [vmem:[%s194 + $0x1c8] sm:$0xff]
        %v260 = vld [vmem:[%s194 + $0x1d0] sm:$0xff]
        %v261 = vld [vmem:[%s194 + $0x1d8] sm:$0xff]
        %v262 = vld [vmem:[%s194 + $0x1e0] sm:$0xff]
        %v263 = vld [vmem:[%s194 + $0x1e8] sm:$0xff]
        %v264 = vld [vmem:[%s194 + $0x1f0] sm:$0xff]
        %v265 = vld [vmem:[%s194 + $0x1f8] sm:$0xff]
        %v266 = vld [vmem:[%s194 + $0x200] sm:$0xff]
        %v267 = vld [vmem:[%s194 + $0x208] sm:$0xff]
        %v268 = vld [vmem:[%s194 + $0x210] sm:$0xff]
        %v269 = vld [vmem:[%s194 + $0x218] sm:$0xff]
        %v270 = vld [vmem:[%s194 + $0x220] sm:$0xff]
        %v271 = vld [vmem:[%s194 + $0x228] sm:$0xff]
        %v272 = vld [vmem:[%s194 + $0x230] sm:$0xff]
        %v273 = vld [vmem:[%s194 + $0x238] sm:$0xff]
        %v274 = vld [vmem:[%s194 + $0x240] sm:$0xff]
        %v275 = vld [vmem:[%s194 + $0x248] sm:$0xff]
        %v276 = vld [vmem:[%s194 + $0x250] sm:$0xff]
        %v277 = vld [vmem:[%s194 + $0x258] sm:$0xff]
        %v278 = vld [vmem:[%s194 + $0x260] sm:$0xff]
        %v279 = vld [vmem:[%s194 + $0x268] sm:$0xff]
        %v280 = vld [vmem:[%s194 + $0x270] sm:$0xff]
        %v281 = vld [vmem:[%s194 + $0x278] sm:$0xff]
        %v282 = vld [vmem:[%s194 + $0x280] sm:$0xff]
        %v283 = vld [vmem:[%s194 + $0x288] sm:$0xff]
        %v284 = vld [vmem:[%s194 + $0x290] sm:$0xff]
        %v285 = vld [vmem:[%s194 + $0x298] sm:$0xff]
        %v286 = vld [vmem:[%s194 + $0x2a0] sm:$0xff]
        %v287 = vld [vmem:[%s194 + $0x2a8] sm:$0xff]
        %v288 = vld [vmem:[%s194 + $0x2b0] sm:$0xff]
        %v289 = vld [vmem:[%s194 + $0x2b8] sm:$0xff]
        %v290 = vld [vmem:[%s194 + $0x2c0] sm:$0xff]
        %v291 = vld [vmem:[%s194 + $0x2c8] sm:$0xff]
        %v292 = vld [vmem:[%s194 + $0x2d0] sm:$0xff]
        %v293 = vld [vmem:[%s194 + $0x2d8] sm:$0xff]
        %v294 = vld [vmem:[%s194 + $0x2e0] sm:$0xff]
        %v295 = vld [vmem:[%s194 + $0x2e8] sm:$0xff]
        %v296 = vld [vmem:[%s194 + $0x2f0] sm:$0xff]
        %v297 = vld [vmem:[%s194 + $0x2f8] sm:$0xff]
        %v298 = vld [vmem:[%s194 + $0x300] sm:$0xff]
        %v299 = vld [vmem:[%s194 + $0x308] sm:$0xff]
        %v300 = vld [vmem:[#allocation2] sm:$0xff]
        %v301 = vld [vmem:[#allocation2 + $0x8] sm:$0x1]
        %v302 = vld [vmem:[#allocation4] sm:$0x1]
        %v304 = vlaneseq
        %v305 = vshrl.u32 %v304, 7
        %v306 = vsub.s32 0, %v305
        %v307 = vrot.slane %v302, %v306
        %vm309 = vcmask 72704
        %v311 = vsel %vm309, %v202, 0
        %v314 = vsel %vm309, %v203, 0
        %v317 = vsel %vm309, %v204, 0
        %v320 = vsel %vm309, %v205, 0
        %v323 = vsel %vm309, %v206, 0
        %v326 = vsel %vm309, %v207, 0
        %v329 = vsel %vm309, %v208, 0
        %v332 = vsel %vm309, %v209, 0
        %v335 = vsel %vm309, %v210, 0
        %v338 = vsel %vm309, %v211, 0
        %v341 = vsel %vm309, %v212, 0
        %v344 = vsel %vm309, %v213, 0
        %v347 = vsel %vm309, %v214, 0
        %v350 = vsel %vm309, %v215, 0
        %v353 = vsel %vm309, %v216, 0
        %v356 = vsel %vm309, %v217, 0
        %v359 = vsel %vm309, %v218, 0
        %v362 = vsel %vm309, %v219, 0
        %v365 = vsel %vm309, %v220, 0
        %v368 = vsel %vm309, %v221, 0
        %v371 = vsel %vm309, %v222, 0
        %v374 = vsel %vm309, %v223, 0
        %v377 = vsel %vm309, %v224, 0
        %v380 = vsel %vm309, %v225, 0
        %v383 = vsel %vm309, %v226, 0
        %v386 = vsel %vm309, %v227, 0
        %v389 = vsel %vm309, %v228, 0
        %v392 = vsel %vm309, %v229, 0
        %v395 = vsel %vm309, %v230, 0
        %v398 = vsel %vm309, %v231, 0
        %v401 = vsel %vm309, %v232, 0
        %v404 = vsel %vm309, %v233, 0
        %v407 = vsel %vm309, %v234, 0
        %v410 = vsel %vm309, %v235, 0
        %v413 = vsel %vm309, %v236, 0
        %v416 = vsel %vm309, %v237, 0
        %v419 = vsel %vm309, %v238, 0
        %v422 = vsel %vm309, %v239, 0
        %v425 = vsel %vm309, %v240, 0
        %v428 = vsel %vm309, %v241, 0
        %v431 = vsel %vm309, %v242, 0
        %v434 = vsel %vm309, %v243, 0
        %v437 = vsel %vm309, %v244, 0
        %v440 = vsel %vm309, %v245, 0
        %v443 = vsel %vm309, %v246, 0
        %v446 = vsel %vm309, %v247, 0
        %v449 = vsel %vm309, %v248, 0
        %v452 = vsel %vm309, %v249, 0
        %v455 = vsel %vm309, %v250, 0
        %v458 = vsel %vm309, %v251, 0
        %v461 = vsel %vm309, %v252, 0
        %v464 = vsel %vm309, %v253, 0
        %v467 = vsel %vm309, %v254, 0
        %v470 = vsel %vm309, %v255, 0
        %v473 = vsel %vm309, %v256, 0
        %v476 = vsel %vm309, %v257, 0
        %v479 = vsel %vm309, %v258, 0
        %v482 = vsel %vm309, %v259, 0
        %v485 = vsel %vm309, %v260, 0
        %v488 = vsel %vm309, %v261, 0
        %v491 = vsel %vm309, %v262, 0
        %v494 = vsel %vm309, %v263, 0
        %v497 = vsel %vm309, %v264, 0
        %v500 = vsel %vm309, %v265, 0
        %v503 = vsel %vm309, %v266, 0
        %v506 = vsel %vm309, %v267, 0
        %v509 = vsel %vm309, %v268, 0
        %v512 = vsel %vm309, %v269, 0
        %v515 = vsel %vm309, %v270, 0
        %v518 = vsel %vm309, %v271, 0
        %v521 = vsel %vm309, %v272, 0
        %v524 = vsel %vm309, %v273, 0
        %v527 = vsel %vm309, %v274, 0
        %v530 = vsel %vm309, %v275, 0
        %v533 = vsel %vm309, %v276, 0
        %v536 = vsel %vm309, %v277, 0
        %v539 = vsel %vm309, %v278, 0
        %v542 = vsel %vm309, %v279, 0
        %v545 = vsel %vm309, %v280, 0
        %v548 = vsel %vm309, %v281, 0
        %v551 = vsel %vm309, %v282, 0
        %v554 = vsel %vm309, %v283, 0
        %v557 = vsel %vm309, %v284, 0
        %v560 = vsel %vm309, %v285, 0
        %v563 = vsel %vm309, %v286, 0
        %v566 = vsel %vm309, %v287, 0
        %v569 = vsel %vm309, %v288, 0
        %v572 = vsel %vm309, %v289, 0
        %v575 = vsel %vm309, %v290, 0
        %v578 = vsel %vm309, %v291, 0
        %v581 = vsel %vm309, %v292, 0
        %v584 = vsel %vm309, %v293, 0
        %v587 = vsel %vm309, %v294, 0
        %v590 = vsel %vm309, %v295, 0
        %v593 = vsel %vm309, %v296, 0
        %v596 = vsel %vm309, %v297, 0
        %v599 = vsel %vm309, %v298, 0
        %v602 = vsel %vm309, %v299, 0
        %vm604 = vcmask 1040384
        %v606 = vsel %vm604, %v301, 0
        %608 = vmatprep.subr.mxu0 0.0
        %609 = vmatpush1.msra.mxu0 %v300
        %610 = vmatprep.subr.mxu0 0.0
        %611 = vmatpush1.msra.mxu0 %v606
        %612 = vmatprep.subr.mxu0 0.0
        %613 = vmatpush1.msra.mxu0 0.0
        %614 = vmatprep.subr.mxu0 0.0
        %615 = vmatpush1.msra.mxu0 0.0
        %616 = vmatprep.subr.mxu0 0.0
        %617 = vmatpush1.msra.mxu0 0.0
        %618 = vmatprep.subr.mxu0 0.0
        %619 = vmatpush1.msra.mxu0 0.0
        %620 = vmatprep.subr.mxu0 0.0
        %621 = vmatpush1.msra.mxu0 0.0
        %622 = vmatprep.subr.mxu0 0.0
        %623 = vmatpush1.msra.mxu0 0.0
        %624 = vmatprep.subr.mxu0 0.0
        %625 = vmatpush1.msra.mxu0 0.0
        %626 = vmatprep.subr.mxu0 0.0
        %627 = vmatpush1.msra.mxu0 0.0
        %628 = vmatprep.subr.mxu0 0.0
        %629 = vmatpush1.msra.mxu0 0.0
        %630 = vmatprep.subr.mxu0 0.0
        %631 = vmatpush1.msra.mxu0 0.0
        %632 = vmatprep.subr.mxu0 0.0
        %633 = vmatpush1.msra.mxu0 0.0
        %634 = vmatprep.subr.mxu0 0.0
        %635 = vmatpush1.msra.mxu0 0.0
        %636 = vmatprep.subr.mxu0 0.0
        %637 = vmatpush1.msra.mxu0 0.0
        %638 = vmatprep.subr.mxu0 0.0
        %639 = vmatpush1.msra.mxu0 0.0
        %640 = vmatprep.subr.mxu0 0.0
        %641 = vmatpush1.msra.mxu0 0.0
        %642 = vmatprep.subr.mxu0 0.0
        %643 = vmatpush1.msra.mxu0 0.0
        %644 = vmatprep.subr.mxu0 0.0
        %645 = vmatpush1.msra.mxu0 0.0
        %646 = vmatprep.subr.mxu0 0.0
        %647 = vmatpush1.msra.mxu0 0.0
        %648 = vmatprep.subr.mxu0 0.0
        %649 = vmatpush1.msra.mxu0 0.0
        %650 = vmatprep.subr.mxu0 0.0
        %651 = vmatpush1.msra.mxu0 0.0
        %652 = vmatprep.subr.mxu0 0.0
        %653 = vmatpush1.msra.mxu0 0.0
        %654 = vmatprep.subr.mxu0 0.0
        %655 = vmatpush1.msra.mxu0 0.0
        %656 = vmatprep.subr.mxu0 0.0
        %657 = vmatpush1.msra.mxu0 0.0
        %658 = vmatprep.subr.mxu0 0.0
        %659 = vmatpush1.msra.mxu0 0.0
        %660 = vmatprep.subr.mxu0 0.0
        %661 = vmatpush1.msra.mxu0 0.0
        %662 = vmatprep.subr.mxu0 0.0
        %663 = vmatpush1.msra.mxu0 0.0
        %664 = vmatprep.subr.mxu0 0.0
        %665 = vmatpush1.msra.mxu0 0.0
        %666 = vmatprep.subr.mxu0 0.0
        %667 = vmatpush1.msra.mxu0 0.0
        %668 = vmatprep.subr.mxu0 0.0
        %669 = vmatpush1.msra.mxu0 0.0
        %670 = vmatprep.subr.mxu0 0.0
        %671 = vmatpush1.msra.mxu0 0.0
        %672 = vmatprep.mubr.f32.mxu0 0.0
        %673 = vmatmul.mubr.f32.gmra.mrb[0].mxu0 %v311
        %v674 = vpop.f32.mrb[0].mxu0
        %v675 = vadd.f32 %v307, %v674
        %v676 = vpop.f32.mrb[0].mxu0
        %677 = vmatprep.mubr.f32.mxu0 0.0
        %678 = vmatmul.mubr.f32.gmra.mrb[0].mxu0 %v314
        %v679 = vpop.f32.mrb[0].mxu0
        %v680 = vadd.f32 %v307, %v679
        %v681 = vpop.f32.mrb[0].mxu0
        %682 = vmatprep.mubr.f32.mxu0 0.0
        %683 = vmatmul.mubr.f32.gmra.mrb[0].mxu0 %v317
        %v684 = vpop.f32.mrb[0].mxu0
        %v685 = vadd.f32 %v307, %v684
        %v686 = vpop.f32.mrb[0].mxu0
        %687 = vmatprep.mubr.f32.mxu0 0.0
        %688 = vmatmul.mubr.f32.gmra.mrb[0].mxu0 %v320
        %v689 = vpop.f32.mrb[0].mxu0
        %v690 = vadd.f32 %v307, %v689
        %v691 = vpop.f32.mrb[0].mxu0
        %692 = vmatprep.mubr.f32.mxu0 0.0
        %693 = vmatmul.mubr.f32.gmra.mrb[0].mxu0 %v323
        %v694 = vpop.f32.mrb[0].mxu0
        %v695 = vadd.f32 %v307, %v694
        %v696 = vpop.f32.mrb[0].mxu0
        %697 = vmatprep.mubr.f32.mxu0 0.0
        %698 = vmatmul.mubr.f32.gmra.mrb[0].mxu0 %v326
        %v699 = vpop.f32.mrb[0].mxu0
        %v700 = vadd.f32 %v307, %v699
        %v701 = vpop.f32.mrb[0].mxu0
        %702 = vmatprep.mubr.f32.mxu0 0.0
        %703 = vmatmul.mubr.f32.gmra.mrb[0].mxu0 %v329
        %v704 = vpop.f32.mrb[0].mxu0
        %v705 = vadd.f32 %v307, %v704
        %v706 = vpop.f32.mrb[0].mxu0
        %707 = vmatprep.mubr.f32.mxu0 0.0
        %708 = vmatmul.mubr.f32.gmra.mrb[0].mxu0 %v332
        %v709 = vpop.f32.mrb[0].mxu0
        %v710 = vadd.f32 %v307, %v709
        %v711 = vpop.f32.mrb[0].mxu0
        %712 = vmatprep.mubr.f32.mxu0 0.0
        %713 = vmatmul.mubr.f32.gmra.mrb[0].mxu0 %v335
        %v714 = vpop.f32.mrb[0].mxu0
        %v715 = vadd.f32 %v307, %v714
        %v716 = vpop.f32.mrb[0].mxu0
        %717 = vmatprep.mubr.f32.mxu0 0.0
        %718 = vmatmul.mubr.f32.gmra.mrb[0].mxu0 %v338
        %v719 = vpop.f32.mrb[0].mxu0
        %v720 = vadd.f32 %v307, %v719
        %v721 = vpop.f32.mrb[0].mxu0
        %722 = vmatprep.mubr.f32.mxu0 0.0
        %723 = vmatmul.mubr.f32.gmra.mrb[0].mxu0 %v341
        %v724 = vpop.f32.mrb[0].mxu0
        %v725 = vadd.f32 %v307, %v724
        %v726 = vpop.f32.mrb[0].mxu0
        %727 = vmatprep.mubr.f32.mxu0 0.0
        %728 = vmatmul.mubr.f32.gmra.mrb[0].mxu0 %v344
        %v729 = vpop.f32.mrb[0].mxu0
        %v730 = vadd.f32 %v307, %v729
        %v731 = vpop.f32.mrb[0].mxu0
        %732 = vmatprep.mubr.f32.mxu0 0.0
        %733 = vmatmul.mubr.f32.gmra.mrb[0].mxu0 %v347
        %v734 = vpop.f32.mrb[0].mxu0
        %v735 = vadd.f32 %v307, %v734
        %v736 = vpop.f32.mrb[0].mxu0
        %737 = vmatprep.mubr.f32.mxu0 0.0
        %738 = vmatmul.mubr.f32.gmra.mrb[0].mxu0 %v350
        %v739 = vpop.f32.mrb[0].mxu0
        %v740 = vadd.f32 %v307, %v739
        %v741 = vpop.f32.mrb[0].mxu0
        %742 = vmatprep.mubr.f32.mxu0 0.0
        %743 = vmatmul.mubr.f32.gmra.mrb[0].mxu0 %v353
        %v744 = vpop.f32.mrb[0].mxu0
        %v745 = vadd.f32 %v307, %v744
        %v746 = vpop.f32.mrb[0].mxu0
        %747 = vmatprep.mubr.f32.mxu0 0.0
        %748 = vmatmul.mubr.f32.gmra.mrb[0].mxu0 %v356
        %v749 = vpop.f32.mrb[0].mxu0
        %v750 = vadd.f32 %v307, %v749
        %v751 = vpop.f32.mrb[0].mxu0
        %752 = vmatprep.mubr.f32.mxu0 0.0
        %753 = vmatmul.mubr.f32.gmra.mrb[0].mxu0 %v359
        %v754 = vpop.f32.mrb[0].mxu0
        %v755 = vadd.f32 %v307, %v754
        %v756 = vpop.f32.mrb[0].mxu0
        %757 = vmatprep.mubr.f32.mxu0 0.0
        %758 = vmatmul.mubr.f32.gmra.mrb[0].mxu0 %v362
        %v759 = vpop.f32.mrb[0].mxu0
        %v760 = vadd.f32 %v307, %v759
        %v761 = vpop.f32.mrb[0].mxu0
        %762 = vmatprep.mubr.f32.mxu0 0.0
        %763 = vmatmul.mubr.f32.gmra.mrb[0].mxu0 %v365
        %v764 = vpop.f32.mrb[0].mxu0
        %v765 = vadd.f32 %v307, %v764
        %v766 = vpop.f32.mrb[0].mxu0
        %767 = vmatprep.mubr.f32.mxu0 0.0
        %768 = vmatmul.mubr.f32.gmra.mrb[0].mxu0 %v368
        %v769 = vpop.f32.mrb[0].mxu0
        %v770 = vadd.f32 %v307, %v769
        %v771 = vpop.f32.mrb[0].mxu0
        %772 = vmatprep.mubr.f32.mxu0 0.0
        %773 = vmatmul.mubr.f32.gmra.mrb[0].mxu0 %v371
        %v774 = vpop.f32.mrb[0].mxu0
        %v775 = vadd.f32 %v307, %v774
        %v776 = vpop.f32.mrb[0].mxu0
        %777 = vmatprep.mubr.f32.mxu0 0.0
        %778 = vmatmul.mubr.f32.gmra.mrb[0].mxu0 %v374
        %v779 = vpop.f32.mrb[0].mxu0
        %v780 = vadd.f32 %v307, %v779
        %v781 = vpop.f32.mrb[0].mxu0
        %782 = vmatprep.mubr.f32.mxu0 0.0
        %783 = vmatmul.mubr.f32.gmra.mrb[0].mxu0 %v377
        %v784 = vpop.f32.mrb[0].mxu0
        %v785 = vadd.f32 %v307, %v784
        %v786 = vpop.f32.mrb[0].mxu0
        %787 = vmatprep.mubr.f32.mxu0 0.0
        %788 = vmatmul.mubr.f32.gmra.mrb[0].mxu0 %v380
        %v789 = vpop.f32.mrb[0].mxu0
        %v790 = vadd.f32 %v307, %v789
        %v791 = vpop.f32.mrb[0].mxu0
        %792 = vmatprep.mubr.f32.mxu0 0.0
        %793 = vmatmul.mubr.f32.gmra.mrb[0].mxu0 %v383
        %v794 = vpop.f32.mrb[0].mxu0
        %v795 = vadd.f32 %v307, %v794
        %v796 = vpop.f32.mrb[0].mxu0
        %797 = vmatprep.mubr.f32.mxu0 0.0
        %798 = vmatmul.mubr.f32.gmra.mrb[0].mxu0 %v386
        %v799 = vpop.f32.mrb[0].mxu0
        %v800 = vadd.f32 %v307, %v799
        %v801 = vpop.f32.mrb[0].mxu0
        %802 = vmatprep.mubr.f32.mxu0 0.0
        %803 = vmatmul.mubr.f32.gmra.mrb[0].mxu0 %v389
        %v804 = vpop.f32.mrb[0].mxu0
        %v805 = vadd.f32 %v307, %v804
        %v806 = vpop.f32.mrb[0].mxu0
        %807 = vmatprep.mubr.f32.mxu0 0.0
        %808 = vmatmul.mubr.f32.gmra.mrb[0].mxu0 %v392
        %v809 = vpop.f32.mrb[0].mxu0
        %v810 = vadd.f32 %v307, %v809
        %v811 = vpop.f32.mrb[0].mxu0
        %812 = vmatprep.mubr.f32.mxu0 0.0
        %813 = vmatmul.mubr.f32.gmra.mrb[0].mxu0 %v395
        %v814 = vpop.f32.mrb[0].mxu0
        %v815 = vadd.f32 %v307, %v814
        %v816 = vpop.f32.mrb[0].mxu0
        %817 = vmatprep.mubr.f32.mxu0 0.0
        %818 = vmatmul.mubr.f32.gmra.mrb[0].mxu0 %v398
        %v819 = vpop.f32.mrb[0].mxu0
        %v820 = vadd.f32 %v307, %v819
        %v821 = vpop.f32.mrb[0].mxu0
        %822 = vmatprep.mubr.f32.mxu0 0.0
        %823 = vmatmul.mubr.f32.gmra.mrb[0].mxu0 %v401
        %v824 = vpop.f32.mrb[0].mxu0
        %v825 = vadd.f32 %v307, %v824
        %v826 = vpop.f32.mrb[0].mxu0
        %827 = vmatprep.mubr.f32.mxu0 0.0
        %828 = vmatmul.mubr.f32.gmra.mrb[0].mxu0 %v404
        %v829 = vpop.f32.mrb[0].mxu0
        %v830 = vadd.f32 %v307, %v829
        %v831 = vpop.f32.mrb[0].mxu0
        %832 = vmatprep.mubr.f32.mxu0 0.0
        %833 = vmatmul.mubr.f32.gmra.mrb[0].mxu0 %v407
        %v834 = vpop.f32.mrb[0].mxu0
        %v835 = vadd.f32 %v307, %v834
        %v836 = vpop.f32.mrb[0].mxu0
        %837 = vmatprep.mubr.f32.mxu0 0.0
        %838 = vmatmul.mubr.f32.gmra.mrb[0].mxu0 %v410
        %v839 = vpop.f32.mrb[0].mxu0
        %v840 = vadd.f32 %v307, %v839
        %v841 = vpop.f32.mrb[0].mxu0
        %842 = vmatprep.mubr.f32.mxu0 0.0
        %843 = vmatmul.mubr.f32.gmra.mrb[0].mxu0 %v413
        %v844 = vpop.f32.mrb[0].mxu0
        %v845 = vadd.f32 %v307, %v844
        %v846 = vpop.f32.mrb[0].mxu0
        %847 = vmatprep.mubr.f32.mxu0 0.0
        %848 = vmatmul.mubr.f32.gmra.mrb[0].mxu0 %v416
        %v849 = vpop.f32.mrb[0].mxu0
        %v850 = vadd.f32 %v307, %v849
        %v851 = vpop.f32.mrb[0].mxu0
        %852 = vmatprep.mubr.f32.mxu0 0.0
        %853 = vmatmul.mubr.f32.gmra.mrb[0].mxu0 %v419
        %v854 = vpop.f32.mrb[0].mxu0
        %v855 = vadd.f32 %v307, %v854
        %v856 = vpop.f32.mrb[0].mxu0
        %857 = vmatprep.mubr.f32.mxu0 0.0
        %858 = vmatmul.mubr.f32.gmra.mrb[0].mxu0 %v422
        %v859 = vpop.f32.mrb[0].mxu0
        %v860 = vadd.f32 %v307, %v859
        %v861 = vpop.f32.mrb[0].mxu0
        %862 = vmatprep.mubr.f32.mxu0 0.0
        %863 = vmatmul.mubr.f32.gmra.mrb[0].mxu0 %v425
        %v864 = vpop.f32.mrb[0].mxu0
        %v865 = vadd.f32 %v307, %v864
        %v866 = vpop.f32.mrb[0].mxu0
        %867 = vmatprep.mubr.f32.mxu0 0.0
        %868 = vmatmul.mubr.f32.gmra.mrb[0].mxu0 %v428
        %v869 = vpop.f32.mrb[0].mxu0
        %v870 = vadd.f32 %v307, %v869
        %v871 = vpop.f32.mrb[0].mxu0
        %872 = vmatprep.mubr.f32.mxu0 0.0
        %873 = vmatmul.mubr.f32.gmra.mrb[0].mxu0 %v431
        %v874 = vpop.f32.mrb[0].mxu0
        %v875 = vadd.f32 %v307, %v874
        %v876 = vpop.f32.mrb[0].mxu0
        %877 = vmatprep.mubr.f32.mxu0 0.0
        %878 = vmatmul.mubr.f32.gmra.mrb[0].mxu0 %v434
        %v879 = vpop.f32.mrb[0].mxu0
        %v880 = vadd.f32 %v307, %v879
        %v881 = vpop.f32.mrb[0].mxu0
        %882 = vmatprep.mubr.f32.mxu0 0.0
        %883 = vmatmul.mubr.f32.gmra.mrb[0].mxu0 %v437
        %v884 = vpop.f32.mrb[0].mxu0
        %v885 = vadd.f32 %v307, %v884
        %v886 = vpop.f32.mrb[0].mxu0
        %887 = vmatprep.mubr.f32.mxu0 0.0
        %888 = vmatmul.mubr.f32.gmra.mrb[0].mxu0 %v440
        %v889 = vpop.f32.mrb[0].mxu0
        %v890 = vadd.f32 %v307, %v889
        %v891 = vpop.f32.mrb[0].mxu0
        %892 = vmatprep.mubr.f32.mxu0 0.0
        %893 = vmatmul.mubr.f32.gmra.mrb[0].mxu0 %v443
        %v894 = vpop.f32.mrb[0].mxu0
        %v895 = vadd.f32 %v307, %v894
        %v896 = vpop.f32.mrb[0].mxu0
        %897 = vmatprep.mubr.f32.mxu0 0.0
        %898 = vmatmul.mubr.f32.gmra.mrb[0].mxu0 %v446
        %v899 = vpop.f32.mrb[0].mxu0
        %v900 = vadd.f32 %v307, %v899
        %v901 = vpop.f32.mrb[0].mxu0
        %902 = vmatprep.mubr.f32.mxu0 0.0
        %903 = vmatmul.mubr.f32.gmra.mrb[0].mxu0 %v449
        %v904 = vpop.f32.mrb[0].mxu0
        %v905 = vadd.f32 %v307, %v904
        %v906 = vpop.f32.mrb[0].mxu0
        %907 = vmatprep.mubr.f32.mxu0 0.0
        %908 = vmatmul.mubr.f32.gmra.mrb[0].mxu0 %v452
        %v909 = vpop.f32.mrb[0].mxu0
        %v910 = vadd.f32 %v307, %v909
        %v911 = vpop.f32.mrb[0].mxu0
        %912 = vmatprep.mubr.f32.mxu0 0.0
        %913 = vmatmul.mubr.f32.gmra.mrb[0].mxu0 %v455
        %v914 = vpop.f32.mrb[0].mxu0
        %v915 = vadd.f32 %v307, %v914
        %v916 = vpop.f32.mrb[0].mxu0
        %917 = vmatprep.mubr.f32.mxu0 0.0
        %918 = vmatmul.mubr.f32.gmra.mrb[0].mxu0 %v458
        %v919 = vpop.f32.mrb[0].mxu0
        %v920 = vadd.f32 %v307, %v919
        %v921 = vpop.f32.mrb[0].mxu0
        %922 = vmatprep.mubr.f32.mxu0 0.0
        %923 = vmatmul.mubr.f32.gmra.mrb[0].mxu0 %v461
        %v924 = vpop.f32.mrb[0].mxu0
        %v925 = vadd.f32 %v307, %v924
        %v926 = vpop.f32.mrb[0].mxu0
        %927 = vmatprep.mubr.f32.mxu0 0.0
        %928 = vmatmul.mubr.f32.gmra.mrb[0].mxu0 %v464
        %v929 = vpop.f32.mrb[0].mxu0
        %v930 = vadd.f32 %v307, %v929
        %v931 = vpop.f32.mrb[0].mxu0
        %932 = vmatprep.mubr.f32.mxu0 0.0
        %933 = vmatmul.mubr.f32.gmra.mrb[0].mxu0 %v467
        %v934 = vpop.f32.mrb[0].mxu0
        %v935 = vadd.f32 %v307, %v934
        %v936 = vpop.f32.mrb[0].mxu0
        %937 = vmatprep.mubr.f32.mxu0 0.0
        %938 = vmatmul.mubr.f32.gmra.mrb[0].mxu0 %v470
        %v939 = vpop.f32.mrb[0].mxu0
        %v940 = vadd.f32 %v307, %v939
        %v941 = vpop.f32.mrb[0].mxu0
        %942 = vmatprep.mubr.f32.mxu0 0.0
        %943 = vmatmul.mubr.f32.gmra.mrb[0].mxu0 %v473
        %v944 = vpop.f32.mrb[0].mxu0
        %v945 = vadd.f32 %v307, %v944
        %v946 = vpop.f32.mrb[0].mxu0
        %947 = vmatprep.mubr.f32.mxu0 0.0
        %948 = vmatmul.mubr.f32.gmra.mrb[0].mxu0 %v476
        %v949 = vpop.f32.mrb[0].mxu0
        %v950 = vadd.f32 %v307, %v949
        %v951 = vpop.f32.mrb[0].mxu0
        %952 = vmatprep.mubr.f32.mxu0 0.0
        %953 = vmatmul.mubr.f32.gmra.mrb[0].mxu0 %v479
        %v954 = vpop.f32.mrb[0].mxu0
        %v955 = vadd.f32 %v307, %v954
        %v956 = vpop.f32.mrb[0].mxu0
        %957 = vmatprep.mubr.f32.mxu0 0.0
        %958 = vmatmul.mubr.f32.gmra.mrb[0].mxu0 %v482
        %v959 = vpop.f32.mrb[0].mxu0
        %v960 = vadd.f32 %v307, %v959
        %v961 = vpop.f32.mrb[0].mxu0
        %962 = vmatprep.mubr.f32.mxu0 0.0
        %963 = vmatmul.mubr.f32.gmra.mrb[0].mxu0 %v485
        %v964 = vpop.f32.mrb[0].mxu0
        %v965 = vadd.f32 %v307, %v964
        %v966 = vpop.f32.mrb[0].mxu0
        %967 = vmatprep.mubr.f32.mxu0 0.0
        %968 = vmatmul.mubr.f32.gmra.mrb[0].mxu0 %v488
        %v969 = vpop.f32.mrb[0].mxu0
        %v970 = vadd.f32 %v307, %v969
        %v971 = vpop.f32.mrb[0].mxu0
        %972 = vmatprep.mubr.f32.mxu0 0.0
        %973 = vmatmul.mubr.f32.gmra.mrb[0].mxu0 %v491
        %v974 = vpop.f32.mrb[0].mxu0
        %v975 = vadd.f32 %v307, %v974
        %v976 = vpop.f32.mrb[0].mxu0
        %977 = vmatprep.mubr.f32.mxu0 0.0
        %978 = vmatmul.mubr.f32.gmra.mrb[0].mxu0 %v494
        %v979 = vpop.f32.mrb[0].mxu0
        %v980 = vadd.f32 %v307, %v979
        %v981 = vpop.f32.mrb[0].mxu0
        %982 = vmatprep.mubr.f32.mxu0 0.0
        %983 = vmatmul.mubr.f32.gmra.mrb[0].mxu0 %v497
        %v984 = vpop.f32.mrb[0].mxu0
        %v985 = vadd.f32 %v307, %v984
        %v986 = vpop.f32.mrb[0].mxu0
        %987 = vmatprep.mubr.f32.mxu0 0.0
        %988 = vmatmul.mubr.f32.gmra.mrb[0].mxu0 %v500
        %v989 = vpop.f32.mrb[0].mxu0
        %v990 = vadd.f32 %v307, %v989
        %v991 = vpop.f32.mrb[0].mxu0
        %992 = vmatprep.mubr.f32.mxu0 0.0
        %993 = vmatmul.mubr.f32.gmra.mrb[0].mxu0 %v503
        %v994 = vpop.f32.mrb[0].mxu0
        %v995 = vadd.f32 %v307, %v994
        %v996 = vpop.f32.mrb[0].mxu0
        %997 = vmatprep.mubr.f32.mxu0 0.0
        %998 = vmatmul.mubr.f32.gmra.mrb[0].mxu0 %v506
        %v999 = vpop.f32.mrb[0].mxu0
        %v1000 = vadd.f32 %v307, %v999
        %v1001 = vpop.f32.mrb[0].mxu0
        %1002 = vmatprep.mubr.f32.mxu0 0.0
        %1003 = vmatmul.mubr.f32.gmra.mrb[0].mxu0 %v509
        %v1004 = vpop.f32.mrb[0].mxu0
        %v1005 = vadd.f32 %v307, %v1004
        %v1006 = vpop.f32.mrb[0].mxu0
        %1007 = vmatprep.mubr.f32.mxu0 0.0
        %1008 = vmatmul.mubr.f32.gmra.mrb[0].mxu0 %v512
        %v1009 = vpop.f32.mrb[0].mxu0
        %v1010 = vadd.f32 %v307, %v1009
        %v1011 = vpop.f32.mrb[0].mxu0
        %1012 = vmatprep.mubr.f32.mxu0 0.0
        %1013 = vmatmul.mubr.f32.gmra.mrb[0].mxu0 %v515
        %v1014 = vpop.f32.mrb[0].mxu0
        %v1015 = vadd.f32 %v307, %v1014
        %v1016 = vpop.f32.mrb[0].mxu0
        %1017 = vmatprep.mubr.f32.mxu0 0.0
        %1018 = vmatmul.mubr.f32.gmra.mrb[0].mxu0 %v518
        %v1019 = vpop.f32.mrb[0].mxu0
        %v1020 = vadd.f32 %v307, %v1019
        %v1021 = vpop.f32.mrb[0].mxu0
        %1022 = vmatprep.mubr.f32.mxu0 0.0
        %1023 = vmatmul.mubr.f32.gmra.mrb[0].mxu0 %v521
        %v1024 = vpop.f32.mrb[0].mxu0
        %v1025 = vadd.f32 %v307, %v1024
        %v1026 = vpop.f32.mrb[0].mxu0
        %1027 = vmatprep.mubr.f32.mxu0 0.0
        %1028 = vmatmul.mubr.f32.gmra.mrb[0].mxu0 %v524
        %v1029 = vpop.f32.mrb[0].mxu0
        %v1030 = vadd.f32 %v307, %v1029
        %v1031 = vpop.f32.mrb[0].mxu0
        %1032 = vmatprep.mubr.f32.mxu0 0.0
        %1033 = vmatmul.mubr.f32.gmra.mrb[0].mxu0 %v527
        %v1034 = vpop.f32.mrb[0].mxu0
        %v1035 = vadd.f32 %v307, %v1034
        %v1036 = vpop.f32.mrb[0].mxu0
        %1037 = vmatprep.mubr.f32.mxu0 0.0
        %1038 = vmatmul.mubr.f32.gmra.mrb[0].mxu0 %v530
        %v1039 = vpop.f32.mrb[0].mxu0
        %v1040 = vadd.f32 %v307, %v1039
        %v1041 = vpop.f32.mrb[0].mxu0
        %1042 = vmatprep.mubr.f32.mxu0 0.0
        %1043 = vmatmul.mubr.f32.gmra.mrb[0].mxu0 %v533
        %v1044 = vpop.f32.mrb[0].mxu0
        %v1045 = vadd.f32 %v307, %v1044
        %v1046 = vpop.f32.mrb[0].mxu0
        %1047 = vmatprep.mubr.f32.mxu0 0.0
        %1048 = vmatmul.mubr.f32.gmra.mrb[0].mxu0 %v536
        %v1049 = vpop.f32.mrb[0].mxu0
        %v1050 = vadd.f32 %v307, %v1049
        %v1051 = vpop.f32.mrb[0].mxu0
        %1052 = vmatprep.mubr.f32.mxu0 0.0
        %1053 = vmatmul.mubr.f32.gmra.mrb[0].mxu0 %v539
        %v1054 = vpop.f32.mrb[0].mxu0
        %v1055 = vadd.f32 %v307, %v1054
        %v1056 = vpop.f32.mrb[0].mxu0
        %1057 = vmatprep.mubr.f32.mxu0 0.0
        %1058 = vmatmul.mubr.f32.gmra.mrb[0].mxu0 %v542
        %v1059 = vpop.f32.mrb[0].mxu0
        %v1060 = vadd.f32 %v307, %v1059
        %v1061 = vpop.f32.mrb[0].mxu0
        %1062 = vmatprep.mubr.f32.mxu0 0.0
        %1063 = vmatmul.mubr.f32.gmra.mrb[0].mxu0 %v545
        %v1064 = vpop.f32.mrb[0].mxu0
        %v1065 = vadd.f32 %v307, %v1064
        %v1066 = vpop.f32.mrb[0].mxu0
        %1067 = vmatprep.mubr.f32.mxu0 0.0
        %1068 = vmatmul.mubr.f32.gmra.mrb[0].mxu0 %v548
        %v1069 = vpop.f32.mrb[0].mxu0
        %v1070 = vadd.f32 %v307, %v1069
        %v1071 = vpop.f32.mrb[0].mxu0
        %1072 = vmatprep.mubr.f32.mxu0 0.0
        %1073 = vmatmul.mubr.f32.gmra.mrb[0].mxu0 %v551
        %v1074 = vpop.f32.mrb[0].mxu0
        %v1075 = vadd.f32 %v307, %v1074
        %v1076 = vpop.f32.mrb[0].mxu0
        %1077 = vmatprep.mubr.f32.mxu0 0.0
        %1078 = vmatmul.mubr.f32.gmra.mrb[0].mxu0 %v554
        %v1079 = vpop.f32.mrb[0].mxu0
        %v1080 = vadd.f32 %v307, %v1079
        %v1081 = vpop.f32.mrb[0].mxu0
        %1082 = vmatprep.mubr.f32.mxu0 0.0
        %1083 = vmatmul.mubr.f32.gmra.mrb[0].mxu0 %v557
        %v1084 = vpop.f32.mrb[0].mxu0
        %v1085 = vadd.f32 %v307, %v1084
        %v1086 = vpop.f32.mrb[0].mxu0
        %1087 = vmatprep.mubr.f32.mxu0 0.0
        %1088 = vmatmul.mubr.f32.gmra.mrb[0].mxu0 %v560
        %v1089 = vpop.f32.mrb[0].mxu0
        %v1090 = vadd.f32 %v307, %v1089
        %v1091 = vpop.f32.mrb[0].mxu0
        %1092 = vmatprep.mubr.f32.mxu0 0.0
        %1093 = vmatmul.mubr.f32.gmra.mrb[0].mxu0 %v563
        %v1094 = vpop.f32.mrb[0].mxu0
        %v1095 = vadd.f32 %v307, %v1094
        %v1096 = vpop.f32.mrb[0].mxu0
        %1097 = vmatprep.mubr.f32.mxu0 0.0
        %1098 = vmatmul.mubr.f32.gmra.mrb[0].mxu0 %v566
        %v1099 = vpop.f32.mrb[0].mxu0
        %v1100 = vadd.f32 %v307, %v1099
        %v1101 = vpop.f32.mrb[0].mxu0
        %1102 = vmatprep.mubr.f32.mxu0 0.0
        %1103 = vmatmul.mubr.f32.gmra.mrb[0].mxu0 %v569
        %v1104 = vpop.f32.mrb[0].mxu0
        %v1105 = vadd.f32 %v307, %v1104
        %v1106 = vpop.f32.mrb[0].mxu0
        %1107 = vmatprep.mubr.f32.mxu0 0.0
        %1108 = vmatmul.mubr.f32.gmra.mrb[0].mxu0 %v572
        %v1109 = vpop.f32.mrb[0].mxu0
        %v1110 = vadd.f32 %v307, %v1109
        %v1111 = vpop.f32.mrb[0].mxu0
        %1112 = vmatprep.mubr.f32.mxu0 0.0
        %1113 = vmatmul.mubr.f32.gmra.mrb[0].mxu0 %v575
        %v1114 = vpop.f32.mrb[0].mxu0
        %v1115 = vadd.f32 %v307, %v1114
        %v1116 = vpop.f32.mrb[0].mxu0
        %1117 = vmatprep.mubr.f32.mxu0 0.0
        %1118 = vmatmul.mubr.f32.gmra.mrb[0].mxu0 %v578
        %v1119 = vpop.f32.mrb[0].mxu0
        %v1120 = vadd.f32 %v307, %v1119
        %v1121 = vpop.f32.mrb[0].mxu0
        %1122 = vmatprep.mubr.f32.mxu0 0.0
        %1123 = vmatmul.mubr.f32.gmra.mrb[0].mxu0 %v581
        %v1124 = vpop.f32.mrb[0].mxu0
        %v1125 = vadd.f32 %v307, %v1124
        %v1126 = vpop.f32.mrb[0].mxu0
        %1127 = vmatprep.mubr.f32.mxu0 0.0
        %1128 = vmatmul.mubr.f32.gmra.mrb[0].mxu0 %v584
        %v1129 = vpop.f32.mrb[0].mxu0
        %v1130 = vadd.f32 %v307, %v1129
        %v1131 = vpop.f32.mrb[0].mxu0
        %1132 = vmatprep.mubr.f32.mxu0 0.0
        %1133 = vmatmul.mubr.f32.gmra.mrb[0].mxu0 %v587
        %v1134 = vpop.f32.mrb[0].mxu0
        %v1135 = vadd.f32 %v307, %v1134
        %v1136 = vpop.f32.mrb[0].mxu0
        %1137 = vmatprep.mubr.f32.mxu0 0.0
        %1138 = vmatmul.mubr.f32.gmra.mrb[0].mxu0 %v590
        %v1139 = vpop.f32.mrb[0].mxu0
        %v1140 = vadd.f32 %v307, %v1139
        %v1141 = vpop.f32.mrb[0].mxu0
        %1142 = vmatprep.mubr.f32.mxu0 0.0
        %1143 = vmatmul.mubr.f32.gmra.mrb[0].mxu0 %v593
        %v1144 = vpop.f32.mrb[0].mxu0
        %v1145 = vadd.f32 %v307, %v1144
        %v1146 = vpop.f32.mrb[0].mxu0
        %1147 = vmatprep.mubr.f32.mxu0 0.0
        %1148 = vmatmul.mubr.f32.gmra.mrb[0].mxu0 %v596
        %v1149 = vpop.f32.mrb[0].mxu0
        %v1150 = vadd.f32 %v307, %v1149
        %v1151 = vpop.f32.mrb[0].mxu0
        %1152 = vmatprep.mubr.f32.mxu0 0.0
        %1153 = vmatmul.mubr.f32.gmra.mrb[0].mxu0 %v599
        %v1154 = vpop.f32.mrb[0].mxu0
        %v1155 = vadd.f32 %v307, %v1154
        %v1156 = vpop.f32.mrb[0].mxu0
        %1157 = vmatprep.mubr.f32.mxu0 0.0
        %1158 = vmatmul.mubr.f32.gmra.mrb[0].mxu0 %v602
        %v1159 = vpop.f32.mrb[0].mxu0
        %v1160 = vadd.f32 %v307, %v1159
        %v1161 = vpop.f32.mrb[0].mxu0
        %1162 = vdwg.mxu0
        %v1163 = vmax.f32 %v675, 0.0
        %v1164 = vmax.f32 %v680, 0.0
        %v1165 = vmax.f32 %v685, 0.0
        %v1166 = vmax.f32 %v690, 0.0
        %v1167 = vmax.f32 %v695, 0.0
        %v1168 = vmax.f32 %v700, 0.0
        %v1169 = vmax.f32 %v705, 0.0
        %v1170 = vmax.f32 %v710, 0.0
        %v1171 = vmax.f32 %v715, 0.0
        %v1172 = vmax.f32 %v720, 0.0
        %v1173 = vmax.f32 %v725, 0.0
        %v1174 = vmax.f32 %v730, 0.0
        %v1175 = vmax.f32 %v735, 0.0
        %v1176 = vmax.f32 %v740, 0.0
        %v1177 = vmax.f32 %v745, 0.0
        %v1178 = vmax.f32 %v750, 0.0
        %v1179 = vmax.f32 %v755, 0.0
        %v1180 = vmax.f32 %v760, 0.0
        %v1181 = vmax.f32 %v765, 0.0
        %v1182 = vmax.f32 %v770, 0.0
        %v1183 = vmax.f32 %v775, 0.0
        %v1184 = vmax.f32 %v780, 0.0
        %v1185 = vmax.f32 %v785, 0.0
        %v1186 = vmax.f32 %v790, 0.0
        %v1187 = vmax.f32 %v795, 0.0
        %v1188 = vmax.f32 %v800, 0.0
        %v1189 = vmax.f32 %v805, 0.0
        %v1190 = vmax.f32 %v810, 0.0
        %v1191 = vmax.f32 %v815, 0.0
        %v1192 = vmax.f32 %v820, 0.0
        %v1193 = vmax.f32 %v825, 0.0
        %v1194 = vmax.f32 %v830, 0.0
        %v1195 = vmax.f32 %v835, 0.0
        %v1196 = vmax.f32 %v840, 0.0
        %v1197 = vmax.f32 %v845, 0.0
        %v1198 = vmax.f32 %v850, 0.0
        %v1199 = vmax.f32 %v855, 0.0
        %v1200 = vmax.f32 %v860, 0.0
        %v1201 = vmax.f32 %v865, 0.0
        %v1202 = vmax.f32 %v870, 0.0
        %v1203 = vmax.f32 %v875, 0.0
        %v1204 = vmax.f32 %v880, 0.0
        %v1205 = vmax.f32 %v885, 0.0
        %v1206 = vmax.f32 %v890, 0.0
        %v1207 = vmax.f32 %v895, 0.0
        %v1208 = vmax.f32 %v900, 0.0
        %v1209 = vmax.f32 %v905, 0.0
        %v1210 = vmax.f32 %v910, 0.0
        %v1211 = vmax.f32 %v915, 0.0
        %v1212 = vmax.f32 %v920, 0.0
        %v1213 = vmax.f32 %v925, 0.0
        %v1214 = vmax.f32 %v930, 0.0
        %v1215 = vmax.f32 %v935, 0.0
        %v1216 = vmax.f32 %v940, 0.0
        %v1217 = vmax.f32 %v945, 0.0
        %v1218 = vmax.f32 %v950, 0.0
        %v1219 = vmax.f32 %v955, 0.0
        %v1220 = vmax.f32 %v960, 0.0
        %v1221 = vmax.f32 %v965, 0.0
        %v1222 = vmax.f32 %v970, 0.0
        %v1223 = vmax.f32 %v975, 0.0
        %v1224 = vmax.f32 %v980, 0.0
        %v1225 = vmax.f32 %v985, 0.0
        %v1226 = vmax.f32 %v990, 0.0
        %v1227 = vmax.f32 %v995, 0.0
        %v1228 = vmax.f32 %v1000, 0.0
        %v1229 = vmax.f32 %v1005, 0.0
        %v1230 = vmax.f32 %v1010, 0.0
        %v1231 = vmax.f32 %v1015, 0.0
        %v1232 = vmax.f32 %v1020, 0.0
        %v1233 = vmax.f32 %v1025, 0.0
        %v1234 = vmax.f32 %v1030, 0.0
        %v1235 = vmax.f32 %v1035, 0.0
        %v1236 = vmax.f32 %v1040, 0.0
        %v1237 = vmax.f32 %v1045, 0.0
        %v1238 = vmax.f32 %v1050, 0.0
        %v1239 = vmax.f32 %v1055, 0.0
        %v1240 = vmax.f32 %v1060, 0.0
        %v1241 = vmax.f32 %v1065, 0.0
        %v1242 = vmax.f32 %v1070, 0.0
        %v1243 = vmax.f32 %v1075, 0.0
        %v1244 = vmax.f32 %v1080, 0.0
        %v1245 = vmax.f32 %v1085, 0.0
        %v1246 = vmax.f32 %v1090, 0.0
        %v1247 = vmax.f32 %v1095, 0.0
        %v1248 = vmax.f32 %v1100, 0.0
        %v1249 = vmax.f32 %v1105, 0.0
        %v1250 = vmax.f32 %v1110, 0.0
        %v1251 = vmax.f32 %v1115, 0.0
        %v1252 = vmax.f32 %v1120, 0.0
        %v1253 = vmax.f32 %v1125, 0.0
        %v1254 = vmax.f32 %v1130, 0.0
        %v1255 = vmax.f32 %v1135, 0.0
        %v1256 = vmax.f32 %v1140, 0.0
        %v1257 = vmax.f32 %v1145, 0.0
        %v1258 = vmax.f32 %v1150, 0.0
        %v1259 = vmax.f32 %v1155, 0.0
        %v1260 = vmax.f32 %v1160, 0.0
        %1261 = vst [vmem:[%s200] sm:$0xff] %v1163
        %1262 = vst [vmem:[%s200 + $0x8] sm:$0xff] %v1164
        %1263 = vst [vmem:[%s200 + $0x10] sm:$0xff] %v1165
        %1264 = vst [vmem:[%s200 + $0x18] sm:$0xff] %v1166
        %1265 = vst [vmem:[%s200 + $0x20] sm:$0xff] %v1167
        %1266 = vst [vmem:[%s200 + $0x28] sm:$0xff] %v1168
        %1267 = vst [vmem:[%s200 + $0x30] sm:$0xff] %v1169
        %1268 = vst [vmem:[%s200 + $0x38] sm:$0xff] %v1170
        %1269 = vst [vmem:[%s200 + $0x40] sm:$0xff] %v1171
        %1270 = vst [vmem:[%s200 + $0x48] sm:$0xff] %v1172
        %1271 = vst [vmem:[%s200 + $0x50] sm:$0xff] %v1173
        %1272 = vst [vmem:[%s200 + $0x58] sm:$0xff] %v1174
        %1273 = vst [vmem:[%s200 + $0x60] sm:$0xff] %v1175
        %1274 = vst [vmem:[%s200 + $0x68] sm:$0xff] %v1176
        %1275 = vst [vmem:[%s200 + $0x70] sm:$0xff] %v1177
        %1276 = vst [vmem:[%s200 + $0x78] sm:$0xff] %v1178
        %1277 = vst [vmem:[%s200 + $0x80] sm:$0xff] %v1179
        %1278 = vst [vmem:[%s200 + $0x88] sm:$0xff] %v1180
        %1279 = vst [vmem:[%s200 + $0x90] sm:$0xff] %v1181
        %1280 = vst [vmem:[%s200 + $0x98] sm:$0xff] %v1182
        %1281 = vst [vmem:[%s200 + $0xa0] sm:$0xff] %v1183
        %1282 = vst [vmem:[%s200 + $0xa8] sm:$0xff] %v1184
        %1283 = vst [vmem:[%s200 + $0xb0] sm:$0xff] %v1185
        %1284 = vst [vmem:[%s200 + $0xb8] sm:$0xff] %v1186
        %1285 = vst [vmem:[%s200 + $0xc0] sm:$0xff] %v1187
        %1286 = vst [vmem:[%s200 + $0xc8] sm:$0xff] %v1188
        %1287 = vst [vmem:[%s200 + $0xd0] sm:$0xff] %v1189
        %1288 = vst [vmem:[%s200 + $0xd8] sm:$0xff] %v1190
        %1289 = vst [vmem:[%s200 + $0xe0] sm:$0xff] %v1191
        %1290 = vst [vmem:[%s200 + $0xe8] sm:$0xff] %v1192
        %1291 = vst [vmem:[%s200 + $0xf0] sm:$0xff] %v1193
        %1292 = vst [vmem:[%s200 + $0xf8] sm:$0xff] %v1194
        %1293 = vst [vmem:[%s200 + $0x100] sm:$0xff] %v1195
        %1294 = vst [vmem:[%s200 + $0x108] sm:$0xff] %v1196
        %1295 = vst [vmem:[%s200 + $0x110] sm:$0xff] %v1197
        %1296 = vst [vmem:[%s200 + $0x118] sm:$0xff] %v1198
        %1297 = vst [vmem:[%s200 + $0x120] sm:$0xff] %v1199
        %1298 = vst [vmem:[%s200 + $0x128] sm:$0xff] %v1200
        %1299 = vst [vmem:[%s200 + $0x130] sm:$0xff] %v1201
        %1300 = vst [vmem:[%s200 + $0x138] sm:$0xff] %v1202
        %1301 = vst [vmem:[%s200 + $0x140] sm:$0xff] %v1203
        %1302 = vst [vmem:[%s200 + $0x148] sm:$0xff] %v1204
        %1303 = vst [vmem:[%s200 + $0x150] sm:$0xff] %v1205
        %1304 = vst [vmem:[%s200 + $0x158] sm:$0xff] %v1206
        %1305 = vst [vmem:[%s200 + $0x160] sm:$0xff] %v1207
        %1306 = vst [vmem:[%s200 + $0x168] sm:$0xff] %v1208
        %1307 = vst [vmem:[%s200 + $0x170] sm:$0xff] %v1209
        %1308 = vst [vmem:[%s200 + $0x178] sm:$0xff] %v1210
        %1309 = vst [vmem:[%s200 + $0x180] sm:$0xff] %v1211
        %1310 = vst [vmem:[%s200 + $0x188] sm:$0xff] %v1212
        %1311 = vst [vmem:[%s200 + $0x190] sm:$0xff] %v1213
        %1312 = vst [vmem:[%s200 + $0x198] sm:$0xff] %v1214
        %1313 = vst [vmem:[%s200 + $0x1a0] sm:$0xff] %v1215
        %1314 = vst [vmem:[%s200 + $0x1a8] sm:$0xff] %v1216
        %1315 = vst [vmem:[%s200 + $0x1b0] sm:$0xff] %v1217
        %1316 = vst [vmem:[%s200 + $0x1b8] sm:$0xff] %v1218
        %1317 = vst [vmem:[%s200 + $0x1c0] sm:$0xff] %v1219
        %1318 = vst [vmem:[%s200 + $0x1c8] sm:$0xff] %v1220
        %1319 = vst [vmem:[%s200 + $0x1d0] sm:$0xff] %v1221
        %1320 = vst [vmem:[%s200 + $0x1d8] sm:$0xff] %v1222
        %1321 = vst [vmem:[%s200 + $0x1e0] sm:$0xff] %v1223
        %1322 = vst [vmem:[%s200 + $0x1e8] sm:$0xff] %v1224
        %1323 = vst [vmem:[%s200 + $0x1f0] sm:$0xff] %v1225
        %1324 = vst [vmem:[%s200 + $0x1f8] sm:$0xff] %v1226
        %1325 = vst [vmem:[%s200 + $0x200] sm:$0xff] %v1227
        %1326 = vst [vmem:[%s200 + $0x208] sm:$0xff] %v1228
        %1327 = vst [vmem:[%s200 + $0x210] sm:$0xff] %v1229
        %1328 = vst [vmem:[%s200 + $0x218] sm:$0xff] %v1230
        %1329 = vst [vmem:[%s200 + $0x220] sm:$0xff] %v1231
        %1330 = vst [vmem:[%s200 + $0x228] sm:$0xff] %v1232
        %1331 = vst [vmem:[%s200 + $0x230] sm:$0xff] %v1233
        %1332 = vst [vmem:[%s200 + $0x238] sm:$0xff] %v1234
        %1333 = vst [vmem:[%s200 + $0x240] sm:$0xff] %v1235
        %1334 = vst [vmem:[%s200 + $0x248] sm:$0xff] %v1236
        %1335 = vst [vmem:[%s200 + $0x250] sm:$0xff] %v1237
        %1336 = vst [vmem:[%s200 + $0x258] sm:$0xff] %v1238
        %1337 = vst [vmem:[%s200 + $0x260] sm:$0xff] %v1239
        %1338 = vst [vmem:[%s200 + $0x268] sm:$0xff] %v1240
        %1339 = vst [vmem:[%s200 + $0x270] sm:$0xff] %v1241
        %1340 = vst [vmem:[%s200 + $0x278] sm:$0xff] %v1242
        %1341 = vst [vmem:[%s200 + $0x280] sm:$0xff] %v1243
        %1342 = vst [vmem:[%s200 + $0x288] sm:$0xff] %v1244
        %1343 = vst [vmem:[%s200 + $0x290] sm:$0xff] %v1245
        %1344 = vst [vmem:[%s200 + $0x298] sm:$0xff] %v1246
        %1345 = vst [vmem:[%s200 + $0x2a0] sm:$0xff] %v1247
        %1346 = vst [vmem:[%s200 + $0x2a8] sm:$0xff] %v1248
        %1347 = vst [vmem:[%s200 + $0x2b0] sm:$0xff] %v1249
        %1348 = vst [vmem:[%s200 + $0x2b8] sm:$0xff] %v1250
        %1349 = vst [vmem:[%s200 + $0x2c0] sm:$0xff] %v1251
        %1350 = vst [vmem:[%s200 + $0x2c8] sm:$0xff] %v1252
        %1351 = vst [vmem:[%s200 + $0x2d0] sm:$0xff] %v1253
        %1352 = vst [vmem:[%s200 + $0x2d8] sm:$0xff] %v1254
        %1353 = vst [vmem:[%s200 + $0x2e0] sm:$0xff] %v1255
        %1354 = vst [vmem:[%s200 + $0x2e8] sm:$0xff] %v1256
        %1355 = vst [vmem:[%s200 + $0x2f0] sm:$0xff] %v1257
        %1356 = vst [vmem:[%s200 + $0x2f8] sm:$0xff] %v1258
        %1357 = vst [vmem:[%s200 + $0x300] sm:$0xff] %v1259
        %1358 = vst [vmem:[%s200 + $0x308] sm:$0xff] %v1260
        %s1359 = smul.u32 98, %s16
        %p1360 = scmp.lt.s32.totalorder %s1359, 195
        %s1361 = scalar_select %p1360, %s1359, 195
        %s1362 = smul.addr %s1361, 8
        %s1363 = scalar_lea.vmem %s3, %s1362
        // Predicated region
        $region41: #{conv_nn_forward.3} parent=31 // pred_check
          %p1364 = pneg %p102
        $region42: #{conv_nn_forward.3} parent=31 // pred_check_branch
          %1366 = sbr.rel (%p1364) target = $region44
        $region43: #{conv_nn_forward.3} parent=31 // pred_region
          %s1367 = smul.u32 98, %s16
        $region44: #{conv_nn_forward.3} parent=31 // pred_fallthru
          _
      $region32: #{conv_nn_forward.3} parent=5 // pred_fallthru
        _
      %p1368 = scmp.le.s32.totalorder 2, %s11
      // Predicated region
      $region45: #{conv_nn_forward.3} parent=5 // pred_check
        %p1369 = pneg %p1368
      $region46: #{conv_nn_forward.3} parent=5 // pred_check_branch
        %1371 = sbr.rel (%p1369) target = $region48
      $region47: #{conv_nn_forward.3} parent=5 // pred_region
        %s1372 = ssub.s32 %s11, 2
        // Predicated region
        $region49: #{conv_nn_forward.3} parent=47 // pred_check
          %p1373 = pneg %p108
        $region50: #{conv_nn_forward.3} parent=47 // pred_check_branch
          %1375 = sbr.rel (%p1373) target = $region52
        $region51: #{conv_nn_forward.3} parent=47 // pred_region
          %s1376 = smul.u32 98, %s17
          %p1377 = scmp.lt.s32.totalorder %s1376, 195
          %s1378 = scalar_select %p1377, %s1376, 195
          %s1379 = smul.addr %s1378, 8
          %s1380 = scalar_lea.vmem %s3, %s1379
        $region52: #{conv_nn_forward.3} parent=47 // pred_fallthru
          _
      $region48: #{conv_nn_forward.3} parent=5 // pred_fallthru
        _
    $region6: #{conv_nn_forward.3} parent=1 // loop_footer
      %s15 = sadd.s32 1, %s11
    $region7: #{conv_nn_forward.3} parent=1 // loop_footer_branch
      %10 = sbr.rel target = $region3
    $region8: #{conv_nn_forward.3} parent=1 // loop_exit
      _
    %1381 = vsyncpa [#allocation3], 1
    %s1382 = scalar_lea.sflag [#allocation3], 1
    %1383 = vsyncpa %s1382, 1
    %1384 = vsyncpa [#allocation5], 1

// kernel: conv_nn_forward.4
$region0: #{conv_nn_forward.4}
  #allocation0 [shape = 'u32[]', space=smem, size = 0x4, offset = 0x4, fixed_abs, tag = 'smem constant byte address 0x4 - core index']
  #allocation1 [shape = 'u32[144,128]{1,0:T(1,128)}', space=vmem, size = 0x12000, scoped, tag = 'internal scratch']
  %s0 = inlined_call_operand.vmem [shape: f32[1568,144], index: 0, kind: input, shape index: {}]
  %s1 = inlined_call_operand.vmem [shape: f32[144,128], index: 1, kind: input, shape index: {}]
  %s2 = inlined_call_operand.vmem [shape: f32[1,128], index: 2, kind: input, shape index: {}]
  %s3 = inlined_call_operand.vmem [shape: f32[1568,128], index: 3, kind: output, shape index: {}]
  %s4 = sld [smem:[#allocation0]]
  $region45: #{conv_nn_forward.4} parent=0
    _
  %s6 = ssub.s32 1, %s4
  %s7 = scalar_select 0, %s6, %s4
  loop: start=0, step=1, limit=4
  $region2: #{conv_nn_forward.4} parent=0 // loop_pre_header
    _
  $region3: #{conv_nn_forward.4} parent=0 // loop_header
    %s9 = sphi 0, %s13
    %p10 = scmp.ge.s32.totalorder %s9, 4
    %s19 = sphi 0, %s21
    %s22 = sphi 0, %s19
    %s23 = sphi 0, %s22
    %s39 = sphi 0, %s23
    %s43 = sphi 0, %s43
    %s45 = sphi 0, %s43
    %s46 = sphi 0, %s45
    %s60 = sphi 0, %s46
    %s64 = sphi 0, %s64
    %s66 = sphi 0, %s64
    %s67 = sphi 0, %s66
    %s81 = sphi 0, %s67
    %s87 = sphi 0, %s89
    %s90 = sphi 0, %s87
    %s91 = sphi 0, %s90
    %s107 = sphi 0, %s91
  $region4: #{conv_nn_forward.4} parent=0 // loop_header_branch
    %12 = sbr.rel (%p10) target = $region8
  $region5: #{conv_nn_forward.4} parent=0 // loop_body
    %s14 = ssub.s32 %s9, 1
    %s15 = ssub.s32 %s9, 2
    %s16 = sadd.s32 %s9, 1
    %s17 = ssub.s32 %s9, %s16
    %p18 = scmp.eq.s32.totalorder %s17, 0
    %s20 = sadd.s32 %s19, 1
    %s21 = scalar_select %p18, %s19, %s20
    %p24 = pneg %p18
    %p25 = scmp.eq.s32.totalorder %s9, 1
    %p26 = por %p24, %p25
    %p27 = scmp.ne.s32.totalorder %s19, %s22
    %p28 = scmp.eq.s32.totalorder %s9, 0
    %p29 = por %p27, %p28
    %p30 = scmp.ne.s32.totalorder %s19, %s22
    %p31 = scmp.eq.s32.totalorder %s14, 1
    %p32 = por %p30, %p31
    %p33 = scmp.ne.s32.totalorder %s22, %s23
    %p34 = scmp.eq.s32.totalorder %s14, 0
    %p35 = por %p33, %p34
    %p36 = scmp.ne.s32.totalorder %s22, %s23
    %p37 = scmp.eq.s32.totalorder %s15, 1
    %p38 = por %p36, %p37
    %p40 = scmp.ne.s32.totalorder %s23, %s39
    %p41 = scmp.eq.s32.totalorder %s15, 0
    %p42 = por %p40, %p41
    %s44 = sadd.s32 %s43, 1
    %p47 = scmp.eq.s32.totalorder %s9, 1
    %p48 = scmp.ne.s32.totalorder %s43, %s45
    %p49 = scmp.eq.s32.totalorder %s9, 0
    %p50 = por %p48, %p49
    %p51 = scmp.ne.s32.totalorder %s43, %s45
    %p52 = scmp.eq.s32.totalorder %s14, 1
    %p53 = por %p51, %p52
    %p54 = scmp.ne.s32.totalorder %s45, %s46
    %p55 = scmp.eq.s32.totalorder %s14, 0
    %p56 = por %p54, %p55
    %p57 = scmp.ne.s32.totalorder %s45, %s46
    %p58 = scmp.eq.s32.totalorder %s15, 1
    %p59 = por %p57, %p58
    %p61 = scmp.ne.s32.totalorder %s46, %s60
    %p62 = scmp.eq.s32.totalorder %s15, 0
    %p63 = por %p61, %p62
    %s65 = sadd.s32 %s64, 1
    %p68 = scmp.eq.s32.totalorder %s9, 1
    %p69 = scmp.ne.s32.totalorder %s64, %s66
    %p70 = scmp.eq.s32.totalorder %s9, 0
    %p71 = por %p69, %p70
    %p72 = scmp.ne.s32.totalorder %s64, %s66
    %p73 = scmp.eq.s32.totalorder %s14, 1
    %p74 = por %p72, %p73
    %p75 = scmp.ne.s32.totalorder %s66, %s67
    %p76 = scmp.eq.s32.totalorder %s14, 0
    %p77 = por %p75, %p76
    %p78 = scmp.ne.s32.totalorder %s66, %s67
    %p79 = scmp.eq.s32.totalorder %s15, 1
    %p80 = por %p78, %p79
    %p82 = scmp.ne.s32.totalorder %s67, %s81
    %p83 = scmp.eq.s32.totalorder %s15, 0
    %p84 = por %p82, %p83
    %s85 = ssub.s32 %s9, %s16
    %p86 = scmp.eq.s32.totalorder %s85, 0
    %s88 = sadd.s32 %s87, 1
    %s89 = scalar_select %p86, %s87, %s88
    %p92 = pneg %p86
    %p93 = scmp.eq.s32.totalorder %s9, 1
    %p94 = por %p92, %p93
    %p95 = scmp.ne.s32.totalorder %s87, %s90
    %p96 = scmp.eq.s32.totalorder %s9, 0
    %p97 = por %p95, %p96
    %p98 = scmp.ne.s32.totalorder %s87, %s90
    %p99 = scmp.eq.s32.totalorder %s14, 1
    %p100 = por %p98, %p99
    %p101 = scmp.ne.s32.totalorder %s90, %s91
    %p102 = scmp.eq.s32.totalorder %s14, 0
    %p103 = por %p101, %p102
    %p104 = scmp.ne.s32.totalorder %s90, %s91
    %p105 = scmp.eq.s32.totalorder %s15, 1
    %p106 = por %p104, %p105
    %p108 = scmp.ne.s32.totalorder %s91, %s107
    %p109 = scmp.eq.s32.totalorder %s15, 0
    %p110 = por %p108, %p109
    %p111 = scmp.le.s32.totalorder 1, %s9
    %p112 = scmp.lt.s32.totalorder %s9, 3
    %p113 = pnand %p111, %p112
    %p114 = pneg %p113
    // Predicated region
    $region9: #{conv_nn_forward.4} parent=5 // pred_check
      _
    $region10: #{conv_nn_forward.4} parent=5 // pred_check_branch
      %116 = sbr.rel (%p113) target = $region12
    $region11: #{conv_nn_forward.4} parent=5 // pred_region
      %s117 = ssub.s32 %s9, 1
      // Predicated region
      $region13: #{conv_nn_forward.4} parent=11 // pred_check
        %p118 = pneg %p56
      $region14: #{conv_nn_forward.4} parent=11 // pred_check_branch
        %120 = sbr.rel (%p118) target = $region16
      $region15: #{conv_nn_forward.4} parent=11 // pred_region
        _
      $region16: #{conv_nn_forward.4} parent=11 // pred_fallthru
        _
      // Predicated region
      $region17: #{conv_nn_forward.4} parent=11 // pred_check
        %p121 = pneg %p77
      $region18: #{conv_nn_forward.4} parent=11 // pred_check_branch
        %123 = sbr.rel (%p121) target = $region20
      $region19: #{conv_nn_forward.4} parent=11 // pred_region
        _
      $region20: #{conv_nn_forward.4} parent=11 // pred_fallthru
        _
    $region12: #{conv_nn_forward.4} parent=5 // pred_fallthru
      _
    %p124 = scmp.lt.s32.totalorder %s9, 2
    // Predicated region
    $region21: #{conv_nn_forward.4} parent=5 // pred_check
      %p125 = pneg %p124
    $region22: #{conv_nn_forward.4} parent=5 // pred_check_branch
      %127 = sbr.rel (%p125) target = $region24
    $region23: #{conv_nn_forward.4} parent=5 // pred_region
      // Predicated region
      $region25: #{conv_nn_forward.4} parent=23 // pred_check
        %p128 = pneg %p29
      $region26: #{conv_nn_forward.4} parent=23 // pred_check_branch
        %130 = sbr.rel (%p128) target = $region28
      $region27: #{conv_nn_forward.4} parent=23 // pred_region
        %s131 = smul.u32 98, %s9
        %p132 = scmp.lt.s32.totalorder %s131, 195
        %s133 = scalar_select %p132, %s131, 195
        %s134 = smul.addr %s133, 2
        %s135 = smul.addr %s134, 8
        %s136 = scalar_lea.vmem %s0, %s135
        %s137 = smul.u32 98, %s9
      $region28: #{conv_nn_forward.4} parent=23 // pred_fallthru
        _
    $region24: #{conv_nn_forward.4} parent=5 // pred_fallthru
      _
    %p138 = scmp.le.s32.totalorder 1, %s9
    %p139 = scmp.lt.s32.totalorder %s9, 3
    %p140 = pnand %p138, %p139
    %p141 = pneg %p140
    // Predicated region
    $region29: #{conv_nn_forward.4} parent=5 // pred_check
      _
    $region30: #{conv_nn_forward.4} parent=5 // pred_check_branch
      %143 = sbr.rel (%p140) target = $region32
    $region31: #{conv_nn_forward.4} parent=5 // pred_region
      %s144 = ssub.s32 %s9, 1
      %s145 = smul.u32 98, %s14
      %p146 = scmp.lt.s32.totalorder %s145, 195
      %s147 = scalar_select %p146, %s145, 195
      %s148 = smul.addr %s147, 2
      %s149 = smul.addr %s148, 8
      %s150 = scalar_lea.vmem %s0, %s149
      %p151 = pneg %p35
      %p152 = pneg %p32
      %p153 = pneg %p56
      %p154 = pneg %p53
      %p155 = pneg %p77
      %p156 = pneg %p74
      %p157 = pneg %p103
      %p158 = pneg %p100
      %s159 = smul.u32 98, %s14
      %p160 = scmp.lt.s32.totalorder %s159, 195
      %s161 = scalar_select %p160, %s159, 195
      %s162 = smul.addr %s161, 8
      %s163 = scalar_lea.vmem %s3, %s162
      %s164 = smul.u32 98, %s14
      %p165 = scmp.lt.s32.totalorder %s164, 195
      %s166 = scalar_select %p165, %s164, 195
      %s167 = smul.addr %s166, 2
      %s168 = smul.addr %s167, 8
      %s169 = scalar_lea.vmem %s0, %s168
      %s170 = smul.u32 98, %s14
      %s171 = smul.u32 98, %s14
      %p172 = scmp.lt.s32.totalorder %s171, 195
      %s173 = scalar_select %p172, %s171, 195
      %s174 = smul.addr %s173, 8
      %s175 = scalar_lea.vmem %s3, %s174
      %s176 = smul.u32 98, %s14
      %v177 = vld [vmem:[%s169] sm:$0xff]
      %v178 = vld [vmem:[%s169 + $0x8] sm:$0xff]
      %v179 = vld [vmem:[%s169 + $0x10] sm:$0xff]
      %v180 = vld [vmem:[%s169 + $0x18] sm:$0xff]
      %v181 = vld [vmem:[%s169 + $0x20] sm:$0xff]
      %v182 = vld [vmem:[%s169 + $0x28] sm:$0xff]
      %v183 = vld [vmem:[%s169 + $0x30] sm:$0xff]
      %v184 = vld [vmem:[%s169 + $0x38] sm:$0xff]
      %v185 = vld [vmem:[%s169 + $0x40] sm:$0xff]
      %v186 = vld [vmem:[%s169 + $0x48] sm:$0xff]
      %v187 = vld [vmem:[%s169 + $0x50] sm:$0xff]
      %v188 = vld [vmem:[%s169 + $0x58] sm:$0xff]
      %v189 = vld [vmem:[%s169 + $0x60] sm:$0xff]
      %v190 = vld [vmem:[%s169 + $0x68] sm:$0xff]
      %v191 = vld [vmem:[%s169 + $0x70] sm:$0xff]
      %v192 = vld [vmem:[%s169 + $0x78] sm:$0xff]
      %v193 = vld [vmem:[%s169 + $0x80] sm:$0xff]
      %v194 = vld [vmem:[%s169 + $0x88] sm:$0xff]
      %v195 = vld [vmem:[%s169 + $0x90] sm:$0xff]
      %v196 = vld [vmem:[%s169 + $0x98] sm:$0xff]
      %v197 = vld [vmem:[%s169 + $0xa0] sm:$0xff]
      %v198 = vld [vmem:[%s169 + $0xa8] sm:$0xff]
      %v199 = vld [vmem:[%s169 + $0xb0] sm:$0xff]
      %v200 = vld [vmem:[%s169 + $0xb8] sm:$0xff]
      %v201 = vld [vmem:[%s169 + $0xc0] sm:$0xff]
      %v202 = vld [vmem:[%s169 + $0xc8] sm:$0xff]
      %v203 = vld [vmem:[%s169 + $0xd0] sm:$0xff]
      %v204 = vld [vmem:[%s169 + $0xd8] sm:$0xff]
      %v205 = vld [vmem:[%s169 + $0xe0] sm:$0xff]
      %v206 = vld [vmem:[%s169 + $0xe8] sm:$0xff]
      %v207 = vld [vmem:[%s169 + $0xf0] sm:$0xff]
      %v208 = vld [vmem:[%s169 + $0xf8] sm:$0xff]
      %v209 = vld [vmem:[%s169 + $0x100] sm:$0xff]
      %v210 = vld [vmem:[%s169 + $0x108] sm:$0xff]
      %v211 = vld [vmem:[%s169 + $0x110] sm:$0xff]
      %v212 = vld [vmem:[%s169 + $0x118] sm:$0xff]
      %v213 = vld [vmem:[%s169 + $0x120] sm:$0xff]
      %v214 = vld [vmem:[%s169 + $0x128] sm:$0xff]
      %v215 = vld [vmem:[%s169 + $0x130] sm:$0xff]
      %v216 = vld [vmem:[%s169 + $0x138] sm:$0xff]
      %v217 = vld [vmem:[%s169 + $0x140] sm:$0xff]
      %v218 = vld [vmem:[%s169 + $0x148] sm:$0xff]
      %v219 = vld [vmem:[%s169 + $0x150] sm:$0xff]
      %v220 = vld [vmem:[%s169 + $0x158] sm:$0xff]
      %v221 = vld [vmem:[%s169 + $0x160] sm:$0xff]
      %v222 = vld [vmem:[%s169 + $0x168] sm:$0xff]
      %v223 = vld [vmem:[%s169 + $0x170] sm:$0xff]
      %v224 = vld [vmem:[%s169 + $0x178] sm:$0xff]
      %v225 = vld [vmem:[%s169 + $0x180] sm:$0xff]
      %v226 = vld [vmem:[%s169 + $0x188] sm:$0xff]
      %v227 = vld [vmem:[%s169 + $0x190] sm:$0xff]
      %v228 = vld [vmem:[%s169 + $0x198] sm:$0xff]
      %v229 = vld [vmem:[%s169 + $0x1a0] sm:$0xff]
      %v230 = vld [vmem:[%s169 + $0x1a8] sm:$0xff]
      %v231 = vld [vmem:[%s169 + $0x1b0] sm:$0xff]
      %v232 = vld [vmem:[%s169 + $0x1b8] sm:$0xff]
      %v233 = vld [vmem:[%s169 + $0x1c0] sm:$0xff]
      %v234 = vld [vmem:[%s169 + $0x1c8] sm:$0xff]
      %v235 = vld [vmem:[%s169 + $0x1d0] sm:$0xff]
      %v236 = vld [vmem:[%s169 + $0x1d8] sm:$0xff]
      %v237 = vld [vmem:[%s169 + $0x1e0] sm:$0xff]
      %v238 = vld [vmem:[%s169 + $0x1e8] sm:$0xff]
      %v239 = vld [vmem:[%s169 + $0x1f0] sm:$0xff]
      %v240 = vld [vmem:[%s169 + $0x1f8] sm:$0xff]
      %v241 = vld [vmem:[%s169 + $0x200] sm:$0xff]
      %v242 = vld [vmem:[%s169 + $0x208] sm:$0xff]
      %v243 = vld [vmem:[%s169 + $0x210] sm:$0xff]
      %v244 = vld [vmem:[%s169 + $0x218] sm:$0xff]
      %v245 = vld [vmem:[%s169 + $0x220] sm:$0xff]
      %v246 = vld [vmem:[%s169 + $0x228] sm:$0xff]
      %v247 = vld [vmem:[%s169 + $0x230] sm:$0xff]
      %v248 = vld [vmem:[%s169 + $0x238] sm:$0xff]
      %v249 = vld [vmem:[%s169 + $0x240] sm:$0xff]
      %v250 = vld [vmem:[%s169 + $0x248] sm:$0xff]
      %v251 = vld [vmem:[%s169 + $0x250] sm:$0xff]
      %v252 = vld [vmem:[%s169 + $0x258] sm:$0xff]
      %v253 = vld [vmem:[%s169 + $0x260] sm:$0xff]
      %v254 = vld [vmem:[%s169 + $0x268] sm:$0xff]
      %v255 = vld [vmem:[%s169 + $0x270] sm:$0xff]
      %v256 = vld [vmem:[%s169 + $0x278] sm:$0xff]
      %v257 = vld [vmem:[%s169 + $0x280] sm:$0xff]
      %v258 = vld [vmem:[%s169 + $0x288] sm:$0xff]
      %v259 = vld [vmem:[%s169 + $0x290] sm:$0xff]
      %v260 = vld [vmem:[%s169 + $0x298] sm:$0xff]
      %v261 = vld [vmem:[%s169 + $0x2a0] sm:$0xff]
      %v262 = vld [vmem:[%s169 + $0x2a8] sm:$0xff]
      %v263 = vld [vmem:[%s169 + $0x2b0] sm:$0xff]
      %v264 = vld [vmem:[%s169 + $0x2b8] sm:$0xff]
      %v265 = vld [vmem:[%s169 + $0x2c0] sm:$0xff]
      %v266 = vld [vmem:[%s169 + $0x2c8] sm:$0xff]
      %v267 = vld [vmem:[%s169 + $0x2d0] sm:$0xff]
      %v268 = vld [vmem:[%s169 + $0x2d8] sm:$0xff]
      %v269 = vld [vmem:[%s169 + $0x2e0] sm:$0xff]
      %v270 = vld [vmem:[%s169 + $0x2e8] sm:$0xff]
      %v271 = vld [vmem:[%s169 + $0x2f0] sm:$0xff]
      %v272 = vld [vmem:[%s169 + $0x2f8] sm:$0xff]
      %v273 = vld [vmem:[%s169 + $0x300] sm:$0xff]
      %v274 = vld [vmem:[%s169 + $0x308] sm:$0xff]
      %v275 = vld [vmem:[%s169 + $0x310] sm:$0xff]
      %v276 = vld [vmem:[%s169 + $0x318] sm:$0xff]
      %v277 = vld [vmem:[%s169 + $0x320] sm:$0xff]
      %v278 = vld [vmem:[%s169 + $0x328] sm:$0xff]
      %v279 = vld [vmem:[%s169 + $0x330] sm:$0xff]
      %v280 = vld [vmem:[%s169 + $0x338] sm:$0xff]
      %v281 = vld [vmem:[%s169 + $0x340] sm:$0xff]
      %v282 = vld [vmem:[%s169 + $0x348] sm:$0xff]
      %v283 = vld [vmem:[%s169 + $0x350] sm:$0xff]
      %v284 = vld [vmem:[%s169 + $0x358] sm:$0xff]
      %v285 = vld [vmem:[%s169 + $0x360] sm:$0xff]
      %v286 = vld [vmem:[%s169 + $0x368] sm:$0xff]
      %v287 = vld [vmem:[%s169 + $0x370] sm:$0xff]
      %v288 = vld [vmem:[%s169 + $0x378] sm:$0xff]
      %v289 = vld [vmem:[%s169 + $0x380] sm:$0xff]
      %v290 = vld [vmem:[%s169 + $0x388] sm:$0xff]
      %v291 = vld [vmem:[%s169 + $0x390] sm:$0xff]
      %v292 = vld [vmem:[%s169 + $0x398] sm:$0xff]
      %v293 = vld [vmem:[%s169 + $0x3a0] sm:$0xff]
      %v294 = vld [vmem:[%s169 + $0x3a8] sm:$0xff]
      %v295 = vld [vmem:[%s169 + $0x3b0] sm:$0xff]
      %v296 = vld [vmem:[%s169 + $0x3b8] sm:$0xff]
      %v297 = vld [vmem:[%s169 + $0x3c0] sm:$0xff]
      %v298 = vld [vmem:[%s169 + $0x3c8] sm:$0xff]
      %v299 = vld [vmem:[%s169 + $0x3d0] sm:$0xff]
      %v300 = vld [vmem:[%s169 + $0x3d8] sm:$0xff]
      %v301 = vld [vmem:[%s169 + $0x3e0] sm:$0xff]
      %v302 = vld [vmem:[%s169 + $0x3e8] sm:$0xff]
      %v303 = vld [vmem:[%s169 + $0x3f0] sm:$0xff]
      %v304 = vld [vmem:[%s169 + $0x3f8] sm:$0xff]
      %v305 = vld [vmem:[%s169 + $0x400] sm:$0xff]
      %v306 = vld [vmem:[%s169 + $0x408] sm:$0xff]
      %v307 = vld [vmem:[%s169 + $0x410] sm:$0xff]
      %v308 = vld [vmem:[%s169 + $0x418] sm:$0xff]
      %v309 = vld [vmem:[%s169 + $0x420] sm:$0xff]
      %v310 = vld [vmem:[%s169 + $0x428] sm:$0xff]
      %v311 = vld [vmem:[%s169 + $0x430] sm:$0xff]
      %v312 = vld [vmem:[%s169 + $0x438] sm:$0xff]
      %v313 = vld [vmem:[%s169 + $0x440] sm:$0xff]
      %v314 = vld [vmem:[%s169 + $0x448] sm:$0xff]
      %v315 = vld [vmem:[%s169 + $0x450] sm:$0xff]
      %v316 = vld [vmem:[%s169 + $0x458] sm:$0xff]
      %v317 = vld [vmem:[%s169 + $0x460] sm:$0xff]
      %v318 = vld [vmem:[%s169 + $0x468] sm:$0xff]
      %v319 = vld [vmem:[%s169 + $0x470] sm:$0xff]
      %v320 = vld [vmem:[%s169 + $0x478] sm:$0xff]
      %v321 = vld [vmem:[%s169 + $0x480] sm:$0xff]
      %v322 = vld [vmem:[%s169 + $0x488] sm:$0xff]
      %v323 = vld [vmem:[%s169 + $0x490] sm:$0xff]
      %v324 = vld [vmem:[%s169 + $0x498] sm:$0xff]
      %v325 = vld [vmem:[%s169 + $0x4a0] sm:$0xff]
      %v326 = vld [vmem:[%s169 + $0x4a8] sm:$0xff]
      %v327 = vld [vmem:[%s169 + $0x4b0] sm:$0xff]
      %v328 = vld [vmem:[%s169 + $0x4b8] sm:$0xff]
      %v329 = vld [vmem:[%s169 + $0x4c0] sm:$0xff]
      %v330 = vld [vmem:[%s169 + $0x4c8] sm:$0xff]
      %v331 = vld [vmem:[%s169 + $0x4d0] sm:$0xff]
      %v332 = vld [vmem:[%s169 + $0x4d8] sm:$0xff]
      %v333 = vld [vmem:[%s169 + $0x4e0] sm:$0xff]
      %v334 = vld [vmem:[%s169 + $0x4e8] sm:$0xff]
      %v335 = vld [vmem:[%s169 + $0x4f0] sm:$0xff]
      %v336 = vld [vmem:[%s169 + $0x4f8] sm:$0xff]
      %v337 = vld [vmem:[%s169 + $0x500] sm:$0xff]
      %v338 = vld [vmem:[%s169 + $0x508] sm:$0xff]
      %v339 = vld [vmem:[%s169 + $0x510] sm:$0xff]
      %v340 = vld [vmem:[%s169 + $0x518] sm:$0xff]
      %v341 = vld [vmem:[%s169 + $0x520] sm:$0xff]
      %v342 = vld [vmem:[%s169 + $0x528] sm:$0xff]
      %v343 = vld [vmem:[%s169 + $0x530] sm:$0xff]
      %v344 = vld [vmem:[%s169 + $0x538] sm:$0xff]
      %v345 = vld [vmem:[%s169 + $0x540] sm:$0xff]
      %v346 = vld [vmem:[%s169 + $0x548] sm:$0xff]
      %v347 = vld [vmem:[%s169 + $0x550] sm:$0xff]
      %v348 = vld [vmem:[%s169 + $0x558] sm:$0xff]
      %v349 = vld [vmem:[%s169 + $0x560] sm:$0xff]
      %v350 = vld [vmem:[%s169 + $0x568] sm:$0xff]
      %v351 = vld [vmem:[%s169 + $0x570] sm:$0xff]
      %v352 = vld [vmem:[%s169 + $0x578] sm:$0xff]
      %v353 = vld [vmem:[%s169 + $0x580] sm:$0xff]
      %v354 = vld [vmem:[%s169 + $0x588] sm:$0xff]
      %v355 = vld [vmem:[%s169 + $0x590] sm:$0xff]
      %v356 = vld [vmem:[%s169 + $0x598] sm:$0xff]
      %v357 = vld [vmem:[%s169 + $0x5a0] sm:$0xff]
      %v358 = vld [vmem:[%s169 + $0x5a8] sm:$0xff]
      %v359 = vld [vmem:[%s169 + $0x5b0] sm:$0xff]
      %v360 = vld [vmem:[%s169 + $0x5b8] sm:$0xff]
      %v361 = vld [vmem:[%s169 + $0x5c0] sm:$0xff]
      %v362 = vld [vmem:[%s169 + $0x5c8] sm:$0xff]
      %v363 = vld [vmem:[%s169 + $0x5d0] sm:$0xff]
      %v364 = vld [vmem:[%s169 + $0x5d8] sm:$0xff]
      %v365 = vld [vmem:[%s169 + $0x5e0] sm:$0xff]
      %v366 = vld [vmem:[%s169 + $0x5e8] sm:$0xff]
      %v367 = vld [vmem:[%s169 + $0x5f0] sm:$0xff]
      %v368 = vld [vmem:[%s169 + $0x5f8] sm:$0xff]
      %v369 = vld [vmem:[%s169 + $0x600] sm:$0xff]
      %v370 = vld [vmem:[%s169 + $0x608] sm:$0xff]
      %v371 = vld [vmem:[%s169 + $0x610] sm:$0xff]
      %v372 = vld [vmem:[%s169 + $0x618] sm:$0xff]
      %v373 = vld [vmem:[%s1] sm:$0xff]
      %v374 = vld [vmem:[%s1 + $0x8] sm:$0xff]
      %v375 = vld [vmem:[%s1 + $0x10] sm:$0xff]
      %v376 = vld [vmem:[%s1 + $0x18] sm:$0xff]
      %v377 = vld [vmem:[%s1 + $0x20] sm:$0xff]
      %v378 = vld [vmem:[%s1 + $0x28] sm:$0xff]
      %v379 = vld [vmem:[%s1 + $0x30] sm:$0xff]
      %v380 = vld [vmem:[%s1 + $0x38] sm:$0xff]
      %v381 = vld [vmem:[%s1 + $0x40] sm:$0xff]
      %v382 = vld [vmem:[%s1 + $0x48] sm:$0xff]
      %v383 = vld [vmem:[%s1 + $0x50] sm:$0xff]
      %v384 = vld [vmem:[%s1 + $0x58] sm:$0xff]
      %v385 = vld [vmem:[%s1 + $0x60] sm:$0xff]
      %v386 = vld [vmem:[%s1 + $0x68] sm:$0xff]
      %v387 = vld [vmem:[%s1 + $0x70] sm:$0xff]
      %v388 = vld [vmem:[%s1 + $0x78] sm:$0xff]
      %v389 = vld [vmem:[%s1 + $0x80] sm:$0xff]
      %v390 = vld [vmem:[%s1 + $0x88] sm:$0xff]
      %v391 = vld [vmem:[%s2] sm:$0x1]
      %v393 = vlaneseq
      %v394 = vshrl.u32 %v393, 7
      %v395 = vsub.s32 0, %v394
      %v396 = vrot.slane %v391, %v395
      %vm398 = vcmask 130048
      %v400 = vsel %vm398, %v178, 0
      %v403 = vsel %vm398, %v180, 0
      %v406 = vsel %vm398, %v182, 0
      %v409 = vsel %vm398, %v184, 0
      %v412 = vsel %vm398, %v186, 0
      %v415 = vsel %vm398, %v188, 0
      %v418 = vsel %vm398, %v190, 0
      %v421 = vsel %vm398, %v192, 0
      %v424 = vsel %vm398, %v194, 0
      %v427 = vsel %vm398, %v196, 0
      %v430 = vsel %vm398, %v198, 0
      %v433 = vsel %vm398, %v200, 0
      %v436 = vsel %vm398, %v202, 0
      %v439 = vsel %vm398, %v204, 0
      %v442 = vsel %vm398, %v206, 0
      %v445 = vsel %vm398, %v208, 0
      %v448 = vsel %vm398, %v210, 0
      %v451 = vsel %vm398, %v212, 0
      %v454 = vsel %vm398, %v214, 0
      %v457 = vsel %vm398, %v216, 0
      %v460 = vsel %vm398, %v218, 0
      %v463 = vsel %vm398, %v220, 0
      %v466 = vsel %vm398, %v222, 0
      %v469 = vsel %vm398, %v224, 0
      %v472 = vsel %vm398, %v226, 0
      %v475 = vsel %vm398, %v228, 0
      %v478 = vsel %vm398, %v230, 0
      %v481 = vsel %vm398, %v232, 0
      %v484 = vsel %vm398, %v234, 0
      %v487 = vsel %vm398, %v236, 0
      %v490 = vsel %vm398, %v238, 0
      %v493 = vsel %vm398, %v240, 0
      %v496 = vsel %vm398, %v242, 0
      %v499 = vsel %vm398, %v244, 0
      %v502 = vsel %vm398, %v246, 0
      %v505 = vsel %vm398, %v248, 0
      %v508 = vsel %vm398, %v250, 0
      %v511 = vsel %vm398, %v252, 0
      %v514 = vsel %vm398, %v254, 0
      %v517 = vsel %vm398, %v256, 0
      %v520 = vsel %vm398, %v258, 0
      %v523 = vsel %vm398, %v260, 0
      %v526 = vsel %vm398, %v262, 0
      %v529 = vsel %vm398, %v264, 0
      %v532 = vsel %vm398, %v266, 0
      %v535 = vsel %vm398, %v268, 0
      %v538 = vsel %vm398, %v270, 0
      %v541 = vsel %vm398, %v272, 0
      %v544 = vsel %vm398, %v274, 0
      %v547 = vsel %vm398, %v276, 0
      %v550 = vsel %vm398, %v278, 0
      %v553 = vsel %vm398, %v280, 0
      %v556 = vsel %vm398, %v282, 0
      %v559 = vsel %vm398, %v284, 0
      %v562 = vsel %vm398, %v286, 0
      %v565 = vsel %vm398, %v288, 0
      %v568 = vsel %vm398, %v290, 0
      %v571 = vsel %vm398, %v292, 0
      %v574 = vsel %vm398, %v294, 0
      %v577 = vsel %vm398, %v296, 0
      %v580 = vsel %vm398, %v298, 0
      %v583 = vsel %vm398, %v300, 0
      %v586 = vsel %vm398, %v302, 0
      %v589 = vsel %vm398, %v304, 0
      %v592 = vsel %vm398, %v306, 0
      %v595 = vsel %vm398, %v308, 0
      %v598 = vsel %vm398, %v310, 0
      %v601 = vsel %vm398, %v312, 0
      %v604 = vsel %vm398, %v314, 0
      %v607 = vsel %vm398, %v316, 0
      %v610 = vsel %vm398, %v318, 0
      %v613 = vsel %vm398, %v320, 0
      %v616 = vsel %vm398, %v322, 0
      %v619 = vsel %vm398, %v324, 0
      %v622 = vsel %vm398, %v326, 0
      %v625 = vsel %vm398, %v328, 0
      %v628 = vsel %vm398, %v330, 0
      %v631 = vsel %vm398, %v332, 0
      %v634 = vsel %vm398, %v334, 0
      %v637 = vsel %vm398, %v336, 0
      %v640 = vsel %vm398, %v338, 0
      %v643 = vsel %vm398, %v340, 0
      %v646 = vsel %vm398, %v342, 0
      %v649 = vsel %vm398, %v344, 0
      %v652 = vsel %vm398, %v346, 0
      %v655 = vsel %vm398, %v348, 0
      %v658 = vsel %vm398, %v350, 0
      %v661 = vsel %vm398, %v352, 0
      %v664 = vsel %vm398, %v354, 0
      %v667 = vsel %vm398, %v356, 0
      %v670 = vsel %vm398, %v358, 0
      %v673 = vsel %vm398, %v360, 0
      %v676 = vsel %vm398, %v362, 0
      %v679 = vsel %vm398, %v364, 0
      %v682 = vsel %vm398, %v366, 0
      %v685 = vsel %vm398, %v368, 0
      %v688 = vsel %vm398, %v370, 0
      %v691 = vsel %vm398, %v372, 0
      %693 = vmatprep.subr.mxu0 0.0
      %694 = vmatpush1.msra.mxu0 %v373
      %695 = vmatprep.subr.mxu0 0.0
      %696 = vmatpush1.msra.mxu0 %v374
      %697 = vmatprep.subr.mxu0 0.0
      %698 = vmatpush1.msra.mxu0 %v375
      %699 = vmatprep.subr.mxu0 0.0
      %700 = vmatpush1.msra.mxu0 %v376
      %701 = vmatprep.subr.mxu0 0.0
      %702 = vmatpush1.msra.mxu0 %v377
      %703 = vmatprep.subr.mxu0 0.0
      %704 = vmatpush1.msra.mxu0 %v378
      %705 = vmatprep.subr.mxu0 0.0
      %706 = vmatpush1.msra.mxu0 %v379
      %707 = vmatprep.subr.mxu0 0.0
      %708 = vmatpush1.msra.mxu0 %v380
      %709 = vmatprep.subr.mxu0 0.0
      %710 = vmatpush1.msra.mxu0 %v381
      %711 = vmatprep.subr.mxu0 0.0
      %712 = vmatpush1.msra.mxu0 %v382
      %713 = vmatprep.subr.mxu0 0.0
      %714 = vmatpush1.msra.mxu0 %v383
      %715 = vmatprep.subr.mxu0 0.0
      %716 = vmatpush1.msra.mxu0 %v384
      %717 = vmatprep.subr.mxu0 0.0
      %718 = vmatpush1.msra.mxu0 %v385
      %719 = vmatprep.subr.mxu0 0.0
      %720 = vmatpush1.msra.mxu0 %v386
      %721 = vmatprep.subr.mxu0 0.0
      %722 = vmatpush1.msra.mxu0 %v387
      %723 = vmatprep.subr.mxu0 0.0
      %724 = vmatpush1.msra.mxu0 %v388
      %725 = vmatprep.subr.mxu0 0.0
      %726 = vmatpush1.msra.mxu0 %v389
      %727 = vmatprep.subr.mxu0 0.0
      %728 = vmatpush1.msra.mxu0 %v390
      %729 = vmatprep.subr.mxu0 0.0
      %730 = vmatpush1.msra.mxu0 0.0
      %731 = vmatprep.subr.mxu0 0.0
      %732 = vmatpush1.msra.mxu0 0.0
      %733 = vmatprep.subr.mxu0 0.0
      %734 = vmatpush1.msra.mxu0 0.0
      %735 = vmatprep.subr.mxu0 0.0
      %736 = vmatpush1.msra.mxu0 0.0
      %737 = vmatprep.subr.mxu0 0.0
      %738 = vmatpush1.msra.mxu0 0.0
      %739 = vmatprep.subr.mxu0 0.0
      %740 = vmatpush1.msra.mxu0 0.0
      %741 = vmatprep.subr.mxu0 0.0
      %742 = vmatpush1.msra.mxu0 0.0
      %743 = vmatprep.subr.mxu0 0.0
      %744 = vmatpush1.msra.mxu0 0.0
      %745 = vmatprep.subr.mxu0 0.0
      %746 = vmatpush1.msra.mxu0 0.0
      %747 = vmatprep.subr.mxu0 0.0
      %748 = vmatpush1.msra.mxu0 0.0
      %749 = vmatprep.subr.mxu0 0.0
      %750 = vmatpush1.msra.mxu0 0.0
      %751 = vmatprep.subr.mxu0 0.0
      %752 = vmatpush1.msra.mxu0 0.0
      %753 = vmatprep.subr.mxu0 0.0
      %754 = vmatpush1.msra.mxu0 0.0
      %755 = vmatprep.subr.mxu0 0.0
      %756 = vmatpush1.msra.mxu0 0.0
      %757 = vmatprep.mubr.f32.mxu0 %v400
      %758 = vmatmul.mubr.f32.gmra.mrb[0].mxu0 %v177
      %v759 = vpop.f32.mrb[0].mxu0
      %v760 = vadd.f32 %v396, %v759
      %v761 = vpop.f32.mrb[0].mxu0
      %762 = vmatprep.mubr.f32.mxu0 %v403
      %763 = vmatmul.mubr.f32.gmra.mrb[0].mxu0 %v179
      %v764 = vpop.f32.mrb[0].mxu0
      %v765 = vadd.f32 %v396, %v764
      %v766 = vpop.f32.mrb[0].mxu0
      %767 = vmatprep.mubr.f32.mxu0 %v406
      %768 = vmatmul.mubr.f32.gmra.mrb[0].mxu0 %v181
      %v769 = vpop.f32.mrb[0].mxu0
      %v770 = vadd.f32 %v396, %v769
      %v771 = vpop.f32.mrb[0].mxu0
      %772 = vmatprep.mubr.f32.mxu0 %v409
      %773 = vmatmul.mubr.f32.gmra.mrb[0].mxu0 %v183
      %v774 = vpop.f32.mrb[0].mxu0
      %v775 = vadd.f32 %v396, %v774
      %v776 = vpop.f32.mrb[0].mxu0
      %777 = vmatprep.mubr.f32.mxu0 %v412
      %778 = vmatmul.mubr.f32.gmra.mrb[0].mxu0 %v185
      %v779 = vpop.f32.mrb[0].mxu0
      %v780 = vadd.f32 %v396, %v779
      %v781 = vpop.f32.mrb[0].mxu0
      %782 = vmatprep.mubr.f32.mxu0 %v415
      %783 = vmatmul.mubr.f32.gmra.mrb[0].mxu0 %v187
      %v784 = vpop.f32.mrb[0].mxu0
      %v785 = vadd.f32 %v396, %v784
      %v786 = vpop.f32.mrb[0].mxu0
      %787 = vmatprep.mubr.f32.mxu0 %v418
      %788 = vmatmul.mubr.f32.gmra.mrb[0].mxu0 %v189
      %v789 = vpop.f32.mrb[0].mxu0
      %v790 = vadd.f32 %v396, %v789
      %v791 = vpop.f32.mrb[0].mxu0
      %792 = vmatprep.mubr.f32.mxu0 %v421
      %793 = vmatmul.mubr.f32.gmra.mrb[0].mxu0 %v191
      %v794 = vpop.f32.mrb[0].mxu0
      %v795 = vadd.f32 %v396, %v794
      %v796 = vpop.f32.mrb[0].mxu0
      %797 = vmatprep.mubr.f32.mxu0 %v424
      %798 = vmatmul.mubr.f32.gmra.mrb[0].mxu0 %v193
      %v799 = vpop.f32.mrb[0].mxu0
      %v800 = vadd.f32 %v396, %v799
      %v801 = vpop.f32.mrb[0].mxu0
      %802 = vmatprep.mubr.f32.mxu0 %v427
      %803 = vmatmul.mubr.f32.gmra.mrb[0].mxu0 %v195
      %v804 = vpop.f32.mrb[0].mxu0
      %v805 = vadd.f32 %v396, %v804
      %v806 = vpop.f32.mrb[0].mxu0
      %807 = vmatprep.mubr.f32.mxu0 %v430
      %808 = vmatmul.mubr.f32.gmra.mrb[0].mxu0 %v197
      %v809 = vpop.f32.mrb[0].mxu0
      %v810 = vadd.f32 %v396, %v809
      %v811 = vpop.f32.mrb[0].mxu0
      %812 = vmatprep.mubr.f32.mxu0 %v433
      %813 = vmatmul.mubr.f32.gmra.mrb[0].mxu0 %v199
      %v814 = vpop.f32.mrb[0].mxu0
      %v815 = vadd.f32 %v396, %v814
      %v816 = vpop.f32.mrb[0].mxu0
      %817 = vmatprep.mubr.f32.mxu0 %v436
      %818 = vmatmul.mubr.f32.gmra.mrb[0].mxu0 %v201
      %v819 = vpop.f32.mrb[0].mxu0
      %v820 = vadd.f32 %v396, %v819
      %v821 = vpop.f32.mrb[0].mxu0
      %822 = vmatprep.mubr.f32.mxu0 %v439
      %823 = vmatmul.mubr.f32.gmra.mrb[0].mxu0 %v203
      %v824 = vpop.f32.mrb[0].mxu0
      %v825 = vadd.f32 %v396, %v824
      %v826 = vpop.f32.mrb[0].mxu0
      %827 = vmatprep.mubr.f32.mxu0 %v442
      %828 = vmatmul.mubr.f32.gmra.mrb[0].mxu0 %v205
      %v829 = vpop.f32.mrb[0].mxu0
      %v830 = vadd.f32 %v396, %v829
      %v831 = vpop.f32.mrb[0].mxu0
      %832 = vmatprep.mubr.f32.mxu0 %v445
      %833 = vmatmul.mubr.f32.gmra.mrb[0].mxu0 %v207
      %v834 = vpop.f32.mrb[0].mxu0
      %v835 = vadd.f32 %v396, %v834
      %v836 = vpop.f32.mrb[0].mxu0
      %837 = vmatprep.mubr.f32.mxu0 %v448
      %838 = vmatmul.mubr.f32.gmra.mrb[0].mxu0 %v209
      %v839 = vpop.f32.mrb[0].mxu0
      %v840 = vadd.f32 %v396, %v839
      %v841 = vpop.f32.mrb[0].mxu0
      %842 = vmatprep.mubr.f32.mxu0 %v451
      %843 = vmatmul.mubr.f32.gmra.mrb[0].mxu0 %v211
      %v844 = vpop.f32.mrb[0].mxu0
      %v845 = vadd.f32 %v396, %v844
      %v846 = vpop.f32.mrb[0].mxu0
      %847 = vmatprep.mubr.f32.mxu0 %v454
      %848 = vmatmul.mubr.f32.gmra.mrb[0].mxu0 %v213
      %v849 = vpop.f32.mrb[0].mxu0
      %v850 = vadd.f32 %v396, %v849
      %v851 = vpop.f32.mrb[0].mxu0
      %852 = vmatprep.mubr.f32.mxu0 %v457
      %853 = vmatmul.mubr.f32.gmra.mrb[0].mxu0 %v215
      %v854 = vpop.f32.mrb[0].mxu0
      %v855 = vadd.f32 %v396, %v854
      %v856 = vpop.f32.mrb[0].mxu0
      %857 = vmatprep.mubr.f32.mxu0 %v460
      %858 = vmatmul.mubr.f32.gmra.mrb[0].mxu0 %v217
      %v859 = vpop.f32.mrb[0].mxu0
      %v860 = vadd.f32 %v396, %v859
      %v861 = vpop.f32.mrb[0].mxu0
      %862 = vmatprep.mubr.f32.mxu0 %v463
      %863 = vmatmul.mubr.f32.gmra.mrb[0].mxu0 %v219
      %v864 = vpop.f32.mrb[0].mxu0
      %v865 = vadd.f32 %v396, %v864
      %v866 = vpop.f32.mrb[0].mxu0
      %867 = vmatprep.mubr.f32.mxu0 %v466
      %868 = vmatmul.mubr.f32.gmra.mrb[0].mxu0 %v221
      %v869 = vpop.f32.mrb[0].mxu0
      %v870 = vadd.f32 %v396, %v869
      %v871 = vpop.f32.mrb[0].mxu0
      %872 = vmatprep.mubr.f32.mxu0 %v469
      %873 = vmatmul.mubr.f32.gmra.mrb[0].mxu0 %v223
      %v874 = vpop.f32.mrb[0].mxu0
      %v875 = vadd.f32 %v396, %v874
      %v876 = vpop.f32.mrb[0].mxu0
      %877 = vmatprep.mubr.f32.mxu0 %v472
      %878 = vmatmul.mubr.f32.gmra.mrb[0].mxu0 %v225
      %v879 = vpop.f32.mrb[0].mxu0
      %v880 = vadd.f32 %v396, %v879
      %v881 = vpop.f32.mrb[0].mxu0
      %882 = vmatprep.mubr.f32.mxu0 %v475
      %883 = vmatmul.mubr.f32.gmra.mrb[0].mxu0 %v227
      %v884 = vpop.f32.mrb[0].mxu0
      %v885 = vadd.f32 %v396, %v884
      %v886 = vpop.f32.mrb[0].mxu0
      %887 = vmatprep.mubr.f32.mxu0 %v478
      %888 = vmatmul.mubr.f32.gmra.mrb[0].mxu0 %v229
      %v889 = vpop.f32.mrb[0].mxu0
      %v890 = vadd.f32 %v396, %v889
      %v891 = vpop.f32.mrb[0].mxu0
      %892 = vmatprep.mubr.f32.mxu0 %v481
      %893 = vmatmul.mubr.f32.gmra.mrb[0].mxu0 %v231
      %v894 = vpop.f32.mrb[0].mxu0
      %v895 = vadd.f32 %v396, %v894
      %v896 = vpop.f32.mrb[0].mxu0
      %897 = vmatprep.mubr.f32.mxu0 %v484
      %898 = vmatmul.mubr.f32.gmra.mrb[0].mxu0 %v233
      %v899 = vpop.f32.mrb[0].mxu0
      %v900 = vadd.f32 %v396, %v899
      %v901 = vpop.f32.mrb[0].mxu0
      %902 = vmatprep.mubr.f32.mxu0 %v487
      %903 = vmatmul.mubr.f32.gmra.mrb[0].mxu0 %v235
      %v904 = vpop.f32.mrb[0].mxu0
      %v905 = vadd.f32 %v396, %v904
      %v906 = vpop.f32.mrb[0].mxu0
      %907 = vmatprep.mubr.f32.mxu0 %v490
      %908 = vmatmul.mubr.f32.gmra.mrb[0].mxu0 %v237
      %v909 = vpop.f32.mrb[0].mxu0
      %v910 = vadd.f32 %v396, %v909
      %v911 = vpop.f32.mrb[0].mxu0
      %912 = vmatprep.mubr.f32.mxu0 %v493
      %913 = vmatmul.mubr.f32.gmra.mrb[0].mxu0 %v239
      %v914 = vpop.f32.mrb[0].mxu0
      %v915 = vadd.f32 %v396, %v914
      %v916 = vpop.f32.mrb[0].mxu0
      %917 = vmatprep.mubr.f32.mxu0 %v496
      %918 = vmatmul.mubr.f32.gmra.mrb[0].mxu0 %v241
      %v919 = vpop.f32.mrb[0].mxu0
      %v920 = vadd.f32 %v396, %v919
      %v921 = vpop.f32.mrb[0].mxu0
      %922 = vmatprep.mubr.f32.mxu0 %v499
      %923 = vmatmul.mubr.f32.gmra.mrb[0].mxu0 %v243
      %v924 = vpop.f32.mrb[0].mxu0
      %v925 = vadd.f32 %v396, %v924
      %v926 = vpop.f32.mrb[0].mxu0
      %927 = vmatprep.mubr.f32.mxu0 %v502
      %928 = vmatmul.mubr.f32.gmra.mrb[0].mxu0 %v245
      %v929 = vpop.f32.mrb[0].mxu0
      %v930 = vadd.f32 %v396, %v929
      %v931 = vpop.f32.mrb[0].mxu0
      %932 = vmatprep.mubr.f32.mxu0 %v505
      %933 = vmatmul.mubr.f32.gmra.mrb[0].mxu0 %v247
      %v934 = vpop.f32.mrb[0].mxu0
      %v935 = vadd.f32 %v396, %v934
      %v936 = vpop.f32.mrb[0].mxu0
      %937 = vmatprep.mubr.f32.mxu0 %v508
      %938 = vmatmul.mubr.f32.gmra.mrb[0].mxu0 %v249
      %v939 = vpop.f32.mrb[0].mxu0
      %v940 = vadd.f32 %v396, %v939
      %v941 = vpop.f32.mrb[0].mxu0
      %942 = vmatprep.mubr.f32.mxu0 %v511
      %943 = vmatmul.mubr.f32.gmra.mrb[0].mxu0 %v251
      %v944 = vpop.f32.mrb[0].mxu0
      %v945 = vadd.f32 %v396, %v944
      %v946 = vpop.f32.mrb[0].mxu0
      %947 = vmatprep.mubr.f32.mxu0 %v514
      %948 = vmatmul.mubr.f32.gmra.mrb[0].mxu0 %v253
      %v949 = vpop.f32.mrb[0].mxu0
      %v950 = vadd.f32 %v396, %v949
      %v951 = vpop.f32.mrb[0].mxu0
      %952 = vmatprep.mubr.f32.mxu0 %v517
      %953 = vmatmul.mubr.f32.gmra.mrb[0].mxu0 %v255
      %v954 = vpop.f32.mrb[0].mxu0
      %v955 = vadd.f32 %v396, %v954
      %v956 = vpop.f32.mrb[0].mxu0
      %957 = vmatprep.mubr.f32.mxu0 %v520
      %958 = vmatmul.mubr.f32.gmra.mrb[0].mxu0 %v257
      %v959 = vpop.f32.mrb[0].mxu0
      %v960 = vadd.f32 %v396, %v959
      %v961 = vpop.f32.mrb[0].mxu0
      %962 = vmatprep.mubr.f32.mxu0 %v523
      %963 = vmatmul.mubr.f32.gmra.mrb[0].mxu0 %v259
      %v964 = vpop.f32.mrb[0].mxu0
      %v965 = vadd.f32 %v396, %v964
      %v966 = vpop.f32.mrb[0].mxu0
      %967 = vmatprep.mubr.f32.mxu0 %v526
      %968 = vmatmul.mubr.f32.gmra.mrb[0].mxu0 %v261
      %v969 = vpop.f32.mrb[0].mxu0
      %v970 = vadd.f32 %v396, %v969
      %v971 = vpop.f32.mrb[0].mxu0
      %972 = vmatprep.mubr.f32.mxu0 %v529
      %973 = vmatmul.mubr.f32.gmra.mrb[0].mxu0 %v263
      %v974 = vpop.f32.mrb[0].mxu0
      %v975 = vadd.f32 %v396, %v974
      %v976 = vpop.f32.mrb[0].mxu0
      %977 = vmatprep.mubr.f32.mxu0 %v532
      %978 = vmatmul.mubr.f32.gmra.mrb[0].mxu0 %v265
      %v979 = vpop.f32.mrb[0].mxu0
      %v980 = vadd.f32 %v396, %v979
      %v981 = vpop.f32.mrb[0].mxu0
      %982 = vmatprep.mubr.f32.mxu0 %v535
      %983 = vmatmul.mubr.f32.gmra.mrb[0].mxu0 %v267
      %v984 = vpop.f32.mrb[0].mxu0
      %v985 = vadd.f32 %v396, %v984
      %v986 = vpop.f32.mrb[0].mxu0
      %987 = vmatprep.mubr.f32.mxu0 %v538
      %988 = vmatmul.mubr.f32.gmra.mrb[0].mxu0 %v269
      %v989 = vpop.f32.mrb[0].mxu0
      %v990 = vadd.f32 %v396, %v989
      %v991 = vpop.f32.mrb[0].mxu0
      %992 = vmatprep.mubr.f32.mxu0 %v541
      %993 = vmatmul.mubr.f32.gmra.mrb[0].mxu0 %v271
      %v994 = vpop.f32.mrb[0].mxu0
      %v995 = vadd.f32 %v396, %v994
      %v996 = vpop.f32.mrb[0].mxu0
      %997 = vmatprep.mubr.f32.mxu0 %v544
      %998 = vmatmul.mubr.f32.gmra.mrb[0].mxu0 %v273
      %v999 = vpop.f32.mrb[0].mxu0
      %v1000 = vadd.f32 %v396, %v999
      %v1001 = vpop.f32.mrb[0].mxu0
      %1002 = vmatprep.mubr.f32.mxu0 %v547
      %1003 = vmatmul.mubr.f32.gmra.mrb[0].mxu0 %v275
      %v1004 = vpop.f32.mrb[0].mxu0
      %v1005 = vadd.f32 %v396, %v1004
      %v1006 = vpop.f32.mrb[0].mxu0
      %1007 = vmatprep.mubr.f32.mxu0 %v550
      %1008 = vmatmul.mubr.f32.gmra.mrb[0].mxu0 %v277
      %v1009 = vpop.f32.mrb[0].mxu0
      %v1010 = vadd.f32 %v396, %v1009
      %v1011 = vpop.f32.mrb[0].mxu0
      %1012 = vmatprep.mubr.f32.mxu0 %v553
      %1013 = vmatmul.mubr.f32.gmra.mrb[0].mxu0 %v279
      %v1014 = vpop.f32.mrb[0].mxu0
      %v1015 = vadd.f32 %v396, %v1014
      %v1016 = vpop.f32.mrb[0].mxu0
      %1017 = vmatprep.mubr.f32.mxu0 %v556
      %1018 = vmatmul.mubr.f32.gmra.mrb[0].mxu0 %v281
      %v1019 = vpop.f32.mrb[0].mxu0
      %v1020 = vadd.f32 %v396, %v1019
      %v1021 = vpop.f32.mrb[0].mxu0
      %1022 = vmatprep.mubr.f32.mxu0 %v559
      %1023 = vmatmul.mubr.f32.gmra.mrb[0].mxu0 %v283
      %v1024 = vpop.f32.mrb[0].mxu0
      %v1025 = vadd.f32 %v396, %v1024
      %v1026 = vpop.f32.mrb[0].mxu0
      %1027 = vmatprep.mubr.f32.mxu0 %v562
      %1028 = vmatmul.mubr.f32.gmra.mrb[0].mxu0 %v285
      %v1029 = vpop.f32.mrb[0].mxu0
      %v1030 = vadd.f32 %v396, %v1029
      %v1031 = vpop.f32.mrb[0].mxu0
      %1032 = vmatprep.mubr.f32.mxu0 %v565
      %1033 = vmatmul.mubr.f32.gmra.mrb[0].mxu0 %v287
      %v1034 = vpop.f32.mrb[0].mxu0
      %v1035 = vadd.f32 %v396, %v1034
      %v1036 = vpop.f32.mrb[0].mxu0
      %1037 = vmatprep.mubr.f32.mxu0 %v568
      %1038 = vmatmul.mubr.f32.gmra.mrb[0].mxu0 %v289
      %v1039 = vpop.f32.mrb[0].mxu0
      %v1040 = vadd.f32 %v396, %v1039
      %v1041 = vpop.f32.mrb[0].mxu0
      %1042 = vmatprep.mubr.f32.mxu0 %v571
      %1043 = vmatmul.mubr.f32.gmra.mrb[0].mxu0 %v291
      %v1044 = vpop.f32.mrb[0].mxu0
      %v1045 = vadd.f32 %v396, %v1044
      %v1046 = vpop.f32.mrb[0].mxu0
      %1047 = vmatprep.mubr.f32.mxu0 %v574
      %1048 = vmatmul.mubr.f32.gmra.mrb[0].mxu0 %v293
      %v1049 = vpop.f32.mrb[0].mxu0
      %v1050 = vadd.f32 %v396, %v1049
      %v1051 = vpop.f32.mrb[0].mxu0
      %1052 = vmatprep.mubr.f32.mxu0 %v577
      %1053 = vmatmul.mubr.f32.gmra.mrb[0].mxu0 %v295
      %v1054 = vpop.f32.mrb[0].mxu0
      %v1055 = vadd.f32 %v396, %v1054
      %v1056 = vpop.f32.mrb[0].mxu0
      %1057 = vmatprep.mubr.f32.mxu0 %v580
      %1058 = vmatmul.mubr.f32.gmra.mrb[0].mxu0 %v297
      %v1059 = vpop.f32.mrb[0].mxu0
      %v1060 = vadd.f32 %v396, %v1059
      %v1061 = vpop.f32.mrb[0].mxu0
      %1062 = vmatprep.mubr.f32.mxu0 %v583
      %1063 = vmatmul.mubr.f32.gmra.mrb[0].mxu0 %v299
      %v1064 = vpop.f32.mrb[0].mxu0
      %v1065 = vadd.f32 %v396, %v1064
      %v1066 = vpop.f32.mrb[0].mxu0
      %1067 = vmatprep.mubr.f32.mxu0 %v586
      %1068 = vmatmul.mubr.f32.gmra.mrb[0].mxu0 %v301
      %v1069 = vpop.f32.mrb[0].mxu0
      %v1070 = vadd.f32 %v396, %v1069
      %v1071 = vpop.f32.mrb[0].mxu0
      %1072 = vmatprep.mubr.f32.mxu0 %v589
      %1073 = vmatmul.mubr.f32.gmra.mrb[0].mxu0 %v303
      %v1074 = vpop.f32.mrb[0].mxu0
      %v1075 = vadd.f32 %v396, %v1074
      %v1076 = vpop.f32.mrb[0].mxu0
      %1077 = vmatprep.mubr.f32.mxu0 %v592
      %1078 = vmatmul.mubr.f32.gmra.mrb[0].mxu0 %v305
      %v1079 = vpop.f32.mrb[0].mxu0
      %v1080 = vadd.f32 %v396, %v1079
      %v1081 = vpop.f32.mrb[0].mxu0
      %1082 = vmatprep.mubr.f32.mxu0 %v595
      %1083 = vmatmul.mubr.f32.gmra.mrb[0].mxu0 %v307
      %v1084 = vpop.f32.mrb[0].mxu0
      %v1085 = vadd.f32 %v396, %v1084
      %v1086 = vpop.f32.mrb[0].mxu0
      %1087 = vmatprep.mubr.f32.mxu0 %v598
      %1088 = vmatmul.mubr.f32.gmra.mrb[0].mxu0 %v309
      %v1089 = vpop.f32.mrb[0].mxu0
      %v1090 = vadd.f32 %v396, %v1089
      %v1091 = vpop.f32.mrb[0].mxu0
      %1092 = vmatprep.mubr.f32.mxu0 %v601
      %1093 = vmatmul.mubr.f32.gmra.mrb[0].mxu0 %v311
      %v1094 = vpop.f32.mrb[0].mxu0
      %v1095 = vadd.f32 %v396, %v1094
      %v1096 = vpop.f32.mrb[0].mxu0
      %1097 = vmatprep.mubr.f32.mxu0 %v604
      %1098 = vmatmul.mubr.f32.gmra.mrb[0].mxu0 %v313
      %v1099 = vpop.f32.mrb[0].mxu0
      %v1100 = vadd.f32 %v396, %v1099
      %v1101 = vpop.f32.mrb[0].mxu0
      %1102 = vmatprep.mubr.f32.mxu0 %v607
      %1103 = vmatmul.mubr.f32.gmra.mrb[0].mxu0 %v315
      %v1104 = vpop.f32.mrb[0].mxu0
      %v1105 = vadd.f32 %v396, %v1104
      %v1106 = vpop.f32.mrb[0].mxu0
      %1107 = vmatprep.mubr.f32.mxu0 %v610
      %1108 = vmatmul.mubr.f32.gmra.mrb[0].mxu0 %v317
      %v1109 = vpop.f32.mrb[0].mxu0
      %v1110 = vadd.f32 %v396, %v1109
      %v1111 = vpop.f32.mrb[0].mxu0
      %1112 = vmatprep.mubr.f32.mxu0 %v613
      %1113 = vmatmul.mubr.f32.gmra.mrb[0].mxu0 %v319
      %v1114 = vpop.f32.mrb[0].mxu0
      %v1115 = vadd.f32 %v396, %v1114
      %v1116 = vpop.f32.mrb[0].mxu0
      %1117 = vmatprep.mubr.f32.mxu0 %v616
      %1118 = vmatmul.mubr.f32.gmra.mrb[0].mxu0 %v321
      %v1119 = vpop.f32.mrb[0].mxu0
      %v1120 = vadd.f32 %v396, %v1119
      %v1121 = vpop.f32.mrb[0].mxu0
      %1122 = vmatprep.mubr.f32.mxu0 %v619
      %1123 = vmatmul.mubr.f32.gmra.mrb[0].mxu0 %v323
      %v1124 = vpop.f32.mrb[0].mxu0
      %v1125 = vadd.f32 %v396, %v1124
      %v1126 = vpop.f32.mrb[0].mxu0
      %1127 = vmatprep.mubr.f32.mxu0 %v622
      %1128 = vmatmul.mubr.f32.gmra.mrb[0].mxu0 %v325
      %v1129 = vpop.f32.mrb[0].mxu0
      %v1130 = vadd.f32 %v396, %v1129
      %v1131 = vpop.f32.mrb[0].mxu0
      %1132 = vmatprep.mubr.f32.mxu0 %v625
      %1133 = vmatmul.mubr.f32.gmra.mrb[0].mxu0 %v327
      %v1134 = vpop.f32.mrb[0].mxu0
      %v1135 = vadd.f32 %v396, %v1134
      %v1136 = vpop.f32.mrb[0].mxu0
      %1137 = vmatprep.mubr.f32.mxu0 %v628
      %1138 = vmatmul.mubr.f32.gmra.mrb[0].mxu0 %v329
      %v1139 = vpop.f32.mrb[0].mxu0
      %v1140 = vadd.f32 %v396, %v1139
      %v1141 = vpop.f32.mrb[0].mxu0
      %1142 = vmatprep.mubr.f32.mxu0 %v631
      %1143 = vmatmul.mubr.f32.gmra.mrb[0].mxu0 %v331
      %v1144 = vpop.f32.mrb[0].mxu0
      %v1145 = vadd.f32 %v396, %v1144
      %v1146 = vpop.f32.mrb[0].mxu0
      %1147 = vmatprep.mubr.f32.mxu0 %v634
      %1148 = vmatmul.mubr.f32.gmra.mrb[0].mxu0 %v333
      %v1149 = vpop.f32.mrb[0].mxu0
      %v1150 = vadd.f32 %v396, %v1149
      %v1151 = vpop.f32.mrb[0].mxu0
      %1152 = vmatprep.mubr.f32.mxu0 %v637
      %1153 = vmatmul.mubr.f32.gmra.mrb[0].mxu0 %v335
      %v1154 = vpop.f32.mrb[0].mxu0
      %v1155 = vadd.f32 %v396, %v1154
      %v1156 = vpop.f32.mrb[0].mxu0
      %1157 = vmatprep.mubr.f32.mxu0 %v640
      %1158 = vmatmul.mubr.f32.gmra.mrb[0].mxu0 %v337
      %v1159 = vpop.f32.mrb[0].mxu0
      %v1160 = vadd.f32 %v396, %v1159
      %v1161 = vpop.f32.mrb[0].mxu0
      %1162 = vmatprep.mubr.f32.mxu0 %v643
      %1163 = vmatmul.mubr.f32.gmra.mrb[0].mxu0 %v339
      %v1164 = vpop.f32.mrb[0].mxu0
      %v1165 = vadd.f32 %v396, %v1164
      %v1166 = vpop.f32.mrb[0].mxu0
      %1167 = vmatprep.mubr.f32.mxu0 %v646
      %1168 = vmatmul.mubr.f32.gmra.mrb[0].mxu0 %v341
      %v1169 = vpop.f32.mrb[0].mxu0
      %v1170 = vadd.f32 %v396, %v1169
      %v1171 = vpop.f32.mrb[0].mxu0
      %1172 = vmatprep.mubr.f32.mxu0 %v649
      %1173 = vmatmul.mubr.f32.gmra.mrb[0].mxu0 %v343
      %v1174 = vpop.f32.mrb[0].mxu0
      %v1175 = vadd.f32 %v396, %v1174
      %v1176 = vpop.f32.mrb[0].mxu0
      %1177 = vmatprep.mubr.f32.mxu0 %v652
      %1178 = vmatmul.mubr.f32.gmra.mrb[0].mxu0 %v345
      %v1179 = vpop.f32.mrb[0].mxu0
      %v1180 = vadd.f32 %v396, %v1179
      %v1181 = vpop.f32.mrb[0].mxu0
      %1182 = vmatprep.mubr.f32.mxu0 %v655
      %1183 = vmatmul.mubr.f32.gmra.mrb[0].mxu0 %v347
      %v1184 = vpop.f32.mrb[0].mxu0
      %v1185 = vadd.f32 %v396, %v1184
      %v1186 = vpop.f32.mrb[0].mxu0
      %1187 = vmatprep.mubr.f32.mxu0 %v658
      %1188 = vmatmul.mubr.f32.gmra.mrb[0].mxu0 %v349
      %v1189 = vpop.f32.mrb[0].mxu0
      %v1190 = vadd.f32 %v396, %v1189
      %v1191 = vpop.f32.mrb[0].mxu0
      %1192 = vmatprep.mubr.f32.mxu0 %v661
      %1193 = vmatmul.mubr.f32.gmra.mrb[0].mxu0 %v351
      %v1194 = vpop.f32.mrb[0].mxu0
      %v1195 = vadd.f32 %v396, %v1194
      %v1196 = vpop.f32.mrb[0].mxu0
      %1197 = vmatprep.mubr.f32.mxu0 %v664
      %1198 = vmatmul.mubr.f32.gmra.mrb[0].mxu0 %v353
      %v1199 = vpop.f32.mrb[0].mxu0
      %v1200 = vadd.f32 %v396, %v1199
      %v1201 = vpop.f32.mrb[0].mxu0
      %1202 = vmatprep.mubr.f32.mxu0 %v667
      %1203 = vmatmul.mubr.f32.gmra.mrb[0].mxu0 %v355
      %v1204 = vpop.f32.mrb[0].mxu0
      %v1205 = vadd.f32 %v396, %v1204
      %v1206 = vpop.f32.mrb[0].mxu0
      %1207 = vmatprep.mubr.f32.mxu0 %v670
      %1208 = vmatmul.mubr.f32.gmra.mrb[0].mxu0 %v357
      %v1209 = vpop.f32.mrb[0].mxu0
      %v1210 = vadd.f32 %v396, %v1209
      %v1211 = vpop.f32.mrb[0].mxu0
      %1212 = vmatprep.mubr.f32.mxu0 %v673
      %1213 = vmatmul.mubr.f32.gmra.mrb[0].mxu0 %v359
      %v1214 = vpop.f32.mrb[0].mxu0
      %v1215 = vadd.f32 %v396, %v1214
      %v1216 = vpop.f32.mrb[0].mxu0
      %1217 = vmatprep.mubr.f32.mxu0 %v676
      %1218 = vmatmul.mubr.f32.gmra.mrb[0].mxu0 %v361
      %v1219 = vpop.f32.mrb[0].mxu0
      %v1220 = vadd.f32 %v396, %v1219
      %v1221 = vpop.f32.mrb[0].mxu0
      %1222 = vmatprep.mubr.f32.mxu0 %v679
      %1223 = vmatmul.mubr.f32.gmra.mrb[0].mxu0 %v363
      %v1224 = vpop.f32.mrb[0].mxu0
      %v1225 = vadd.f32 %v396, %v1224
      %v1226 = vpop.f32.mrb[0].mxu0
      %1227 = vmatprep.mubr.f32.mxu0 %v682
      %1228 = vmatmul.mubr.f32.gmra.mrb[0].mxu0 %v365
      %v1229 = vpop.f32.mrb[0].mxu0
      %v1230 = vadd.f32 %v396, %v1229
      %v1231 = vpop.f32.mrb[0].mxu0
      %1232 = vmatprep.mubr.f32.mxu0 %v685
      %1233 = vmatmul.mubr.f32.gmra.mrb[0].mxu0 %v367
      %v1234 = vpop.f32.mrb[0].mxu0
      %v1235 = vadd.f32 %v396, %v1234
      %v1236 = vpop.f32.mrb[0].mxu0
      %1237 = vmatprep.mubr.f32.mxu0 %v688
      %1238 = vmatmul.mubr.f32.gmra.mrb[0].mxu0 %v369
      %v1239 = vpop.f32.mrb[0].mxu0
      %v1240 = vadd.f32 %v396, %v1239
      %v1241 = vpop.f32.mrb[0].mxu0
      %1242 = vmatprep.mubr.f32.mxu0 %v691
      %1243 = vmatmul.mubr.f32.gmra.mrb[0].mxu0 %v371
      %v1244 = vpop.f32.mrb[0].mxu0
      %v1245 = vadd.f32 %v396, %v1244
      %v1246 = vpop.f32.mrb[0].mxu0
      %1247 = vdwg.mxu0
      %v1248 = vmax.f32 %v760, 0.0
      %v1249 = vmax.f32 %v765, 0.0
      %v1250 = vmax.f32 %v770, 0.0
      %v1251 = vmax.f32 %v775, 0.0
      %v1252 = vmax.f32 %v780, 0.0
      %v1253 = vmax.f32 %v785, 0.0
      %v1254 = vmax.f32 %v790, 0.0
      %v1255 = vmax.f32 %v795, 0.0
      %v1256 = vmax.f32 %v800, 0.0
      %v1257 = vmax.f32 %v805, 0.0
      %v1258 = vmax.f32 %v810, 0.0
      %v1259 = vmax.f32 %v815, 0.0
      %v1260 = vmax.f32 %v820, 0.0
      %v1261 = vmax.f32 %v825, 0.0
      %v1262 = vmax.f32 %v830, 0.0
      %v1263 = vmax.f32 %v835, 0.0
      %v1264 = vmax.f32 %v840, 0.0
      %v1265 = vmax.f32 %v845, 0.0
      %v1266 = vmax.f32 %v850, 0.0
      %v1267 = vmax.f32 %v855, 0.0
      %v1268 = vmax.f32 %v860, 0.0
      %v1269 = vmax.f32 %v865, 0.0
      %v1270 = vmax.f32 %v870, 0.0
      %v1271 = vmax.f32 %v875, 0.0
      %v1272 = vmax.f32 %v880, 0.0
      %v1273 = vmax.f32 %v885, 0.0
      %v1274 = vmax.f32 %v890, 0.0
      %v1275 = vmax.f32 %v895, 0.0
      %v1276 = vmax.f32 %v900, 0.0
      %v1277 = vmax.f32 %v905, 0.0
      %v1278 = vmax.f32 %v910, 0.0
      %v1279 = vmax.f32 %v915, 0.0
      %v1280 = vmax.f32 %v920, 0.0
      %v1281 = vmax.f32 %v925, 0.0
      %v1282 = vmax.f32 %v930, 0.0
      %v1283 = vmax.f32 %v935, 0.0
      %v1284 = vmax.f32 %v940, 0.0
      %v1285 = vmax.f32 %v945, 0.0
      %v1286 = vmax.f32 %v950, 0.0
      %v1287 = vmax.f32 %v955, 0.0
      %v1288 = vmax.f32 %v960, 0.0
      %v1289 = vmax.f32 %v965, 0.0
      %v1290 = vmax.f32 %v970, 0.0
      %v1291 = vmax.f32 %v975, 0.0
      %v1292 = vmax.f32 %v980, 0.0
      %v1293 = vmax.f32 %v985, 0.0
      %v1294 = vmax.f32 %v990, 0.0
      %v1295 = vmax.f32 %v995, 0.0
      %v1296 = vmax.f32 %v1000, 0.0
      %v1297 = vmax.f32 %v1005, 0.0
      %v1298 = vmax.f32 %v1010, 0.0
      %v1299 = vmax.f32 %v1015, 0.0
      %v1300 = vmax.f32 %v1020, 0.0
      %v1301 = vmax.f32 %v1025, 0.0
      %v1302 = vmax.f32 %v1030, 0.0
      %v1303 = vmax.f32 %v1035, 0.0
      %v1304 = vmax.f32 %v1040, 0.0
      %v1305 = vmax.f32 %v1045, 0.0
      %v1306 = vmax.f32 %v1050, 0.0
      %v1307 = vmax.f32 %v1055, 0.0
      %v1308 = vmax.f32 %v1060, 0.0
      %v1309 = vmax.f32 %v1065, 0.0
      %v1310 = vmax.f32 %v1070, 0.0
      %v1311 = vmax.f32 %v1075, 0.0
      %v1312 = vmax.f32 %v1080, 0.0
      %v1313 = vmax.f32 %v1085, 0.0
      %v1314 = vmax.f32 %v1090, 0.0
      %v1315 = vmax.f32 %v1095, 0.0
      %v1316 = vmax.f32 %v1100, 0.0
      %v1317 = vmax.f32 %v1105, 0.0
      %v1318 = vmax.f32 %v1110, 0.0
      %v1319 = vmax.f32 %v1115, 0.0
      %v1320 = vmax.f32 %v1120, 0.0
      %v1321 = vmax.f32 %v1125, 0.0
      %v1322 = vmax.f32 %v1130, 0.0
      %v1323 = vmax.f32 %v1135, 0.0
      %v1324 = vmax.f32 %v1140, 0.0
      %v1325 = vmax.f32 %v1145, 0.0
      %v1326 = vmax.f32 %v1150, 0.0
      %v1327 = vmax.f32 %v1155, 0.0
      %v1328 = vmax.f32 %v1160, 0.0
      %v1329 = vmax.f32 %v1165, 0.0
      %v1330 = vmax.f32 %v1170, 0.0
      %v1331 = vmax.f32 %v1175, 0.0
      %v1332 = vmax.f32 %v1180, 0.0
      %v1333 = vmax.f32 %v1185, 0.0
      %v1334 = vmax.f32 %v1190, 0.0
      %v1335 = vmax.f32 %v1195, 0.0
      %v1336 = vmax.f32 %v1200, 0.0
      %v1337 = vmax.f32 %v1205, 0.0
      %v1338 = vmax.f32 %v1210, 0.0
      %v1339 = vmax.f32 %v1215, 0.0
      %v1340 = vmax.f32 %v1220, 0.0
      %v1341 = vmax.f32 %v1225, 0.0
      %v1342 = vmax.f32 %v1230, 0.0
      %v1343 = vmax.f32 %v1235, 0.0
      %v1344 = vmax.f32 %v1240, 0.0
      %v1345 = vmax.f32 %v1245, 0.0
      %1346 = vst [vmem:[%s175] sm:$0xff] %v1248
      %1347 = vst [vmem:[%s175 + $0x8] sm:$0xff] %v1249
      %1348 = vst [vmem:[%s175 + $0x10] sm:$0xff] %v1250
      %1349 = vst [vmem:[%s175 + $0x18] sm:$0xff] %v1251
      %1350 = vst [vmem:[%s175 + $0x20] sm:$0xff] %v1252
      %1351 = vst [vmem:[%s175 + $0x28] sm:$0xff] %v1253
      %1352 = vst [vmem:[%s175 + $0x30] sm:$0xff] %v1254
      %1353 = vst [vmem:[%s175 + $0x38] sm:$0xff] %v1255
      %1354 = vst [vmem:[%s175 + $0x40] sm:$0xff] %v1256
      %1355 = vst [vmem:[%s175 + $0x48] sm:$0xff] %v1257
      %1356 = vst [vmem:[%s175 + $0x50] sm:$0xff] %v1258
      %1357 = vst [vmem:[%s175 + $0x58] sm:$0xff] %v1259
      %1358 = vst [vmem:[%s175 + $0x60] sm:$0xff] %v1260
      %1359 = vst [vmem:[%s175 + $0x68] sm:$0xff] %v1261
      %1360 = vst [vmem:[%s175 + $0x70] sm:$0xff] %v1262
      %1361 = vst [vmem:[%s175 + $0x78] sm:$0xff] %v1263
      %1362 = vst [vmem:[%s175 + $0x80] sm:$0xff] %v1264
      %1363 = vst [vmem:[%s175 + $0x88] sm:$0xff] %v1265
      %1364 = vst [vmem:[%s175 + $0x90] sm:$0xff] %v1266
      %1365 = vst [vmem:[%s175 + $0x98] sm:$0xff] %v1267
      %1366 = vst [vmem:[%s175 + $0xa0] sm:$0xff] %v1268
      %1367 = vst [vmem:[%s175 + $0xa8] sm:$0xff] %v1269
      %1368 = vst [vmem:[%s175 + $0xb0] sm:$0xff] %v1270
      %1369 = vst [vmem:[%s175 + $0xb8] sm:$0xff] %v1271
      %1370 = vst [vmem:[%s175 + $0xc0] sm:$0xff] %v1272
      %1371 = vst [vmem:[%s175 + $0xc8] sm:$0xff] %v1273
      %1372 = vst [vmem:[%s175 + $0xd0] sm:$0xff] %v1274
      %1373 = vst [vmem:[%s175 + $0xd8] sm:$0xff] %v1275
      %1374 = vst [vmem:[%s175 + $0xe0] sm:$0xff] %v1276
      %1375 = vst [vmem:[%s175 + $0xe8] sm:$0xff] %v1277
      %1376 = vst [vmem:[%s175 + $0xf0] sm:$0xff] %v1278
      %1377 = vst [vmem:[%s175 + $0xf8] sm:$0xff] %v1279
      %1378 = vst [vmem:[%s175 + $0x100] sm:$0xff] %v1280
      %1379 = vst [vmem:[%s175 + $0x108] sm:$0xff] %v1281
      %1380 = vst [vmem:[%s175 + $0x110] sm:$0xff] %v1282
      %1381 = vst [vmem:[%s175 + $0x118] sm:$0xff] %v1283
      %1382 = vst [vmem:[%s175 + $0x120] sm:$0xff] %v1284
      %1383 = vst [vmem:[%s175 + $0x128] sm:$0xff] %v1285
      %1384 = vst [vmem:[%s175 + $0x130] sm:$0xff] %v1286
      %1385 = vst [vmem:[%s175 + $0x138] sm:$0xff] %v1287
      %1386 = vst [vmem:[%s175 + $0x140] sm:$0xff] %v1288
      %1387 = vst [vmem:[%s175 + $0x148] sm:$0xff] %v1289
      %1388 = vst [vmem:[%s175 + $0x150] sm:$0xff] %v1290
      %1389 = vst [vmem:[%s175 + $0x158] sm:$0xff] %v1291
      %1390 = vst [vmem:[%s175 + $0x160] sm:$0xff] %v1292
      %1391 = vst [vmem:[%s175 + $0x168] sm:$0xff] %v1293
      %1392 = vst [vmem:[%s175 + $0x170] sm:$0xff] %v1294
      %1393 = vst [vmem:[%s175 + $0x178] sm:$0xff] %v1295
      %1394 = vst [vmem:[%s175 + $0x180] sm:$0xff] %v1296
      %1395 = vst [vmem:[%s175 + $0x188] sm:$0xff] %v1297
      %1396 = vst [vmem:[%s175 + $0x190] sm:$0xff] %v1298
      %1397 = vst [vmem:[%s175 + $0x198] sm:$0xff] %v1299
      %1398 = vst [vmem:[%s175 + $0x1a0] sm:$0xff] %v1300
      %1399 = vst [vmem:[%s175 + $0x1a8] sm:$0xff] %v1301
      %1400 = vst [vmem:[%s175 + $0x1b0] sm:$0xff] %v1302
      %1401 = vst [vmem:[%s175 + $0x1b8] sm:$0xff] %v1303
      %1402 = vst [vmem:[%s175 + $0x1c0] sm:$0xff] %v1304
      %1403 = vst [vmem:[%s175 + $0x1c8] sm:$0xff] %v1305
      %1404 = vst [vmem:[%s175 + $0x1d0] sm:$0xff] %v1306
      %1405 = vst [vmem:[%s175 + $0x1d8] sm:$0xff] %v1307
      %1406 = vst [vmem:[%s175 + $0x1e0] sm:$0xff] %v1308
      %1407 = vst [vmem:[%s175 + $0x1e8] sm:$0xff] %v1309
      %1408 = vst [vmem:[%s175 + $0x1f0] sm:$0xff] %v1310
      %1409 = vst [vmem:[%s175 + $0x1f8] sm:$0xff] %v1311
      %1410 = vst [vmem:[%s175 + $0x200] sm:$0xff] %v1312
      %1411 = vst [vmem:[%s175 + $0x208] sm:$0xff] %v1313
      %1412 = vst [vmem:[%s175 + $0x210] sm:$0xff] %v1314
      %1413 = vst [vmem:[%s175 + $0x218] sm:$0xff] %v1315
      %1414 = vst [vmem:[%s175 + $0x220] sm:$0xff] %v1316
      %1415 = vst [vmem:[%s175 + $0x228] sm:$0xff] %v1317
      %1416 = vst [vmem:[%s175 + $0x230] sm:$0xff] %v1318
      %1417 = vst [vmem:[%s175 + $0x238] sm:$0xff] %v1319
      %1418 = vst [vmem:[%s175 + $0x240] sm:$0xff] %v1320
      %1419 = vst [vmem:[%s175 + $0x248] sm:$0xff] %v1321
      %1420 = vst [vmem:[%s175 + $0x250] sm:$0xff] %v1322
      %1421 = vst [vmem:[%s175 + $0x258] sm:$0xff] %v1323
      %1422 = vst [vmem:[%s175 + $0x260] sm:$0xff] %v1324
      %1423 = vst [vmem:[%s175 + $0x268] sm:$0xff] %v1325
      %1424 = vst [vmem:[%s175 + $0x270] sm:$0xff] %v1326
      %1425 = vst [vmem:[%s175 + $0x278] sm:$0xff] %v1327
      %1426 = vst [vmem:[%s175 + $0x280] sm:$0xff] %v1328
      %1427 = vst [vmem:[%s175 + $0x288] sm:$0xff] %v1329
      %1428 = vst [vmem:[%s175 + $0x290] sm:$0xff] %v1330
      %1429 = vst [vmem:[%s175 + $0x298] sm:$0xff] %v1331
      %1430 = vst [vmem:[%s175 + $0x2a0] sm:$0xff] %v1332
      %1431 = vst [vmem:[%s175 + $0x2a8] sm:$0xff] %v1333
      %1432 = vst [vmem:[%s175 + $0x2b0] sm:$0xff] %v1334
      %1433 = vst [vmem:[%s175 + $0x2b8] sm:$0xff] %v1335
      %1434 = vst [vmem:[%s175 + $0x2c0] sm:$0xff] %v1336
      %1435 = vst [vmem:[%s175 + $0x2c8] sm:$0xff] %v1337
      %1436 = vst [vmem:[%s175 + $0x2d0] sm:$0xff] %v1338
      %1437 = vst [vmem:[%s175 + $0x2d8] sm:$0xff] %v1339
      %1438 = vst [vmem:[%s175 + $0x2e0] sm:$0xff] %v1340
      %1439 = vst [vmem:[%s175 + $0x2e8] sm:$0xff] %v1341
      %1440 = vst [vmem:[%s175 + $0x2f0] sm:$0xff] %v1342
      %1441 = vst [vmem:[%s175 + $0x2f8] sm:$0xff] %v1343
      %1442 = vst [vmem:[%s175 + $0x300] sm:$0xff] %v1344
      %1443 = vst [vmem:[%s175 + $0x308] sm:$0xff] %v1345
      %s1444 = smul.u32 98, %s14
      %p1445 = scmp.lt.s32.totalorder %s1444, 195
      %s1446 = scalar_select %p1445, %s1444, 195
      %s1447 = smul.addr %s1446, 8
      %s1448 = scalar_lea.vmem %s3, %s1447
      // Predicated region
      $region33: #{conv_nn_forward.4} parent=31 // pred_check
        %p1449 = pneg %p100
      $region34: #{conv_nn_forward.4} parent=31 // pred_check_branch
        %1451 = sbr.rel (%p1449) target = $region36
      $region35: #{conv_nn_forward.4} parent=31 // pred_region
        %s1452 = smul.u32 98, %s14
      $region36: #{conv_nn_forward.4} parent=31 // pred_fallthru
        _
    $region32: #{conv_nn_forward.4} parent=5 // pred_fallthru
      _
    %p1453 = scmp.le.s32.totalorder 2, %s9
    // Predicated region
    $region37: #{conv_nn_forward.4} parent=5 // pred_check
      %p1454 = pneg %p1453
    $region38: #{conv_nn_forward.4} parent=5 // pred_check_branch
      %1456 = sbr.rel (%p1454) target = $region40
    $region39: #{conv_nn_forward.4} parent=5 // pred_region
      %s1457 = ssub.s32 %s9, 2
      // Predicated region
      $region41: #{conv_nn_forward.4} parent=39 // pred_check
        %p1458 = pneg %p106
      $region42: #{conv_nn_forward.4} parent=39 // pred_check_branch
        %1460 = sbr.rel (%p1458) target = $region44
      $region43: #{conv_nn_forward.4} parent=39 // pred_region
        %s1461 = smul.u32 98, %s15
        %p1462 = scmp.lt.s32.totalorder %s1461, 195
        %s1463 = scalar_select %p1462, %s1461, 195
        %s1464 = smul.addr %s1463, 8
        %s1465 = scalar_lea.vmem %s3, %s1464
      $region44: #{conv_nn_forward.4} parent=39 // pred_fallthru
        _
    $region40: #{conv_nn_forward.4} parent=5 // pred_fallthru
      _
  $region6: #{conv_nn_forward.4} parent=0 // loop_footer
    %s13 = sadd.s32 1, %s9
  $region7: #{conv_nn_forward.4} parent=0 // loop_footer_branch
    %8 = sbr.rel target = $region3
  $region8: #{conv_nn_forward.4} parent=0 // loop_exit
    _

// kernel: conv_nn_forward.5
$region0: #{conv_nn_forward.5}
  #allocation0 [shape = 'u32[]', space=smem, size = 0x4, offset = 0x4, fixed_abs, tag = 'smem constant byte address 0x4 - core index']
  #allocation1 [shape = 'u32[144,128]{1,0:T(1,128)}', space=vmem, size = 0x12000, scoped, tag = 'internal scratch']
  #allocation2 [shape = 'f32[2,64]{1,0:T(2,128)}', space=vmem, size = 0x400, scoped, tag = 'scratch operand']
  %s0 = inlined_call_operand.vmem [shape: f32[2,25088], index: 0, kind: input, shape index: {}]
  %s1 = inlined_call_operand.vmem [shape: f32[2,25088,64], index: 1, kind: input, shape index: {}]
  %s2 = inlined_call_operand.vmem [shape: f32[2,1,64], index: 2, kind: input, shape index: {}]
  %s3 = inlined_call_operand.vmem [shape: f32[2,64,10], index: 3, kind: input, shape index: {}]
  %s4 = inlined_call_operand.vmem [shape: f32[2,2,10], index: 4, kind: output, shape index: {}]
  %s5 = sld [smem:[#allocation0]]
  $region57: #{conv_nn_forward.5} parent=0
    _
  %s7 = ssub.s32 1, %s5
  %s8 = scalar_select 0, %s7, %s5
  loop: start=0, step=1, limit=6
  $region2: #{conv_nn_forward.5} parent=0 // loop_pre_header
    _
  $region3: #{conv_nn_forward.5} parent=0 // loop_header
    %s10 = sphi 0, %s14
    %p11 = scmp.ge.s32.totalorder %s10, 6
    %s17 = sphi 0, %s29
    %s18 = sphi 0, %s25
    %s19 = sphi 0, %s17
    %s20 = sphi 0, %s18
    %s21 = sphi 0, %s19
    %s22 = sphi 0, %s20
    %s32 = sphi 0, %s34
    %s35 = sphi 0, %s32
    %s36 = sphi 0, %s35
    %s52 = sphi 0, %s36
    %s60 = sphi 0, %s62
    %s63 = sphi 0, %s60
    %s64 = sphi 0, %s63
    %s80 = sphi 0, %s64
    %s86 = sphi 0, %s88
    %s89 = sphi 0, %s86
    %s90 = sphi 0, %s89
    %s106 = sphi 0, %s90
    %s112 = sphi 0, %s114
    %s115 = sphi 0, %s112
    %s116 = sphi 0, %s115
    %s132 = sphi 0, %s116
    %s138 = sphi 0, %s140
    %s141 = sphi 0, %s138
    %s142 = sphi 0, %s141
    %s158 = sphi 0, %s142
  $region4: #{conv_nn_forward.5} parent=0 // loop_header_branch
    %13 = sbr.rel (%p11) target = $region8
  $region5: #{conv_nn_forward.5} parent=0 // loop_body
    %s15 = ssub.s32 %s10, 1
    %s16 = ssub.s32 %s10, 2
    %s23 = sadd.s32 1, %s18
    %p24 = scmp.ge.s32.totalorder %s23, 2
    %s25 = scalar_select %p24, 0, %s23
    %s26 = sadd.s32 1, %s17
    %s27 = scalar_select %p24, %s26, %s17
    %p28 = scmp.ge.s32.totalorder %s27, 2
    %s29 = scalar_select %p28, 0, %s27
    %s30 = ssub.s32 %s18, %s25
    %p31 = scmp.eq.s32.totalorder %s30, 0
    %s33 = sadd.s32 %s32, 1
    %s34 = scalar_select %p31, %s32, %s33
    %p37 = pneg %p31
    %p38 = scmp.eq.s32.totalorder %s10, 3
    %p39 = por %p37, %p38
    %p40 = scmp.ne.s32.totalorder %s32, %s35
    %p41 = scmp.eq.s32.totalorder %s10, 0
    %p42 = por %p40, %p41
    %p43 = scmp.ne.s32.totalorder %s32, %s35
    %p44 = scmp.eq.s32.totalorder %s15, 3
    %p45 = por %p43, %p44
    %p46 = scmp.ne.s32.totalorder %s35, %s36
    %p47 = scmp.eq.s32.totalorder %s15, 0
    %p48 = por %p46, %p47
    %p49 = scmp.ne.s32.totalorder %s35, %s36
    %p50 = scmp.eq.s32.totalorder %s16, 3
    %p51 = por %p49, %p50
    %p53 = scmp.ne.s32.totalorder %s36, %s52
    %p54 = scmp.eq.s32.totalorder %s16, 0
    %p55 = por %p53, %p54
    %s56 = ssub.s32 %s17, %s29
    %s57 = ssub.s32 %s18, %s25
    %s58 = sor.u32 %s56, %s57
    %p59 = scmp.eq.s32.totalorder %s58, 0
    %s61 = sadd.s32 %s60, 1
    %s62 = scalar_select %p59, %s60, %s61
    %p65 = pneg %p59
    %p66 = scmp.eq.s32.totalorder %s10, 3
    %p67 = por %p65, %p66
    %p68 = scmp.ne.s32.totalorder %s60, %s63
    %p69 = scmp.eq.s32.totalorder %s10, 0
    %p70 = por %p68, %p69
    %p71 = scmp.ne.s32.totalorder %s60, %s63
    %p72 = scmp.eq.s32.totalorder %s15, 3
    %p73 = por %p71, %p72
    %p74 = scmp.ne.s32.totalorder %s63, %s64
    %p75 = scmp.eq.s32.totalorder %s15, 0
    %p76 = por %p74, %p75
    %p77 = scmp.ne.s32.totalorder %s63, %s64
    %p78 = scmp.eq.s32.totalorder %s16, 3
    %p79 = por %p77, %p78
    %p81 = scmp.ne.s32.totalorder %s64, %s80
    %p82 = scmp.eq.s32.totalorder %s16, 0
    %p83 = por %p81, %p82
    %s84 = ssub.s32 %s17, %s29
    %p85 = scmp.eq.s32.totalorder %s84, 0
    %s87 = sadd.s32 %s86, 1
    %s88 = scalar_select %p85, %s86, %s87
    %p91 = pneg %p85
    %p92 = scmp.eq.s32.totalorder %s10, 3
    %p93 = por %p91, %p92
    %p94 = scmp.ne.s32.totalorder %s86, %s89
    %p95 = scmp.eq.s32.totalorder %s10, 0
    %p96 = por %p94, %p95
    %p97 = scmp.ne.s32.totalorder %s86, %s89
    %p98 = scmp.eq.s32.totalorder %s15, 3
    %p99 = por %p97, %p98
    %p100 = scmp.ne.s32.totalorder %s89, %s90
    %p101 = scmp.eq.s32.totalorder %s15, 0
    %p102 = por %p100, %p101
    %p103 = scmp.ne.s32.totalorder %s89, %s90
    %p104 = scmp.eq.s32.totalorder %s16, 3
    %p105 = por %p103, %p104
    %p107 = scmp.ne.s32.totalorder %s90, %s106
    %p108 = scmp.eq.s32.totalorder %s16, 0
    %p109 = por %p107, %p108
    %s110 = ssub.s32 %s17, %s29
    %p111 = scmp.eq.s32.totalorder %s110, 0
    %s113 = sadd.s32 %s112, 1
    %s114 = scalar_select %p111, %s112, %s113
    %p117 = pneg %p111
    %p118 = scmp.eq.s32.totalorder %s10, 3
    %p119 = por %p117, %p118
    %p120 = scmp.ne.s32.totalorder %s112, %s115
    %p121 = scmp.eq.s32.totalorder %s10, 0
    %p122 = por %p120, %p121
    %p123 = scmp.ne.s32.totalorder %s112, %s115
    %p124 = scmp.eq.s32.totalorder %s15, 3
    %p125 = por %p123, %p124
    %p126 = scmp.ne.s32.totalorder %s115, %s116
    %p127 = scmp.eq.s32.totalorder %s15, 0
    %p128 = por %p126, %p127
    %p129 = scmp.ne.s32.totalorder %s115, %s116
    %p130 = scmp.eq.s32.totalorder %s16, 3
    %p131 = por %p129, %p130
    %p133 = scmp.ne.s32.totalorder %s116, %s132
    %p134 = scmp.eq.s32.totalorder %s16, 0
    %p135 = por %p133, %p134
    %s136 = ssub.s32 %s17, %s29
    %p137 = scmp.eq.s32.totalorder %s136, 0
    %s139 = sadd.s32 %s138, 1
    %s140 = scalar_select %p137, %s138, %s139
    %p143 = pneg %p137
    %p144 = scmp.eq.s32.totalorder %s10, 3
    %p145 = por %p143, %p144
    %p146 = scmp.ne.s32.totalorder %s138, %s141
    %p147 = scmp.eq.s32.totalorder %s10, 0
    %p148 = por %p146, %p147
    %p149 = scmp.ne.s32.totalorder %s138, %s141
    %p150 = scmp.eq.s32.totalorder %s15, 3
    %p151 = por %p149, %p150
    %p152 = scmp.ne.s32.totalorder %s141, %s142
    %p153 = scmp.eq.s32.totalorder %s15, 0
    %p154 = por %p152, %p153
    %p155 = scmp.ne.s32.totalorder %s141, %s142
    %p156 = scmp.eq.s32.totalorder %s16, 3
    %p157 = por %p155, %p156
    %p159 = scmp.ne.s32.totalorder %s142, %s158
    %p160 = scmp.eq.s32.totalorder %s16, 0
    %p161 = por %p159, %p160
    %p162 = scmp.le.s32.totalorder 1, %s10
    %p163 = scmp.lt.s32.totalorder %s10, 5
    %p164 = pnand %p162, %p163
    %p165 = pneg %p164
    // Predicated region
    $region9: #{conv_nn_forward.5} parent=5 // pred_check
      _
    $region10: #{conv_nn_forward.5} parent=5 // pred_check_branch
      %167 = sbr.rel (%p164) target = $region12
    $region11: #{conv_nn_forward.5} parent=5 // pred_region
      %s168 = ssub.s32 %s10, 1
    $region12: #{conv_nn_forward.5} parent=5 // pred_fallthru
      _
    %p169 = scmp.lt.s32.totalorder %s10, 4
    // Predicated region
    $region13: #{conv_nn_forward.5} parent=5 // pred_check
      %p170 = pneg %p169
    $region14: #{conv_nn_forward.5} parent=5 // pred_check_branch
      %172 = sbr.rel (%p170) target = $region16
    $region15: #{conv_nn_forward.5} parent=5 // pred_region
      // Predicated region
      $region17: #{conv_nn_forward.5} parent=15 // pred_check
        %p173 = pneg %p42
      $region18: #{conv_nn_forward.5} parent=15 // pred_check_branch
        %175 = sbr.rel (%p173) target = $region20
      $region19: #{conv_nn_forward.5} parent=15 // pred_region
        %s176 = smul.u32 98, %s18
        %p177 = scmp.lt.s32.totalorder %s176, 195
        %s178 = scalar_select %p177, %s176, 195
        %s179 = smul.addr %s178, 2
        %s180 = scalar_lea.vmem %s0, %s179
        %s181 = smul.u32 98, %s18
      $region20: #{conv_nn_forward.5} parent=15 // pred_fallthru
        _
      // Predicated region
      $region21: #{conv_nn_forward.5} parent=15 // pred_check
        %p182 = pneg %p70
      $region22: #{conv_nn_forward.5} parent=15 // pred_check_branch
        %184 = sbr.rel (%p182) target = $region24
      $region23: #{conv_nn_forward.5} parent=15 // pred_region
        %s185 = smul.u32 1568, %s18
        %p186 = scmp.lt.s32.totalorder %s17, 1
        %s187 = scalar_select %p186, %s17, 1
        %p188 = scmp.lt.s32.totalorder %s185, 3135
        %s189 = scalar_select %p188, %s185, 3135
        %s190 = smul.addr %s187, 3136
        %s191 = sadd.s32 %s189, %s190
        %s192 = smul.addr %s191, 8
        %s193 = scalar_lea.vmem %s1, %s192
        %s194 = smul.u32 1568, %s18
      $region24: #{conv_nn_forward.5} parent=15 // pred_fallthru
        _
      // Predicated region
      $region25: #{conv_nn_forward.5} parent=15 // pred_check
        %p195 = pneg %p96
      $region26: #{conv_nn_forward.5} parent=15 // pred_check_branch
        %197 = sbr.rel (%p195) target = $region28
      $region27: #{conv_nn_forward.5} parent=15 // pred_region
        %p198 = scmp.lt.s32.totalorder %s17, 1
        %s199 = scalar_select %p198, %s17, 1
        %s200 = scalar_lea.vmem %s2, %s199
      $region28: #{conv_nn_forward.5} parent=15 // pred_fallthru
        _
      // Predicated region
      $region29: #{conv_nn_forward.5} parent=15 // pred_check
        %p201 = pneg %p122
      $region30: #{conv_nn_forward.5} parent=15 // pred_check_branch
        %203 = sbr.rel (%p201) target = $region32
      $region31: #{conv_nn_forward.5} parent=15 // pred_region
        %p204 = scmp.lt.s32.totalorder %s17, 1
        %s205 = scalar_select %p204, %s17, 1
        %s206 = smul.addr %s205, 8
        %s207 = smul.addr %s206, 8
        %s208 = scalar_lea.vmem %s3, %s207
      $region32: #{conv_nn_forward.5} parent=15 // pred_fallthru
        _
    $region16: #{conv_nn_forward.5} parent=5 // pred_fallthru
      _
    %p209 = scmp.le.s32.totalorder 1, %s10
    %p210 = scmp.lt.s32.totalorder %s10, 5
    %p211 = pnand %p209, %p210
    %p212 = pneg %p211
    // Predicated region
    $region33: #{conv_nn_forward.5} parent=5 // pred_check
      _
    $region34: #{conv_nn_forward.5} parent=5 // pred_check_branch
      %214 = sbr.rel (%p211) target = $region36
    $region35: #{conv_nn_forward.5} parent=5 // pred_region
      %s215 = ssub.s32 %s10, 1
      %s216 = smul.u32 98, %s20
      %p217 = scmp.lt.s32.totalorder %s216, 195
      %s218 = scalar_select %p217, %s216, 195
      %s219 = smul.addr %s218, 2
      %s220 = scalar_lea.vmem %s0, %s219
      %p221 = pneg %p48
      %p222 = pneg %p45
      %s223 = smul.u32 1568, %s20
      %p224 = scmp.lt.s32.totalorder %s19, 1
      %s225 = scalar_select %p224, %s19, 1
      %p226 = scmp.lt.s32.totalorder %s223, 3135
      %s227 = scalar_select %p226, %s223, 3135
      %s228 = smul.addr %s225, 3136
      %s229 = sadd.s32 %s227, %s228
      %s230 = smul.addr %s229, 8
      %s231 = scalar_lea.vmem %s1, %s230
      %p232 = pneg %p76
      %p233 = pneg %p73
      %p234 = scmp.lt.s32.totalorder %s19, 1
      %s235 = scalar_select %p234, %s19, 1
      %s236 = scalar_lea.vmem %s2, %s235
      %p237 = pneg %p102
      %p238 = pneg %p99
      %p239 = scmp.lt.s32.totalorder %s19, 1
      %s240 = scalar_select %p239, %s19, 1
      %s241 = smul.addr %s240, 8
      %s242 = smul.addr %s241, 8
      %s243 = scalar_lea.vmem %s3, %s242
      %p244 = pneg %p128
      %p245 = pneg %p125
      %p246 = pneg %p154
      %p247 = pneg %p151
      %p248 = scmp.lt.s32.totalorder %s19, 1
      %s249 = scalar_select %p248, %s19, 1
      %s250 = smul.addr %s249, 2
      %s251 = scalar_lea.vmem %s4, %s250
      %s252 = smul.u32 98, %s20
      %p253 = scmp.lt.s32.totalorder %s252, 195
      %s254 = scalar_select %p253, %s252, 195
      %s255 = smul.addr %s254, 2
      %s256 = scalar_lea.vmem %s0, %s255
      %s257 = smul.u32 98, %s20
      %s258 = smul.u32 1568, %s20
      %p259 = scmp.lt.s32.totalorder %s19, 1
      %s260 = scalar_select %p259, %s19, 1
      %p261 = scmp.lt.s32.totalorder %s258, 3135
      %s262 = scalar_select %p261, %s258, 3135
      %s263 = smul.addr %s260, 3136
      %s264 = sadd.s32 %s262, %s263
      %s265 = smul.addr %s264, 8
      %s266 = scalar_lea.vmem %s1, %s265
      %s267 = smul.u32 1568, %s20
      %p268 = scmp.lt.s32.totalorder %s19, 1
      %s269 = scalar_select %p268, %s19, 1
      %s270 = scalar_lea.vmem %s2, %s269
      %p271 = scmp.lt.s32.totalorder %s19, 1
      %s272 = scalar_select %p271, %s19, 1
      %s273 = smul.addr %s272, 8
      %s274 = smul.addr %s273, 8
      %s275 = scalar_lea.vmem %s3, %s274
      %p276 = scmp.lt.s32.totalorder %s19, 1
      %s277 = scalar_select %p276, %s19, 1
      %s278 = smul.addr %s277, 2
      %s279 = scalar_lea.vmem %s4, %s278
      %p280 = scmp.eq.s32.totalorder %s20, 0
      // Predicated region
      $region37: #{conv_nn_forward.5} parent=35 // pred_check
        %p281 = pneg %p280
      $region38: #{conv_nn_forward.5} parent=35 // pred_check_branch
        %283 = sbr.rel (%p281) target = $region40
      $region39: #{conv_nn_forward.5} parent=35 // pred_region
        %vm284 = vcmask 517120
        %285 = vst.msk [vmem:[#allocation2] sm:$0x3] %vm284, 0.0
      $region40: #{conv_nn_forward.5} parent=35 // pred_fallthru
        _
      %v286 = vld [vmem:[#allocation2] sm:$0x3]
      %v287 = vld [vmem:[%s256] sm:$0xff]
      %v288 = vld [vmem:[%s256 + $0x8] sm:$0xff]
      %v289 = vld [vmem:[%s256 + $0x10] sm:$0xff]
      %v290 = vld [vmem:[%s256 + $0x18] sm:$0xff]
      %v291 = vld [vmem:[%s256 + $0x20] sm:$0xff]
      %v292 = vld [vmem:[%s256 + $0x28] sm:$0xff]
      %v293 = vld [vmem:[%s256 + $0x30] sm:$0xff]
      %v294 = vld [vmem:[%s256 + $0x38] sm:$0xff]
      %v295 = vld [vmem:[%s256 + $0x40] sm:$0xff]
      %v296 = vld [vmem:[%s256 + $0x48] sm:$0xff]
      %v297 = vld [vmem:[%s256 + $0x50] sm:$0xff]
      %v298 = vld [vmem:[%s256 + $0x58] sm:$0xff]
      %v299 = vld [vmem:[%s256 + $0x60] sm:$0xff]
      %v300 = vld [vmem:[%s256 + $0x68] sm:$0xff]
      %v301 = vld [vmem:[%s256 + $0x70] sm:$0xff]
      %v302 = vld [vmem:[%s256 + $0x78] sm:$0xff]
      %v303 = vld [vmem:[%s256 + $0x80] sm:$0xff]
      %v304 = vld [vmem:[%s256 + $0x88] sm:$0xff]
      %v305 = vld [vmem:[%s256 + $0x90] sm:$0xff]
      %v306 = vld [vmem:[%s256 + $0x98] sm:$0xff]
      %v307 = vld [vmem:[%s256 + $0xa0] sm:$0xff]
      %v308 = vld [vmem:[%s256 + $0xa8] sm:$0xff]
      %v309 = vld [vmem:[%s256 + $0xb0] sm:$0xff]
      %v310 = vld [vmem:[%s256 + $0xb8] sm:$0xff]
      %v311 = vld [vmem:[%s256 + $0xc0] sm:$0xf]
      %v312 = vld [vmem:[%s266] sm:$0xff]
      %v313 = vld [vmem:[%s266 + $0x8] sm:$0xff]
      %v314 = vld [vmem:[%s266 + $0x10] sm:$0xff]
      %v315 = vld [vmem:[%s266 + $0x18] sm:$0xff]
      %v316 = vld [vmem:[%s266 + $0x20] sm:$0xff]
      %v317 = vld [vmem:[%s266 + $0x28] sm:$0xff]
      %v318 = vld [vmem:[%s266 + $0x30] sm:$0xff]
      %v319 = vld [vmem:[%s266 + $0x38] sm:$0xff]
      %v320 = vld [vmem:[%s266 + $0x40] sm:$0xff]
      %v321 = vld [vmem:[%s266 + $0x48] sm:$0xff]
      %v322 = vld [vmem:[%s266 + $0x50] sm:$0xff]
      %v323 = vld [vmem:[%s266 + $0x58] sm:$0xff]
      %v324 = vld [vmem:[%s266 + $0x60] sm:$0xff]
      %v325 = vld [vmem:[%s266 + $0x68] sm:$0xff]
      %v326 = vld [vmem:[%s266 + $0x70] sm:$0xff]
      %v327 = vld [vmem:[%s266 + $0x78] sm:$0xff]
      %v328 = vld [vmem:[%s266 + $0x80] sm:$0xff]
      %v329 = vld [vmem:[%s266 + $0x88] sm:$0xff]
      %v330 = vld [vmem:[%s266 + $0x90] sm:$0xff]
      %v331 = vld [vmem:[%s266 + $0x98] sm:$0xff]
      %v332 = vld [vmem:[%s266 + $0xa0] sm:$0xff]
      %v333 = vld [vmem:[%s266 + $0xa8] sm:$0xff]
      %v334 = vld [vmem:[%s266 + $0xb0] sm:$0xff]
      %v335 = vld [vmem:[%s266 + $0xb8] sm:$0xff]
      %v336 = vld [vmem:[%s266 + $0xc0] sm:$0xff]
      %v337 = vld [vmem:[%s266 + $0xc8] sm:$0xff]
      %v338 = vld [vmem:[%s266 + $0xd0] sm:$0xff]
      %v339 = vld [vmem:[%s266 + $0xd8] sm:$0xff]
      %v340 = vld [vmem:[%s266 + $0xe0] sm:$0xff]
      %v341 = vld [vmem:[%s266 + $0xe8] sm:$0xff]
      %v342 = vld [vmem:[%s266 + $0xf0] sm:$0xff]
      %v343 = vld [vmem:[%s266 + $0xf8] sm:$0xff]
      %v344 = vld [vmem:[%s266 + $0x100] sm:$0xff]
      %v345 = vld [vmem:[%s266 + $0x108] sm:$0xff]
      %v346 = vld [vmem:[%s266 + $0x110] sm:$0xff]
      %v347 = vld [vmem:[%s266 + $0x118] sm:$0xff]
      %v348 = vld [vmem:[%s266 + $0x120] sm:$0xff]
      %v349 = vld [vmem:[%s266 + $0x128] sm:$0xff]
      %v350 = vld [vmem:[%s266 + $0x130] sm:$0xff]
      %v351 = vld [vmem:[%s266 + $0x138] sm:$0xff]
      %v352 = vld [vmem:[%s266 + $0x140] sm:$0xff]
      %v353 = vld [vmem:[%s266 + $0x148] sm:$0xff]
      %v354 = vld [vmem:[%s266 + $0x150] sm:$0xff]
      %v355 = vld [vmem:[%s266 + $0x158] sm:$0xff]
      %v356 = vld [vmem:[%s266 + $0x160] sm:$0xff]
      %v357 = vld [vmem:[%s266 + $0x168] sm:$0xff]
      %v358 = vld [vmem:[%s266 + $0x170] sm:$0xff]
      %v359 = vld [vmem:[%s266 + $0x178] sm:$0xff]
      %v360 = vld [vmem:[%s266 + $0x180] sm:$0xff]
      %v361 = vld [vmem:[%s266 + $0x188] sm:$0xff]
      %v362 = vld [vmem:[%s266 + $0x190] sm:$0xff]
      %v363 = vld [vmem:[%s266 + $0x198] sm:$0xff]
      %v364 = vld [vmem:[%s266 + $0x1a0] sm:$0xff]
      %v365 = vld [vmem:[%s266 + $0x1a8] sm:$0xff]
      %v366 = vld [vmem:[%s266 + $0x1b0] sm:$0xff]
      %v367 = vld [vmem:[%s266 + $0x1b8] sm:$0xff]
      %v368 = vld [vmem:[%s266 + $0x1c0] sm:$0xff]
      %v369 = vld [vmem:[%s266 + $0x1c8] sm:$0xff]
      %v370 = vld [vmem:[%s266 + $0x1d0] sm:$0xff]
      %v371 = vld [vmem:[%s266 + $0x1d8] sm:$0xff]
      %v372 = vld [vmem:[%s266 + $0x1e0] sm:$0xff]
      %v373 = vld [vmem:[%s266 + $0x1e8] sm:$0xff]
      %v374 = vld [vmem:[%s266 + $0x1f0] sm:$0xff]
      %v375 = vld [vmem:[%s266 + $0x1f8] sm:$0xff]
      %v376 = vld [vmem:[%s266 + $0x200] sm:$0xff]
      %v377 = vld [vmem:[%s266 + $0x208] sm:$0xff]
      %v378 = vld [vmem:[%s266 + $0x210] sm:$0xff]
      %v379 = vld [vmem:[%s266 + $0x218] sm:$0xff]
      %v380 = vld [vmem:[%s266 + $0x220] sm:$0xff]
      %v381 = vld [vmem:[%s266 + $0x228] sm:$0xff]
      %v382 = vld [vmem:[%s266 + $0x230] sm:$0xff]
      %v383 = vld [vmem:[%s266 + $0x238] sm:$0xff]
      %v384 = vld [vmem:[%s266 + $0x240] sm:$0xff]
      %v385 = vld [vmem:[%s266 + $0x248] sm:$0xff]
      %v386 = vld [vmem:[%s266 + $0x250] sm:$0xff]
      %v387 = vld [vmem:[%s266 + $0x258] sm:$0xff]
      %v388 = vld [vmem:[%s266 + $0x260] sm:$0xff]
      %v389 = vld [vmem:[%s266 + $0x268] sm:$0xff]
      %v390 = vld [vmem:[%s266 + $0x270] sm:$0xff]
      %v391 = vld [vmem:[%s266 + $0x278] sm:$0xff]
      %v392 = vld [vmem:[%s266 + $0x280] sm:$0xff]
      %v393 = vld [vmem:[%s266 + $0x288] sm:$0xff]
      %v394 = vld [vmem:[%s266 + $0x290] sm:$0xff]
      %v395 = vld [vmem:[%s266 + $0x298] sm:$0xff]
      %v396 = vld [vmem:[%s266 + $0x2a0] sm:$0xff]
      %v397 = vld [vmem:[%s266 + $0x2a8] sm:$0xff]
      %v398 = vld [vmem:[%s266 + $0x2b0] sm:$0xff]
      %v399 = vld [vmem:[%s266 + $0x2b8] sm:$0xff]
      %v400 = vld [vmem:[%s266 + $0x2c0] sm:$0xff]
      %v401 = vld [vmem:[%s266 + $0x2c8] sm:$0xff]
      %v402 = vld [vmem:[%s266 + $0x2d0] sm:$0xff]
      %v403 = vld [vmem:[%s266 + $0x2d8] sm:$0xff]
      %v404 = vld [vmem:[%s266 + $0x2e0] sm:$0xff]
      %v405 = vld [vmem:[%s266 + $0x2e8] sm:$0xff]
      %v406 = vld [vmem:[%s266 + $0x2f0] sm:$0xff]
      %v407 = vld [vmem:[%s266 + $0x2f8] sm:$0xff]
      %v408 = vld [vmem:[%s266 + $0x300] sm:$0xff]
      %v409 = vld [vmem:[%s266 + $0x308] sm:$0xff]
      %v410 = vld [vmem:[%s266 + $0x310] sm:$0xff]
      %v411 = vld [vmem:[%s266 + $0x318] sm:$0xff]
      %v412 = vld [vmem:[%s266 + $0x320] sm:$0xff]
      %v413 = vld [vmem:[%s266 + $0x328] sm:$0xff]
      %v414 = vld [vmem:[%s266 + $0x330] sm:$0xff]
      %v415 = vld [vmem:[%s266 + $0x338] sm:$0xff]
      %v416 = vld [vmem:[%s266 + $0x340] sm:$0xff]
      %v417 = vld [vmem:[%s266 + $0x348] sm:$0xff]
      %v418 = vld [vmem:[%s266 + $0x350] sm:$0xff]
      %v419 = vld [vmem:[%s266 + $0x358] sm:$0xff]
      %v420 = vld [vmem:[%s266 + $0x360] sm:$0xff]
      %v421 = vld [vmem:[%s266 + $0x368] sm:$0xff]
      %v422 = vld [vmem:[%s266 + $0x370] sm:$0xff]
      %v423 = vld [vmem:[%s266 + $0x378] sm:$0xff]
      %v424 = vld [vmem:[%s266 + $0x380] sm:$0xff]
      %v425 = vld [vmem:[%s266 + $0x388] sm:$0xff]
      %v426 = vld [vmem:[%s266 + $0x390] sm:$0xff]
      %v427 = vld [vmem:[%s266 + $0x398] sm:$0xff]
      %v428 = vld [vmem:[%s266 + $0x3a0] sm:$0xff]
      %v429 = vld [vmem:[%s266 + $0x3a8] sm:$0xff]
      %v430 = vld [vmem:[%s266 + $0x3b0] sm:$0xff]
      %v431 = vld [vmem:[%s266 + $0x3b8] sm:$0xff]
      %v432 = vld [vmem:[%s266 + $0x3c0] sm:$0xff]
      %v433 = vld [vmem:[%s266 + $0x3c8] sm:$0xff]
      %v434 = vld [vmem:[%s266 + $0x3d0] sm:$0xff]
      %v435 = vld [vmem:[%s266 + $0x3d8] sm:$0xff]
      %v436 = vld [vmem:[%s266 + $0x3e0] sm:$0xff]
      %v437 = vld [vmem:[%s266 + $0x3e8] sm:$0xff]
      %v438 = vld [vmem:[%s266 + $0x3f0] sm:$0xff]
      %v439 = vld [vmem:[%s266 + $0x3f8] sm:$0xff]
      %v440 = vld [vmem:[%s266 + $0x400] sm:$0xff]
      %v441 = vld [vmem:[%s266 + $0x408] sm:$0xff]
      %v442 = vld [vmem:[%s266 + $0x410] sm:$0xff]
      %v443 = vld [vmem:[%s266 + $0x418] sm:$0xff]
      %v444 = vld [vmem:[%s266 + $0x420] sm:$0xff]
      %v445 = vld [vmem:[%s266 + $0x428] sm:$0xff]
      %v446 = vld [vmem:[%s266 + $0x430] sm:$0xff]
      %v447 = vld [vmem:[%s266 + $0x438] sm:$0xff]
      %v448 = vld [vmem:[%s266 + $0x440] sm:$0xff]
      %v449 = vld [vmem:[%s266 + $0x448] sm:$0xff]
      %v450 = vld [vmem:[%s266 + $0x450] sm:$0xff]
      %v451 = vld [vmem:[%s266 + $0x458] sm:$0xff]
      %v452 = vld [vmem:[%s266 + $0x460] sm:$0xff]
      %v453 = vld [vmem:[%s266 + $0x468] sm:$0xff]
      %v454 = vld [vmem:[%s266 + $0x470] sm:$0xff]
      %v455 = vld [vmem:[%s266 + $0x478] sm:$0xff]
      %v456 = vld [vmem:[%s266 + $0x480] sm:$0xff]
      %v457 = vld [vmem:[%s266 + $0x488] sm:$0xff]
      %v458 = vld [vmem:[%s266 + $0x490] sm:$0xff]
      %v459 = vld [vmem:[%s266 + $0x498] sm:$0xff]
      %v460 = vld [vmem:[%s266 + $0x4a0] sm:$0xff]
      %v461 = vld [vmem:[%s266 + $0x4a8] sm:$0xff]
      %v462 = vld [vmem:[%s266 + $0x4b0] sm:$0xff]
      %v463 = vld [vmem:[%s266 + $0x4b8] sm:$0xff]
      %v464 = vld [vmem:[%s266 + $0x4c0] sm:$0xff]
      %v465 = vld [vmem:[%s266 + $0x4c8] sm:$0xff]
      %v466 = vld [vmem:[%s266 + $0x4d0] sm:$0xff]
      %v467 = vld [vmem:[%s266 + $0x4d8] sm:$0xff]
      %v468 = vld [vmem:[%s266 + $0x4e0] sm:$0xff]
      %v469 = vld [vmem:[%s266 + $0x4e8] sm:$0xff]
      %v470 = vld [vmem:[%s266 + $0x4f0] sm:$0xff]
      %v471 = vld [vmem:[%s266 + $0x4f8] sm:$0xff]
      %v472 = vld [vmem:[%s266 + $0x500] sm:$0xff]
      %v473 = vld [vmem:[%s266 + $0x508] sm:$0xff]
      %v474 = vld [vmem:[%s266 + $0x510] sm:$0xff]
      %v475 = vld [vmem:[%s266 + $0x518] sm:$0xff]
      %v476 = vld [vmem:[%s266 + $0x520] sm:$0xff]
      %v477 = vld [vmem:[%s266 + $0x528] sm:$0xff]
      %v478 = vld [vmem:[%s266 + $0x530] sm:$0xff]
      %v479 = vld [vmem:[%s266 + $0x538] sm:$0xff]
      %v480 = vld [vmem:[%s266 + $0x540] sm:$0xff]
      %v481 = vld [vmem:[%s266 + $0x548] sm:$0xff]
      %v482 = vld [vmem:[%s266 + $0x550] sm:$0xff]
      %v483 = vld [vmem:[%s266 + $0x558] sm:$0xff]
      %v484 = vld [vmem:[%s266 + $0x560] sm:$0xff]
      %v485 = vld [vmem:[%s266 + $0x568] sm:$0xff]
      %v486 = vld [vmem:[%s266 + $0x570] sm:$0xff]
      %v487 = vld [vmem:[%s266 + $0x578] sm:$0xff]
      %v488 = vld [vmem:[%s266 + $0x580] sm:$0xff]
      %v489 = vld [vmem:[%s266 + $0x588] sm:$0xff]
      %v490 = vld [vmem:[%s266 + $0x590] sm:$0xff]
      %v491 = vld [vmem:[%s266 + $0x598] sm:$0xff]
      %v492 = vld [vmem:[%s266 + $0x5a0] sm:$0xff]
      %v493 = vld [vmem:[%s266 + $0x5a8] sm:$0xff]
      %v494 = vld [vmem:[%s266 + $0x5b0] sm:$0xff]
      %v495 = vld [vmem:[%s266 + $0x5b8] sm:$0xff]
      %v496 = vld [vmem:[%s266 + $0x5c0] sm:$0xff]
      %v497 = vld [vmem:[%s266 + $0x5c8] sm:$0xff]
      %v498 = vld [vmem:[%s266 + $0x5d0] sm:$0xff]
      %v499 = vld [vmem:[%s266 + $0x5d8] sm:$0xff]
      %v500 = vld [vmem:[%s266 + $0x5e0] sm:$0xff]
      %v501 = vld [vmem:[%s266 + $0x5e8] sm:$0xff]
      %v502 = vld [vmem:[%s266 + $0x5f0] sm:$0xff]
      %v503 = vld [vmem:[%s266 + $0x5f8] sm:$0xff]
      %v504 = vld [vmem:[%s266 + $0x600] sm:$0xff]
      %v505 = vld [vmem:[%s266 + $0x608] sm:$0xff]
      %v506 = vld [vmem:[%s266 + $0x610] sm:$0xff]
      %v507 = vld [vmem:[%s266 + $0x618] sm:$0xff]
      %v508 = vld [vmem:[%s266 + $0x620] sm:$0xff]
      %v509 = vld [vmem:[%s266 + $0x628] sm:$0xff]
      %v510 = vld [vmem:[%s266 + $0x630] sm:$0xff]
      %v511 = vld [vmem:[%s266 + $0x638] sm:$0xff]
      %v512 = vld [vmem:[%s266 + $0x640] sm:$0xff]
      %v513 = vld [vmem:[%s266 + $0x648] sm:$0xff]
      %v514 = vld [vmem:[%s266 + $0x650] sm:$0xff]
      %v515 = vld [vmem:[%s266 + $0x658] sm:$0xff]
      %v516 = vld [vmem:[%s266 + $0x660] sm:$0xff]
      %v517 = vld [vmem:[%s266 + $0x668] sm:$0xff]
      %v518 = vld [vmem:[%s266 + $0x670] sm:$0xff]
      %v519 = vld [vmem:[%s266 + $0x678] sm:$0xff]
      %v520 = vld [vmem:[%s266 + $0x680] sm:$0xff]
      %v521 = vld [vmem:[%s266 + $0x688] sm:$0xff]
      %v522 = vld [vmem:[%s266 + $0x690] sm:$0xff]
      %v523 = vld [vmem:[%s266 + $0x698] sm:$0xff]
      %v524 = vld [vmem:[%s266 + $0x6a0] sm:$0xff]
      %v525 = vld [vmem:[%s266 + $0x6a8] sm:$0xff]
      %v526 = vld [vmem:[%s266 + $0x6b0] sm:$0xff]
      %v527 = vld [vmem:[%s266 + $0x6b8] sm:$0xff]
      %v528 = vld [vmem:[%s266 + $0x6c0] sm:$0xff]
      %v529 = vld [vmem:[%s266 + $0x6c8] sm:$0xff]
      %v530 = vld [vmem:[%s266 + $0x6d0] sm:$0xff]
      %v531 = vld [vmem:[%s266 + $0x6d8] sm:$0xff]
      %v532 = vld [vmem:[%s266 + $0x6e0] sm:$0xff]
      %v533 = vld [vmem:[%s266 + $0x6e8] sm:$0xff]
      %v534 = vld [vmem:[%s266 + $0x6f0] sm:$0xff]
      %v535 = vld [vmem:[%s266 + $0x6f8] sm:$0xff]
      %v536 = vld [vmem:[%s266 + $0x700] sm:$0xff]
      %v537 = vld [vmem:[%s266 + $0x708] sm:$0xff]
      %v538 = vld [vmem:[%s266 + $0x710] sm:$0xff]
      %v539 = vld [vmem:[%s266 + $0x718] sm:$0xff]
      %v540 = vld [vmem:[%s266 + $0x720] sm:$0xff]
      %v541 = vld [vmem:[%s266 + $0x728] sm:$0xff]
      %v542 = vld [vmem:[%s266 + $0x730] sm:$0xff]
      %v543 = vld [vmem:[%s266 + $0x738] sm:$0xff]
      %v544 = vld [vmem:[%s266 + $0x740] sm:$0xff]
      %v545 = vld [vmem:[%s266 + $0x748] sm:$0xff]
      %v546 = vld [vmem:[%s266 + $0x750] sm:$0xff]
      %v547 = vld [vmem:[%s266 + $0x758] sm:$0xff]
      %v548 = vld [vmem:[%s266 + $0x760] sm:$0xff]
      %v549 = vld [vmem:[%s266 + $0x768] sm:$0xff]
      %v550 = vld [vmem:[%s266 + $0x770] sm:$0xff]
      %v551 = vld [vmem:[%s266 + $0x778] sm:$0xff]
      %v552 = vld [vmem:[%s266 + $0x780] sm:$0xff]
      %v553 = vld [vmem:[%s266 + $0x788] sm:$0xff]
      %v554 = vld [vmem:[%s266 + $0x790] sm:$0xff]
      %v555 = vld [vmem:[%s266 + $0x798] sm:$0xff]
      %v556 = vld [vmem:[%s266 + $0x7a0] sm:$0xff]
      %v557 = vld [vmem:[%s266 + $0x7a8] sm:$0xff]
      %v558 = vld [vmem:[%s266 + $0x7b0] sm:$0xff]
      %v559 = vld [vmem:[%s266 + $0x7b8] sm:$0xff]
      %v560 = vld [vmem:[%s266 + $0x7c0] sm:$0xff]
      %v561 = vld [vmem:[%s266 + $0x7c8] sm:$0xff]
      %v562 = vld [vmem:[%s266 + $0x7d0] sm:$0xff]
      %v563 = vld [vmem:[%s266 + $0x7d8] sm:$0xff]
      %v564 = vld [vmem:[%s266 + $0x7e0] sm:$0xff]
      %v565 = vld [vmem:[%s266 + $0x7e8] sm:$0xff]
      %v566 = vld [vmem:[%s266 + $0x7f0] sm:$0xff]
      %v567 = vld [vmem:[%s266 + $0x7f8] sm:$0xff]
      %v568 = vld [vmem:[%s266 + $0x800] sm:$0xff]
      %v569 = vld [vmem:[%s266 + $0x808] sm:$0xff]
      %v570 = vld [vmem:[%s266 + $0x810] sm:$0xff]
      %v571 = vld [vmem:[%s266 + $0x818] sm:$0xff]
      %v572 = vld [vmem:[%s266 + $0x820] sm:$0xff]
      %v573 = vld [vmem:[%s266 + $0x828] sm:$0xff]
      %v574 = vld [vmem:[%s266 + $0x830] sm:$0xff]
      %v575 = vld [vmem:[%s266 + $0x838] sm:$0xff]
      %v576 = vld [vmem:[%s266 + $0x840] sm:$0xff]
      %v577 = vld [vmem:[%s266 + $0x848] sm:$0xff]
      %v578 = vld [vmem:[%s266 + $0x850] sm:$0xff]
      %v579 = vld [vmem:[%s266 + $0x858] sm:$0xff]
      %v580 = vld [vmem:[%s266 + $0x860] sm:$0xff]
      %v581 = vld [vmem:[%s266 + $0x868] sm:$0xff]
      %v582 = vld [vmem:[%s266 + $0x870] sm:$0xff]
      %v583 = vld [vmem:[%s266 + $0x878] sm:$0xff]
      %v584 = vld [vmem:[%s266 + $0x880] sm:$0xff]
      %v585 = vld [vmem:[%s266 + $0x888] sm:$0xff]
      %v586 = vld [vmem:[%s266 + $0x890] sm:$0xff]
      %v587 = vld [vmem:[%s266 + $0x898] sm:$0xff]
      %v588 = vld [vmem:[%s266 + $0x8a0] sm:$0xff]
      %v589 = vld [vmem:[%s266 + $0x8a8] sm:$0xff]
      %v590 = vld [vmem:[%s266 + $0x8b0] sm:$0xff]
      %v591 = vld [vmem:[%s266 + $0x8b8] sm:$0xff]
      %v592 = vld [vmem:[%s266 + $0x8c0] sm:$0xff]
      %v593 = vld [vmem:[%s266 + $0x8c8] sm:$0xff]
      %v594 = vld [vmem:[%s266 + $0x8d0] sm:$0xff]
      %v595 = vld [vmem:[%s266 + $0x8d8] sm:$0xff]
      %v596 = vld [vmem:[%s266 + $0x8e0] sm:$0xff]
      %v597 = vld [vmem:[%s266 + $0x8e8] sm:$0xff]
      %v598 = vld [vmem:[%s266 + $0x8f0] sm:$0xff]
      %v599 = vld [vmem:[%s266 + $0x8f8] sm:$0xff]
      %v600 = vld [vmem:[%s266 + $0x900] sm:$0xff]
      %v601 = vld [vmem:[%s266 + $0x908] sm:$0xff]
      %v602 = vld [vmem:[%s266 + $0x910] sm:$0xff]
      %v603 = vld [vmem:[%s266 + $0x918] sm:$0xff]
      %v604 = vld [vmem:[%s266 + $0x920] sm:$0xff]
      %v605 = vld [vmem:[%s266 + $0x928] sm:$0xff]
      %v606 = vld [vmem:[%s266 + $0x930] sm:$0xff]
      %v607 = vld [vmem:[%s266 + $0x938] sm:$0xff]
      %v608 = vld [vmem:[%s266 + $0x940] sm:$0xff]
      %v609 = vld [vmem:[%s266 + $0x948] sm:$0xff]
      %v610 = vld [vmem:[%s266 + $0x950] sm:$0xff]
      %v611 = vld [vmem:[%s266 + $0x958] sm:$0xff]
      %v612 = vld [vmem:[%s266 + $0x960] sm:$0xff]
      %v613 = vld [vmem:[%s266 + $0x968] sm:$0xff]
      %v614 = vld [vmem:[%s266 + $0x970] sm:$0xff]
      %v615 = vld [vmem:[%s266 + $0x978] sm:$0xff]
      %v616 = vld [vmem:[%s266 + $0x980] sm:$0xff]
      %v617 = vld [vmem:[%s266 + $0x988] sm:$0xff]
      %v618 = vld [vmem:[%s266 + $0x990] sm:$0xff]
      %v619 = vld [vmem:[%s266 + $0x998] sm:$0xff]
      %v620 = vld [vmem:[%s266 + $0x9a0] sm:$0xff]
      %v621 = vld [vmem:[%s266 + $0x9a8] sm:$0xff]
      %v622 = vld [vmem:[%s266 + $0x9b0] sm:$0xff]
      %v623 = vld [vmem:[%s266 + $0x9b8] sm:$0xff]
      %v624 = vld [vmem:[%s266 + $0x9c0] sm:$0xff]
      %v625 = vld [vmem:[%s266 + $0x9c8] sm:$0xff]
      %v626 = vld [vmem:[%s266 + $0x9d0] sm:$0xff]
      %v627 = vld [vmem:[%s266 + $0x9d8] sm:$0xff]
      %v628 = vld [vmem:[%s266 + $0x9e0] sm:$0xff]
      %v629 = vld [vmem:[%s266 + $0x9e8] sm:$0xff]
      %v630 = vld [vmem:[%s266 + $0x9f0] sm:$0xff]
      %v631 = vld [vmem:[%s266 + $0x9f8] sm:$0xff]
      %v632 = vld [vmem:[%s266 + $0xa00] sm:$0xff]
      %v633 = vld [vmem:[%s266 + $0xa08] sm:$0xff]
      %v634 = vld [vmem:[%s266 + $0xa10] sm:$0xff]
      %v635 = vld [vmem:[%s266 + $0xa18] sm:$0xff]
      %v636 = vld [vmem:[%s266 + $0xa20] sm:$0xff]
      %v637 = vld [vmem:[%s266 + $0xa28] sm:$0xff]
      %v638 = vld [vmem:[%s266 + $0xa30] sm:$0xff]
      %v639 = vld [vmem:[%s266 + $0xa38] sm:$0xff]
      %v640 = vld [vmem:[%s266 + $0xa40] sm:$0xff]
      %v641 = vld [vmem:[%s266 + $0xa48] sm:$0xff]
      %v642 = vld [vmem:[%s266 + $0xa50] sm:$0xff]
      %v643 = vld [vmem:[%s266 + $0xa58] sm:$0xff]
      %v644 = vld [vmem:[%s266 + $0xa60] sm:$0xff]
      %v645 = vld [vmem:[%s266 + $0xa68] sm:$0xff]
      %v646 = vld [vmem:[%s266 + $0xa70] sm:$0xff]
      %v647 = vld [vmem:[%s266 + $0xa78] sm:$0xff]
      %v648 = vld [vmem:[%s266 + $0xa80] sm:$0xff]
      %v649 = vld [vmem:[%s266 + $0xa88] sm:$0xff]
      %v650 = vld [vmem:[%s266 + $0xa90] sm:$0xff]
      %v651 = vld [vmem:[%s266 + $0xa98] sm:$0xff]
      %v652 = vld [vmem:[%s266 + $0xaa0] sm:$0xff]
      %v653 = vld [vmem:[%s266 + $0xaa8] sm:$0xff]
      %v654 = vld [vmem:[%s266 + $0xab0] sm:$0xff]
      %v655 = vld [vmem:[%s266 + $0xab8] sm:$0xff]
      %v656 = vld [vmem:[%s266 + $0xac0] sm:$0xff]
      %v657 = vld [vmem:[%s266 + $0xac8] sm:$0xff]
      %v658 = vld [vmem:[%s266 + $0xad0] sm:$0xff]
      %v659 = vld [vmem:[%s266 + $0xad8] sm:$0xff]
      %v660 = vld [vmem:[%s266 + $0xae0] sm:$0xff]
      %v661 = vld [vmem:[%s266 + $0xae8] sm:$0xff]
      %v662 = vld [vmem:[%s266 + $0xaf0] sm:$0xff]
      %v663 = vld [vmem:[%s266 + $0xaf8] sm:$0xff]
      %v664 = vld [vmem:[%s266 + $0xb00] sm:$0xff]
      %v665 = vld [vmem:[%s266 + $0xb08] sm:$0xff]
      %v666 = vld [vmem:[%s266 + $0xb10] sm:$0xff]
      %v667 = vld [vmem:[%s266 + $0xb18] sm:$0xff]
      %v668 = vld [vmem:[%s266 + $0xb20] sm:$0xff]
      %v669 = vld [vmem:[%s266 + $0xb28] sm:$0xff]
      %v670 = vld [vmem:[%s266 + $0xb30] sm:$0xff]
      %v671 = vld [vmem:[%s266 + $0xb38] sm:$0xff]
      %v672 = vld [vmem:[%s266 + $0xb40] sm:$0xff]
      %v673 = vld [vmem:[%s266 + $0xb48] sm:$0xff]
      %v674 = vld [vmem:[%s266 + $0xb50] sm:$0xff]
      %v675 = vld [vmem:[%s266 + $0xb58] sm:$0xff]
      %v676 = vld [vmem:[%s266 + $0xb60] sm:$0xff]
      %v677 = vld [vmem:[%s266 + $0xb68] sm:$0xff]
      %v678 = vld [vmem:[%s266 + $0xb70] sm:$0xff]
      %v679 = vld [vmem:[%s266 + $0xb78] sm:$0xff]
      %v680 = vld [vmem:[%s266 + $0xb80] sm:$0xff]
      %v681 = vld [vmem:[%s266 + $0xb88] sm:$0xff]
      %v682 = vld [vmem:[%s266 + $0xb90] sm:$0xff]
      %v683 = vld [vmem:[%s266 + $0xb98] sm:$0xff]
      %v684 = vld [vmem:[%s266 + $0xba0] sm:$0xff]
      %v685 = vld [vmem:[%s266 + $0xba8] sm:$0xff]
      %v686 = vld [vmem:[%s266 + $0xbb0] sm:$0xff]
      %v687 = vld [vmem:[%s266 + $0xbb8] sm:$0xff]
      %v688 = vld [vmem:[%s266 + $0xbc0] sm:$0xff]
      %v689 = vld [vmem:[%s266 + $0xbc8] sm:$0xff]
      %v690 = vld [vmem:[%s266 + $0xbd0] sm:$0xff]
      %v691 = vld [vmem:[%s266 + $0xbd8] sm:$0xff]
      %v692 = vld [vmem:[%s266 + $0xbe0] sm:$0xff]
      %v693 = vld [vmem:[%s266 + $0xbe8] sm:$0xff]
      %v694 = vld [vmem:[%s266 + $0xbf0] sm:$0xff]
      %v695 = vld [vmem:[%s266 + $0xbf8] sm:$0xff]
      %v696 = vld [vmem:[%s266 + $0xc00] sm:$0xff]
      %v697 = vld [vmem:[%s266 + $0xc08] sm:$0xff]
      %v698 = vld [vmem:[%s266 + $0xc10] sm:$0xff]
      %v699 = vld [vmem:[%s266 + $0xc18] sm:$0xff]
      %v700 = vld [vmem:[%s266 + $0xc20] sm:$0xff]
      %v701 = vld [vmem:[%s266 + $0xc28] sm:$0xff]
      %v702 = vld [vmem:[%s266 + $0xc30] sm:$0xff]
      %v703 = vld [vmem:[%s266 + $0xc38] sm:$0xff]
      %v704 = vld [vmem:[%s266 + $0xc40] sm:$0xff]
      %v705 = vld [vmem:[%s266 + $0xc48] sm:$0xff]
      %v706 = vld [vmem:[%s266 + $0xc50] sm:$0xff]
      %v707 = vld [vmem:[%s266 + $0xc58] sm:$0xff]
      %v708 = vld [vmem:[%s266 + $0xc60] sm:$0xff]
      %v709 = vld [vmem:[%s266 + $0xc68] sm:$0xff]
      %v710 = vld [vmem:[%s266 + $0xc70] sm:$0xff]
      %v711 = vld [vmem:[%s266 + $0xc78] sm:$0xff]
      %v712 = vld [vmem:[%s266 + $0xc80] sm:$0xff]
      %v713 = vld [vmem:[%s266 + $0xc88] sm:$0xff]
      %v714 = vld [vmem:[%s266 + $0xc90] sm:$0xff]
      %v715 = vld [vmem:[%s266 + $0xc98] sm:$0xff]
      %v716 = vld [vmem:[%s266 + $0xca0] sm:$0xff]
      %v717 = vld [vmem:[%s266 + $0xca8] sm:$0xff]
      %v718 = vld [vmem:[%s266 + $0xcb0] sm:$0xff]
      %v719 = vld [vmem:[%s266 + $0xcb8] sm:$0xff]
      %v720 = vld [vmem:[%s266 + $0xcc0] sm:$0xff]
      %v721 = vld [vmem:[%s266 + $0xcc8] sm:$0xff]
      %v722 = vld [vmem:[%s266 + $0xcd0] sm:$0xff]
      %v723 = vld [vmem:[%s266 + $0xcd8] sm:$0xff]
      %v724 = vld [vmem:[%s266 + $0xce0] sm:$0xff]
      %v725 = vld [vmem:[%s266 + $0xce8] sm:$0xff]
      %v726 = vld [vmem:[%s266 + $0xcf0] sm:$0xff]
      %v727 = vld [vmem:[%s266 + $0xcf8] sm:$0xff]
      %v728 = vld [vmem:[%s266 + $0xd00] sm:$0xff]
      %v729 = vld [vmem:[%s266 + $0xd08] sm:$0xff]
      %v730 = vld [vmem:[%s266 + $0xd10] sm:$0xff]
      %v731 = vld [vmem:[%s266 + $0xd18] sm:$0xff]
      %v732 = vld [vmem:[%s266 + $0xd20] sm:$0xff]
      %v733 = vld [vmem:[%s266 + $0xd28] sm:$0xff]
      %v734 = vld [vmem:[%s266 + $0xd30] sm:$0xff]
      %v735 = vld [vmem:[%s266 + $0xd38] sm:$0xff]
      %v736 = vld [vmem:[%s266 + $0xd40] sm:$0xff]
      %v737 = vld [vmem:[%s266 + $0xd48] sm:$0xff]
      %v738 = vld [vmem:[%s266 + $0xd50] sm:$0xff]
      %v739 = vld [vmem:[%s266 + $0xd58] sm:$0xff]
      %v740 = vld [vmem:[%s266 + $0xd60] sm:$0xff]
      %v741 = vld [vmem:[%s266 + $0xd68] sm:$0xff]
      %v742 = vld [vmem:[%s266 + $0xd70] sm:$0xff]
      %v743 = vld [vmem:[%s266 + $0xd78] sm:$0xff]
      %v744 = vld [vmem:[%s266 + $0xd80] sm:$0xff]
      %v745 = vld [vmem:[%s266 + $0xd88] sm:$0xff]
      %v746 = vld [vmem:[%s266 + $0xd90] sm:$0xff]
      %v747 = vld [vmem:[%s266 + $0xd98] sm:$0xff]
      %v748 = vld [vmem:[%s266 + $0xda0] sm:$0xff]
      %v749 = vld [vmem:[%s266 + $0xda8] sm:$0xff]
      %v750 = vld [vmem:[%s266 + $0xdb0] sm:$0xff]
      %v751 = vld [vmem:[%s266 + $0xdb8] sm:$0xff]
      %v752 = vld [vmem:[%s266 + $0xdc0] sm:$0xff]
      %v753 = vld [vmem:[%s266 + $0xdc8] sm:$0xff]
      %v754 = vld [vmem:[%s266 + $0xdd0] sm:$0xff]
      %v755 = vld [vmem:[%s266 + $0xdd8] sm:$0xff]
      %v756 = vld [vmem:[%s266 + $0xde0] sm:$0xff]
      %v757 = vld [vmem:[%s266 + $0xde8] sm:$0xff]
      %v758 = vld [vmem:[%s266 + $0xdf0] sm:$0xff]
      %v759 = vld [vmem:[%s266 + $0xdf8] sm:$0xff]
      %v760 = vld [vmem:[%s266 + $0xe00] sm:$0xff]
      %v761 = vld [vmem:[%s266 + $0xe08] sm:$0xff]
      %v762 = vld [vmem:[%s266 + $0xe10] sm:$0xff]
      %v763 = vld [vmem:[%s266 + $0xe18] sm:$0xff]
      %v764 = vld [vmem:[%s266 + $0xe20] sm:$0xff]
      %v765 = vld [vmem:[%s266 + $0xe28] sm:$0xff]
      %v766 = vld [vmem:[%s266 + $0xe30] sm:$0xff]
      %v767 = vld [vmem:[%s266 + $0xe38] sm:$0xff]
      %v768 = vld [vmem:[%s266 + $0xe40] sm:$0xff]
      %v769 = vld [vmem:[%s266 + $0xe48] sm:$0xff]
      %v770 = vld [vmem:[%s266 + $0xe50] sm:$0xff]
      %v771 = vld [vmem:[%s266 + $0xe58] sm:$0xff]
      %v772 = vld [vmem:[%s266 + $0xe60] sm:$0xff]
      %v773 = vld [vmem:[%s266 + $0xe68] sm:$0xff]
      %v774 = vld [vmem:[%s266 + $0xe70] sm:$0xff]
      %v775 = vld [vmem:[%s266 + $0xe78] sm:$0xff]
      %v776 = vld [vmem:[%s266 + $0xe80] sm:$0xff]
      %v777 = vld [vmem:[%s266 + $0xe88] sm:$0xff]
      %v778 = vld [vmem:[%s266 + $0xe90] sm:$0xff]
      %v779 = vld [vmem:[%s266 + $0xe98] sm:$0xff]
      %v780 = vld [vmem:[%s266 + $0xea0] sm:$0xff]
      %v781 = vld [vmem:[%s266 + $0xea8] sm:$0xff]
      %v782 = vld [vmem:[%s266 + $0xeb0] sm:$0xff]
      %v783 = vld [vmem:[%s266 + $0xeb8] sm:$0xff]
      %v784 = vld [vmem:[%s266 + $0xec0] sm:$0xff]
      %v785 = vld [vmem:[%s266 + $0xec8] sm:$0xff]
      %v786 = vld [vmem:[%s266 + $0xed0] sm:$0xff]
      %v787 = vld [vmem:[%s266 + $0xed8] sm:$0xff]
      %v788 = vld [vmem:[%s266 + $0xee0] sm:$0xff]
      %v789 = vld [vmem:[%s266 + $0xee8] sm:$0xff]
      %v790 = vld [vmem:[%s266 + $0xef0] sm:$0xff]
      %v791 = vld [vmem:[%s266 + $0xef8] sm:$0xff]
      %v792 = vld [vmem:[%s266 + $0xf00] sm:$0xff]
      %v793 = vld [vmem:[%s266 + $0xf08] sm:$0xff]
      %v794 = vld [vmem:[%s266 + $0xf10] sm:$0xff]
      %v795 = vld [vmem:[%s266 + $0xf18] sm:$0xff]
      %v796 = vld [vmem:[%s266 + $0xf20] sm:$0xff]
      %v797 = vld [vmem:[%s266 + $0xf28] sm:$0xff]
      %v798 = vld [vmem:[%s266 + $0xf30] sm:$0xff]
      %v799 = vld [vmem:[%s266 + $0xf38] sm:$0xff]
      %v800 = vld [vmem:[%s266 + $0xf40] sm:$0xff]
      %v801 = vld [vmem:[%s266 + $0xf48] sm:$0xff]
      %v802 = vld [vmem:[%s266 + $0xf50] sm:$0xff]
      %v803 = vld [vmem:[%s266 + $0xf58] sm:$0xff]
      %v804 = vld [vmem:[%s266 + $0xf60] sm:$0xff]
      %v805 = vld [vmem:[%s266 + $0xf68] sm:$0xff]
      %v806 = vld [vmem:[%s266 + $0xf70] sm:$0xff]
      %v807 = vld [vmem:[%s266 + $0xf78] sm:$0xff]
      %v808 = vld [vmem:[%s266 + $0xf80] sm:$0xff]
      %v809 = vld [vmem:[%s266 + $0xf88] sm:$0xff]
      %v810 = vld [vmem:[%s266 + $0xf90] sm:$0xff]
      %v811 = vld [vmem:[%s266 + $0xf98] sm:$0xff]
      %v812 = vld [vmem:[%s266 + $0xfa0] sm:$0xff]
      %v813 = vld [vmem:[%s266 + $0xfa8] sm:$0xff]
      %v814 = vld [vmem:[%s266 + $0xfb0] sm:$0xff]
      %v815 = vld [vmem:[%s266 + $0xfb8] sm:$0xff]
      %v816 = vld [vmem:[%s266 + $0xfc0] sm:$0xff]
      %v817 = vld [vmem:[%s266 + $0xfc8] sm:$0xff]
      %v818 = vld [vmem:[%s266 + $0xfd0] sm:$0xff]
      %v819 = vld [vmem:[%s266 + $0xfd8] sm:$0xff]
      %v820 = vld [vmem:[%s266 + $0xfe0] sm:$0xff]
      %v821 = vld [vmem:[%s266 + $0xfe8] sm:$0xff]
      %v822 = vld [vmem:[%s266 + $0xff0] sm:$0xff]
      %v823 = vld [vmem:[%s266 + $0xff8] sm:$0xff]
      %v824 = vld [vmem:[%s266 + $0x1000] sm:$0xff]
      %v825 = vld [vmem:[%s266 + $0x1008] sm:$0xff]
      %v826 = vld [vmem:[%s266 + $0x1010] sm:$0xff]
      %v827 = vld [vmem:[%s266 + $0x1018] sm:$0xff]
      %v828 = vld [vmem:[%s266 + $0x1020] sm:$0xff]
      %v829 = vld [vmem:[%s266 + $0x1028] sm:$0xff]
      %v830 = vld [vmem:[%s266 + $0x1030] sm:$0xff]
      %v831 = vld [vmem:[%s266 + $0x1038] sm:$0xff]
      %v832 = vld [vmem:[%s266 + $0x1040] sm:$0xff]
      %v833 = vld [vmem:[%s266 + $0x1048] sm:$0xff]
      %v834 = vld [vmem:[%s266 + $0x1050] sm:$0xff]
      %v835 = vld [vmem:[%s266 + $0x1058] sm:$0xff]
      %v836 = vld [vmem:[%s266 + $0x1060] sm:$0xff]
      %v837 = vld [vmem:[%s266 + $0x1068] sm:$0xff]
      %v838 = vld [vmem:[%s266 + $0x1070] sm:$0xff]
      %v839 = vld [vmem:[%s266 + $0x1078] sm:$0xff]
      %v840 = vld [vmem:[%s266 + $0x1080] sm:$0xff]
      %v841 = vld [vmem:[%s266 + $0x1088] sm:$0xff]
      %v842 = vld [vmem:[%s266 + $0x1090] sm:$0xff]
      %v843 = vld [vmem:[%s266 + $0x1098] sm:$0xff]
      %v844 = vld [vmem:[%s266 + $0x10a0] sm:$0xff]
      %v845 = vld [vmem:[%s266 + $0x10a8] sm:$0xff]
      %v846 = vld [vmem:[%s266 + $0x10b0] sm:$0xff]
      %v847 = vld [vmem:[%s266 + $0x10b8] sm:$0xff]
      %v848 = vld [vmem:[%s266 + $0x10c0] sm:$0xff]
      %v849 = vld [vmem:[%s266 + $0x10c8] sm:$0xff]
      %v850 = vld [vmem:[%s266 + $0x10d0] sm:$0xff]
      %v851 = vld [vmem:[%s266 + $0x10d8] sm:$0xff]
      %v852 = vld [vmem:[%s266 + $0x10e0] sm:$0xff]
      %v853 = vld [vmem:[%s266 + $0x10e8] sm:$0xff]
      %v854 = vld [vmem:[%s266 + $0x10f0] sm:$0xff]
      %v855 = vld [vmem:[%s266 + $0x10f8] sm:$0xff]
      %v856 = vld [vmem:[%s266 + $0x1100] sm:$0xff]
      %v857 = vld [vmem:[%s266 + $0x1108] sm:$0xff]
      %v858 = vld [vmem:[%s266 + $0x1110] sm:$0xff]
      %v859 = vld [vmem:[%s266 + $0x1118] sm:$0xff]
      %v860 = vld [vmem:[%s266 + $0x1120] sm:$0xff]
      %v861 = vld [vmem:[%s266 + $0x1128] sm:$0xff]
      %v862 = vld [vmem:[%s266 + $0x1130] sm:$0xff]
      %v863 = vld [vmem:[%s266 + $0x1138] sm:$0xff]
      %v864 = vld [vmem:[%s266 + $0x1140] sm:$0xff]
      %v865 = vld [vmem:[%s266 + $0x1148] sm:$0xff]
      %v866 = vld [vmem:[%s266 + $0x1150] sm:$0xff]
      %v867 = vld [vmem:[%s266 + $0x1158] sm:$0xff]
      %v868 = vld [vmem:[%s266 + $0x1160] sm:$0xff]
      %v869 = vld [vmem:[%s266 + $0x1168] sm:$0xff]
      %v870 = vld [vmem:[%s266 + $0x1170] sm:$0xff]
      %v871 = vld [vmem:[%s266 + $0x1178] sm:$0xff]
      %v872 = vld [vmem:[%s266 + $0x1180] sm:$0xff]
      %v873 = vld [vmem:[%s266 + $0x1188] sm:$0xff]
      %v874 = vld [vmem:[%s266 + $0x1190] sm:$0xff]
      %v875 = vld [vmem:[%s266 + $0x1198] sm:$0xff]
      %v876 = vld [vmem:[%s266 + $0x11a0] sm:$0xff]
      %v877 = vld [vmem:[%s266 + $0x11a8] sm:$0xff]
      %v878 = vld [vmem:[%s266 + $0x11b0] sm:$0xff]
      %v879 = vld [vmem:[%s266 + $0x11b8] sm:$0xff]
      %v880 = vld [vmem:[%s266 + $0x11c0] sm:$0xff]
      %v881 = vld [vmem:[%s266 + $0x11c8] sm:$0xff]
      %v882 = vld [vmem:[%s266 + $0x11d0] sm:$0xff]
      %v883 = vld [vmem:[%s266 + $0x11d8] sm:$0xff]
      %v884 = vld [vmem:[%s266 + $0x11e0] sm:$0xff]
      %v885 = vld [vmem:[%s266 + $0x11e8] sm:$0xff]
      %v886 = vld [vmem:[%s266 + $0x11f0] sm:$0xff]
      %v887 = vld [vmem:[%s266 + $0x11f8] sm:$0xff]
      %v888 = vld [vmem:[%s266 + $0x1200] sm:$0xff]
      %v889 = vld [vmem:[%s266 + $0x1208] sm:$0xff]
      %v890 = vld [vmem:[%s266 + $0x1210] sm:$0xff]
      %v891 = vld [vmem:[%s266 + $0x1218] sm:$0xff]
      %v892 = vld [vmem:[%s266 + $0x1220] sm:$0xff]
      %v893 = vld [vmem:[%s266 + $0x1228] sm:$0xff]
      %v894 = vld [vmem:[%s266 + $0x1230] sm:$0xff]
      %v895 = vld [vmem:[%s266 + $0x1238] sm:$0xff]
      %v896 = vld [vmem:[%s266 + $0x1240] sm:$0xff]
      %v897 = vld [vmem:[%s266 + $0x1248] sm:$0xff]
      %v898 = vld [vmem:[%s266 + $0x1250] sm:$0xff]
      %v899 = vld [vmem:[%s266 + $0x1258] sm:$0xff]
      %v900 = vld [vmem:[%s266 + $0x1260] sm:$0xff]
      %v901 = vld [vmem:[%s266 + $0x1268] sm:$0xff]
      %v902 = vld [vmem:[%s266 + $0x1270] sm:$0xff]
      %v903 = vld [vmem:[%s266 + $0x1278] sm:$0xff]
      %v904 = vld [vmem:[%s266 + $0x1280] sm:$0xff]
      %v905 = vld [vmem:[%s266 + $0x1288] sm:$0xff]
      %v906 = vld [vmem:[%s266 + $0x1290] sm:$0xff]
      %v907 = vld [vmem:[%s266 + $0x1298] sm:$0xff]
      %v908 = vld [vmem:[%s266 + $0x12a0] sm:$0xff]
      %v909 = vld [vmem:[%s266 + $0x12a8] sm:$0xff]
      %v910 = vld [vmem:[%s266 + $0x12b0] sm:$0xff]
      %v911 = vld [vmem:[%s266 + $0x12b8] sm:$0xff]
      %v912 = vld [vmem:[%s266 + $0x12c0] sm:$0xff]
      %v913 = vld [vmem:[%s266 + $0x12c8] sm:$0xff]
      %v914 = vld [vmem:[%s266 + $0x12d0] sm:$0xff]
      %v915 = vld [vmem:[%s266 + $0x12d8] sm:$0xff]
      %v916 = vld [vmem:[%s266 + $0x12e0] sm:$0xff]
      %v917 = vld [vmem:[%s266 + $0x12e8] sm:$0xff]
      %v918 = vld [vmem:[%s266 + $0x12f0] sm:$0xff]
      %v919 = vld [vmem:[%s266 + $0x12f8] sm:$0xff]
      %v920 = vld [vmem:[%s266 + $0x1300] sm:$0xff]
      %v921 = vld [vmem:[%s266 + $0x1308] sm:$0xff]
      %v922 = vld [vmem:[%s266 + $0x1310] sm:$0xff]
      %v923 = vld [vmem:[%s266 + $0x1318] sm:$0xff]
      %v924 = vld [vmem:[%s266 + $0x1320] sm:$0xff]
      %v925 = vld [vmem:[%s266 + $0x1328] sm:$0xff]
      %v926 = vld [vmem:[%s266 + $0x1330] sm:$0xff]
      %v927 = vld [vmem:[%s266 + $0x1338] sm:$0xff]
      %v928 = vld [vmem:[%s266 + $0x1340] sm:$0xff]
      %v929 = vld [vmem:[%s266 + $0x1348] sm:$0xff]
      %v930 = vld [vmem:[%s266 + $0x1350] sm:$0xff]
      %v931 = vld [vmem:[%s266 + $0x1358] sm:$0xff]
      %v932 = vld [vmem:[%s266 + $0x1360] sm:$0xff]
      %v933 = vld [vmem:[%s266 + $0x1368] sm:$0xff]
      %v934 = vld [vmem:[%s266 + $0x1370] sm:$0xff]
      %v935 = vld [vmem:[%s266 + $0x1378] sm:$0xff]
      %v936 = vld [vmem:[%s266 + $0x1380] sm:$0xff]
      %v937 = vld [vmem:[%s266 + $0x1388] sm:$0xff]
      %v938 = vld [vmem:[%s266 + $0x1390] sm:$0xff]
      %v939 = vld [vmem:[%s266 + $0x1398] sm:$0xff]
      %v940 = vld [vmem:[%s266 + $0x13a0] sm:$0xff]
      %v941 = vld [vmem:[%s266 + $0x13a8] sm:$0xff]
      %v942 = vld [vmem:[%s266 + $0x13b0] sm:$0xff]
      %v943 = vld [vmem:[%s266 + $0x13b8] sm:$0xff]
      %v944 = vld [vmem:[%s266 + $0x13c0] sm:$0xff]
      %v945 = vld [vmem:[%s266 + $0x13c8] sm:$0xff]
      %v946 = vld [vmem:[%s266 + $0x13d0] sm:$0xff]
      %v947 = vld [vmem:[%s266 + $0x13d8] sm:$0xff]
      %v948 = vld [vmem:[%s266 + $0x13e0] sm:$0xff]
      %v949 = vld [vmem:[%s266 + $0x13e8] sm:$0xff]
      %v950 = vld [vmem:[%s266 + $0x13f0] sm:$0xff]
      %v951 = vld [vmem:[%s266 + $0x13f8] sm:$0xff]
      %v952 = vld [vmem:[%s266 + $0x1400] sm:$0xff]
      %v953 = vld [vmem:[%s266 + $0x1408] sm:$0xff]
      %v954 = vld [vmem:[%s266 + $0x1410] sm:$0xff]
      %v955 = vld [vmem:[%s266 + $0x1418] sm:$0xff]
      %v956 = vld [vmem:[%s266 + $0x1420] sm:$0xff]
      %v957 = vld [vmem:[%s266 + $0x1428] sm:$0xff]
      %v958 = vld [vmem:[%s266 + $0x1430] sm:$0xff]
      %v959 = vld [vmem:[%s266 + $0x1438] sm:$0xff]
      %v960 = vld [vmem:[%s266 + $0x1440] sm:$0xff]
      %v961 = vld [vmem:[%s266 + $0x1448] sm:$0xff]
      %v962 = vld [vmem:[%s266 + $0x1450] sm:$0xff]
      %v963 = vld [vmem:[%s266 + $0x1458] sm:$0xff]
      %v964 = vld [vmem:[%s266 + $0x1460] sm:$0xff]
      %v965 = vld [vmem:[%s266 + $0x1468] sm:$0xff]
      %v966 = vld [vmem:[%s266 + $0x1470] sm:$0xff]
      %v967 = vld [vmem:[%s266 + $0x1478] sm:$0xff]
      %v968 = vld [vmem:[%s266 + $0x1480] sm:$0xff]
      %v969 = vld [vmem:[%s266 + $0x1488] sm:$0xff]
      %v970 = vld [vmem:[%s266 + $0x1490] sm:$0xff]
      %v971 = vld [vmem:[%s266 + $0x1498] sm:$0xff]
      %v972 = vld [vmem:[%s266 + $0x14a0] sm:$0xff]
      %v973 = vld [vmem:[%s266 + $0x14a8] sm:$0xff]
      %v974 = vld [vmem:[%s266 + $0x14b0] sm:$0xff]
      %v975 = vld [vmem:[%s266 + $0x14b8] sm:$0xff]
      %v976 = vld [vmem:[%s266 + $0x14c0] sm:$0xff]
      %v977 = vld [vmem:[%s266 + $0x14c8] sm:$0xff]
      %v978 = vld [vmem:[%s266 + $0x14d0] sm:$0xff]
      %v979 = vld [vmem:[%s266 + $0x14d8] sm:$0xff]
      %v980 = vld [vmem:[%s266 + $0x14e0] sm:$0xff]
      %v981 = vld [vmem:[%s266 + $0x14e8] sm:$0xff]
      %v982 = vld [vmem:[%s266 + $0x14f0] sm:$0xff]
      %v983 = vld [vmem:[%s266 + $0x14f8] sm:$0xff]
      %v984 = vld [vmem:[%s266 + $0x1500] sm:$0xff]
      %v985 = vld [vmem:[%s266 + $0x1508] sm:$0xff]
      %v986 = vld [vmem:[%s266 + $0x1510] sm:$0xff]
      %v987 = vld [vmem:[%s266 + $0x1518] sm:$0xff]
      %v988 = vld [vmem:[%s266 + $0x1520] sm:$0xff]
      %v989 = vld [vmem:[%s266 + $0x1528] sm:$0xff]
      %v990 = vld [vmem:[%s266 + $0x1530] sm:$0xff]
      %v991 = vld [vmem:[%s266 + $0x1538] sm:$0xff]
      %v992 = vld [vmem:[%s266 + $0x1540] sm:$0xff]
      %v993 = vld [vmem:[%s266 + $0x1548] sm:$0xff]
      %v994 = vld [vmem:[%s266 + $0x1550] sm:$0xff]
      %v995 = vld [vmem:[%s266 + $0x1558] sm:$0xff]
      %v996 = vld [vmem:[%s266 + $0x1560] sm:$0xff]
      %v997 = vld [vmem:[%s266 + $0x1568] sm:$0xff]
      %v998 = vld [vmem:[%s266 + $0x1570] sm:$0xff]
      %v999 = vld [vmem:[%s266 + $0x1578] sm:$0xff]
      %v1000 = vld [vmem:[%s266 + $0x1580] sm:$0xff]
      %v1001 = vld [vmem:[%s266 + $0x1588] sm:$0xff]
      %v1002 = vld [vmem:[%s266 + $0x1590] sm:$0xff]
      %v1003 = vld [vmem:[%s266 + $0x1598] sm:$0xff]
      %v1004 = vld [vmem:[%s266 + $0x15a0] sm:$0xff]
      %v1005 = vld [vmem:[%s266 + $0x15a8] sm:$0xff]
      %v1006 = vld [vmem:[%s266 + $0x15b0] sm:$0xff]
      %v1007 = vld [vmem:[%s266 + $0x15b8] sm:$0xff]
      %v1008 = vld [vmem:[%s266 + $0x15c0] sm:$0xff]
      %v1009 = vld [vmem:[%s266 + $0x15c8] sm:$0xff]
      %v1010 = vld [vmem:[%s266 + $0x15d0] sm:$0xff]
      %v1011 = vld [vmem:[%s266 + $0x15d8] sm:$0xff]
      %v1012 = vld [vmem:[%s266 + $0x15e0] sm:$0xff]
      %v1013 = vld [vmem:[%s266 + $0x15e8] sm:$0xff]
      %v1014 = vld [vmem:[%s266 + $0x15f0] sm:$0xff]
      %v1015 = vld [vmem:[%s266 + $0x15f8] sm:$0xff]
      %v1016 = vld [vmem:[%s266 + $0x1600] sm:$0xff]
      %v1017 = vld [vmem:[%s266 + $0x1608] sm:$0xff]
      %v1018 = vld [vmem:[%s266 + $0x1610] sm:$0xff]
      %v1019 = vld [vmem:[%s266 + $0x1618] sm:$0xff]
      %v1020 = vld [vmem:[%s266 + $0x1620] sm:$0xff]
      %v1021 = vld [vmem:[%s266 + $0x1628] sm:$0xff]
      %v1022 = vld [vmem:[%s266 + $0x1630] sm:$0xff]
      %v1023 = vld [vmem:[%s266 + $0x1638] sm:$0xff]
      %v1024 = vld [vmem:[%s266 + $0x1640] sm:$0xff]
      %v1025 = vld [vmem:[%s266 + $0x1648] sm:$0xff]
      %v1026 = vld [vmem:[%s266 + $0x1650] sm:$0xff]
      %v1027 = vld [vmem:[%s266 + $0x1658] sm:$0xff]
      %v1028 = vld [vmem:[%s266 + $0x1660] sm:$0xff]
      %v1029 = vld [vmem:[%s266 + $0x1668] sm:$0xff]
      %v1030 = vld [vmem:[%s266 + $0x1670] sm:$0xff]
      %v1031 = vld [vmem:[%s266 + $0x1678] sm:$0xff]
      %v1032 = vld [vmem:[%s266 + $0x1680] sm:$0xff]
      %v1033 = vld [vmem:[%s266 + $0x1688] sm:$0xff]
      %v1034 = vld [vmem:[%s266 + $0x1690] sm:$0xff]
      %v1035 = vld [vmem:[%s266 + $0x1698] sm:$0xff]
      %v1036 = vld [vmem:[%s266 + $0x16a0] sm:$0xff]
      %v1037 = vld [vmem:[%s266 + $0x16a8] sm:$0xff]
      %v1038 = vld [vmem:[%s266 + $0x16b0] sm:$0xff]
      %v1039 = vld [vmem:[%s266 + $0x16b8] sm:$0xff]
      %v1040 = vld [vmem:[%s266 + $0x16c0] sm:$0xff]
      %v1041 = vld [vmem:[%s266 + $0x16c8] sm:$0xff]
      %v1042 = vld [vmem:[%s266 + $0x16d0] sm:$0xff]
      %v1043 = vld [vmem:[%s266 + $0x16d8] sm:$0xff]
      %v1044 = vld [vmem:[%s266 + $0x16e0] sm:$0xff]
      %v1045 = vld [vmem:[%s266 + $0x16e8] sm:$0xff]
      %v1046 = vld [vmem:[%s266 + $0x16f0] sm:$0xff]
      %v1047 = vld [vmem:[%s266 + $0x16f8] sm:$0xff]
      %v1048 = vld [vmem:[%s266 + $0x1700] sm:$0xff]
      %v1049 = vld [vmem:[%s266 + $0x1708] sm:$0xff]
      %v1050 = vld [vmem:[%s266 + $0x1710] sm:$0xff]
      %v1051 = vld [vmem:[%s266 + $0x1718] sm:$0xff]
      %v1052 = vld [vmem:[%s266 + $0x1720] sm:$0xff]
      %v1053 = vld [vmem:[%s266 + $0x1728] sm:$0xff]
      %v1054 = vld [vmem:[%s266 + $0x1730] sm:$0xff]
      %v1055 = vld [vmem:[%s266 + $0x1738] sm:$0xff]
      %v1056 = vld [vmem:[%s266 + $0x1740] sm:$0xff]
      %v1057 = vld [vmem:[%s266 + $0x1748] sm:$0xff]
      %v1058 = vld [vmem:[%s266 + $0x1750] sm:$0xff]
      %v1059 = vld [vmem:[%s266 + $0x1758] sm:$0xff]
      %v1060 = vld [vmem:[%s266 + $0x1760] sm:$0xff]
      %v1061 = vld [vmem:[%s266 + $0x1768] sm:$0xff]
      %v1062 = vld [vmem:[%s266 + $0x1770] sm:$0xff]
      %v1063 = vld [vmem:[%s266 + $0x1778] sm:$0xff]
      %v1064 = vld [vmem:[%s266 + $0x1780] sm:$0xff]
      %v1065 = vld [vmem:[%s266 + $0x1788] sm:$0xff]
      %v1066 = vld [vmem:[%s266 + $0x1790] sm:$0xff]
      %v1067 = vld [vmem:[%s266 + $0x1798] sm:$0xff]
      %v1068 = vld [vmem:[%s266 + $0x17a0] sm:$0xff]
      %v1069 = vld [vmem:[%s266 + $0x17a8] sm:$0xff]
      %v1070 = vld [vmem:[%s266 + $0x17b0] sm:$0xff]
      %v1071 = vld [vmem:[%s266 + $0x17b8] sm:$0xff]
      %v1072 = vld [vmem:[%s266 + $0x17c0] sm:$0xff]
      %v1073 = vld [vmem:[%s266 + $0x17c8] sm:$0xff]
      %v1074 = vld [vmem:[%s266 + $0x17d0] sm:$0xff]
      %v1075 = vld [vmem:[%s266 + $0x17d8] sm:$0xff]
      %v1076 = vld [vmem:[%s266 + $0x17e0] sm:$0xff]
      %v1077 = vld [vmem:[%s266 + $0x17e8] sm:$0xff]
      %v1078 = vld [vmem:[%s266 + $0x17f0] sm:$0xff]
      %v1079 = vld [vmem:[%s266 + $0x17f8] sm:$0xff]
      %v1080 = vld [vmem:[%s266 + $0x1800] sm:$0xff]
      %v1081 = vld [vmem:[%s266 + $0x1808] sm:$0xff]
      %v1082 = vld [vmem:[%s266 + $0x1810] sm:$0xff]
      %v1083 = vld [vmem:[%s266 + $0x1818] sm:$0xff]
      %v1084 = vld [vmem:[%s266 + $0x1820] sm:$0xff]
      %v1085 = vld [vmem:[%s266 + $0x1828] sm:$0xff]
      %v1086 = vld [vmem:[%s266 + $0x1830] sm:$0xff]
      %v1087 = vld [vmem:[%s266 + $0x1838] sm:$0xff]
      %v1088 = vld [vmem:[%s266 + $0x1840] sm:$0xff]
      %v1089 = vld [vmem:[%s266 + $0x1848] sm:$0xff]
      %v1090 = vld [vmem:[%s266 + $0x1850] sm:$0xff]
      %v1091 = vld [vmem:[%s266 + $0x1858] sm:$0xff]
      %v1092 = vld [vmem:[%s266 + $0x1860] sm:$0xff]
      %v1093 = vld [vmem:[%s266 + $0x1868] sm:$0xff]
      %v1094 = vld [vmem:[%s266 + $0x1870] sm:$0xff]
      %v1095 = vld [vmem:[%s266 + $0x1878] sm:$0xff]
      %v1096 = vld [vmem:[%s266 + $0x1880] sm:$0xff]
      %v1097 = vld [vmem:[%s266 + $0x1888] sm:$0xff]
      %v1098 = vld [vmem:[%s266 + $0x1890] sm:$0xff]
      %v1099 = vld [vmem:[%s266 + $0x1898] sm:$0xff]
      %v1100 = vld [vmem:[%s266 + $0x18a0] sm:$0xff]
      %v1101 = vld [vmem:[%s266 + $0x18a8] sm:$0xff]
      %v1102 = vld [vmem:[%s266 + $0x18b0] sm:$0xff]
      %v1103 = vld [vmem:[%s266 + $0x18b8] sm:$0xff]
      %v1104 = vld [vmem:[%s266 + $0x18c0] sm:$0xff]
      %v1105 = vld [vmem:[%s266 + $0x18c8] sm:$0xff]
      %v1106 = vld [vmem:[%s266 + $0x18d0] sm:$0xff]
      %v1107 = vld [vmem:[%s266 + $0x18d8] sm:$0xff]
      %v1108 = vld [vmem:[%s266 + $0x18e0] sm:$0xff]
      %v1109 = vld [vmem:[%s266 + $0x18e8] sm:$0xff]
      %v1110 = vld [vmem:[%s266 + $0x18f0] sm:$0xff]
      %v1111 = vld [vmem:[%s266 + $0x18f8] sm:$0xff]
      %v1112 = vld [vmem:[%s266 + $0x1900] sm:$0xff]
      %v1113 = vld [vmem:[%s266 + $0x1908] sm:$0xff]
      %v1114 = vld [vmem:[%s266 + $0x1910] sm:$0xff]
      %v1115 = vld [vmem:[%s266 + $0x1918] sm:$0xff]
      %v1116 = vld [vmem:[%s266 + $0x1920] sm:$0xff]
      %v1117 = vld [vmem:[%s266 + $0x1928] sm:$0xff]
      %v1118 = vld [vmem:[%s266 + $0x1930] sm:$0xff]
      %v1119 = vld [vmem:[%s266 + $0x1938] sm:$0xff]
      %v1120 = vld [vmem:[%s266 + $0x1940] sm:$0xff]
      %v1121 = vld [vmem:[%s266 + $0x1948] sm:$0xff]
      %v1122 = vld [vmem:[%s266 + $0x1950] sm:$0xff]
      %v1123 = vld [vmem:[%s266 + $0x1958] sm:$0xff]
      %v1124 = vld [vmem:[%s266 + $0x1960] sm:$0xff]
      %v1125 = vld [vmem:[%s266 + $0x1968] sm:$0xff]
      %v1126 = vld [vmem:[%s266 + $0x1970] sm:$0xff]
      %v1127 = vld [vmem:[%s266 + $0x1978] sm:$0xff]
      %v1128 = vld [vmem:[%s266 + $0x1980] sm:$0xff]
      %v1129 = vld [vmem:[%s266 + $0x1988] sm:$0xff]
      %v1130 = vld [vmem:[%s266 + $0x1990] sm:$0xff]
      %v1131 = vld [vmem:[%s266 + $0x1998] sm:$0xff]
      %v1132 = vld [vmem:[%s266 + $0x19a0] sm:$0xff]
      %v1133 = vld [vmem:[%s266 + $0x19a8] sm:$0xff]
      %v1134 = vld [vmem:[%s266 + $0x19b0] sm:$0xff]
      %v1135 = vld [vmem:[%s266 + $0x19b8] sm:$0xff]
      %v1136 = vld [vmem:[%s266 + $0x19c0] sm:$0xff]
      %v1137 = vld [vmem:[%s266 + $0x19c8] sm:$0xff]
      %v1138 = vld [vmem:[%s266 + $0x19d0] sm:$0xff]
      %v1139 = vld [vmem:[%s266 + $0x19d8] sm:$0xff]
      %v1140 = vld [vmem:[%s266 + $0x19e0] sm:$0xff]
      %v1141 = vld [vmem:[%s266 + $0x19e8] sm:$0xff]
      %v1142 = vld [vmem:[%s266 + $0x19f0] sm:$0xff]
      %v1143 = vld [vmem:[%s266 + $0x19f8] sm:$0xff]
      %v1144 = vld [vmem:[%s266 + $0x1a00] sm:$0xff]
      %v1145 = vld [vmem:[%s266 + $0x1a08] sm:$0xff]
      %v1146 = vld [vmem:[%s266 + $0x1a10] sm:$0xff]
      %v1147 = vld [vmem:[%s266 + $0x1a18] sm:$0xff]
      %v1148 = vld [vmem:[%s266 + $0x1a20] sm:$0xff]
      %v1149 = vld [vmem:[%s266 + $0x1a28] sm:$0xff]
      %v1150 = vld [vmem:[%s266 + $0x1a30] sm:$0xff]
      %v1151 = vld [vmem:[%s266 + $0x1a38] sm:$0xff]
      %v1152 = vld [vmem:[%s266 + $0x1a40] sm:$0xff]
      %v1153 = vld [vmem:[%s266 + $0x1a48] sm:$0xff]
      %v1154 = vld [vmem:[%s266 + $0x1a50] sm:$0xff]
      %v1155 = vld [vmem:[%s266 + $0x1a58] sm:$0xff]
      %v1156 = vld [vmem:[%s266 + $0x1a60] sm:$0xff]
      %v1157 = vld [vmem:[%s266 + $0x1a68] sm:$0xff]
      %v1158 = vld [vmem:[%s266 + $0x1a70] sm:$0xff]
      %v1159 = vld [vmem:[%s266 + $0x1a78] sm:$0xff]
      %v1160 = vld [vmem:[%s266 + $0x1a80] sm:$0xff]
      %v1161 = vld [vmem:[%s266 + $0x1a88] sm:$0xff]
      %v1162 = vld [vmem:[%s266 + $0x1a90] sm:$0xff]
      %v1163 = vld [vmem:[%s266 + $0x1a98] sm:$0xff]
      %v1164 = vld [vmem:[%s266 + $0x1aa0] sm:$0xff]
      %v1165 = vld [vmem:[%s266 + $0x1aa8] sm:$0xff]
      %v1166 = vld [vmem:[%s266 + $0x1ab0] sm:$0xff]
      %v1167 = vld [vmem:[%s266 + $0x1ab8] sm:$0xff]
      %v1168 = vld [vmem:[%s266 + $0x1ac0] sm:$0xff]
      %v1169 = vld [vmem:[%s266 + $0x1ac8] sm:$0xff]
      %v1170 = vld [vmem:[%s266 + $0x1ad0] sm:$0xff]
      %v1171 = vld [vmem:[%s266 + $0x1ad8] sm:$0xff]
      %v1172 = vld [vmem:[%s266 + $0x1ae0] sm:$0xff]
      %v1173 = vld [vmem:[%s266 + $0x1ae8] sm:$0xff]
      %v1174 = vld [vmem:[%s266 + $0x1af0] sm:$0xff]
      %v1175 = vld [vmem:[%s266 + $0x1af8] sm:$0xff]
      %v1176 = vld [vmem:[%s266 + $0x1b00] sm:$0xff]
      %v1177 = vld [vmem:[%s266 + $0x1b08] sm:$0xff]
      %v1178 = vld [vmem:[%s266 + $0x1b10] sm:$0xff]
      %v1179 = vld [vmem:[%s266 + $0x1b18] sm:$0xff]
      %v1180 = vld [vmem:[%s266 + $0x1b20] sm:$0xff]
      %v1181 = vld [vmem:[%s266 + $0x1b28] sm:$0xff]
      %v1182 = vld [vmem:[%s266 + $0x1b30] sm:$0xff]
      %v1183 = vld [vmem:[%s266 + $0x1b38] sm:$0xff]
      %v1184 = vld [vmem:[%s266 + $0x1b40] sm:$0xff]
      %v1185 = vld [vmem:[%s266 + $0x1b48] sm:$0xff]
      %v1186 = vld [vmem:[%s266 + $0x1b50] sm:$0xff]
      %v1187 = vld [vmem:[%s266 + $0x1b58] sm:$0xff]
      %v1188 = vld [vmem:[%s266 + $0x1b60] sm:$0xff]
      %v1189 = vld [vmem:[%s266 + $0x1b68] sm:$0xff]
      %v1190 = vld [vmem:[%s266 + $0x1b70] sm:$0xff]
      %v1191 = vld [vmem:[%s266 + $0x1b78] sm:$0xff]
      %v1192 = vld [vmem:[%s266 + $0x1b80] sm:$0xff]
      %v1193 = vld [vmem:[%s266 + $0x1b88] sm:$0xff]
      %v1194 = vld [vmem:[%s266 + $0x1b90] sm:$0xff]
      %v1195 = vld [vmem:[%s266 + $0x1b98] sm:$0xff]
      %v1196 = vld [vmem:[%s266 + $0x1ba0] sm:$0xff]
      %v1197 = vld [vmem:[%s266 + $0x1ba8] sm:$0xff]
      %v1198 = vld [vmem:[%s266 + $0x1bb0] sm:$0xff]
      %v1199 = vld [vmem:[%s266 + $0x1bb8] sm:$0xff]
      %v1200 = vld [vmem:[%s266 + $0x1bc0] sm:$0xff]
      %v1201 = vld [vmem:[%s266 + $0x1bc8] sm:$0xff]
      %v1202 = vld [vmem:[%s266 + $0x1bd0] sm:$0xff]
      %v1203 = vld [vmem:[%s266 + $0x1bd8] sm:$0xff]
      %v1204 = vld [vmem:[%s266 + $0x1be0] sm:$0xff]
      %v1205 = vld [vmem:[%s266 + $0x1be8] sm:$0xff]
      %v1206 = vld [vmem:[%s266 + $0x1bf0] sm:$0xff]
      %v1207 = vld [vmem:[%s266 + $0x1bf8] sm:$0xff]
      %v1208 = vld [vmem:[%s266 + $0x1c00] sm:$0xff]
      %v1209 = vld [vmem:[%s266 + $0x1c08] sm:$0xff]
      %v1210 = vld [vmem:[%s266 + $0x1c10] sm:$0xff]
      %v1211 = vld [vmem:[%s266 + $0x1c18] sm:$0xff]
      %v1212 = vld [vmem:[%s266 + $0x1c20] sm:$0xff]
      %v1213 = vld [vmem:[%s266 + $0x1c28] sm:$0xff]
      %v1214 = vld [vmem:[%s266 + $0x1c30] sm:$0xff]
      %v1215 = vld [vmem:[%s266 + $0x1c38] sm:$0xff]
      %v1216 = vld [vmem:[%s266 + $0x1c40] sm:$0xff]
      %v1217 = vld [vmem:[%s266 + $0x1c48] sm:$0xff]
      %v1218 = vld [vmem:[%s266 + $0x1c50] sm:$0xff]
      %v1219 = vld [vmem:[%s266 + $0x1c58] sm:$0xff]
      %v1220 = vld [vmem:[%s266 + $0x1c60] sm:$0xff]
      %v1221 = vld [vmem:[%s266 + $0x1c68] sm:$0xff]
      %v1222 = vld [vmem:[%s266 + $0x1c70] sm:$0xff]
      %v1223 = vld [vmem:[%s266 + $0x1c78] sm:$0xff]
      %v1224 = vld [vmem:[%s266 + $0x1c80] sm:$0xff]
      %v1225 = vld [vmem:[%s266 + $0x1c88] sm:$0xff]
      %v1226 = vld [vmem:[%s266 + $0x1c90] sm:$0xff]
      %v1227 = vld [vmem:[%s266 + $0x1c98] sm:$0xff]
      %v1228 = vld [vmem:[%s266 + $0x1ca0] sm:$0xff]
      %v1229 = vld [vmem:[%s266 + $0x1ca8] sm:$0xff]
      %v1230 = vld [vmem:[%s266 + $0x1cb0] sm:$0xff]
      %v1231 = vld [vmem:[%s266 + $0x1cb8] sm:$0xff]
      %v1232 = vld [vmem:[%s266 + $0x1cc0] sm:$0xff]
      %v1233 = vld [vmem:[%s266 + $0x1cc8] sm:$0xff]
      %v1234 = vld [vmem:[%s266 + $0x1cd0] sm:$0xff]
      %v1235 = vld [vmem:[%s266 + $0x1cd8] sm:$0xff]
      %v1236 = vld [vmem:[%s266 + $0x1ce0] sm:$0xff]
      %v1237 = vld [vmem:[%s266 + $0x1ce8] sm:$0xff]
      %v1238 = vld [vmem:[%s266 + $0x1cf0] sm:$0xff]
      %v1239 = vld [vmem:[%s266 + $0x1cf8] sm:$0xff]
      %v1240 = vld [vmem:[%s266 + $0x1d00] sm:$0xff]
      %v1241 = vld [vmem:[%s266 + $0x1d08] sm:$0xff]
      %v1242 = vld [vmem:[%s266 + $0x1d10] sm:$0xff]
      %v1243 = vld [vmem:[%s266 + $0x1d18] sm:$0xff]
      %v1244 = vld [vmem:[%s266 + $0x1d20] sm:$0xff]
      %v1245 = vld [vmem:[%s266 + $0x1d28] sm:$0xff]
      %v1246 = vld [vmem:[%s266 + $0x1d30] sm:$0xff]
      %v1247 = vld [vmem:[%s266 + $0x1d38] sm:$0xff]
      %v1248 = vld [vmem:[%s266 + $0x1d40] sm:$0xff]
      %v1249 = vld [vmem:[%s266 + $0x1d48] sm:$0xff]
      %v1250 = vld [vmem:[%s266 + $0x1d50] sm:$0xff]
      %v1251 = vld [vmem:[%s266 + $0x1d58] sm:$0xff]
      %v1252 = vld [vmem:[%s266 + $0x1d60] sm:$0xff]
      %v1253 = vld [vmem:[%s266 + $0x1d68] sm:$0xff]
      %v1254 = vld [vmem:[%s266 + $0x1d70] sm:$0xff]
      %v1255 = vld [vmem:[%s266 + $0x1d78] sm:$0xff]
      %v1256 = vld [vmem:[%s266 + $0x1d80] sm:$0xff]
      %v1257 = vld [vmem:[%s266 + $0x1d88] sm:$0xff]
      %v1258 = vld [vmem:[%s266 + $0x1d90] sm:$0xff]
      %v1259 = vld [vmem:[%s266 + $0x1d98] sm:$0xff]
      %v1260 = vld [vmem:[%s266 + $0x1da0] sm:$0xff]
      %v1261 = vld [vmem:[%s266 + $0x1da8] sm:$0xff]
      %v1262 = vld [vmem:[%s266 + $0x1db0] sm:$0xff]
      %v1263 = vld [vmem:[%s266 + $0x1db8] sm:$0xff]
      %v1264 = vld [vmem:[%s266 + $0x1dc0] sm:$0xff]
      %v1265 = vld [vmem:[%s266 + $0x1dc8] sm:$0xff]
      %v1266 = vld [vmem:[%s266 + $0x1dd0] sm:$0xff]
      %v1267 = vld [vmem:[%s266 + $0x1dd8] sm:$0xff]
      %v1268 = vld [vmem:[%s266 + $0x1de0] sm:$0xff]
      %v1269 = vld [vmem:[%s266 + $0x1de8] sm:$0xff]
      %v1270 = vld [vmem:[%s266 + $0x1df0] sm:$0xff]
      %v1271 = vld [vmem:[%s266 + $0x1df8] sm:$0xff]
      %v1272 = vld [vmem:[%s266 + $0x1e00] sm:$0xff]
      %v1273 = vld [vmem:[%s266 + $0x1e08] sm:$0xff]
      %v1274 = vld [vmem:[%s266 + $0x1e10] sm:$0xff]
      %v1275 = vld [vmem:[%s266 + $0x1e18] sm:$0xff]
      %v1276 = vld [vmem:[%s266 + $0x1e20] sm:$0xff]
      %v1277 = vld [vmem:[%s266 + $0x1e28] sm:$0xff]
      %v1278 = vld [vmem:[%s266 + $0x1e30] sm:$0xff]
      %v1279 = vld [vmem:[%s266 + $0x1e38] sm:$0xff]
      %v1280 = vld [vmem:[%s266 + $0x1e40] sm:$0xff]
      %v1281 = vld [vmem:[%s266 + $0x1e48] sm:$0xff]
      %v1282 = vld [vmem:[%s266 + $0x1e50] sm:$0xff]
      %v1283 = vld [vmem:[%s266 + $0x1e58] sm:$0xff]
      %v1284 = vld [vmem:[%s266 + $0x1e60] sm:$0xff]
      %v1285 = vld [vmem:[%s266 + $0x1e68] sm:$0xff]
      %v1286 = vld [vmem:[%s266 + $0x1e70] sm:$0xff]
      %v1287 = vld [vmem:[%s266 + $0x1e78] sm:$0xff]
      %v1288 = vld [vmem:[%s266 + $0x1e80] sm:$0xff]
      %v1289 = vld [vmem:[%s266 + $0x1e88] sm:$0xff]
      %v1290 = vld [vmem:[%s266 + $0x1e90] sm:$0xff]
      %v1291 = vld [vmem:[%s266 + $0x1e98] sm:$0xff]
      %v1292 = vld [vmem:[%s266 + $0x1ea0] sm:$0xff]
      %v1293 = vld [vmem:[%s266 + $0x1ea8] sm:$0xff]
      %v1294 = vld [vmem:[%s266 + $0x1eb0] sm:$0xff]
      %v1295 = vld [vmem:[%s266 + $0x1eb8] sm:$0xff]
      %v1296 = vld [vmem:[%s266 + $0x1ec0] sm:$0xff]
      %v1297 = vld [vmem:[%s266 + $0x1ec8] sm:$0xff]
      %v1298 = vld [vmem:[%s266 + $0x1ed0] sm:$0xff]
      %v1299 = vld [vmem:[%s266 + $0x1ed8] sm:$0xff]
      %v1300 = vld [vmem:[%s266 + $0x1ee0] sm:$0xff]
      %v1301 = vld [vmem:[%s266 + $0x1ee8] sm:$0xff]
      %v1302 = vld [vmem:[%s266 + $0x1ef0] sm:$0xff]
      %v1303 = vld [vmem:[%s266 + $0x1ef8] sm:$0xff]
      %v1304 = vld [vmem:[%s266 + $0x1f00] sm:$0xff]
      %v1305 = vld [vmem:[%s266 + $0x1f08] sm:$0xff]
      %v1306 = vld [vmem:[%s266 + $0x1f10] sm:$0xff]
      %v1307 = vld [vmem:[%s266 + $0x1f18] sm:$0xff]
      %v1308 = vld [vmem:[%s266 + $0x1f20] sm:$0xff]
      %v1309 = vld [vmem:[%s266 + $0x1f28] sm:$0xff]
      %v1310 = vld [vmem:[%s266 + $0x1f30] sm:$0xff]
      %v1311 = vld [vmem:[%s266 + $0x1f38] sm:$0xff]
      %v1312 = vld [vmem:[%s266 + $0x1f40] sm:$0xff]
      %v1313 = vld [vmem:[%s266 + $0x1f48] sm:$0xff]
      %v1314 = vld [vmem:[%s266 + $0x1f50] sm:$0xff]
      %v1315 = vld [vmem:[%s266 + $0x1f58] sm:$0xff]
      %v1316 = vld [vmem:[%s266 + $0x1f60] sm:$0xff]
      %v1317 = vld [vmem:[%s266 + $0x1f68] sm:$0xff]
      %v1318 = vld [vmem:[%s266 + $0x1f70] sm:$0xff]
      %v1319 = vld [vmem:[%s266 + $0x1f78] sm:$0xff]
      %v1320 = vld [vmem:[%s266 + $0x1f80] sm:$0xff]
      %v1321 = vld [vmem:[%s266 + $0x1f88] sm:$0xff]
      %v1322 = vld [vmem:[%s266 + $0x1f90] sm:$0xff]
      %v1323 = vld [vmem:[%s266 + $0x1f98] sm:$0xff]
      %v1324 = vld [vmem:[%s266 + $0x1fa0] sm:$0xff]
      %v1325 = vld [vmem:[%s266 + $0x1fa8] sm:$0xff]
      %v1326 = vld [vmem:[%s266 + $0x1fb0] sm:$0xff]
      %v1327 = vld [vmem:[%s266 + $0x1fb8] sm:$0xff]
      %v1328 = vld [vmem:[%s266 + $0x1fc0] sm:$0xff]
      %v1329 = vld [vmem:[%s266 + $0x1fc8] sm:$0xff]
      %v1330 = vld [vmem:[%s266 + $0x1fd0] sm:$0xff]
      %v1331 = vld [vmem:[%s266 + $0x1fd8] sm:$0xff]
      %v1332 = vld [vmem:[%s266 + $0x1fe0] sm:$0xff]
      %v1333 = vld [vmem:[%s266 + $0x1fe8] sm:$0xff]
      %v1334 = vld [vmem:[%s266 + $0x1ff0] sm:$0xff]
      %v1335 = vld [vmem:[%s266 + $0x1ff8] sm:$0xff]
      %v1336 = vld [vmem:[%s266 + $0x2000] sm:$0xff]
      %v1337 = vld [vmem:[%s266 + $0x2008] sm:$0xff]
      %v1338 = vld [vmem:[%s266 + $0x2010] sm:$0xff]
      %v1339 = vld [vmem:[%s266 + $0x2018] sm:$0xff]
      %v1340 = vld [vmem:[%s266 + $0x2020] sm:$0xff]
      %v1341 = vld [vmem:[%s266 + $0x2028] sm:$0xff]
      %v1342 = vld [vmem:[%s266 + $0x2030] sm:$0xff]
      %v1343 = vld [vmem:[%s266 + $0x2038] sm:$0xff]
      %v1344 = vld [vmem:[%s266 + $0x2040] sm:$0xff]
      %v1345 = vld [vmem:[%s266 + $0x2048] sm:$0xff]
      %v1346 = vld [vmem:[%s266 + $0x2050] sm:$0xff]
      %v1347 = vld [vmem:[%s266 + $0x2058] sm:$0xff]
      %v1348 = vld [vmem:[%s266 + $0x2060] sm:$0xff]
      %v1349 = vld [vmem:[%s266 + $0x2068] sm:$0xff]
      %v1350 = vld [vmem:[%s266 + $0x2070] sm:$0xff]
      %v1351 = vld [vmem:[%s266 + $0x2078] sm:$0xff]
      %v1352 = vld [vmem:[%s266 + $0x2080] sm:$0xff]
      %v1353 = vld [vmem:[%s266 + $0x2088] sm:$0xff]
      %v1354 = vld [vmem:[%s266 + $0x2090] sm:$0xff]
      %v1355 = vld [vmem:[%s266 + $0x2098] sm:$0xff]
      %v1356 = vld [vmem:[%s266 + $0x20a0] sm:$0xff]
      %v1357 = vld [vmem:[%s266 + $0x20a8] sm:$0xff]
      %v1358 = vld [vmem:[%s266 + $0x20b0] sm:$0xff]
      %v1359 = vld [vmem:[%s266 + $0x20b8] sm:$0xff]
      %v1360 = vld [vmem:[%s266 + $0x20c0] sm:$0xff]
      %v1361 = vld [vmem:[%s266 + $0x20c8] sm:$0xff]
      %v1362 = vld [vmem:[%s266 + $0x20d0] sm:$0xff]
      %v1363 = vld [vmem:[%s266 + $0x20d8] sm:$0xff]
      %v1364 = vld [vmem:[%s266 + $0x20e0] sm:$0xff]
      %v1365 = vld [vmem:[%s266 + $0x20e8] sm:$0xff]
      %v1366 = vld [vmem:[%s266 + $0x20f0] sm:$0xff]
      %v1367 = vld [vmem:[%s266 + $0x20f8] sm:$0xff]
      %v1368 = vld [vmem:[%s266 + $0x2100] sm:$0xff]
      %v1369 = vld [vmem:[%s266 + $0x2108] sm:$0xff]
      %v1370 = vld [vmem:[%s266 + $0x2110] sm:$0xff]
      %v1371 = vld [vmem:[%s266 + $0x2118] sm:$0xff]
      %v1372 = vld [vmem:[%s266 + $0x2120] sm:$0xff]
      %v1373 = vld [vmem:[%s266 + $0x2128] sm:$0xff]
      %v1374 = vld [vmem:[%s266 + $0x2130] sm:$0xff]
      %v1375 = vld [vmem:[%s266 + $0x2138] sm:$0xff]
      %v1376 = vld [vmem:[%s266 + $0x2140] sm:$0xff]
      %v1377 = vld [vmem:[%s266 + $0x2148] sm:$0xff]
      %v1378 = vld [vmem:[%s266 + $0x2150] sm:$0xff]
      %v1379 = vld [vmem:[%s266 + $0x2158] sm:$0xff]
      %v1380 = vld [vmem:[%s266 + $0x2160] sm:$0xff]
      %v1381 = vld [vmem:[%s266 + $0x2168] sm:$0xff]
      %v1382 = vld [vmem:[%s266 + $0x2170] sm:$0xff]
      %v1383 = vld [vmem:[%s266 + $0x2178] sm:$0xff]
      %v1384 = vld [vmem:[%s266 + $0x2180] sm:$0xff]
      %v1385 = vld [vmem:[%s266 + $0x2188] sm:$0xff]
      %v1386 = vld [vmem:[%s266 + $0x2190] sm:$0xff]
      %v1387 = vld [vmem:[%s266 + $0x2198] sm:$0xff]
      %v1388 = vld [vmem:[%s266 + $0x21a0] sm:$0xff]
      %v1389 = vld [vmem:[%s266 + $0x21a8] sm:$0xff]
      %v1390 = vld [vmem:[%s266 + $0x21b0] sm:$0xff]
      %v1391 = vld [vmem:[%s266 + $0x21b8] sm:$0xff]
      %v1392 = vld [vmem:[%s266 + $0x21c0] sm:$0xff]
      %v1393 = vld [vmem:[%s266 + $0x21c8] sm:$0xff]
      %v1394 = vld [vmem:[%s266 + $0x21d0] sm:$0xff]
      %v1395 = vld [vmem:[%s266 + $0x21d8] sm:$0xff]
      %v1396 = vld [vmem:[%s266 + $0x21e0] sm:$0xff]
      %v1397 = vld [vmem:[%s266 + $0x21e8] sm:$0xff]
      %v1398 = vld [vmem:[%s266 + $0x21f0] sm:$0xff]
      %v1399 = vld [vmem:[%s266 + $0x21f8] sm:$0xff]
      %v1400 = vld [vmem:[%s266 + $0x2200] sm:$0xff]
      %v1401 = vld [vmem:[%s266 + $0x2208] sm:$0xff]
      %v1402 = vld [vmem:[%s266 + $0x2210] sm:$0xff]
      %v1403 = vld [vmem:[%s266 + $0x2218] sm:$0xff]
      %v1404 = vld [vmem:[%s266 + $0x2220] sm:$0xff]
      %v1405 = vld [vmem:[%s266 + $0x2228] sm:$0xff]
      %v1406 = vld [vmem:[%s266 + $0x2230] sm:$0xff]
      %v1407 = vld [vmem:[%s266 + $0x2238] sm:$0xff]
      %v1408 = vld [vmem:[%s266 + $0x2240] sm:$0xff]
      %v1409 = vld [vmem:[%s266 + $0x2248] sm:$0xff]
      %v1410 = vld [vmem:[%s266 + $0x2250] sm:$0xff]
      %v1411 = vld [vmem:[%s266 + $0x2258] sm:$0xff]
      %v1412 = vld [vmem:[%s266 + $0x2260] sm:$0xff]
      %v1413 = vld [vmem:[%s266 + $0x2268] sm:$0xff]
      %v1414 = vld [vmem:[%s266 + $0x2270] sm:$0xff]
      %v1415 = vld [vmem:[%s266 + $0x2278] sm:$0xff]
      %v1416 = vld [vmem:[%s266 + $0x2280] sm:$0xff]
      %v1417 = vld [vmem:[%s266 + $0x2288] sm:$0xff]
      %v1418 = vld [vmem:[%s266 + $0x2290] sm:$0xff]
      %v1419 = vld [vmem:[%s266 + $0x2298] sm:$0xff]
      %v1420 = vld [vmem:[%s266 + $0x22a0] sm:$0xff]
      %v1421 = vld [vmem:[%s266 + $0x22a8] sm:$0xff]
      %v1422 = vld [vmem:[%s266 + $0x22b0] sm:$0xff]
      %v1423 = vld [vmem:[%s266 + $0x22b8] sm:$0xff]
      %v1424 = vld [vmem:[%s266 + $0x22c0] sm:$0xff]
      %v1425 = vld [vmem:[%s266 + $0x22c8] sm:$0xff]
      %v1426 = vld [vmem:[%s266 + $0x22d0] sm:$0xff]
      %v1427 = vld [vmem:[%s266 + $0x22d8] sm:$0xff]
      %v1428 = vld [vmem:[%s266 + $0x22e0] sm:$0xff]
      %v1429 = vld [vmem:[%s266 + $0x22e8] sm:$0xff]
      %v1430 = vld [vmem:[%s266 + $0x22f0] sm:$0xff]
      %v1431 = vld [vmem:[%s266 + $0x22f8] sm:$0xff]
      %v1432 = vld [vmem:[%s266 + $0x2300] sm:$0xff]
      %v1433 = vld [vmem:[%s266 + $0x2308] sm:$0xff]
      %v1434 = vld [vmem:[%s266 + $0x2310] sm:$0xff]
      %v1435 = vld [vmem:[%s266 + $0x2318] sm:$0xff]
      %v1436 = vld [vmem:[%s266 + $0x2320] sm:$0xff]
      %v1437 = vld [vmem:[%s266 + $0x2328] sm:$0xff]
      %v1438 = vld [vmem:[%s266 + $0x2330] sm:$0xff]
      %v1439 = vld [vmem:[%s266 + $0x2338] sm:$0xff]
      %v1440 = vld [vmem:[%s266 + $0x2340] sm:$0xff]
      %v1441 = vld [vmem:[%s266 + $0x2348] sm:$0xff]
      %v1442 = vld [vmem:[%s266 + $0x2350] sm:$0xff]
      %v1443 = vld [vmem:[%s266 + $0x2358] sm:$0xff]
      %v1444 = vld [vmem:[%s266 + $0x2360] sm:$0xff]
      %v1445 = vld [vmem:[%s266 + $0x2368] sm:$0xff]
      %v1446 = vld [vmem:[%s266 + $0x2370] sm:$0xff]
      %v1447 = vld [vmem:[%s266 + $0x2378] sm:$0xff]
      %v1448 = vld [vmem:[%s266 + $0x2380] sm:$0xff]
      %v1449 = vld [vmem:[%s266 + $0x2388] sm:$0xff]
      %v1450 = vld [vmem:[%s266 + $0x2390] sm:$0xff]
      %v1451 = vld [vmem:[%s266 + $0x2398] sm:$0xff]
      %v1452 = vld [vmem:[%s266 + $0x23a0] sm:$0xff]
      %v1453 = vld [vmem:[%s266 + $0x23a8] sm:$0xff]
      %v1454 = vld [vmem:[%s266 + $0x23b0] sm:$0xff]
      %v1455 = vld [vmem:[%s266 + $0x23b8] sm:$0xff]
      %v1456 = vld [vmem:[%s266 + $0x23c0] sm:$0xff]
      %v1457 = vld [vmem:[%s266 + $0x23c8] sm:$0xff]
      %v1458 = vld [vmem:[%s266 + $0x23d0] sm:$0xff]
      %v1459 = vld [vmem:[%s266 + $0x23d8] sm:$0xff]
      %v1460 = vld [vmem:[%s266 + $0x23e0] sm:$0xff]
      %v1461 = vld [vmem:[%s266 + $0x23e8] sm:$0xff]
      %v1462 = vld [vmem:[%s266 + $0x23f0] sm:$0xff]
      %v1463 = vld [vmem:[%s266 + $0x23f8] sm:$0xff]
      %v1464 = vld [vmem:[%s266 + $0x2400] sm:$0xff]
      %v1465 = vld [vmem:[%s266 + $0x2408] sm:$0xff]
      %v1466 = vld [vmem:[%s266 + $0x2410] sm:$0xff]
      %v1467 = vld [vmem:[%s266 + $0x2418] sm:$0xff]
      %v1468 = vld [vmem:[%s266 + $0x2420] sm:$0xff]
      %v1469 = vld [vmem:[%s266 + $0x2428] sm:$0xff]
      %v1470 = vld [vmem:[%s266 + $0x2430] sm:$0xff]
      %v1471 = vld [vmem:[%s266 + $0x2438] sm:$0xff]
      %v1472 = vld [vmem:[%s266 + $0x2440] sm:$0xff]
      %v1473 = vld [vmem:[%s266 + $0x2448] sm:$0xff]
      %v1474 = vld [vmem:[%s266 + $0x2450] sm:$0xff]
      %v1475 = vld [vmem:[%s266 + $0x2458] sm:$0xff]
      %v1476 = vld [vmem:[%s266 + $0x2460] sm:$0xff]
      %v1477 = vld [vmem:[%s266 + $0x2468] sm:$0xff]
      %v1478 = vld [vmem:[%s266 + $0x2470] sm:$0xff]
      %v1479 = vld [vmem:[%s266 + $0x2478] sm:$0xff]
      %v1480 = vld [vmem:[%s266 + $0x2480] sm:$0xff]
      %v1481 = vld [vmem:[%s266 + $0x2488] sm:$0xff]
      %v1482 = vld [vmem:[%s266 + $0x2490] sm:$0xff]
      %v1483 = vld [vmem:[%s266 + $0x2498] sm:$0xff]
      %v1484 = vld [vmem:[%s266 + $0x24a0] sm:$0xff]
      %v1485 = vld [vmem:[%s266 + $0x24a8] sm:$0xff]
      %v1486 = vld [vmem:[%s266 + $0x24b0] sm:$0xff]
      %v1487 = vld [vmem:[%s266 + $0x24b8] sm:$0xff]
      %v1488 = vld [vmem:[%s266 + $0x24c0] sm:$0xff]
      %v1489 = vld [vmem:[%s266 + $0x24c8] sm:$0xff]
      %v1490 = vld [vmem:[%s266 + $0x24d0] sm:$0xff]
      %v1491 = vld [vmem:[%s266 + $0x24d8] sm:$0xff]
      %v1492 = vld [vmem:[%s266 + $0x24e0] sm:$0xff]
      %v1493 = vld [vmem:[%s266 + $0x24e8] sm:$0xff]
      %v1494 = vld [vmem:[%s266 + $0x24f0] sm:$0xff]
      %v1495 = vld [vmem:[%s266 + $0x24f8] sm:$0xff]
      %v1496 = vld [vmem:[%s266 + $0x2500] sm:$0xff]
      %v1497 = vld [vmem:[%s266 + $0x2508] sm:$0xff]
      %v1498 = vld [vmem:[%s266 + $0x2510] sm:$0xff]
      %v1499 = vld [vmem:[%s266 + $0x2518] sm:$0xff]
      %v1500 = vld [vmem:[%s266 + $0x2520] sm:$0xff]
      %v1501 = vld [vmem:[%s266 + $0x2528] sm:$0xff]
      %v1502 = vld [vmem:[%s266 + $0x2530] sm:$0xff]
      %v1503 = vld [vmem:[%s266 + $0x2538] sm:$0xff]
      %v1504 = vld [vmem:[%s266 + $0x2540] sm:$0xff]
      %v1505 = vld [vmem:[%s266 + $0x2548] sm:$0xff]
      %v1506 = vld [vmem:[%s266 + $0x2550] sm:$0xff]
      %v1507 = vld [vmem:[%s266 + $0x2558] sm:$0xff]
      %v1508 = vld [vmem:[%s266 + $0x2560] sm:$0xff]
      %v1509 = vld [vmem:[%s266 + $0x2568] sm:$0xff]
      %v1510 = vld [vmem:[%s266 + $0x2570] sm:$0xff]
      %v1511 = vld [vmem:[%s266 + $0x2578] sm:$0xff]
      %v1512 = vld [vmem:[%s266 + $0x2580] sm:$0xff]
      %v1513 = vld [vmem:[%s266 + $0x2588] sm:$0xff]
      %v1514 = vld [vmem:[%s266 + $0x2590] sm:$0xff]
      %v1515 = vld [vmem:[%s266 + $0x2598] sm:$0xff]
      %v1516 = vld [vmem:[%s266 + $0x25a0] sm:$0xff]
      %v1517 = vld [vmem:[%s266 + $0x25a8] sm:$0xff]
      %v1518 = vld [vmem:[%s266 + $0x25b0] sm:$0xff]
      %v1519 = vld [vmem:[%s266 + $0x25b8] sm:$0xff]
      %v1520 = vld [vmem:[%s266 + $0x25c0] sm:$0xff]
      %v1521 = vld [vmem:[%s266 + $0x25c8] sm:$0xff]
      %v1522 = vld [vmem:[%s266 + $0x25d0] sm:$0xff]
      %v1523 = vld [vmem:[%s266 + $0x25d8] sm:$0xff]
      %v1524 = vld [vmem:[%s266 + $0x25e0] sm:$0xff]
      %v1525 = vld [vmem:[%s266 + $0x25e8] sm:$0xff]
      %v1526 = vld [vmem:[%s266 + $0x25f0] sm:$0xff]
      %v1527 = vld [vmem:[%s266 + $0x25f8] sm:$0xff]
      %v1528 = vld [vmem:[%s266 + $0x2600] sm:$0xff]
      %v1529 = vld [vmem:[%s266 + $0x2608] sm:$0xff]
      %v1530 = vld [vmem:[%s266 + $0x2610] sm:$0xff]
      %v1531 = vld [vmem:[%s266 + $0x2618] sm:$0xff]
      %v1532 = vld [vmem:[%s266 + $0x2620] sm:$0xff]
      %v1533 = vld [vmem:[%s266 + $0x2628] sm:$0xff]
      %v1534 = vld [vmem:[%s266 + $0x2630] sm:$0xff]
      %v1535 = vld [vmem:[%s266 + $0x2638] sm:$0xff]
      %v1536 = vld [vmem:[%s266 + $0x2640] sm:$0xff]
      %v1537 = vld [vmem:[%s266 + $0x2648] sm:$0xff]
      %v1538 = vld [vmem:[%s266 + $0x2650] sm:$0xff]
      %v1539 = vld [vmem:[%s266 + $0x2658] sm:$0xff]
      %v1540 = vld [vmem:[%s266 + $0x2660] sm:$0xff]
      %v1541 = vld [vmem:[%s266 + $0x2668] sm:$0xff]
      %v1542 = vld [vmem:[%s266 + $0x2670] sm:$0xff]
      %v1543 = vld [vmem:[%s266 + $0x2678] sm:$0xff]
      %v1544 = vld [vmem:[%s266 + $0x2680] sm:$0xff]
      %v1545 = vld [vmem:[%s266 + $0x2688] sm:$0xff]
      %v1546 = vld [vmem:[%s266 + $0x2690] sm:$0xff]
      %v1547 = vld [vmem:[%s266 + $0x2698] sm:$0xff]
      %v1548 = vld [vmem:[%s266 + $0x26a0] sm:$0xff]
      %v1549 = vld [vmem:[%s266 + $0x26a8] sm:$0xff]
      %v1550 = vld [vmem:[%s266 + $0x26b0] sm:$0xff]
      %v1551 = vld [vmem:[%s266 + $0x26b8] sm:$0xff]
      %v1552 = vld [vmem:[%s266 + $0x26c0] sm:$0xff]
      %v1553 = vld [vmem:[%s266 + $0x26c8] sm:$0xff]
      %v1554 = vld [vmem:[%s266 + $0x26d0] sm:$0xff]
      %v1555 = vld [vmem:[%s266 + $0x26d8] sm:$0xff]
      %v1556 = vld [vmem:[%s266 + $0x26e0] sm:$0xff]
      %v1557 = vld [vmem:[%s266 + $0x26e8] sm:$0xff]
      %v1558 = vld [vmem:[%s266 + $0x26f0] sm:$0xff]
      %v1559 = vld [vmem:[%s266 + $0x26f8] sm:$0xff]
      %v1560 = vld [vmem:[%s266 + $0x2700] sm:$0xff]
      %v1561 = vld [vmem:[%s266 + $0x2708] sm:$0xff]
      %v1562 = vld [vmem:[%s266 + $0x2710] sm:$0xff]
      %v1563 = vld [vmem:[%s266 + $0x2718] sm:$0xff]
      %v1564 = vld [vmem:[%s266 + $0x2720] sm:$0xff]
      %v1565 = vld [vmem:[%s266 + $0x2728] sm:$0xff]
      %v1566 = vld [vmem:[%s266 + $0x2730] sm:$0xff]
      %v1567 = vld [vmem:[%s266 + $0x2738] sm:$0xff]
      %v1568 = vld [vmem:[%s266 + $0x2740] sm:$0xff]
      %v1569 = vld [vmem:[%s266 + $0x2748] sm:$0xff]
      %v1570 = vld [vmem:[%s266 + $0x2750] sm:$0xff]
      %v1571 = vld [vmem:[%s266 + $0x2758] sm:$0xff]
      %v1572 = vld [vmem:[%s266 + $0x2760] sm:$0xff]
      %v1573 = vld [vmem:[%s266 + $0x2768] sm:$0xff]
      %v1574 = vld [vmem:[%s266 + $0x2770] sm:$0xff]
      %v1575 = vld [vmem:[%s266 + $0x2778] sm:$0xff]
      %v1576 = vld [vmem:[%s266 + $0x2780] sm:$0xff]
      %v1577 = vld [vmem:[%s266 + $0x2788] sm:$0xff]
      %v1578 = vld [vmem:[%s266 + $0x2790] sm:$0xff]
      %v1579 = vld [vmem:[%s266 + $0x2798] sm:$0xff]
      %v1580 = vld [vmem:[%s266 + $0x27a0] sm:$0xff]
      %v1581 = vld [vmem:[%s266 + $0x27a8] sm:$0xff]
      %v1582 = vld [vmem:[%s266 + $0x27b0] sm:$0xff]
      %v1583 = vld [vmem:[%s266 + $0x27b8] sm:$0xff]
      %v1584 = vld [vmem:[%s266 + $0x27c0] sm:$0xff]
      %v1585 = vld [vmem:[%s266 + $0x27c8] sm:$0xff]
      %v1586 = vld [vmem:[%s266 + $0x27d0] sm:$0xff]
      %v1587 = vld [vmem:[%s266 + $0x27d8] sm:$0xff]
      %v1588 = vld [vmem:[%s266 + $0x27e0] sm:$0xff]
      %v1589 = vld [vmem:[%s266 + $0x27e8] sm:$0xff]
      %v1590 = vld [vmem:[%s266 + $0x27f0] sm:$0xff]
      %v1591 = vld [vmem:[%s266 + $0x27f8] sm:$0xff]
      %v1592 = vld [vmem:[%s266 + $0x2800] sm:$0xff]
      %v1593 = vld [vmem:[%s266 + $0x2808] sm:$0xff]
      %v1594 = vld [vmem:[%s266 + $0x2810] sm:$0xff]
      %v1595 = vld [vmem:[%s266 + $0x2818] sm:$0xff]
      %v1596 = vld [vmem:[%s266 + $0x2820] sm:$0xff]
      %v1597 = vld [vmem:[%s266 + $0x2828] sm:$0xff]
      %v1598 = vld [vmem:[%s266 + $0x2830] sm:$0xff]
      %v1599 = vld [vmem:[%s266 + $0x2838] sm:$0xff]
      %v1600 = vld [vmem:[%s266 + $0x2840] sm:$0xff]
      %v1601 = vld [vmem:[%s266 + $0x2848] sm:$0xff]
      %v1602 = vld [vmem:[%s266 + $0x2850] sm:$0xff]
      %v1603 = vld [vmem:[%s266 + $0x2858] sm:$0xff]
      %v1604 = vld [vmem:[%s266 + $0x2860] sm:$0xff]
      %v1605 = vld [vmem:[%s266 + $0x2868] sm:$0xff]
      %v1606 = vld [vmem:[%s266 + $0x2870] sm:$0xff]
      %v1607 = vld [vmem:[%s266 + $0x2878] sm:$0xff]
      %v1608 = vld [vmem:[%s266 + $0x2880] sm:$0xff]
      %v1609 = vld [vmem:[%s266 + $0x2888] sm:$0xff]
      %v1610 = vld [vmem:[%s266 + $0x2890] sm:$0xff]
      %v1611 = vld [vmem:[%s266 + $0x2898] sm:$0xff]
      %v1612 = vld [vmem:[%s266 + $0x28a0] sm:$0xff]
      %v1613 = vld [vmem:[%s266 + $0x28a8] sm:$0xff]
      %v1614 = vld [vmem:[%s266 + $0x28b0] sm:$0xff]
      %v1615 = vld [vmem:[%s266 + $0x28b8] sm:$0xff]
      %v1616 = vld [vmem:[%s266 + $0x28c0] sm:$0xff]
      %v1617 = vld [vmem:[%s266 + $0x28c8] sm:$0xff]
      %v1618 = vld [vmem:[%s266 + $0x28d0] sm:$0xff]
      %v1619 = vld [vmem:[%s266 + $0x28d8] sm:$0xff]
      %v1620 = vld [vmem:[%s266 + $0x28e0] sm:$0xff]
      %v1621 = vld [vmem:[%s266 + $0x28e8] sm:$0xff]
      %v1622 = vld [vmem:[%s266 + $0x28f0] sm:$0xff]
      %v1623 = vld [vmem:[%s266 + $0x28f8] sm:$0xff]
      %v1624 = vld [vmem:[%s266 + $0x2900] sm:$0xff]
      %v1625 = vld [vmem:[%s266 + $0x2908] sm:$0xff]
      %v1626 = vld [vmem:[%s266 + $0x2910] sm:$0xff]
      %v1627 = vld [vmem:[%s266 + $0x2918] sm:$0xff]
      %v1628 = vld [vmem:[%s266 + $0x2920] sm:$0xff]
      %v1629 = vld [vmem:[%s266 + $0x2928] sm:$0xff]
      %v1630 = vld [vmem:[%s266 + $0x2930] sm:$0xff]
      %v1631 = vld [vmem:[%s266 + $0x2938] sm:$0xff]
      %v1632 = vld [vmem:[%s266 + $0x2940] sm:$0xff]
      %v1633 = vld [vmem:[%s266 + $0x2948] sm:$0xff]
      %v1634 = vld [vmem:[%s266 + $0x2950] sm:$0xff]
      %v1635 = vld [vmem:[%s266 + $0x2958] sm:$0xff]
      %v1636 = vld [vmem:[%s266 + $0x2960] sm:$0xff]
      %v1637 = vld [vmem:[%s266 + $0x2968] sm:$0xff]
      %v1638 = vld [vmem:[%s266 + $0x2970] sm:$0xff]
      %v1639 = vld [vmem:[%s266 + $0x2978] sm:$0xff]
      %v1640 = vld [vmem:[%s266 + $0x2980] sm:$0xff]
      %v1641 = vld [vmem:[%s266 + $0x2988] sm:$0xff]
      %v1642 = vld [vmem:[%s266 + $0x2990] sm:$0xff]
      %v1643 = vld [vmem:[%s266 + $0x2998] sm:$0xff]
      %v1644 = vld [vmem:[%s266 + $0x29a0] sm:$0xff]
      %v1645 = vld [vmem:[%s266 + $0x29a8] sm:$0xff]
      %v1646 = vld [vmem:[%s266 + $0x29b0] sm:$0xff]
      %v1647 = vld [vmem:[%s266 + $0x29b8] sm:$0xff]
      %v1648 = vld [vmem:[%s266 + $0x29c0] sm:$0xff]
      %v1649 = vld [vmem:[%s266 + $0x29c8] sm:$0xff]
      %v1650 = vld [vmem:[%s266 + $0x29d0] sm:$0xff]
      %v1651 = vld [vmem:[%s266 + $0x29d8] sm:$0xff]
      %v1652 = vld [vmem:[%s266 + $0x29e0] sm:$0xff]
      %v1653 = vld [vmem:[%s266 + $0x29e8] sm:$0xff]
      %v1654 = vld [vmem:[%s266 + $0x29f0] sm:$0xff]
      %v1655 = vld [vmem:[%s266 + $0x29f8] sm:$0xff]
      %v1656 = vld [vmem:[%s266 + $0x2a00] sm:$0xff]
      %v1657 = vld [vmem:[%s266 + $0x2a08] sm:$0xff]
      %v1658 = vld [vmem:[%s266 + $0x2a10] sm:$0xff]
      %v1659 = vld [vmem:[%s266 + $0x2a18] sm:$0xff]
      %v1660 = vld [vmem:[%s266 + $0x2a20] sm:$0xff]
      %v1661 = vld [vmem:[%s266 + $0x2a28] sm:$0xff]
      %v1662 = vld [vmem:[%s266 + $0x2a30] sm:$0xff]
      %v1663 = vld [vmem:[%s266 + $0x2a38] sm:$0xff]
      %v1664 = vld [vmem:[%s266 + $0x2a40] sm:$0xff]
      %v1665 = vld [vmem:[%s266 + $0x2a48] sm:$0xff]
      %v1666 = vld [vmem:[%s266 + $0x2a50] sm:$0xff]
      %v1667 = vld [vmem:[%s266 + $0x2a58] sm:$0xff]
      %v1668 = vld [vmem:[%s266 + $0x2a60] sm:$0xff]
      %v1669 = vld [vmem:[%s266 + $0x2a68] sm:$0xff]
      %v1670 = vld [vmem:[%s266 + $0x2a70] sm:$0xff]
      %v1671 = vld [vmem:[%s266 + $0x2a78] sm:$0xff]
      %v1672 = vld [vmem:[%s266 + $0x2a80] sm:$0xff]
      %v1673 = vld [vmem:[%s266 + $0x2a88] sm:$0xff]
      %v1674 = vld [vmem:[%s266 + $0x2a90] sm:$0xff]
      %v1675 = vld [vmem:[%s266 + $0x2a98] sm:$0xff]
      %v1676 = vld [vmem:[%s266 + $0x2aa0] sm:$0xff]
      %v1677 = vld [vmem:[%s266 + $0x2aa8] sm:$0xff]
      %v1678 = vld [vmem:[%s266 + $0x2ab0] sm:$0xff]
      %v1679 = vld [vmem:[%s266 + $0x2ab8] sm:$0xff]
      %v1680 = vld [vmem:[%s266 + $0x2ac0] sm:$0xff]
      %v1681 = vld [vmem:[%s266 + $0x2ac8] sm:$0xff]
      %v1682 = vld [vmem:[%s266 + $0x2ad0] sm:$0xff]
      %v1683 = vld [vmem:[%s266 + $0x2ad8] sm:$0xff]
      %v1684 = vld [vmem:[%s266 + $0x2ae0] sm:$0xff]
      %v1685 = vld [vmem:[%s266 + $0x2ae8] sm:$0xff]
      %v1686 = vld [vmem:[%s266 + $0x2af0] sm:$0xff]
      %v1687 = vld [vmem:[%s266 + $0x2af8] sm:$0xff]
      %v1688 = vld [vmem:[%s266 + $0x2b00] sm:$0xff]
      %v1689 = vld [vmem:[%s266 + $0x2b08] sm:$0xff]
      %v1690 = vld [vmem:[%s266 + $0x2b10] sm:$0xff]
      %v1691 = vld [vmem:[%s266 + $0x2b18] sm:$0xff]
      %v1692 = vld [vmem:[%s266 + $0x2b20] sm:$0xff]
      %v1693 = vld [vmem:[%s266 + $0x2b28] sm:$0xff]
      %v1694 = vld [vmem:[%s266 + $0x2b30] sm:$0xff]
      %v1695 = vld [vmem:[%s266 + $0x2b38] sm:$0xff]
      %v1696 = vld [vmem:[%s266 + $0x2b40] sm:$0xff]
      %v1697 = vld [vmem:[%s266 + $0x2b48] sm:$0xff]
      %v1698 = vld [vmem:[%s266 + $0x2b50] sm:$0xff]
      %v1699 = vld [vmem:[%s266 + $0x2b58] sm:$0xff]
      %v1700 = vld [vmem:[%s266 + $0x2b60] sm:$0xff]
      %v1701 = vld [vmem:[%s266 + $0x2b68] sm:$0xff]
      %v1702 = vld [vmem:[%s266 + $0x2b70] sm:$0xff]
      %v1703 = vld [vmem:[%s266 + $0x2b78] sm:$0xff]
      %v1704 = vld [vmem:[%s266 + $0x2b80] sm:$0xff]
      %v1705 = vld [vmem:[%s266 + $0x2b88] sm:$0xff]
      %v1706 = vld [vmem:[%s266 + $0x2b90] sm:$0xff]
      %v1707 = vld [vmem:[%s266 + $0x2b98] sm:$0xff]
      %v1708 = vld [vmem:[%s266 + $0x2ba0] sm:$0xff]
      %v1709 = vld [vmem:[%s266 + $0x2ba8] sm:$0xff]
      %v1710 = vld [vmem:[%s266 + $0x2bb0] sm:$0xff]
      %v1711 = vld [vmem:[%s266 + $0x2bb8] sm:$0xff]
      %v1712 = vld [vmem:[%s266 + $0x2bc0] sm:$0xff]
      %v1713 = vld [vmem:[%s266 + $0x2bc8] sm:$0xff]
      %v1714 = vld [vmem:[%s266 + $0x2bd0] sm:$0xff]
      %v1715 = vld [vmem:[%s266 + $0x2bd8] sm:$0xff]
      %v1716 = vld [vmem:[%s266 + $0x2be0] sm:$0xff]
      %v1717 = vld [vmem:[%s266 + $0x2be8] sm:$0xff]
      %v1718 = vld [vmem:[%s266 + $0x2bf0] sm:$0xff]
      %v1719 = vld [vmem:[%s266 + $0x2bf8] sm:$0xff]
      %v1720 = vld [vmem:[%s266 + $0x2c00] sm:$0xff]
      %v1721 = vld [vmem:[%s266 + $0x2c08] sm:$0xff]
      %v1722 = vld [vmem:[%s266 + $0x2c10] sm:$0xff]
      %v1723 = vld [vmem:[%s266 + $0x2c18] sm:$0xff]
      %v1724 = vld [vmem:[%s266 + $0x2c20] sm:$0xff]
      %v1725 = vld [vmem:[%s266 + $0x2c28] sm:$0xff]
      %v1726 = vld [vmem:[%s266 + $0x2c30] sm:$0xff]
      %v1727 = vld [vmem:[%s266 + $0x2c38] sm:$0xff]
      %v1728 = vld [vmem:[%s266 + $0x2c40] sm:$0xff]
      %v1729 = vld [vmem:[%s266 + $0x2c48] sm:$0xff]
      %v1730 = vld [vmem:[%s266 + $0x2c50] sm:$0xff]
      %v1731 = vld [vmem:[%s266 + $0x2c58] sm:$0xff]
      %v1732 = vld [vmem:[%s266 + $0x2c60] sm:$0xff]
      %v1733 = vld [vmem:[%s266 + $0x2c68] sm:$0xff]
      %v1734 = vld [vmem:[%s266 + $0x2c70] sm:$0xff]
      %v1735 = vld [vmem:[%s266 + $0x2c78] sm:$0xff]
      %v1736 = vld [vmem:[%s266 + $0x2c80] sm:$0xff]
      %v1737 = vld [vmem:[%s266 + $0x2c88] sm:$0xff]
      %v1738 = vld [vmem:[%s266 + $0x2c90] sm:$0xff]
      %v1739 = vld [vmem:[%s266 + $0x2c98] sm:$0xff]
      %v1740 = vld [vmem:[%s266 + $0x2ca0] sm:$0xff]
      %v1741 = vld [vmem:[%s266 + $0x2ca8] sm:$0xff]
      %v1742 = vld [vmem:[%s266 + $0x2cb0] sm:$0xff]
      %v1743 = vld [vmem:[%s266 + $0x2cb8] sm:$0xff]
      %v1744 = vld [vmem:[%s266 + $0x2cc0] sm:$0xff]
      %v1745 = vld [vmem:[%s266 + $0x2cc8] sm:$0xff]
      %v1746 = vld [vmem:[%s266 + $0x2cd0] sm:$0xff]
      %v1747 = vld [vmem:[%s266 + $0x2cd8] sm:$0xff]
      %v1748 = vld [vmem:[%s266 + $0x2ce0] sm:$0xff]
      %v1749 = vld [vmem:[%s266 + $0x2ce8] sm:$0xff]
      %v1750 = vld [vmem:[%s266 + $0x2cf0] sm:$0xff]
      %v1751 = vld [vmem:[%s266 + $0x2cf8] sm:$0xff]
      %v1752 = vld [vmem:[%s266 + $0x2d00] sm:$0xff]
      %v1753 = vld [vmem:[%s266 + $0x2d08] sm:$0xff]
      %v1754 = vld [vmem:[%s266 + $0x2d10] sm:$0xff]
      %v1755 = vld [vmem:[%s266 + $0x2d18] sm:$0xff]
      %v1756 = vld [vmem:[%s266 + $0x2d20] sm:$0xff]
      %v1757 = vld [vmem:[%s266 + $0x2d28] sm:$0xff]
      %v1758 = vld [vmem:[%s266 + $0x2d30] sm:$0xff]
      %v1759 = vld [vmem:[%s266 + $0x2d38] sm:$0xff]
      %v1760 = vld [vmem:[%s266 + $0x2d40] sm:$0xff]
      %v1761 = vld [vmem:[%s266 + $0x2d48] sm:$0xff]
      %v1762 = vld [vmem:[%s266 + $0x2d50] sm:$0xff]
      %v1763 = vld [vmem:[%s266 + $0x2d58] sm:$0xff]
      %v1764 = vld [vmem:[%s266 + $0x2d60] sm:$0xff]
      %v1765 = vld [vmem:[%s266 + $0x2d68] sm:$0xff]
      %v1766 = vld [vmem:[%s266 + $0x2d70] sm:$0xff]
      %v1767 = vld [vmem:[%s266 + $0x2d78] sm:$0xff]
      %v1768 = vld [vmem:[%s266 + $0x2d80] sm:$0xff]
      %v1769 = vld [vmem:[%s266 + $0x2d88] sm:$0xff]
      %v1770 = vld [vmem:[%s266 + $0x2d90] sm:$0xff]
      %v1771 = vld [vmem:[%s266 + $0x2d98] sm:$0xff]
      %v1772 = vld [vmem:[%s266 + $0x2da0] sm:$0xff]
      %v1773 = vld [vmem:[%s266 + $0x2da8] sm:$0xff]
      %v1774 = vld [vmem:[%s266 + $0x2db0] sm:$0xff]
      %v1775 = vld [vmem:[%s266 + $0x2db8] sm:$0xff]
      %v1776 = vld [vmem:[%s266 + $0x2dc0] sm:$0xff]
      %v1777 = vld [vmem:[%s266 + $0x2dc8] sm:$0xff]
      %v1778 = vld [vmem:[%s266 + $0x2dd0] sm:$0xff]
      %v1779 = vld [vmem:[%s266 + $0x2dd8] sm:$0xff]
      %v1780 = vld [vmem:[%s266 + $0x2de0] sm:$0xff]
      %v1781 = vld [vmem:[%s266 + $0x2de8] sm:$0xff]
      %v1782 = vld [vmem:[%s266 + $0x2df0] sm:$0xff]
      %v1783 = vld [vmem:[%s266 + $0x2df8] sm:$0xff]
      %v1784 = vld [vmem:[%s266 + $0x2e00] sm:$0xff]
      %v1785 = vld [vmem:[%s266 + $0x2e08] sm:$0xff]
      %v1786 = vld [vmem:[%s266 + $0x2e10] sm:$0xff]
      %v1787 = vld [vmem:[%s266 + $0x2e18] sm:$0xff]
      %v1788 = vld [vmem:[%s266 + $0x2e20] sm:$0xff]
      %v1789 = vld [vmem:[%s266 + $0x2e28] sm:$0xff]
      %v1790 = vld [vmem:[%s266 + $0x2e30] sm:$0xff]
      %v1791 = vld [vmem:[%s266 + $0x2e38] sm:$0xff]
      %v1792 = vld [vmem:[%s266 + $0x2e40] sm:$0xff]
      %v1793 = vld [vmem:[%s266 + $0x2e48] sm:$0xff]
      %v1794 = vld [vmem:[%s266 + $0x2e50] sm:$0xff]
      %v1795 = vld [vmem:[%s266 + $0x2e58] sm:$0xff]
      %v1796 = vld [vmem:[%s266 + $0x2e60] sm:$0xff]
      %v1797 = vld [vmem:[%s266 + $0x2e68] sm:$0xff]
      %v1798 = vld [vmem:[%s266 + $0x2e70] sm:$0xff]
      %v1799 = vld [vmem:[%s266 + $0x2e78] sm:$0xff]
      %v1800 = vld [vmem:[%s266 + $0x2e80] sm:$0xff]
      %v1801 = vld [vmem:[%s266 + $0x2e88] sm:$0xff]
      %v1802 = vld [vmem:[%s266 + $0x2e90] sm:$0xff]
      %v1803 = vld [vmem:[%s266 + $0x2e98] sm:$0xff]
      %v1804 = vld [vmem:[%s266 + $0x2ea0] sm:$0xff]
      %v1805 = vld [vmem:[%s266 + $0x2ea8] sm:$0xff]
      %v1806 = vld [vmem:[%s266 + $0x2eb0] sm:$0xff]
      %v1807 = vld [vmem:[%s266 + $0x2eb8] sm:$0xff]
      %v1808 = vld [vmem:[%s266 + $0x2ec0] sm:$0xff]
      %v1809 = vld [vmem:[%s266 + $0x2ec8] sm:$0xff]
      %v1810 = vld [vmem:[%s266 + $0x2ed0] sm:$0xff]
      %v1811 = vld [vmem:[%s266 + $0x2ed8] sm:$0xff]
      %v1812 = vld [vmem:[%s266 + $0x2ee0] sm:$0xff]
      %v1813 = vld [vmem:[%s266 + $0x2ee8] sm:$0xff]
      %v1814 = vld [vmem:[%s266 + $0x2ef0] sm:$0xff]
      %v1815 = vld [vmem:[%s266 + $0x2ef8] sm:$0xff]
      %v1816 = vld [vmem:[%s266 + $0x2f00] sm:$0xff]
      %v1817 = vld [vmem:[%s266 + $0x2f08] sm:$0xff]
      %v1818 = vld [vmem:[%s266 + $0x2f10] sm:$0xff]
      %v1819 = vld [vmem:[%s266 + $0x2f18] sm:$0xff]
      %v1820 = vld [vmem:[%s266 + $0x2f20] sm:$0xff]
      %v1821 = vld [vmem:[%s266 + $0x2f28] sm:$0xff]
      %v1822 = vld [vmem:[%s266 + $0x2f30] sm:$0xff]
      %v1823 = vld [vmem:[%s266 + $0x2f38] sm:$0xff]
      %v1824 = vld [vmem:[%s266 + $0x2f40] sm:$0xff]
      %v1825 = vld [vmem:[%s266 + $0x2f48] sm:$0xff]
      %v1826 = vld [vmem:[%s266 + $0x2f50] sm:$0xff]
      %v1827 = vld [vmem:[%s266 + $0x2f58] sm:$0xff]
      %v1828 = vld [vmem:[%s266 + $0x2f60] sm:$0xff]
      %v1829 = vld [vmem:[%s266 + $0x2f68] sm:$0xff]
      %v1830 = vld [vmem:[%s266 + $0x2f70] sm:$0xff]
      %v1831 = vld [vmem:[%s266 + $0x2f78] sm:$0xff]
      %v1832 = vld [vmem:[%s266 + $0x2f80] sm:$0xff]
      %v1833 = vld [vmem:[%s266 + $0x2f88] sm:$0xff]
      %v1834 = vld [vmem:[%s266 + $0x2f90] sm:$0xff]
      %v1835 = vld [vmem:[%s266 + $0x2f98] sm:$0xff]
      %v1836 = vld [vmem:[%s266 + $0x2fa0] sm:$0xff]
      %v1837 = vld [vmem:[%s266 + $0x2fa8] sm:$0xff]
      %v1838 = vld [vmem:[%s266 + $0x2fb0] sm:$0xff]
      %v1839 = vld [vmem:[%s266 + $0x2fb8] sm:$0xff]
      %v1840 = vld [vmem:[%s266 + $0x2fc0] sm:$0xff]
      %v1841 = vld [vmem:[%s266 + $0x2fc8] sm:$0xff]
      %v1842 = vld [vmem:[%s266 + $0x2fd0] sm:$0xff]
      %v1843 = vld [vmem:[%s266 + $0x2fd8] sm:$0xff]
      %v1844 = vld [vmem:[%s266 + $0x2fe0] sm:$0xff]
      %v1845 = vld [vmem:[%s266 + $0x2fe8] sm:$0xff]
      %v1846 = vld [vmem:[%s266 + $0x2ff0] sm:$0xff]
      %v1847 = vld [vmem:[%s266 + $0x2ff8] sm:$0xff]
      %v1848 = vld [vmem:[%s266 + $0x3000] sm:$0xff]
      %v1849 = vld [vmem:[%s266 + $0x3008] sm:$0xff]
      %v1850 = vld [vmem:[%s266 + $0x3010] sm:$0xff]
      %v1851 = vld [vmem:[%s266 + $0x3018] sm:$0xff]
      %v1852 = vld [vmem:[%s266 + $0x3020] sm:$0xff]
      %v1853 = vld [vmem:[%s266 + $0x3028] sm:$0xff]
      %v1854 = vld [vmem:[%s266 + $0x3030] sm:$0xff]
      %v1855 = vld [vmem:[%s266 + $0x3038] sm:$0xff]
      %v1856 = vld [vmem:[%s266 + $0x3040] sm:$0xff]
      %v1857 = vld [vmem:[%s266 + $0x3048] sm:$0xff]
      %v1858 = vld [vmem:[%s266 + $0x3050] sm:$0xff]
      %v1859 = vld [vmem:[%s266 + $0x3058] sm:$0xff]
      %v1860 = vld [vmem:[%s266 + $0x3060] sm:$0xff]
      %v1861 = vld [vmem:[%s266 + $0x3068] sm:$0xff]
      %v1862 = vld [vmem:[%s266 + $0x3070] sm:$0xff]
      %v1863 = vld [vmem:[%s266 + $0x3078] sm:$0xff]
      %v1864 = vld [vmem:[%s266 + $0x3080] sm:$0xff]
      %v1865 = vld [vmem:[%s266 + $0x3088] sm:$0xff]
      %v1866 = vld [vmem:[%s266 + $0x3090] sm:$0xff]
      %v1867 = vld [vmem:[%s266 + $0x3098] sm:$0xff]
      %v1868 = vld [vmem:[%s266 + $0x30a0] sm:$0xff]
      %v1869 = vld [vmem:[%s266 + $0x30a8] sm:$0xff]
      %v1870 = vld [vmem:[%s266 + $0x30b0] sm:$0xff]
      %v1871 = vld [vmem:[%s266 + $0x30b8] sm:$0xff]
      %v1872 = vld [vmem:[%s266 + $0x30c0] sm:$0xff]
      %v1873 = vld [vmem:[%s266 + $0x30c8] sm:$0xff]
      %v1874 = vld [vmem:[%s266 + $0x30d0] sm:$0xff]
      %v1875 = vld [vmem:[%s266 + $0x30d8] sm:$0xff]
      %v1876 = vld [vmem:[%s266 + $0x30e0] sm:$0xff]
      %v1877 = vld [vmem:[%s266 + $0x30e8] sm:$0xff]
      %v1878 = vld [vmem:[%s266 + $0x30f0] sm:$0xff]
      %v1879 = vld [vmem:[%s266 + $0x30f8] sm:$0xff]
      %v1905 = vcombine.high %v287, %v287
      %v1907 = vunpack.c.l.s4 1983009808
      %v1908 = vunpack.c.0.s8 %v1907
      %v1909 = vlaneseq
      %v1910 = vshrl.u32 %v1909, 7
      %v1911 = vsub.s32 %v1908, %v1910
      %v1912 = vrot.slane %v287, %v1911
      %v1914 = vunpack.c.l.s4 1983009808
      %v1915 = vunpack.c.0.s8 %v1914
      %v1916 = vlaneseq
      %v1917 = vshrl.u32 %v1916, 7
      %v1918 = vsub.s32 %v1915, %v1917
      %v1919 = vrot.slane %v1905, %v1918
      %v1920 = vcombine.high %v1912, %v1912
      %v1921 = vcombine.high %v1919, %v1919
      %v1922 = vcombine.high %v288, %v288
      %v1924 = vunpack.c.l.s4 1983009808
      %v1925 = vunpack.c.0.s8 %v1924
      %v1926 = vlaneseq
      %v1927 = vshrl.u32 %v1926, 7
      %v1928 = vsub.s32 %v1925, %v1927
      %v1929 = vrot.slane %v288, %v1928
      %v1931 = vunpack.c.l.s4 1983009808
      %v1932 = vunpack.c.0.s8 %v1931
      %v1933 = vlaneseq
      %v1934 = vshrl.u32 %v1933, 7
      %v1935 = vsub.s32 %v1932, %v1934
      %v1936 = vrot.slane %v1922, %v1935
      %v1937 = vcombine.high %v1929, %v1929
      %v1938 = vcombine.high %v1936, %v1936
      %v1939 = vcombine.high %v289, %v289
      %v1941 = vunpack.c.l.s4 1983009808
      %v1942 = vunpack.c.0.s8 %v1941
      %v1943 = vlaneseq
      %v1944 = vshrl.u32 %v1943, 7
      %v1945 = vsub.s32 %v1942, %v1944
      %v1946 = vrot.slane %v289, %v1945
      %v1948 = vunpack.c.l.s4 1983009808
      %v1949 = vunpack.c.0.s8 %v1948
      %v1950 = vlaneseq
      %v1951 = vshrl.u32 %v1950, 7
      %v1952 = vsub.s32 %v1949, %v1951
      %v1953 = vrot.slane %v1939, %v1952
      %v1954 = vcombine.high %v1946, %v1946
      %v1955 = vcombine.high %v1953, %v1953
      %v1956 = vcombine.high %v290, %v290
      %v1958 = vunpack.c.l.s4 1983009808
      %v1959 = vunpack.c.0.s8 %v1958
      %v1960 = vlaneseq
      %v1961 = vshrl.u32 %v1960, 7
      %v1962 = vsub.s32 %v1959, %v1961
      %v1963 = vrot.slane %v290, %v1962
      %v1965 = vunpack.c.l.s4 1983009808
      %v1966 = vunpack.c.0.s8 %v1965
      %v1967 = vlaneseq
      %v1968 = vshrl.u32 %v1967, 7
      %v1969 = vsub.s32 %v1966, %v1968
      %v1970 = vrot.slane %v1956, %v1969
      %v1971 = vcombine.high %v1963, %v1963
      %v1972 = vcombine.high %v1970, %v1970
      %v1973 = vcombine.high %v291, %v291
      %v1975 = vunpack.c.l.s4 1983009808
      %v1976 = vunpack.c.0.s8 %v1975
      %v1977 = vlaneseq
      %v1978 = vshrl.u32 %v1977, 7
      %v1979 = vsub.s32 %v1976, %v1978
      %v1980 = vrot.slane %v291, %v1979
      %v1982 = vunpack.c.l.s4 1983009808
      %v1983 = vunpack.c.0.s8 %v1982
      %v1984 = vlaneseq
      %v1985 = vshrl.u32 %v1984, 7
      %v1986 = vsub.s32 %v1983, %v1985
      %v1987 = vrot.slane %v1973, %v1986
      %v1988 = vcombine.high %v1980, %v1980
      %v1989 = vcombine.high %v1987, %v1987
      %v1990 = vcombine.high %v292, %v292
      %v1992 = vunpack.c.l.s4 1983009808
      %v1993 = vunpack.c.0.s8 %v1992
      %v1994 = vlaneseq
      %v1995 = vshrl.u32 %v1994, 7
      %v1996 = vsub.s32 %v1993, %v1995
      %v1997 = vrot.slane %v292, %v1996
      %v1999 = vunpack.c.l.s4 1983009808
      %v2000 = vunpack.c.0.s8 %v1999
      %v2001 = vlaneseq
      %v2002 = vshrl.u32 %v2001, 7
      %v2003 = vsub.s32 %v2000, %v2002
      %v2004 = vrot.slane %v1990, %v2003
      %v2005 = vcombine.high %v1997, %v1997
      %v2006 = vcombine.high %v2004, %v2004
      %v2007 = vcombine.high %v293, %v293
      %v2009 = vunpack.c.l.s4 1983009808
      %v2010 = vunpack.c.0.s8 %v2009
      %v2011 = vlaneseq
      %v2012 = vshrl.u32 %v2011, 7
      %v2013 = vsub.s32 %v2010, %v2012
      %v2014 = vrot.slane %v293, %v2013
      %v2016 = vunpack.c.l.s4 1983009808
      %v2017 = vunpack.c.0.s8 %v2016
      %v2018 = vlaneseq
      %v2019 = vshrl.u32 %v2018, 7
      %v2020 = vsub.s32 %v2017, %v2019
      %v2021 = vrot.slane %v2007, %v2020
      %v2022 = vcombine.high %v2014, %v2014
      %v2023 = vcombine.high %v2021, %v2021
      %v2024 = vcombine.high %v294, %v294
      %v2026 = vunpack.c.l.s4 1983009808
      %v2027 = vunpack.c.0.s8 %v2026
      %v2028 = vlaneseq
      %v2029 = vshrl.u32 %v2028, 7
      %v2030 = vsub.s32 %v2027, %v2029
      %v2031 = vrot.slane %v294, %v2030
      %v2033 = vunpack.c.l.s4 1983009808
      %v2034 = vunpack.c.0.s8 %v2033
      %v2035 = vlaneseq
      %v2036 = vshrl.u32 %v2035, 7
      %v2037 = vsub.s32 %v2034, %v2036
      %v2038 = vrot.slane %v2024, %v2037
      %v2039 = vcombine.high %v2031, %v2031
      %v2040 = vcombine.high %v2038, %v2038
      %v2041 = vcombine.high %v295, %v295
      %v2043 = vunpack.c.l.s4 1983009808
      %v2044 = vunpack.c.0.s8 %v2043
      %v2045 = vlaneseq
      %v2046 = vshrl.u32 %v2045, 7
      %v2047 = vsub.s32 %v2044, %v2046
      %v2048 = vrot.slane %v295, %v2047
      %v2050 = vunpack.c.l.s4 1983009808
      %v2051 = vunpack.c.0.s8 %v2050
      %v2052 = vlaneseq
      %v2053 = vshrl.u32 %v2052, 7
      %v2054 = vsub.s32 %v2051, %v2053
      %v2055 = vrot.slane %v2041, %v2054
      %v2056 = vcombine.high %v2048, %v2048
      %v2057 = vcombine.high %v2055, %v2055
      %v2058 = vcombine.high %v296, %v296
      %v2060 = vunpack.c.l.s4 1983009808
      %v2061 = vunpack.c.0.s8 %v2060
      %v2062 = vlaneseq
      %v2063 = vshrl.u32 %v2062, 7
      %v2064 = vsub.s32 %v2061, %v2063
      %v2065 = vrot.slane %v296, %v2064
      %v2067 = vunpack.c.l.s4 1983009808
      %v2068 = vunpack.c.0.s8 %v2067
      %v2069 = vlaneseq
      %v2070 = vshrl.u32 %v2069, 7
      %v2071 = vsub.s32 %v2068, %v2070
      %v2072 = vrot.slane %v2058, %v2071
      %v2073 = vcombine.high %v2065, %v2065
      %v2074 = vcombine.high %v2072, %v2072
      %v2075 = vcombine.high %v297, %v297
      %v2077 = vunpack.c.l.s4 1983009808
      %v2078 = vunpack.c.0.s8 %v2077
      %v2079 = vlaneseq
      %v2080 = vshrl.u32 %v2079, 7
      %v2081 = vsub.s32 %v2078, %v2080
      %v2082 = vrot.slane %v297, %v2081
      %v2084 = vunpack.c.l.s4 1983009808
      %v2085 = vunpack.c.0.s8 %v2084
      %v2086 = vlaneseq
      %v2087 = vshrl.u32 %v2086, 7
      %v2088 = vsub.s32 %v2085, %v2087
      %v2089 = vrot.slane %v2075, %v2088
      %v2090 = vcombine.high %v2082, %v2082
      %v2091 = vcombine.high %v2089, %v2089
      %v2092 = vcombine.high %v298, %v298
      %v2094 = vunpack.c.l.s4 1983009808
      %v2095 = vunpack.c.0.s8 %v2094
      %v2096 = vlaneseq
      %v2097 = vshrl.u32 %v2096, 7
      %v2098 = vsub.s32 %v2095, %v2097
      %v2099 = vrot.slane %v298, %v2098
      %v2101 = vunpack.c.l.s4 1983009808
      %v2102 = vunpack.c.0.s8 %v2101
      %v2103 = vlaneseq
      %v2104 = vshrl.u32 %v2103, 7
      %v2105 = vsub.s32 %v2102, %v2104
      %v2106 = vrot.slane %v2092, %v2105
      %v2107 = vcombine.high %v2099, %v2099
      %v2108 = vcombine.high %v2106, %v2106
      %v2109 = vcombine.high %v299, %v299
      %v2111 = vunpack.c.l.s4 1983009808
      %v2112 = vunpack.c.0.s8 %v2111
      %v2113 = vlaneseq
      %v2114 = vshrl.u32 %v2113, 7
      %v2115 = vsub.s32 %v2112, %v2114
      %v2116 = vrot.slane %v299, %v2115
      %v2118 = vunpack.c.l.s4 1983009808
      %v2119 = vunpack.c.0.s8 %v2118
      %v2120 = vlaneseq
      %v2121 = vshrl.u32 %v2120, 7
      %v2122 = vsub.s32 %v2119, %v2121
      %v2123 = vrot.slane %v2109, %v2122
      %v2124 = vcombine.high %v2116, %v2116
      %v2125 = vcombine.high %v2123, %v2123
      %v2126 = vcombine.high %v300, %v300
      %v2128 = vunpack.c.l.s4 1983009808
      %v2129 = vunpack.c.0.s8 %v2128
      %v2130 = vlaneseq
      %v2131 = vshrl.u32 %v2130, 7
      %v2132 = vsub.s32 %v2129, %v2131
      %v2133 = vrot.slane %v300, %v2132
      %v2135 = vunpack.c.l.s4 1983009808
      %v2136 = vunpack.c.0.s8 %v2135
      %v2137 = vlaneseq
      %v2138 = vshrl.u32 %v2137, 7
      %v2139 = vsub.s32 %v2136, %v2138
      %v2140 = vrot.slane %v2126, %v2139
      %v2141 = vcombine.high %v2133, %v2133
      %v2142 = vcombine.high %v2140, %v2140
      %v2143 = vcombine.high %v301, %v301
      %v2145 = vunpack.c.l.s4 1983009808
      %v2146 = vunpack.c.0.s8 %v2145
      %v2147 = vlaneseq
      %v2148 = vshrl.u32 %v2147, 7
      %v2149 = vsub.s32 %v2146, %v2148
      %v2150 = vrot.slane %v301, %v2149
      %v2152 = vunpack.c.l.s4 1983009808
      %v2153 = vunpack.c.0.s8 %v2152
      %v2154 = vlaneseq
      %v2155 = vshrl.u32 %v2154, 7
      %v2156 = vsub.s32 %v2153, %v2155
      %v2157 = vrot.slane %v2143, %v2156
      %v2158 = vcombine.high %v2150, %v2150
      %v2159 = vcombine.high %v2157, %v2157
      %v2160 = vcombine.high %v302, %v302
      %v2162 = vunpack.c.l.s4 1983009808
      %v2163 = vunpack.c.0.s8 %v2162
      %v2164 = vlaneseq
      %v2165 = vshrl.u32 %v2164, 7
      %v2166 = vsub.s32 %v2163, %v2165
      %v2167 = vrot.slane %v302, %v2166
      %v2169 = vunpack.c.l.s4 1983009808
      %v2170 = vunpack.c.0.s8 %v2169
      %v2171 = vlaneseq
      %v2172 = vshrl.u32 %v2171, 7
      %v2173 = vsub.s32 %v2170, %v2172
      %v2174 = vrot.slane %v2160, %v2173
      %v2175 = vcombine.high %v2167, %v2167
      %v2176 = vcombine.high %v2174, %v2174
      %v2177 = vcombine.high %v303, %v303
      %v2179 = vunpack.c.l.s4 1983009808
      %v2180 = vunpack.c.0.s8 %v2179
      %v2181 = vlaneseq
      %v2182 = vshrl.u32 %v2181, 7
      %v2183 = vsub.s32 %v2180, %v2182
      %v2184 = vrot.slane %v303, %v2183
      %v2186 = vunpack.c.l.s4 1983009808
      %v2187 = vunpack.c.0.s8 %v2186
      %v2188 = vlaneseq
      %v2189 = vshrl.u32 %v2188, 7
      %v2190 = vsub.s32 %v2187, %v2189
      %v2191 = vrot.slane %v2177, %v2190
      %v2192 = vcombine.high %v2184, %v2184
      %v2193 = vcombine.high %v2191, %v2191
      %v2194 = vcombine.high %v304, %v304
      %v2196 = vunpack.c.l.s4 1983009808
      %v2197 = vunpack.c.0.s8 %v2196
      %v2198 = vlaneseq
      %v2199 = vshrl.u32 %v2198, 7
      %v2200 = vsub.s32 %v2197, %v2199
      %v2201 = vrot.slane %v304, %v2200
      %v2203 = vunpack.c.l.s4 1983009808
      %v2204 = vunpack.c.0.s8 %v2203
      %v2205 = vlaneseq
      %v2206 = vshrl.u32 %v2205, 7
      %v2207 = vsub.s32 %v2204, %v2206
      %v2208 = vrot.slane %v2194, %v2207
      %v2209 = vcombine.high %v2201, %v2201
      %v2210 = vcombine.high %v2208, %v2208
      %v2211 = vcombine.high %v305, %v305
      %v2213 = vunpack.c.l.s4 1983009808
      %v2214 = vunpack.c.0.s8 %v2213
      %v2215 = vlaneseq
      %v2216 = vshrl.u32 %v2215, 7
      %v2217 = vsub.s32 %v2214, %v2216
      %v2218 = vrot.slane %v305, %v2217
      %v2220 = vunpack.c.l.s4 1983009808
      %v2221 = vunpack.c.0.s8 %v2220
      %v2222 = vlaneseq
      %v2223 = vshrl.u32 %v2222, 7
      %v2224 = vsub.s32 %v2221, %v2223
      %v2225 = vrot.slane %v2211, %v2224
      %v2226 = vcombine.high %v2218, %v2218
      %v2227 = vcombine.high %v2225, %v2225
      %v2228 = vcombine.high %v306, %v306
      %v2230 = vunpack.c.l.s4 1983009808
      %v2231 = vunpack.c.0.s8 %v2230
      %v2232 = vlaneseq
      %v2233 = vshrl.u32 %v2232, 7
      %v2234 = vsub.s32 %v2231, %v2233
      %v2235 = vrot.slane %v306, %v2234
      %v2237 = vunpack.c.l.s4 1983009808
      %v2238 = vunpack.c.0.s8 %v2237
      %v2239 = vlaneseq
      %v2240 = vshrl.u32 %v2239, 7
      %v2241 = vsub.s32 %v2238, %v2240
      %v2242 = vrot.slane %v2228, %v2241
      %v2243 = vcombine.high %v2235, %v2235
      %v2244 = vcombine.high %v2242, %v2242
      %v2245 = vcombine.high %v307, %v307
      %v2247 = vunpack.c.l.s4 1983009808
      %v2248 = vunpack.c.0.s8 %v2247
      %v2249 = vlaneseq
      %v2250 = vshrl.u32 %v2249, 7
      %v2251 = vsub.s32 %v2248, %v2250
      %v2252 = vrot.slane %v307, %v2251
      %v2254 = vunpack.c.l.s4 1983009808
      %v2255 = vunpack.c.0.s8 %v2254
      %v2256 = vlaneseq
      %v2257 = vshrl.u32 %v2256, 7
      %v2258 = vsub.s32 %v2255, %v2257
      %v2259 = vrot.slane %v2245, %v2258
      %v2260 = vcombine.high %v2252, %v2252
      %v2261 = vcombine.high %v2259, %v2259
      %v2262 = vcombine.high %v308, %v308
      %v2264 = vunpack.c.l.s4 1983009808
      %v2265 = vunpack.c.0.s8 %v2264
      %v2266 = vlaneseq
      %v2267 = vshrl.u32 %v2266, 7
      %v2268 = vsub.s32 %v2265, %v2267
      %v2269 = vrot.slane %v308, %v2268
      %v2271 = vunpack.c.l.s4 1983009808
      %v2272 = vunpack.c.0.s8 %v2271
      %v2273 = vlaneseq
      %v2274 = vshrl.u32 %v2273, 7
      %v2275 = vsub.s32 %v2272, %v2274
      %v2276 = vrot.slane %v2262, %v2275
      %v2277 = vcombine.high %v2269, %v2269
      %v2278 = vcombine.high %v2276, %v2276
      %v2279 = vcombine.high %v309, %v309
      %v2281 = vunpack.c.l.s4 1983009808
      %v2282 = vunpack.c.0.s8 %v2281
      %v2283 = vlaneseq
      %v2284 = vshrl.u32 %v2283, 7
      %v2285 = vsub.s32 %v2282, %v2284
      %v2286 = vrot.slane %v309, %v2285
      %v2288 = vunpack.c.l.s4 1983009808
      %v2289 = vunpack.c.0.s8 %v2288
      %v2290 = vlaneseq
      %v2291 = vshrl.u32 %v2290, 7
      %v2292 = vsub.s32 %v2289, %v2291
      %v2293 = vrot.slane %v2279, %v2292
      %v2294 = vcombine.high %v2286, %v2286
      %v2295 = vcombine.high %v2293, %v2293
      %v2296 = vcombine.high %v310, %v310
      %v2298 = vunpack.c.l.s4 1983009808
      %v2299 = vunpack.c.0.s8 %v2298
      %v2300 = vlaneseq
      %v2301 = vshrl.u32 %v2300, 7
      %v2302 = vsub.s32 %v2299, %v2301
      %v2303 = vrot.slane %v310, %v2302
      %v2305 = vunpack.c.l.s4 1983009808
      %v2306 = vunpack.c.0.s8 %v2305
      %v2307 = vlaneseq
      %v2308 = vshrl.u32 %v2307, 7
      %v2309 = vsub.s32 %v2306, %v2308
      %v2310 = vrot.slane %v2296, %v2309
      %v2311 = vcombine.high %v2303, %v2303
      %v2312 = vcombine.high %v2310, %v2310
      %v2314 = vunpack.c.l.s4 1983009808
      %v2315 = vunpack.c.0.s8 %v2314
      %v2316 = vlaneseq
      %v2317 = vshrl.u32 %v2316, 7
      %v2318 = vsub.s32 %v2315, %v2317
      %v2319 = vrot.slane %v311, %v2318
      %v2320 = vcombine.high %v2319, %v2319
      %2419 = vmatprep.subr.mxu0 0.0
      %2420 = vmatpush1.msra.mxu0 %v312
      %2421 = vmatprep.subr.mxu0 0.0
      %2422 = vmatpush1.msra.mxu0 %v313
      %2423 = vmatprep.subr.mxu0 0.0
      %2424 = vmatpush1.msra.mxu0 %v314
      %2425 = vmatprep.subr.mxu0 0.0
      %2426 = vmatpush1.msra.mxu0 %v315
      %2427 = vmatprep.subr.mxu0 0.0
      %2428 = vmatpush1.msra.mxu0 %v316
      %2429 = vmatprep.subr.mxu0 0.0
      %2430 = vmatpush1.msra.mxu0 %v317
      %2431 = vmatprep.subr.mxu0 0.0
      %2432 = vmatpush1.msra.mxu0 %v318
      %2433 = vmatprep.subr.mxu0 0.0
      %2434 = vmatpush1.msra.mxu0 %v319
      %2435 = vmatprep.subr.mxu0 0.0
      %2436 = vmatpush1.msra.mxu0 %v320
      %2437 = vmatprep.subr.mxu0 0.0
      %2438 = vmatpush1.msra.mxu0 %v321
      %2439 = vmatprep.subr.mxu0 0.0
      %2440 = vmatpush1.msra.mxu0 %v322
      %2441 = vmatprep.subr.mxu0 0.0
      %2442 = vmatpush1.msra.mxu0 %v323
      %2443 = vmatprep.subr.mxu0 0.0
      %2444 = vmatpush1.msra.mxu0 %v324
      %2445 = vmatprep.subr.mxu0 0.0
      %2446 = vmatpush1.msra.mxu0 %v325
      %2447 = vmatprep.subr.mxu0 0.0
      %2448 = vmatpush1.msra.mxu0 %v326
      %2449 = vmatprep.subr.mxu0 0.0
      %2450 = vmatpush1.msra.mxu0 %v327
      %2451 = vmatprep.subr.mxu0 0.0
      %2452 = vmatpush1.msra.mxu0 %v328
      %2453 = vmatprep.subr.mxu0 0.0
      %2454 = vmatpush1.msra.mxu0 %v329
      %2455 = vmatprep.subr.mxu0 0.0
      %2456 = vmatpush1.msra.mxu0 %v330
      %2457 = vmatprep.subr.mxu0 0.0
      %2458 = vmatpush1.msra.mxu0 %v331
      %2459 = vmatprep.subr.mxu0 0.0
      %2460 = vmatpush1.msra.mxu0 %v332
      %2461 = vmatprep.subr.mxu0 0.0
      %2462 = vmatpush1.msra.mxu0 %v333
      %2463 = vmatprep.subr.mxu0 0.0
      %2464 = vmatpush1.msra.mxu0 %v334
      %2465 = vmatprep.subr.mxu0 0.0
      %2466 = vmatpush1.msra.mxu0 %v335
      %2467 = vmatprep.subr.mxu0 0.0
      %2468 = vmatpush1.msra.mxu0 %v336
      %2469 = vmatprep.subr.mxu0 0.0
      %2470 = vmatpush1.msra.mxu0 %v337
      %2471 = vmatprep.subr.mxu0 0.0
      %2472 = vmatpush1.msra.mxu0 %v338
      %2473 = vmatprep.subr.mxu0 0.0
      %2474 = vmatpush1.msra.mxu0 %v339
      %2475 = vmatprep.subr.mxu0 0.0
      %2476 = vmatpush1.msra.mxu0 %v340
      %2477 = vmatprep.subr.mxu0 0.0
      %2478 = vmatpush1.msra.mxu0 %v341
      %2479 = vmatprep.subr.mxu0 0.0
      %2480 = vmatpush1.msra.mxu0 %v342
      %2481 = vmatprep.subr.mxu0 0.0
      %2482 = vmatpush1.msra.mxu0 %v343
      %2483 = vmatprep.mubr.f32.mxu0 %v1920
      %2484 = vmatmul.mubr.f32.gmra.mrb[0].mxu0 %v1912
      %v2485 = vpop.f32.mrb[0].mxu0
      %v2486 = vadd.f32 0.0, %v2485
      %v2487 = vpop.f32.mrb[0].mxu0
      %2488 = vdwg.mxu0
      %2489 = vmatprep.subr.mxu0 0.0
      %2490 = vmatpush1.msra.mxu0 %v344
      %2491 = vmatprep.subr.mxu0 0.0
      %2492 = vmatpush1.msra.mxu0 %v345
      %2493 = vmatprep.subr.mxu0 0.0
      %2494 = vmatpush1.msra.mxu0 %v346
      %2495 = vmatprep.subr.mxu0 0.0
      %2496 = vmatpush1.msra.mxu0 %v347
      %2497 = vmatprep.subr.mxu0 0.0
      %2498 = vmatpush1.msra.mxu0 %v348
      %2499 = vmatprep.subr.mxu0 0.0
      %2500 = vmatpush1.msra.mxu0 %v349
      %2501 = vmatprep.subr.mxu0 0.0
      %2502 = vmatpush1.msra.mxu0 %v350
      %2503 = vmatprep.subr.mxu0 0.0
      %2504 = vmatpush1.msra.mxu0 %v351
      %2505 = vmatprep.subr.mxu0 0.0
      %2506 = vmatpush1.msra.mxu0 %v352
      %2507 = vmatprep.subr.mxu0 0.0
      %2508 = vmatpush1.msra.mxu0 %v353
      %2509 = vmatprep.subr.mxu0 0.0
      %2510 = vmatpush1.msra.mxu0 %v354
      %2511 = vmatprep.subr.mxu0 0.0
      %2512 = vmatpush1.msra.mxu0 %v355
      %2513 = vmatprep.subr.mxu0 0.0
      %2514 = vmatpush1.msra.mxu0 %v356
      %2515 = vmatprep.subr.mxu0 0.0
      %2516 = vmatpush1.msra.mxu0 %v357
      %2517 = vmatprep.subr.mxu0 0.0
      %2518 = vmatpush1.msra.mxu0 %v358
      %2519 = vmatprep.subr.mxu0 0.0
      %2520 = vmatpush1.msra.mxu0 %v359
      %2521 = vmatprep.subr.mxu0 0.0
      %2522 = vmatpush1.msra.mxu0 %v360
      %2523 = vmatprep.subr.mxu0 0.0
      %2524 = vmatpush1.msra.mxu0 %v361
      %2525 = vmatprep.subr.mxu0 0.0
      %2526 = vmatpush1.msra.mxu0 %v362
      %2527 = vmatprep.subr.mxu0 0.0
      %2528 = vmatpush1.msra.mxu0 %v363
      %2529 = vmatprep.subr.mxu0 0.0
      %2530 = vmatpush1.msra.mxu0 %v364
      %2531 = vmatprep.subr.mxu0 0.0
      %2532 = vmatpush1.msra.mxu0 %v365
      %2533 = vmatprep.subr.mxu0 0.0
      %2534 = vmatpush1.msra.mxu0 %v366
      %2535 = vmatprep.subr.mxu0 0.0
      %2536 = vmatpush1.msra.mxu0 %v367
      %2537 = vmatprep.subr.mxu0 0.0
      %2538 = vmatpush1.msra.mxu0 %v368
      %2539 = vmatprep.subr.mxu0 0.0
      %2540 = vmatpush1.msra.mxu0 %v369
      %2541 = vmatprep.subr.mxu0 0.0
      %2542 = vmatpush1.msra.mxu0 %v370
      %2543 = vmatprep.subr.mxu0 0.0
      %2544 = vmatpush1.msra.mxu0 %v371
      %2545 = vmatprep.subr.mxu0 0.0
      %2546 = vmatpush1.msra.mxu0 %v372
      %2547 = vmatprep.subr.mxu0 0.0
      %2548 = vmatpush1.msra.mxu0 %v373
      %2549 = vmatprep.subr.mxu0 0.0
      %2550 = vmatpush1.msra.mxu0 %v374
      %2551 = vmatprep.subr.mxu0 0.0
      %2552 = vmatpush1.msra.mxu0 %v375
      %2553 = vmatprep.mubr.f32.mxu0 %v1921
      %2554 = vmatmul.mubr.f32.gmra.mrb[0].mxu0 %v1919
      %v2555 = vpop.f32.mrb[0].mxu0
      %v2556 = vadd.f32 %v2486, %v2555
      %v2557 = vpop.f32.mrb[0].mxu0
      %2558 = vdwg.mxu0
      %2559 = vmatprep.subr.mxu0 0.0
      %2560 = vmatpush1.msra.mxu0 %v376
      %2561 = vmatprep.subr.mxu0 0.0
      %2562 = vmatpush1.msra.mxu0 %v377
      %2563 = vmatprep.subr.mxu0 0.0
      %2564 = vmatpush1.msra.mxu0 %v378
      %2565 = vmatprep.subr.mxu0 0.0
      %2566 = vmatpush1.msra.mxu0 %v379
      %2567 = vmatprep.subr.mxu0 0.0
      %2568 = vmatpush1.msra.mxu0 %v380
      %2569 = vmatprep.subr.mxu0 0.0
      %2570 = vmatpush1.msra.mxu0 %v381
      %2571 = vmatprep.subr.mxu0 0.0
      %2572 = vmatpush1.msra.mxu0 %v382
      %2573 = vmatprep.subr.mxu0 0.0
      %2574 = vmatpush1.msra.mxu0 %v383
      %2575 = vmatprep.subr.mxu0 0.0
      %2576 = vmatpush1.msra.mxu0 %v384
      %2577 = vmatprep.subr.mxu0 0.0
      %2578 = vmatpush1.msra.mxu0 %v385
      %2579 = vmatprep.subr.mxu0 0.0
      %2580 = vmatpush1.msra.mxu0 %v386
      %2581 = vmatprep.subr.mxu0 0.0
      %2582 = vmatpush1.msra.mxu0 %v387
      %2583 = vmatprep.subr.mxu0 0.0
      %2584 = vmatpush1.msra.mxu0 %v388
      %2585 = vmatprep.subr.mxu0 0.0
      %2586 = vmatpush1.msra.mxu0 %v389
      %2587 = vmatprep.subr.mxu0 0.0
      %2588 = vmatpush1.msra.mxu0 %v390
      %2589 = vmatprep.subr.mxu0 0.0
      %2590 = vmatpush1.msra.mxu0 %v391
      %2591 = vmatprep.subr.mxu0 0.0
      %2592 = vmatpush1.msra.mxu0 %v392
      %2593 = vmatprep.subr.mxu0 0.0
      %2594 = vmatpush1.msra.mxu0 %v393
      %2595 = vmatprep.subr.mxu0 0.0
      %2596 = vmatpush1.msra.mxu0 %v394
      %2597 = vmatprep.subr.mxu0 0.0
      %2598 = vmatpush1.msra.mxu0 %v395
      %2599 = vmatprep.subr.mxu0 0.0
      %2600 = vmatpush1.msra.mxu0 %v396
      %2601 = vmatprep.subr.mxu0 0.0
      %2602 = vmatpush1.msra.mxu0 %v397
      %2603 = vmatprep.subr.mxu0 0.0
      %2604 = vmatpush1.msra.mxu0 %v398
      %2605 = vmatprep.subr.mxu0 0.0
      %2606 = vmatpush1.msra.mxu0 %v399
      %2607 = vmatprep.subr.mxu0 0.0
      %2608 = vmatpush1.msra.mxu0 %v400
      %2609 = vmatprep.subr.mxu0 0.0
      %2610 = vmatpush1.msra.mxu0 %v401
      %2611 = vmatprep.subr.mxu0 0.0
      %2612 = vmatpush1.msra.mxu0 %v402
      %2613 = vmatprep.subr.mxu0 0.0
      %2614 = vmatpush1.msra.mxu0 %v403
      %2615 = vmatprep.subr.mxu0 0.0
      %2616 = vmatpush1.msra.mxu0 %v404
      %2617 = vmatprep.subr.mxu0 0.0
      %2618 = vmatpush1.msra.mxu0 %v405
      %2619 = vmatprep.subr.mxu0 0.0
      %2620 = vmatpush1.msra.mxu0 %v406
      %2621 = vmatprep.subr.mxu0 0.0
      %2622 = vmatpush1.msra.mxu0 %v407
      %2623 = vmatprep.mubr.f32.mxu0 %v1937
      %2624 = vmatmul.mubr.f32.gmra.mrb[0].mxu0 %v1929
      %v2625 = vpop.f32.mrb[0].mxu0
      %v2626 = vadd.f32 %v2556, %v2625
      %v2627 = vpop.f32.mrb[0].mxu0
      %2628 = vdwg.mxu0
      %2629 = vmatprep.subr.mxu0 0.0
      %2630 = vmatpush1.msra.mxu0 %v408
      %2631 = vmatprep.subr.mxu0 0.0
      %2632 = vmatpush1.msra.mxu0 %v409
      %2633 = vmatprep.subr.mxu0 0.0
      %2634 = vmatpush1.msra.mxu0 %v410
      %2635 = vmatprep.subr.mxu0 0.0
      %2636 = vmatpush1.msra.mxu0 %v411
      %2637 = vmatprep.subr.mxu0 0.0
      %2638 = vmatpush1.msra.mxu0 %v412
      %2639 = vmatprep.subr.mxu0 0.0
      %2640 = vmatpush1.msra.mxu0 %v413
      %2641 = vmatprep.subr.mxu0 0.0
      %2642 = vmatpush1.msra.mxu0 %v414
      %2643 = vmatprep.subr.mxu0 0.0
      %2644 = vmatpush1.msra.mxu0 %v415
      %2645 = vmatprep.subr.mxu0 0.0
      %2646 = vmatpush1.msra.mxu0 %v416
      %2647 = vmatprep.subr.mxu0 0.0
      %2648 = vmatpush1.msra.mxu0 %v417
      %2649 = vmatprep.subr.mxu0 0.0
      %2650 = vmatpush1.msra.mxu0 %v418
      %2651 = vmatprep.subr.mxu0 0.0
      %2652 = vmatpush1.msra.mxu0 %v419
      %2653 = vmatprep.subr.mxu0 0.0
      %2654 = vmatpush1.msra.mxu0 %v420
      %2655 = vmatprep.subr.mxu0 0.0
      %2656 = vmatpush1.msra.mxu0 %v421
      %2657 = vmatprep.subr.mxu0 0.0
      %2658 = vmatpush1.msra.mxu0 %v422
      %2659 = vmatprep.subr.mxu0 0.0
      %2660 = vmatpush1.msra.mxu0 %v423
      %2661 = vmatprep.subr.mxu0 0.0
      %2662 = vmatpush1.msra.mxu0 %v424
      %2663 = vmatprep.subr.mxu0 0.0
      %2664 = vmatpush1.msra.mxu0 %v425
      %2665 = vmatprep.subr.mxu0 0.0
      %2666 = vmatpush1.msra.mxu0 %v426
      %2667 = vmatprep.subr.mxu0 0.0
      %2668 = vmatpush1.msra.mxu0 %v427
      %2669 = vmatprep.subr.mxu0 0.0
      %2670 = vmatpush1.msra.mxu0 %v428
      %2671 = vmatprep.subr.mxu0 0.0
      %2672 = vmatpush1.msra.mxu0 %v429
      %2673 = vmatprep.subr.mxu0 0.0
      %2674 = vmatpush1.msra.mxu0 %v430
      %2675 = vmatprep.subr.mxu0 0.0
      %2676 = vmatpush1.msra.mxu0 %v431
      %2677 = vmatprep.subr.mxu0 0.0
      %2678 = vmatpush1.msra.mxu0 %v432
      %2679 = vmatprep.subr.mxu0 0.0
      %2680 = vmatpush1.msra.mxu0 %v433
      %2681 = vmatprep.subr.mxu0 0.0
      %2682 = vmatpush1.msra.mxu0 %v434
      %2683 = vmatprep.subr.mxu0 0.0
      %2684 = vmatpush1.msra.mxu0 %v435
      %2685 = vmatprep.subr.mxu0 0.0
      %2686 = vmatpush1.msra.mxu0 %v436
      %2687 = vmatprep.subr.mxu0 0.0
      %2688 = vmatpush1.msra.mxu0 %v437
      %2689 = vmatprep.subr.mxu0 0.0
      %2690 = vmatpush1.msra.mxu0 %v438
      %2691 = vmatprep.subr.mxu0 0.0
      %2692 = vmatpush1.msra.mxu0 %v439
      %2693 = vmatprep.mubr.f32.mxu0 %v1938
      %2694 = vmatmul.mubr.f32.gmra.mrb[0].mxu0 %v1936
      %v2695 = vpop.f32.mrb[0].mxu0
      %v2696 = vadd.f32 %v2626, %v2695
      %v2697 = vpop.f32.mrb[0].mxu0
      %2698 = vdwg.mxu0
      %2699 = vmatprep.subr.mxu0 0.0
      %2700 = vmatpush1.msra.mxu0 %v440
      %2701 = vmatprep.subr.mxu0 0.0
      %2702 = vmatpush1.msra.mxu0 %v441
      %2703 = vmatprep.subr.mxu0 0.0
      %2704 = vmatpush1.msra.mxu0 %v442
      %2705 = vmatprep.subr.mxu0 0.0
      %2706 = vmatpush1.msra.mxu0 %v443
      %2707 = vmatprep.subr.mxu0 0.0
      %2708 = vmatpush1.msra.mxu0 %v444
      %2709 = vmatprep.subr.mxu0 0.0
      %2710 = vmatpush1.msra.mxu0 %v445
      %2711 = vmatprep.subr.mxu0 0.0
      %2712 = vmatpush1.msra.mxu0 %v446
      %2713 = vmatprep.subr.mxu0 0.0
      %2714 = vmatpush1.msra.mxu0 %v447
      %2715 = vmatprep.subr.mxu0 0.0
      %2716 = vmatpush1.msra.mxu0 %v448
      %2717 = vmatprep.subr.mxu0 0.0
      %2718 = vmatpush1.msra.mxu0 %v449
      %2719 = vmatprep.subr.mxu0 0.0
      %2720 = vmatpush1.msra.mxu0 %v450
      %2721 = vmatprep.subr.mxu0 0.0
      %2722 = vmatpush1.msra.mxu0 %v451
      %2723 = vmatprep.subr.mxu0 0.0
      %2724 = vmatpush1.msra.mxu0 %v452
      %2725 = vmatprep.subr.mxu0 0.0
      %2726 = vmatpush1.msra.mxu0 %v453
      %2727 = vmatprep.subr.mxu0 0.0
      %2728 = vmatpush1.msra.mxu0 %v454
      %2729 = vmatprep.subr.mxu0 0.0
      %2730 = vmatpush1.msra.mxu0 %v455
      %2731 = vmatprep.subr.mxu0 0.0
      %2732 = vmatpush1.msra.mxu0 %v456
      %2733 = vmatprep.subr.mxu0 0.0
      %2734 = vmatpush1.msra.mxu0 %v457
      %2735 = vmatprep.subr.mxu0 0.0
      %2736 = vmatpush1.msra.mxu0 %v458
      %2737 = vmatprep.subr.mxu0 0.0
      %2738 = vmatpush1.msra.mxu0 %v459
      %2739 = vmatprep.subr.mxu0 0.0
      %2740 = vmatpush1.msra.mxu0 %v460
      %2741 = vmatprep.subr.mxu0 0.0
      %2742 = vmatpush1.msra.mxu0 %v461
      %2743 = vmatprep.subr.mxu0 0.0
      %2744 = vmatpush1.msra.mxu0 %v462
      %2745 = vmatprep.subr.mxu0 0.0
      %2746 = vmatpush1.msra.mxu0 %v463
      %2747 = vmatprep.subr.mxu0 0.0
      %2748 = vmatpush1.msra.mxu0 %v464
      %2749 = vmatprep.subr.mxu0 0.0
      %2750 = vmatpush1.msra.mxu0 %v465
      %2751 = vmatprep.subr.mxu0 0.0
      %2752 = vmatpush1.msra.mxu0 %v466
      %2753 = vmatprep.subr.mxu0 0.0
      %2754 = vmatpush1.msra.mxu0 %v467
      %2755 = vmatprep.subr.mxu0 0.0
      %2756 = vmatpush1.msra.mxu0 %v468
      %2757 = vmatprep.subr.mxu0 0.0
      %2758 = vmatpush1.msra.mxu0 %v469
      %2759 = vmatprep.subr.mxu0 0.0
      %2760 = vmatpush1.msra.mxu0 %v470
      %2761 = vmatprep.subr.mxu0 0.0
      %2762 = vmatpush1.msra.mxu0 %v471
      %2763 = vmatprep.mubr.f32.mxu0 %v1954
      %2764 = vmatmul.mubr.f32.gmra.mrb[0].mxu0 %v1946
      %v2765 = vpop.f32.mrb[0].mxu0
      %v2766 = vadd.f32 %v2696, %v2765
      %v2767 = vpop.f32.mrb[0].mxu0
      %2768 = vdwg.mxu0
      %2769 = vmatprep.subr.mxu0 0.0
      %2770 = vmatpush1.msra.mxu0 %v472
      %2771 = vmatprep.subr.mxu0 0.0
      %2772 = vmatpush1.msra.mxu0 %v473
      %2773 = vmatprep.subr.mxu0 0.0
      %2774 = vmatpush1.msra.mxu0 %v474
      %2775 = vmatprep.subr.mxu0 0.0
      %2776 = vmatpush1.msra.mxu0 %v475
      %2777 = vmatprep.subr.mxu0 0.0
      %2778 = vmatpush1.msra.mxu0 %v476
      %2779 = vmatprep.subr.mxu0 0.0
      %2780 = vmatpush1.msra.mxu0 %v477
      %2781 = vmatprep.subr.mxu0 0.0
      %2782 = vmatpush1.msra.mxu0 %v478
      %2783 = vmatprep.subr.mxu0 0.0
      %2784 = vmatpush1.msra.mxu0 %v479
      %2785 = vmatprep.subr.mxu0 0.0
      %2786 = vmatpush1.msra.mxu0 %v480
      %2787 = vmatprep.subr.mxu0 0.0
      %2788 = vmatpush1.msra.mxu0 %v481
      %2789 = vmatprep.subr.mxu0 0.0
      %2790 = vmatpush1.msra.mxu0 %v482
      %2791 = vmatprep.subr.mxu0 0.0
      %2792 = vmatpush1.msra.mxu0 %v483
      %2793 = vmatprep.subr.mxu0 0.0
      %2794 = vmatpush1.msra.mxu0 %v484
      %2795 = vmatprep.subr.mxu0 0.0
      %2796 = vmatpush1.msra.mxu0 %v485
      %2797 = vmatprep.subr.mxu0 0.0
      %2798 = vmatpush1.msra.mxu0 %v486
      %2799 = vmatprep.subr.mxu0 0.0
      %2800 = vmatpush1.msra.mxu0 %v487
      %2801 = vmatprep.subr.mxu0 0.0
      %2802 = vmatpush1.msra.mxu0 %v488
      %2803 = vmatprep.subr.mxu0 0.0
      %2804 = vmatpush1.msra.mxu0 %v489
      %2805 = vmatprep.subr.mxu0 0.0
      %2806 = vmatpush1.msra.mxu0 %v490
      %2807 = vmatprep.subr.mxu0 0.0
      %2808 = vmatpush1.msra.mxu0 %v491
      %2809 = vmatprep.subr.mxu0 0.0
      %2810 = vmatpush1.msra.mxu0 %v492
      %2811 = vmatprep.subr.mxu0 0.0
      %2812 = vmatpush1.msra.mxu0 %v493
      %2813 = vmatprep.subr.mxu0 0.0
      %2814 = vmatpush1.msra.mxu0 %v494
      %2815 = vmatprep.subr.mxu0 0.0
      %2816 = vmatpush1.msra.mxu0 %v495
      %2817 = vmatprep.subr.mxu0 0.0
      %2818 = vmatpush1.msra.mxu0 %v496
      %2819 = vmatprep.subr.mxu0 0.0
      %2820 = vmatpush1.msra.mxu0 %v497
      %2821 = vmatprep.subr.mxu0 0.0
      %2822 = vmatpush1.msra.mxu0 %v498
      %2823 = vmatprep.subr.mxu0 0.0
      %2824 = vmatpush1.msra.mxu0 %v499
      %2825 = vmatprep.subr.mxu0 0.0
      %2826 = vmatpush1.msra.mxu0 %v500
      %2827 = vmatprep.subr.mxu0 0.0
      %2828 = vmatpush1.msra.mxu0 %v501
      %2829 = vmatprep.subr.mxu0 0.0
      %2830 = vmatpush1.msra.mxu0 %v502
      %2831 = vmatprep.subr.mxu0 0.0
      %2832 = vmatpush1.msra.mxu0 %v503
      %2833 = vmatprep.mubr.f32.mxu0 %v1955
      %2834 = vmatmul.mubr.f32.gmra.mrb[0].mxu0 %v1953
      %v2835 = vpop.f32.mrb[0].mxu0
      %v2836 = vadd.f32 %v2766, %v2835
      %v2837 = vpop.f32.mrb[0].mxu0
      %2838 = vdwg.mxu0
      %2839 = vmatprep.subr.mxu0 0.0
      %2840 = vmatpush1.msra.mxu0 %v504
      %2841 = vmatprep.subr.mxu0 0.0
      %2842 = vmatpush1.msra.mxu0 %v505
      %2843 = vmatprep.subr.mxu0 0.0
      %2844 = vmatpush1.msra.mxu0 %v506
      %2845 = vmatprep.subr.mxu0 0.0
      %2846 = vmatpush1.msra.mxu0 %v507
      %2847 = vmatprep.subr.mxu0 0.0
      %2848 = vmatpush1.msra.mxu0 %v508
      %2849 = vmatprep.subr.mxu0 0.0
      %2850 = vmatpush1.msra.mxu0 %v509
      %2851 = vmatprep.subr.mxu0 0.0
      %2852 = vmatpush1.msra.mxu0 %v510
      %2853 = vmatprep.subr.mxu0 0.0
      %2854 = vmatpush1.msra.mxu0 %v511
      %2855 = vmatprep.subr.mxu0 0.0
      %2856 = vmatpush1.msra.mxu0 %v512
      %2857 = vmatprep.subr.mxu0 0.0
      %2858 = vmatpush1.msra.mxu0 %v513
      %2859 = vmatprep.subr.mxu0 0.0
      %2860 = vmatpush1.msra.mxu0 %v514
      %2861 = vmatprep.subr.mxu0 0.0
      %2862 = vmatpush1.msra.mxu0 %v515
      %2863 = vmatprep.subr.mxu0 0.0
      %2864 = vmatpush1.msra.mxu0 %v516
      %2865 = vmatprep.subr.mxu0 0.0
      %2866 = vmatpush1.msra.mxu0 %v517
      %2867 = vmatprep.subr.mxu0 0.0
      %2868 = vmatpush1.msra.mxu0 %v518
      %2869 = vmatprep.subr.mxu0 0.0
      %2870 = vmatpush1.msra.mxu0 %v519
      %2871 = vmatprep.subr.mxu0 0.0
      %2872 = vmatpush1.msra.mxu0 %v520
      %2873 = vmatprep.subr.mxu0 0.0
      %2874 = vmatpush1.msra.mxu0 %v521
      %2875 = vmatprep.subr.mxu0 0.0
      %2876 = vmatpush1.msra.mxu0 %v522
      %2877 = vmatprep.subr.mxu0 0.0
      %2878 = vmatpush1.msra.mxu0 %v523
      %2879 = vmatprep.subr.mxu0 0.0
      %2880 = vmatpush1.msra.mxu0 %v524
      %2881 = vmatprep.subr.mxu0 0.0
      %2882 = vmatpush1.msra.mxu0 %v525
      %2883 = vmatprep.subr.mxu0 0.0
      %2884 = vmatpush1.msra.mxu0 %v526
      %2885 = vmatprep.subr.mxu0 0.0
      %2886 = vmatpush1.msra.mxu0 %v527
      %2887 = vmatprep.subr.mxu0 0.0
      %2888 = vmatpush1.msra.mxu0 %v528
      %2889 = vmatprep.subr.mxu0 0.0
      %2890 = vmatpush1.msra.mxu0 %v529
      %2891 = vmatprep.subr.mxu0 0.0
      %2892 = vmatpush1.msra.mxu0 %v530
      %2893 = vmatprep.subr.mxu0 0.0
      %2894 = vmatpush1.msra.mxu0 %v531
      %2895 = vmatprep.subr.mxu0 0.0
      %2896 = vmatpush1.msra.mxu0 %v532
      %2897 = vmatprep.subr.mxu0 0.0
      %2898 = vmatpush1.msra.mxu0 %v533
      %2899 = vmatprep.subr.mxu0 0.0
      %2900 = vmatpush1.msra.mxu0 %v534
      %2901 = vmatprep.subr.mxu0 0.0
      %2902 = vmatpush1.msra.mxu0 %v535
      %2903 = vmatprep.mubr.f32.mxu0 %v1971
      %2904 = vmatmul.mubr.f32.gmra.mrb[0].mxu0 %v1963
      %v2905 = vpop.f32.mrb[0].mxu0
      %v2906 = vadd.f32 %v2836, %v2905
      %v2907 = vpop.f32.mrb[0].mxu0
      %2908 = vdwg.mxu0
      %2909 = vmatprep.subr.mxu0 0.0
      %2910 = vmatpush1.msra.mxu0 %v536
      %2911 = vmatprep.subr.mxu0 0.0
      %2912 = vmatpush1.msra.mxu0 %v537
      %2913 = vmatprep.subr.mxu0 0.0
      %2914 = vmatpush1.msra.mxu0 %v538
      %2915 = vmatprep.subr.mxu0 0.0
      %2916 = vmatpush1.msra.mxu0 %v539
      %2917 = vmatprep.subr.mxu0 0.0
      %2918 = vmatpush1.msra.mxu0 %v540
      %2919 = vmatprep.subr.mxu0 0.0
      %2920 = vmatpush1.msra.mxu0 %v541
      %2921 = vmatprep.subr.mxu0 0.0
      %2922 = vmatpush1.msra.mxu0 %v542
      %2923 = vmatprep.subr.mxu0 0.0
      %2924 = vmatpush1.msra.mxu0 %v543
      %2925 = vmatprep.subr.mxu0 0.0
      %2926 = vmatpush1.msra.mxu0 %v544
      %2927 = vmatprep.subr.mxu0 0.0
      %2928 = vmatpush1.msra.mxu0 %v545
      %2929 = vmatprep.subr.mxu0 0.0
      %2930 = vmatpush1.msra.mxu0 %v546
      %2931 = vmatprep.subr.mxu0 0.0
      %2932 = vmatpush1.msra.mxu0 %v547
      %2933 = vmatprep.subr.mxu0 0.0
      %2934 = vmatpush1.msra.mxu0 %v548
      %2935 = vmatprep.subr.mxu0 0.0
      %2936 = vmatpush1.msra.mxu0 %v549
      %2937 = vmatprep.subr.mxu0 0.0
      %2938 = vmatpush1.msra.mxu0 %v550
      %2939 = vmatprep.subr.mxu0 0.0
      %2940 = vmatpush1.msra.mxu0 %v551
      %2941 = vmatprep.subr.mxu0 0.0
      %2942 = vmatpush1.msra.mxu0 %v552
      %2943 = vmatprep.subr.mxu0 0.0
      %2944 = vmatpush1.msra.mxu0 %v553
      %2945 = vmatprep.subr.mxu0 0.0
      %2946 = vmatpush1.msra.mxu0 %v554
      %2947 = vmatprep.subr.mxu0 0.0
      %2948 = vmatpush1.msra.mxu0 %v555
      %2949 = vmatprep.subr.mxu0 0.0
      %2950 = vmatpush1.msra.mxu0 %v556
      %2951 = vmatprep.subr.mxu0 0.0
      %2952 = vmatpush1.msra.mxu0 %v557
      %2953 = vmatprep.subr.mxu0 0.0
      %2954 = vmatpush1.msra.mxu0 %v558
      %2955 = vmatprep.subr.mxu0 0.0
      %2956 = vmatpush1.msra.mxu0 %v559
      %2957 = vmatprep.subr.mxu0 0.0
      %2958 = vmatpush1.msra.mxu0 %v560
      %2959 = vmatprep.subr.mxu0 0.0
      %2960 = vmatpush1.msra.mxu0 %v561
      %2961 = vmatprep.subr.mxu0 0.0
      %2962 = vmatpush1.msra.mxu0 %v562
      %2963 = vmatprep.subr.mxu0 0.0
      %2964 = vmatpush1.msra.mxu0 %v563
      %2965 = vmatprep.subr.mxu0 0.0
      %2966 = vmatpush1.msra.mxu0 %v564
      %2967 = vmatprep.subr.mxu0 0.0
      %2968 = vmatpush1.msra.mxu0 %v565
      %2969 = vmatprep.subr.mxu0 0.0
      %2970 = vmatpush1.msra.mxu0 %v566
      %2971 = vmatprep.subr.mxu0 0.0
      %2972 = vmatpush1.msra.mxu0 %v567
      %2973 = vmatprep.mubr.f32.mxu0 %v1972
      %2974 = vmatmul.mubr.f32.gmra.mrb[0].mxu0 %v1970
      %v2975 = vpop.f32.mrb[0].mxu0
      %v2976 = vadd.f32 %v2906, %v2975
      %v2977 = vpop.f32.mrb[0].mxu0
      %2978 = vdwg.mxu0
      %2979 = vmatprep.subr.mxu0 0.0
      %2980 = vmatpush1.msra.mxu0 %v568
      %2981 = vmatprep.subr.mxu0 0.0
      %2982 = vmatpush1.msra.mxu0 %v569
      %2983 = vmatprep.subr.mxu0 0.0
      %2984 = vmatpush1.msra.mxu0 %v570
      %2985 = vmatprep.subr.mxu0 0.0
      %2986 = vmatpush1.msra.mxu0 %v571
      %2987 = vmatprep.subr.mxu0 0.0
      %2988 = vmatpush1.msra.mxu0 %v572
      %2989 = vmatprep.subr.mxu0 0.0
      %2990 = vmatpush1.msra.mxu0 %v573
      %2991 = vmatprep.subr.mxu0 0.0
      %2992 = vmatpush1.msra.mxu0 %v574
      %2993 = vmatprep.subr.mxu0 0.0
      %2994 = vmatpush1.msra.mxu0 %v575
      %2995 = vmatprep.subr.mxu0 0.0
      %2996 = vmatpush1.msra.mxu0 %v576
      %2997 = vmatprep.subr.mxu0 0.0
      %2998 = vmatpush1.msra.mxu0 %v577
      %2999 = vmatprep.subr.mxu0 0.0
      %3000 = vmatpush1.msra.mxu0 %v578
      %3001 = vmatprep.subr.mxu0 0.0
      %3002 = vmatpush1.msra.mxu0 %v579
      %3003 = vmatprep.subr.mxu0 0.0
      %3004 = vmatpush1.msra.mxu0 %v580
      %3005 = vmatprep.subr.mxu0 0.0
      %3006 = vmatpush1.msra.mxu0 %v581
      %3007 = vmatprep.subr.mxu0 0.0
      %3008 = vmatpush1.msra.mxu0 %v582
      %3009 = vmatprep.subr.mxu0 0.0
      %3010 = vmatpush1.msra.mxu0 %v583
      %3011 = vmatprep.subr.mxu0 0.0
      %3012 = vmatpush1.msra.mxu0 %v584
      %3013 = vmatprep.subr.mxu0 0.0
      %3014 = vmatpush1.msra.mxu0 %v585
      %3015 = vmatprep.subr.mxu0 0.0
      %3016 = vmatpush1.msra.mxu0 %v586
      %3017 = vmatprep.subr.mxu0 0.0
      %3018 = vmatpush1.msra.mxu0 %v587
      %3019 = vmatprep.subr.mxu0 0.0
      %3020 = vmatpush1.msra.mxu0 %v588
      %3021 = vmatprep.subr.mxu0 0.0
      %3022 = vmatpush1.msra.mxu0 %v589
      %3023 = vmatprep.subr.mxu0 0.0
      %3024 = vmatpush1.msra.mxu0 %v590
      %3025 = vmatprep.subr.mxu0 0.0
      %3026 = vmatpush1.msra.mxu0 %v591
      %3027 = vmatprep.subr.mxu0 0.0
      %3028 = vmatpush1.msra.mxu0 %v592
      %3029 = vmatprep.subr.mxu0 0.0
      %3030 = vmatpush1.msra.mxu0 %v593
      %3031 = vmatprep.subr.mxu0 0.0
      %3032 = vmatpush1.msra.mxu0 %v594
      %3033 = vmatprep.subr.mxu0 0.0
      %3034 = vmatpush1.msra.mxu0 %v595
      %3035 = vmatprep.subr.mxu0 0.0
      %3036 = vmatpush1.msra.mxu0 %v596
      %3037 = vmatprep.subr.mxu0 0.0
      %3038 = vmatpush1.msra.mxu0 %v597
      %3039 = vmatprep.subr.mxu0 0.0
      %3040 = vmatpush1.msra.mxu0 %v598
      %3041 = vmatprep.subr.mxu0 0.0
      %3042 = vmatpush1.msra.mxu0 %v599
      %3043 = vmatprep.mubr.f32.mxu0 %v1988
      %3044 = vmatmul.mubr.f32.gmra.mrb[0].mxu0 %v1980
      %v3045 = vpop.f32.mrb[0].mxu0
      %v3046 = vadd.f32 %v2976, %v3045
      %v3047 = vpop.f32.mrb[0].mxu0
      %3048 = vdwg.mxu0
      %3049 = vmatprep.subr.mxu0 0.0
      %3050 = vmatpush1.msra.mxu0 %v600
      %3051 = vmatprep.subr.mxu0 0.0
      %3052 = vmatpush1.msra.mxu0 %v601
      %3053 = vmatprep.subr.mxu0 0.0
      %3054 = vmatpush1.msra.mxu0 %v602
      %3055 = vmatprep.subr.mxu0 0.0
      %3056 = vmatpush1.msra.mxu0 %v603
      %3057 = vmatprep.subr.mxu0 0.0
      %3058 = vmatpush1.msra.mxu0 %v604
      %3059 = vmatprep.subr.mxu0 0.0
      %3060 = vmatpush1.msra.mxu0 %v605
      %3061 = vmatprep.subr.mxu0 0.0
      %3062 = vmatpush1.msra.mxu0 %v606
      %3063 = vmatprep.subr.mxu0 0.0
      %3064 = vmatpush1.msra.mxu0 %v607
      %3065 = vmatprep.subr.mxu0 0.0
      %3066 = vmatpush1.msra.mxu0 %v608
      %3067 = vmatprep.subr.mxu0 0.0
      %3068 = vmatpush1.msra.mxu0 %v609
      %3069 = vmatprep.subr.mxu0 0.0
      %3070 = vmatpush1.msra.mxu0 %v610
      %3071 = vmatprep.subr.mxu0 0.0
      %3072 = vmatpush1.msra.mxu0 %v611
      %3073 = vmatprep.subr.mxu0 0.0
      %3074 = vmatpush1.msra.mxu0 %v612
      %3075 = vmatprep.subr.mxu0 0.0
      %3076 = vmatpush1.msra.mxu0 %v613
      %3077 = vmatprep.subr.mxu0 0.0
      %3078 = vmatpush1.msra.mxu0 %v614
      %3079 = vmatprep.subr.mxu0 0.0
      %3080 = vmatpush1.msra.mxu0 %v615
      %3081 = vmatprep.subr.mxu0 0.0
      %3082 = vmatpush1.msra.mxu0 %v616
      %3083 = vmatprep.subr.mxu0 0.0
      %3084 = vmatpush1.msra.mxu0 %v617
      %3085 = vmatprep.subr.mxu0 0.0
      %3086 = vmatpush1.msra.mxu0 %v618
      %3087 = vmatprep.subr.mxu0 0.0
      %3088 = vmatpush1.msra.mxu0 %v619
      %3089 = vmatprep.subr.mxu0 0.0
      %3090 = vmatpush1.msra.mxu0 %v620
      %3091 = vmatprep.subr.mxu0 0.0
      %3092 = vmatpush1.msra.mxu0 %v621
      %3093 = vmatprep.subr.mxu0 0.0
      %3094 = vmatpush1.msra.mxu0 %v622
      %3095 = vmatprep.subr.mxu0 0.0
      %3096 = vmatpush1.msra.mxu0 %v623
      %3097 = vmatprep.subr.mxu0 0.0
      %3098 = vmatpush1.msra.mxu0 %v624
      %3099 = vmatprep.subr.mxu0 0.0
      %3100 = vmatpush1.msra.mxu0 %v625
      %3101 = vmatprep.subr.mxu0 0.0
      %3102 = vmatpush1.msra.mxu0 %v626
      %3103 = vmatprep.subr.mxu0 0.0
      %3104 = vmatpush1.msra.mxu0 %v627
      %3105 = vmatprep.subr.mxu0 0.0
      %3106 = vmatpush1.msra.mxu0 %v628
      %3107 = vmatprep.subr.mxu0 0.0
      %3108 = vmatpush1.msra.mxu0 %v629
      %3109 = vmatprep.subr.mxu0 0.0
      %3110 = vmatpush1.msra.mxu0 %v630
      %3111 = vmatprep.subr.mxu0 0.0
      %3112 = vmatpush1.msra.mxu0 %v631
      %3113 = vmatprep.mubr.f32.mxu0 %v1989
      %3114 = vmatmul.mubr.f32.gmra.mrb[0].mxu0 %v1987
      %v3115 = vpop.f32.mrb[0].mxu0
      %v3116 = vadd.f32 %v3046, %v3115
      %v3117 = vpop.f32.mrb[0].mxu0
      %3118 = vdwg.mxu0
      %3119 = vmatprep.subr.mxu0 0.0
      %3120 = vmatpush1.msra.mxu0 %v632
      %3121 = vmatprep.subr.mxu0 0.0
      %3122 = vmatpush1.msra.mxu0 %v633
      %3123 = vmatprep.subr.mxu0 0.0
      %3124 = vmatpush1.msra.mxu0 %v634
      %3125 = vmatprep.subr.mxu0 0.0
      %3126 = vmatpush1.msra.mxu0 %v635
      %3127 = vmatprep.subr.mxu0 0.0
      %3128 = vmatpush1.msra.mxu0 %v636
      %3129 = vmatprep.subr.mxu0 0.0
      %3130 = vmatpush1.msra.mxu0 %v637
      %3131 = vmatprep.subr.mxu0 0.0
      %3132 = vmatpush1.msra.mxu0 %v638
      %3133 = vmatprep.subr.mxu0 0.0
      %3134 = vmatpush1.msra.mxu0 %v639
      %3135 = vmatprep.subr.mxu0 0.0
      %3136 = vmatpush1.msra.mxu0 %v640
      %3137 = vmatprep.subr.mxu0 0.0
      %3138 = vmatpush1.msra.mxu0 %v641
      %3139 = vmatprep.subr.mxu0 0.0
      %3140 = vmatpush1.msra.mxu0 %v642
      %3141 = vmatprep.subr.mxu0 0.0
      %3142 = vmatpush1.msra.mxu0 %v643
      %3143 = vmatprep.subr.mxu0 0.0
      %3144 = vmatpush1.msra.mxu0 %v644
      %3145 = vmatprep.subr.mxu0 0.0
      %3146 = vmatpush1.msra.mxu0 %v645
      %3147 = vmatprep.subr.mxu0 0.0
      %3148 = vmatpush1.msra.mxu0 %v646
      %3149 = vmatprep.subr.mxu0 0.0
      %3150 = vmatpush1.msra.mxu0 %v647
      %3151 = vmatprep.subr.mxu0 0.0
      %3152 = vmatpush1.msra.mxu0 %v648
      %3153 = vmatprep.subr.mxu0 0.0
      %3154 = vmatpush1.msra.mxu0 %v649
      %3155 = vmatprep.subr.mxu0 0.0
      %3156 = vmatpush1.msra.mxu0 %v650
      %3157 = vmatprep.subr.mxu0 0.0
      %3158 = vmatpush1.msra.mxu0 %v651
      %3159 = vmatprep.subr.mxu0 0.0
      %3160 = vmatpush1.msra.mxu0 %v652
      %3161 = vmatprep.subr.mxu0 0.0
      %3162 = vmatpush1.msra.mxu0 %v653
      %3163 = vmatprep.subr.mxu0 0.0
      %3164 = vmatpush1.msra.mxu0 %v654
      %3165 = vmatprep.subr.mxu0 0.0
      %3166 = vmatpush1.msra.mxu0 %v655
      %3167 = vmatprep.subr.mxu0 0.0
      %3168 = vmatpush1.msra.mxu0 %v656
      %3169 = vmatprep.subr.mxu0 0.0
      %3170 = vmatpush1.msra.mxu0 %v657
      %3171 = vmatprep.subr.mxu0 0.0
      %3172 = vmatpush1.msra.mxu0 %v658
      %3173 = vmatprep.subr.mxu0 0.0
      %3174 = vmatpush1.msra.mxu0 %v659
      %3175 = vmatprep.subr.mxu0 0.0
      %3176 = vmatpush1.msra.mxu0 %v660
      %3177 = vmatprep.subr.mxu0 0.0
      %3178 = vmatpush1.msra.mxu0 %v661
      %3179 = vmatprep.subr.mxu0 0.0
      %3180 = vmatpush1.msra.mxu0 %v662
      %3181 = vmatprep.subr.mxu0 0.0
      %3182 = vmatpush1.msra.mxu0 %v663
      %3183 = vmatprep.mubr.f32.mxu0 %v2005
      %3184 = vmatmul.mubr.f32.gmra.mrb[0].mxu0 %v1997
      %v3185 = vpop.f32.mrb[0].mxu0
      %v3186 = vadd.f32 %v3116, %v3185
      %v3187 = vpop.f32.mrb[0].mxu0
      %3188 = vdwg.mxu0
      %3189 = vmatprep.subr.mxu0 0.0
      %3190 = vmatpush1.msra.mxu0 %v664
      %3191 = vmatprep.subr.mxu0 0.0
      %3192 = vmatpush1.msra.mxu0 %v665
      %3193 = vmatprep.subr.mxu0 0.0
      %3194 = vmatpush1.msra.mxu0 %v666
      %3195 = vmatprep.subr.mxu0 0.0
      %3196 = vmatpush1.msra.mxu0 %v667
      %3197 = vmatprep.subr.mxu0 0.0
      %3198 = vmatpush1.msra.mxu0 %v668
      %3199 = vmatprep.subr.mxu0 0.0
      %3200 = vmatpush1.msra.mxu0 %v669
      %3201 = vmatprep.subr.mxu0 0.0
      %3202 = vmatpush1.msra.mxu0 %v670
      %3203 = vmatprep.subr.mxu0 0.0
      %3204 = vmatpush1.msra.mxu0 %v671
      %3205 = vmatprep.subr.mxu0 0.0
      %3206 = vmatpush1.msra.mxu0 %v672
      %3207 = vmatprep.subr.mxu0 0.0
      %3208 = vmatpush1.msra.mxu0 %v673
      %3209 = vmatprep.subr.mxu0 0.0
      %3210 = vmatpush1.msra.mxu0 %v674
      %3211 = vmatprep.subr.mxu0 0.0
      %3212 = vmatpush1.msra.mxu0 %v675
      %3213 = vmatprep.subr.mxu0 0.0
      %3214 = vmatpush1.msra.mxu0 %v676
      %3215 = vmatprep.subr.mxu0 0.0
      %3216 = vmatpush1.msra.mxu0 %v677
      %3217 = vmatprep.subr.mxu0 0.0
      %3218 = vmatpush1.msra.mxu0 %v678
      %3219 = vmatprep.subr.mxu0 0.0
      %3220 = vmatpush1.msra.mxu0 %v679
      %3221 = vmatprep.subr.mxu0 0.0
      %3222 = vmatpush1.msra.mxu0 %v680
      %3223 = vmatprep.subr.mxu0 0.0
      %3224 = vmatpush1.msra.mxu0 %v681
      %3225 = vmatprep.subr.mxu0 0.0
      %3226 = vmatpush1.msra.mxu0 %v682
      %3227 = vmatprep.subr.mxu0 0.0
      %3228 = vmatpush1.msra.mxu0 %v683
      %3229 = vmatprep.subr.mxu0 0.0
      %3230 = vmatpush1.msra.mxu0 %v684
      %3231 = vmatprep.subr.mxu0 0.0
      %3232 = vmatpush1.msra.mxu0 %v685
      %3233 = vmatprep.subr.mxu0 0.0
      %3234 = vmatpush1.msra.mxu0 %v686
      %3235 = vmatprep.subr.mxu0 0.0
      %3236 = vmatpush1.msra.mxu0 %v687
      %3237 = vmatprep.subr.mxu0 0.0
      %3238 = vmatpush1.msra.mxu0 %v688
      %3239 = vmatprep.subr.mxu0 0.0
      %3240 = vmatpush1.msra.mxu0 %v689
      %3241 = vmatprep.subr.mxu0 0.0
      %3242 = vmatpush1.msra.mxu0 %v690
      %3243 = vmatprep.subr.mxu0 0.0
      %3244 = vmatpush1.msra.mxu0 %v691
      %3245 = vmatprep.subr.mxu0 0.0
      %3246 = vmatpush1.msra.mxu0 %v692
      %3247 = vmatprep.subr.mxu0 0.0
      %3248 = vmatpush1.msra.mxu0 %v693
      %3249 = vmatprep.subr.mxu0 0.0
      %3250 = vmatpush1.msra.mxu0 %v694
      %3251 = vmatprep.subr.mxu0 0.0
      %3252 = vmatpush1.msra.mxu0 %v695
      %3253 = vmatprep.mubr.f32.mxu0 %v2006
      %3254 = vmatmul.mubr.f32.gmra.mrb[0].mxu0 %v2004
      %v3255 = vpop.f32.mrb[0].mxu0
      %v3256 = vadd.f32 %v3186, %v3255
      %v3257 = vpop.f32.mrb[0].mxu0
      %3258 = vdwg.mxu0
      %3259 = vmatprep.subr.mxu0 0.0
      %3260 = vmatpush1.msra.mxu0 %v696
      %3261 = vmatprep.subr.mxu0 0.0
      %3262 = vmatpush1.msra.mxu0 %v697
      %3263 = vmatprep.subr.mxu0 0.0
      %3264 = vmatpush1.msra.mxu0 %v698
      %3265 = vmatprep.subr.mxu0 0.0
      %3266 = vmatpush1.msra.mxu0 %v699
      %3267 = vmatprep.subr.mxu0 0.0
      %3268 = vmatpush1.msra.mxu0 %v700
      %3269 = vmatprep.subr.mxu0 0.0
      %3270 = vmatpush1.msra.mxu0 %v701
      %3271 = vmatprep.subr.mxu0 0.0
      %3272 = vmatpush1.msra.mxu0 %v702
      %3273 = vmatprep.subr.mxu0 0.0
      %3274 = vmatpush1.msra.mxu0 %v703
      %3275 = vmatprep.subr.mxu0 0.0
      %3276 = vmatpush1.msra.mxu0 %v704
      %3277 = vmatprep.subr.mxu0 0.0
      %3278 = vmatpush1.msra.mxu0 %v705
      %3279 = vmatprep.subr.mxu0 0.0
      %3280 = vmatpush1.msra.mxu0 %v706
      %3281 = vmatprep.subr.mxu0 0.0
      %3282 = vmatpush1.msra.mxu0 %v707
      %3283 = vmatprep.subr.mxu0 0.0
      %3284 = vmatpush1.msra.mxu0 %v708
      %3285 = vmatprep.subr.mxu0 0.0
      %3286 = vmatpush1.msra.mxu0 %v709
      %3287 = vmatprep.subr.mxu0 0.0
      %3288 = vmatpush1.msra.mxu0 %v710
      %3289 = vmatprep.subr.mxu0 0.0
      %3290 = vmatpush1.msra.mxu0 %v711
      %3291 = vmatprep.subr.mxu0 0.0
      %3292 = vmatpush1.msra.mxu0 %v712
      %3293 = vmatprep.subr.mxu0 0.0
      %3294 = vmatpush1.msra.mxu0 %v713
      %3295 = vmatprep.subr.mxu0 0.0
      %3296 = vmatpush1.msra.mxu0 %v714
      %3297 = vmatprep.subr.mxu0 0.0
      %3298 = vmatpush1.msra.mxu0 %v715
      %3299 = vmatprep.subr.mxu0 0.0
      %3300 = vmatpush1.msra.mxu0 %v716
      %3301 = vmatprep.subr.mxu0 0.0
      %3302 = vmatpush1.msra.mxu0 %v717
      %3303 = vmatprep.subr.mxu0 0.0
      %3304 = vmatpush1.msra.mxu0 %v718
      %3305 = vmatprep.subr.mxu0 0.0
      %3306 = vmatpush1.msra.mxu0 %v719
      %3307 = vmatprep.subr.mxu0 0.0
      %3308 = vmatpush1.msra.mxu0 %v720
      %3309 = vmatprep.subr.mxu0 0.0
      %3310 = vmatpush1.msra.mxu0 %v721
      %3311 = vmatprep.subr.mxu0 0.0
      %3312 = vmatpush1.msra.mxu0 %v722
      %3313 = vmatprep.subr.mxu0 0.0
      %3314 = vmatpush1.msra.mxu0 %v723
      %3315 = vmatprep.subr.mxu0 0.0
      %3316 = vmatpush1.msra.mxu0 %v724
      %3317 = vmatprep.subr.mxu0 0.0
      %3318 = vmatpush1.msra.mxu0 %v725
      %3319 = vmatprep.subr.mxu0 0.0
      %3320 = vmatpush1.msra.mxu0 %v726
      %3321 = vmatprep.subr.mxu0 0.0
      %3322 = vmatpush1.msra.mxu0 %v727
      %3323 = vmatprep.mubr.f32.mxu0 %v2022
      %3324 = vmatmul.mubr.f32.gmra.mrb[0].mxu0 %v2014
      %v3325 = vpop.f32.mrb[0].mxu0
      %v3326 = vadd.f32 %v3256, %v3325
      %v3327 = vpop.f32.mrb[0].mxu0
      %3328 = vdwg.mxu0
      %3329 = vmatprep.subr.mxu0 0.0
      %3330 = vmatpush1.msra.mxu0 %v728
      %3331 = vmatprep.subr.mxu0 0.0
      %3332 = vmatpush1.msra.mxu0 %v729
      %3333 = vmatprep.subr.mxu0 0.0
      %3334 = vmatpush1.msra.mxu0 %v730
      %3335 = vmatprep.subr.mxu0 0.0
      %3336 = vmatpush1.msra.mxu0 %v731
      %3337 = vmatprep.subr.mxu0 0.0
      %3338 = vmatpush1.msra.mxu0 %v732
      %3339 = vmatprep.subr.mxu0 0.0
      %3340 = vmatpush1.msra.mxu0 %v733
      %3341 = vmatprep.subr.mxu0 0.0
      %3342 = vmatpush1.msra.mxu0 %v734
      %3343 = vmatprep.subr.mxu0 0.0
      %3344 = vmatpush1.msra.mxu0 %v735
      %3345 = vmatprep.subr.mxu0 0.0
      %3346 = vmatpush1.msra.mxu0 %v736
      %3347 = vmatprep.subr.mxu0 0.0
      %3348 = vmatpush1.msra.mxu0 %v737
      %3349 = vmatprep.subr.mxu0 0.0
      %3350 = vmatpush1.msra.mxu0 %v738
      %3351 = vmatprep.subr.mxu0 0.0
      %3352 = vmatpush1.msra.mxu0 %v739
      %3353 = vmatprep.subr.mxu0 0.0
      %3354 = vmatpush1.msra.mxu0 %v740
      %3355 = vmatprep.subr.mxu0 0.0
      %3356 = vmatpush1.msra.mxu0 %v741
      %3357 = vmatprep.subr.mxu0 0.0
      %3358 = vmatpush1.msra.mxu0 %v742
      %3359 = vmatprep.subr.mxu0 0.0
      %3360 = vmatpush1.msra.mxu0 %v743
      %3361 = vmatprep.subr.mxu0 0.0
      %3362 = vmatpush1.msra.mxu0 %v744
      %3363 = vmatprep.subr.mxu0 0.0
      %3364 = vmatpush1.msra.mxu0 %v745
      %3365 = vmatprep.subr.mxu0 0.0
      %3366 = vmatpush1.msra.mxu0 %v746
      %3367 = vmatprep.subr.mxu0 0.0
      %3368 = vmatpush1.msra.mxu0 %v747
      %3369 = vmatprep.subr.mxu0 0.0
      %3370 = vmatpush1.msra.mxu0 %v748
      %3371 = vmatprep.subr.mxu0 0.0
      %3372 = vmatpush1.msra.mxu0 %v749
      %3373 = vmatprep.subr.mxu0 0.0
      %3374 = vmatpush1.msra.mxu0 %v750
      %3375 = vmatprep.subr.mxu0 0.0
      %3376 = vmatpush1.msra.mxu0 %v751
      %3377 = vmatprep.subr.mxu0 0.0
      %3378 = vmatpush1.msra.mxu0 %v752
      %3379 = vmatprep.subr.mxu0 0.0
      %3380 = vmatpush1.msra.mxu0 %v753
      %3381 = vmatprep.subr.mxu0 0.0
      %3382 = vmatpush1.msra.mxu0 %v754
      %3383 = vmatprep.subr.mxu0 0.0
      %3384 = vmatpush1.msra.mxu0 %v755
      %3385 = vmatprep.subr.mxu0 0.0
      %3386 = vmatpush1.msra.mxu0 %v756
      %3387 = vmatprep.subr.mxu0 0.0
      %3388 = vmatpush1.msra.mxu0 %v757
      %3389 = vmatprep.subr.mxu0 0.0
      %3390 = vmatpush1.msra.mxu0 %v758
      %3391 = vmatprep.subr.mxu0 0.0
      %3392 = vmatpush1.msra.mxu0 %v759
      %3393 = vmatprep.mubr.f32.mxu0 %v2023
      %3394 = vmatmul.mubr.f32.gmra.mrb[0].mxu0 %v2021
      %v3395 = vpop.f32.mrb[0].mxu0
      %v3396 = vadd.f32 %v3326, %v3395
      %v3397 = vpop.f32.mrb[0].mxu0
      %3398 = vdwg.mxu0
      %3399 = vmatprep.subr.mxu0 0.0
      %3400 = vmatpush1.msra.mxu0 %v760
      %3401 = vmatprep.subr.mxu0 0.0
      %3402 = vmatpush1.msra.mxu0 %v761
      %3403 = vmatprep.subr.mxu0 0.0
      %3404 = vmatpush1.msra.mxu0 %v762
      %3405 = vmatprep.subr.mxu0 0.0
      %3406 = vmatpush1.msra.mxu0 %v763
      %3407 = vmatprep.subr.mxu0 0.0
      %3408 = vmatpush1.msra.mxu0 %v764
      %3409 = vmatprep.subr.mxu0 0.0
      %3410 = vmatpush1.msra.mxu0 %v765
      %3411 = vmatprep.subr.mxu0 0.0
      %3412 = vmatpush1.msra.mxu0 %v766
      %3413 = vmatprep.subr.mxu0 0.0
      %3414 = vmatpush1.msra.mxu0 %v767
      %3415 = vmatprep.subr.mxu0 0.0
      %3416 = vmatpush1.msra.mxu0 %v768
      %3417 = vmatprep.subr.mxu0 0.0
      %3418 = vmatpush1.msra.mxu0 %v769
      %3419 = vmatprep.subr.mxu0 0.0
      %3420 = vmatpush1.msra.mxu0 %v770
      %3421 = vmatprep.subr.mxu0 0.0
      %3422 = vmatpush1.msra.mxu0 %v771
      %3423 = vmatprep.subr.mxu0 0.0
      %3424 = vmatpush1.msra.mxu0 %v772
      %3425 = vmatprep.subr.mxu0 0.0
      %3426 = vmatpush1.msra.mxu0 %v773
      %3427 = vmatprep.subr.mxu0 0.0
      %3428 = vmatpush1.msra.mxu0 %v774
      %3429 = vmatprep.subr.mxu0 0.0
      %3430 = vmatpush1.msra.mxu0 %v775
      %3431 = vmatprep.subr.mxu0 0.0
      %3432 = vmatpush1.msra.mxu0 %v776
      %3433 = vmatprep.subr.mxu0 0.0
      %3434 = vmatpush1.msra.mxu0 %v777
      %3435 = vmatprep.subr.mxu0 0.0
      %3436 = vmatpush1.msra.mxu0 %v778
      %3437 = vmatprep.subr.mxu0 0.0
      %3438 = vmatpush1.msra.mxu0 %v779
      %3439 = vmatprep.subr.mxu0 0.0
      %3440 = vmatpush1.msra.mxu0 %v780
      %3441 = vmatprep.subr.mxu0 0.0
      %3442 = vmatpush1.msra.mxu0 %v781
      %3443 = vmatprep.subr.mxu0 0.0
      %3444 = vmatpush1.msra.mxu0 %v782
      %3445 = vmatprep.subr.mxu0 0.0
      %3446 = vmatpush1.msra.mxu0 %v783
      %3447 = vmatprep.subr.mxu0 0.0
      %3448 = vmatpush1.msra.mxu0 %v784
      %3449 = vmatprep.subr.mxu0 0.0
      %3450 = vmatpush1.msra.mxu0 %v785
      %3451 = vmatprep.subr.mxu0 0.0
      %3452 = vmatpush1.msra.mxu0 %v786
      %3453 = vmatprep.subr.mxu0 0.0
      %3454 = vmatpush1.msra.mxu0 %v787
      %3455 = vmatprep.subr.mxu0 0.0
      %3456 = vmatpush1.msra.mxu0 %v788
      %3457 = vmatprep.subr.mxu0 0.0
      %3458 = vmatpush1.msra.mxu0 %v789
      %3459 = vmatprep.subr.mxu0 0.0
      %3460 = vmatpush1.msra.mxu0 %v790
      %3461 = vmatprep.subr.mxu0 0.0
      %3462 = vmatpush1.msra.mxu0 %v791
      %3463 = vmatprep.mubr.f32.mxu0 %v2039
      %3464 = vmatmul.mubr.f32.gmra.mrb[0].mxu0 %v2031
      %v3465 = vpop.f32.mrb[0].mxu0
      %v3466 = vadd.f32 %v3396, %v3465
      %v3467 = vpop.f32.mrb[0].mxu0
      %3468 = vdwg.mxu0
      %3469 = vmatprep.subr.mxu0 0.0
      %3470 = vmatpush1.msra.mxu0 %v792
      %3471 = vmatprep.subr.mxu0 0.0
      %3472 = vmatpush1.msra.mxu0 %v793
      %3473 = vmatprep.subr.mxu0 0.0
      %3474 = vmatpush1.msra.mxu0 %v794
      %3475 = vmatprep.subr.mxu0 0.0
      %3476 = vmatpush1.msra.mxu0 %v795
      %3477 = vmatprep.subr.mxu0 0.0
      %3478 = vmatpush1.msra.mxu0 %v796
      %3479 = vmatprep.subr.mxu0 0.0
      %3480 = vmatpush1.msra.mxu0 %v797
      %3481 = vmatprep.subr.mxu0 0.0
      %3482 = vmatpush1.msra.mxu0 %v798
      %3483 = vmatprep.subr.mxu0 0.0
      %3484 = vmatpush1.msra.mxu0 %v799
      %3485 = vmatprep.subr.mxu0 0.0
      %3486 = vmatpush1.msra.mxu0 %v800
      %3487 = vmatprep.subr.mxu0 0.0
      %3488 = vmatpush1.msra.mxu0 %v801
      %3489 = vmatprep.subr.mxu0 0.0
      %3490 = vmatpush1.msra.mxu0 %v802
      %3491 = vmatprep.subr.mxu0 0.0
      %3492 = vmatpush1.msra.mxu0 %v803
      %3493 = vmatprep.subr.mxu0 0.0
      %3494 = vmatpush1.msra.mxu0 %v804
      %3495 = vmatprep.subr.mxu0 0.0
      %3496 = vmatpush1.msra.mxu0 %v805
      %3497 = vmatprep.subr.mxu0 0.0
      %3498 = vmatpush1.msra.mxu0 %v806
      %3499 = vmatprep.subr.mxu0 0.0
      %3500 = vmatpush1.msra.mxu0 %v807
      %3501 = vmatprep.subr.mxu0 0.0
      %3502 = vmatpush1.msra.mxu0 %v808
      %3503 = vmatprep.subr.mxu0 0.0
      %3504 = vmatpush1.msra.mxu0 %v809
      %3505 = vmatprep.subr.mxu0 0.0
      %3506 = vmatpush1.msra.mxu0 %v810
      %3507 = vmatprep.subr.mxu0 0.0
      %3508 = vmatpush1.msra.mxu0 %v811
      %3509 = vmatprep.subr.mxu0 0.0
      %3510 = vmatpush1.msra.mxu0 %v812
      %3511 = vmatprep.subr.mxu0 0.0
      %3512 = vmatpush1.msra.mxu0 %v813
      %3513 = vmatprep.subr.mxu0 0.0
      %3514 = vmatpush1.msra.mxu0 %v814
      %3515 = vmatprep.subr.mxu0 0.0
      %3516 = vmatpush1.msra.mxu0 %v815
      %3517 = vmatprep.subr.mxu0 0.0
      %3518 = vmatpush1.msra.mxu0 %v816
      %3519 = vmatprep.subr.mxu0 0.0
      %3520 = vmatpush1.msra.mxu0 %v817
      %3521 = vmatprep.subr.mxu0 0.0
      %3522 = vmatpush1.msra.mxu0 %v818
      %3523 = vmatprep.subr.mxu0 0.0
      %3524 = vmatpush1.msra.mxu0 %v819
      %3525 = vmatprep.subr.mxu0 0.0
      %3526 = vmatpush1.msra.mxu0 %v820
      %3527 = vmatprep.subr.mxu0 0.0
      %3528 = vmatpush1.msra.mxu0 %v821
      %3529 = vmatprep.subr.mxu0 0.0
      %3530 = vmatpush1.msra.mxu0 %v822
      %3531 = vmatprep.subr.mxu0 0.0
      %3532 = vmatpush1.msra.mxu0 %v823
      %3533 = vmatprep.mubr.f32.mxu0 %v2040
      %3534 = vmatmul.mubr.f32.gmra.mrb[0].mxu0 %v2038
      %v3535 = vpop.f32.mrb[0].mxu0
      %v3536 = vadd.f32 %v3466, %v3535
      %v3537 = vpop.f32.mrb[0].mxu0
      %3538 = vdwg.mxu0
      %3539 = vmatprep.subr.mxu0 0.0
      %3540 = vmatpush1.msra.mxu0 %v824
      %3541 = vmatprep.subr.mxu0 0.0
      %3542 = vmatpush1.msra.mxu0 %v825
      %3543 = vmatprep.subr.mxu0 0.0
      %3544 = vmatpush1.msra.mxu0 %v826
      %3545 = vmatprep.subr.mxu0 0.0
      %3546 = vmatpush1.msra.mxu0 %v827
      %3547 = vmatprep.subr.mxu0 0.0
      %3548 = vmatpush1.msra.mxu0 %v828
      %3549 = vmatprep.subr.mxu0 0.0
      %3550 = vmatpush1.msra.mxu0 %v829
      %3551 = vmatprep.subr.mxu0 0.0
      %3552 = vmatpush1.msra.mxu0 %v830
      %3553 = vmatprep.subr.mxu0 0.0
      %3554 = vmatpush1.msra.mxu0 %v831
      %3555 = vmatprep.subr.mxu0 0.0
      %3556 = vmatpush1.msra.mxu0 %v832
      %3557 = vmatprep.subr.mxu0 0.0
      %3558 = vmatpush1.msra.mxu0 %v833
      %3559 = vmatprep.subr.mxu0 0.0
      %3560 = vmatpush1.msra.mxu0 %v834
      %3561 = vmatprep.subr.mxu0 0.0
      %3562 = vmatpush1.msra.mxu0 %v835
      %3563 = vmatprep.subr.mxu0 0.0
      %3564 = vmatpush1.msra.mxu0 %v836
      %3565 = vmatprep.subr.mxu0 0.0
      %3566 = vmatpush1.msra.mxu0 %v837
      %3567 = vmatprep.subr.mxu0 0.0
      %3568 = vmatpush1.msra.mxu0 %v838
      %3569 = vmatprep.subr.mxu0 0.0
      %3570 = vmatpush1.msra.mxu0 %v839
      %3571 = vmatprep.subr.mxu0 0.0
      %3572 = vmatpush1.msra.mxu0 %v840
      %3573 = vmatprep.subr.mxu0 0.0
      %3574 = vmatpush1.msra.mxu0 %v841
      %3575 = vmatprep.subr.mxu0 0.0
      %3576 = vmatpush1.msra.mxu0 %v842
      %3577 = vmatprep.subr.mxu0 0.0
      %3578 = vmatpush1.msra.mxu0 %v843
      %3579 = vmatprep.subr.mxu0 0.0
      %3580 = vmatpush1.msra.mxu0 %v844
      %3581 = vmatprep.subr.mxu0 0.0
      %3582 = vmatpush1.msra.mxu0 %v845
      %3583 = vmatprep.subr.mxu0 0.0
      %3584 = vmatpush1.msra.mxu0 %v846
      %3585 = vmatprep.subr.mxu0 0.0
      %3586 = vmatpush1.msra.mxu0 %v847
      %3587 = vmatprep.subr.mxu0 0.0
      %3588 = vmatpush1.msra.mxu0 %v848
      %3589 = vmatprep.subr.mxu0 0.0
      %3590 = vmatpush1.msra.mxu0 %v849
      %3591 = vmatprep.subr.mxu0 0.0
      %3592 = vmatpush1.msra.mxu0 %v850
      %3593 = vmatprep.subr.mxu0 0.0
      %3594 = vmatpush1.msra.mxu0 %v851
      %3595 = vmatprep.subr.mxu0 0.0
      %3596 = vmatpush1.msra.mxu0 %v852
      %3597 = vmatprep.subr.mxu0 0.0
      %3598 = vmatpush1.msra.mxu0 %v853
      %3599 = vmatprep.subr.mxu0 0.0
      %3600 = vmatpush1.msra.mxu0 %v854
      %3601 = vmatprep.subr.mxu0 0.0
      %3602 = vmatpush1.msra.mxu0 %v855
      %3603 = vmatprep.mubr.f32.mxu0 %v2056
      %3604 = vmatmul.mubr.f32.gmra.mrb[0].mxu0 %v2048
      %v3605 = vpop.f32.mrb[0].mxu0
      %v3606 = vadd.f32 %v3536, %v3605
      %v3607 = vpop.f32.mrb[0].mxu0
      %3608 = vdwg.mxu0
      %3609 = vmatprep.subr.mxu0 0.0
      %3610 = vmatpush1.msra.mxu0 %v856
      %3611 = vmatprep.subr.mxu0 0.0
      %3612 = vmatpush1.msra.mxu0 %v857
      %3613 = vmatprep.subr.mxu0 0.0
      %3614 = vmatpush1.msra.mxu0 %v858
      %3615 = vmatprep.subr.mxu0 0.0
      %3616 = vmatpush1.msra.mxu0 %v859
      %3617 = vmatprep.subr.mxu0 0.0
      %3618 = vmatpush1.msra.mxu0 %v860
      %3619 = vmatprep.subr.mxu0 0.0
      %3620 = vmatpush1.msra.mxu0 %v861
      %3621 = vmatprep.subr.mxu0 0.0
      %3622 = vmatpush1.msra.mxu0 %v862
      %3623 = vmatprep.subr.mxu0 0.0
      %3624 = vmatpush1.msra.mxu0 %v863
      %3625 = vmatprep.subr.mxu0 0.0
      %3626 = vmatpush1.msra.mxu0 %v864
      %3627 = vmatprep.subr.mxu0 0.0
      %3628 = vmatpush1.msra.mxu0 %v865
      %3629 = vmatprep.subr.mxu0 0.0
      %3630 = vmatpush1.msra.mxu0 %v866
      %3631 = vmatprep.subr.mxu0 0.0
      %3632 = vmatpush1.msra.mxu0 %v867
      %3633 = vmatprep.subr.mxu0 0.0
      %3634 = vmatpush1.msra.mxu0 %v868
      %3635 = vmatprep.subr.mxu0 0.0
      %3636 = vmatpush1.msra.mxu0 %v869
      %3637 = vmatprep.subr.mxu0 0.0
      %3638 = vmatpush1.msra.mxu0 %v870
      %3639 = vmatprep.subr.mxu0 0.0
      %3640 = vmatpush1.msra.mxu0 %v871
      %3641 = vmatprep.subr.mxu0 0.0
      %3642 = vmatpush1.msra.mxu0 %v872
      %3643 = vmatprep.subr.mxu0 0.0
      %3644 = vmatpush1.msra.mxu0 %v873
      %3645 = vmatprep.subr.mxu0 0.0
      %3646 = vmatpush1.msra.mxu0 %v874
      %3647 = vmatprep.subr.mxu0 0.0
      %3648 = vmatpush1.msra.mxu0 %v875
      %3649 = vmatprep.subr.mxu0 0.0
      %3650 = vmatpush1.msra.mxu0 %v876
      %3651 = vmatprep.subr.mxu0 0.0
      %3652 = vmatpush1.msra.mxu0 %v877
      %3653 = vmatprep.subr.mxu0 0.0
      %3654 = vmatpush1.msra.mxu0 %v878
      %3655 = vmatprep.subr.mxu0 0.0
      %3656 = vmatpush1.msra.mxu0 %v879
      %3657 = vmatprep.subr.mxu0 0.0
      %3658 = vmatpush1.msra.mxu0 %v880
      %3659 = vmatprep.subr.mxu0 0.0
      %3660 = vmatpush1.msra.mxu0 %v881
      %3661 = vmatprep.subr.mxu0 0.0
      %3662 = vmatpush1.msra.mxu0 %v882
      %3663 = vmatprep.subr.mxu0 0.0
      %3664 = vmatpush1.msra.mxu0 %v883
      %3665 = vmatprep.subr.mxu0 0.0
      %3666 = vmatpush1.msra.mxu0 %v884
      %3667 = vmatprep.subr.mxu0 0.0
      %3668 = vmatpush1.msra.mxu0 %v885
      %3669 = vmatprep.subr.mxu0 0.0
      %3670 = vmatpush1.msra.mxu0 %v886
      %3671 = vmatprep.subr.mxu0 0.0
      %3672 = vmatpush1.msra.mxu0 %v887
      %3673 = vmatprep.mubr.f32.mxu0 %v2057
      %3674 = vmatmul.mubr.f32.gmra.mrb[0].mxu0 %v2055
      %v3675 = vpop.f32.mrb[0].mxu0
      %v3676 = vadd.f32 %v3606, %v3675
      %v3677 = vpop.f32.mrb[0].mxu0
      %3678 = vdwg.mxu0
      %3679 = vmatprep.subr.mxu0 0.0
      %3680 = vmatpush1.msra.mxu0 %v888
      %3681 = vmatprep.subr.mxu0 0.0
      %3682 = vmatpush1.msra.mxu0 %v889
      %3683 = vmatprep.subr.mxu0 0.0
      %3684 = vmatpush1.msra.mxu0 %v890
      %3685 = vmatprep.subr.mxu0 0.0
      %3686 = vmatpush1.msra.mxu0 %v891
      %3687 = vmatprep.subr.mxu0 0.0
      %3688 = vmatpush1.msra.mxu0 %v892
      %3689 = vmatprep.subr.mxu0 0.0
      %3690 = vmatpush1.msra.mxu0 %v893
      %3691 = vmatprep.subr.mxu0 0.0
      %3692 = vmatpush1.msra.mxu0 %v894
      %3693 = vmatprep.subr.mxu0 0.0
      %3694 = vmatpush1.msra.mxu0 %v895
      %3695 = vmatprep.subr.mxu0 0.0
      %3696 = vmatpush1.msra.mxu0 %v896
      %3697 = vmatprep.subr.mxu0 0.0
      %3698 = vmatpush1.msra.mxu0 %v897
      %3699 = vmatprep.subr.mxu0 0.0
      %3700 = vmatpush1.msra.mxu0 %v898
      %3701 = vmatprep.subr.mxu0 0.0
      %3702 = vmatpush1.msra.mxu0 %v899
      %3703 = vmatprep.subr.mxu0 0.0
      %3704 = vmatpush1.msra.mxu0 %v900
      %3705 = vmatprep.subr.mxu0 0.0
      %3706 = vmatpush1.msra.mxu0 %v901
      %3707 = vmatprep.subr.mxu0 0.0
      %3708 = vmatpush1.msra.mxu0 %v902
      %3709 = vmatprep.subr.mxu0 0.0
      %3710 = vmatpush1.msra.mxu0 %v903
      %3711 = vmatprep.subr.mxu0 0.0
      %3712 = vmatpush1.msra.mxu0 %v904
      %3713 = vmatprep.subr.mxu0 0.0
      %3714 = vmatpush1.msra.mxu0 %v905
      %3715 = vmatprep.subr.mxu0 0.0
      %3716 = vmatpush1.msra.mxu0 %v906
      %3717 = vmatprep.subr.mxu0 0.0
      %3718 = vmatpush1.msra.mxu0 %v907
      %3719 = vmatprep.subr.mxu0 0.0
      %3720 = vmatpush1.msra.mxu0 %v908
      %3721 = vmatprep.subr.mxu0 0.0
      %3722 = vmatpush1.msra.mxu0 %v909
      %3723 = vmatprep.subr.mxu0 0.0
      %3724 = vmatpush1.msra.mxu0 %v910
      %3725 = vmatprep.subr.mxu0 0.0
      %3726 = vmatpush1.msra.mxu0 %v911
      %3727 = vmatprep.subr.mxu0 0.0
      %3728 = vmatpush1.msra.mxu0 %v912
      %3729 = vmatprep.subr.mxu0 0.0
      %3730 = vmatpush1.msra.mxu0 %v913
      %3731 = vmatprep.subr.mxu0 0.0
      %3732 = vmatpush1.msra.mxu0 %v914
      %3733 = vmatprep.subr.mxu0 0.0
      %3734 = vmatpush1.msra.mxu0 %v915
      %3735 = vmatprep.subr.mxu0 0.0
      %3736 = vmatpush1.msra.mxu0 %v916
      %3737 = vmatprep.subr.mxu0 0.0
      %3738 = vmatpush1.msra.mxu0 %v917
      %3739 = vmatprep.subr.mxu0 0.0
      %3740 = vmatpush1.msra.mxu0 %v918
      %3741 = vmatprep.subr.mxu0 0.0
      %3742 = vmatpush1.msra.mxu0 %v919
      %3743 = vmatprep.mubr.f32.mxu0 %v2073
      %3744 = vmatmul.mubr.f32.gmra.mrb[0].mxu0 %v2065
      %v3745 = vpop.f32.mrb[0].mxu0
      %v3746 = vadd.f32 %v3676, %v3745
      %v3747 = vpop.f32.mrb[0].mxu0
      %3748 = vdwg.mxu0
      %3749 = vmatprep.subr.mxu0 0.0
      %3750 = vmatpush1.msra.mxu0 %v920
      %3751 = vmatprep.subr.mxu0 0.0
      %3752 = vmatpush1.msra.mxu0 %v921
      %3753 = vmatprep.subr.mxu0 0.0
      %3754 = vmatpush1.msra.mxu0 %v922
      %3755 = vmatprep.subr.mxu0 0.0
      %3756 = vmatpush1.msra.mxu0 %v923
      %3757 = vmatprep.subr.mxu0 0.0
      %3758 = vmatpush1.msra.mxu0 %v924
      %3759 = vmatprep.subr.mxu0 0.0
      %3760 = vmatpush1.msra.mxu0 %v925
      %3761 = vmatprep.subr.mxu0 0.0
      %3762 = vmatpush1.msra.mxu0 %v926
      %3763 = vmatprep.subr.mxu0 0.0
      %3764 = vmatpush1.msra.mxu0 %v927
      %3765 = vmatprep.subr.mxu0 0.0
      %3766 = vmatpush1.msra.mxu0 %v928
      %3767 = vmatprep.subr.mxu0 0.0
      %3768 = vmatpush1.msra.mxu0 %v929
      %3769 = vmatprep.subr.mxu0 0.0
      %3770 = vmatpush1.msra.mxu0 %v930
      %3771 = vmatprep.subr.mxu0 0.0
      %3772 = vmatpush1.msra.mxu0 %v931
      %3773 = vmatprep.subr.mxu0 0.0
      %3774 = vmatpush1.msra.mxu0 %v932
      %3775 = vmatprep.subr.mxu0 0.0
      %3776 = vmatpush1.msra.mxu0 %v933
      %3777 = vmatprep.subr.mxu0 0.0
      %3778 = vmatpush1.msra.mxu0 %v934
      %3779 = vmatprep.subr.mxu0 0.0
      %3780 = vmatpush1.msra.mxu0 %v935
      %3781 = vmatprep.subr.mxu0 0.0
      %3782 = vmatpush1.msra.mxu0 %v936
      %3783 = vmatprep.subr.mxu0 0.0
      %3784 = vmatpush1.msra.mxu0 %v937
      %3785 = vmatprep.subr.mxu0 0.0
      %3786 = vmatpush1.msra.mxu0 %v938
      %3787 = vmatprep.subr.mxu0 0.0
      %3788 = vmatpush1.msra.mxu0 %v939
      %3789 = vmatprep.subr.mxu0 0.0
      %3790 = vmatpush1.msra.mxu0 %v940
      %3791 = vmatprep.subr.mxu0 0.0
      %3792 = vmatpush1.msra.mxu0 %v941
      %3793 = vmatprep.subr.mxu0 0.0
      %3794 = vmatpush1.msra.mxu0 %v942
      %3795 = vmatprep.subr.mxu0 0.0
      %3796 = vmatpush1.msra.mxu0 %v943
      %3797 = vmatprep.subr.mxu0 0.0
      %3798 = vmatpush1.msra.mxu0 %v944
      %3799 = vmatprep.subr.mxu0 0.0
      %3800 = vmatpush1.msra.mxu0 %v945
      %3801 = vmatprep.subr.mxu0 0.0
      %3802 = vmatpush1.msra.mxu0 %v946
      %3803 = vmatprep.subr.mxu0 0.0
      %3804 = vmatpush1.msra.mxu0 %v947
      %3805 = vmatprep.subr.mxu0 0.0
      %3806 = vmatpush1.msra.mxu0 %v948
      %3807 = vmatprep.subr.mxu0 0.0
      %3808 = vmatpush1.msra.mxu0 %v949
      %3809 = vmatprep.subr.mxu0 0.0
      %3810 = vmatpush1.msra.mxu0 %v950
      %3811 = vmatprep.subr.mxu0 0.0
      %3812 = vmatpush1.msra.mxu0 %v951
      %3813 = vmatprep.mubr.f32.mxu0 %v2074
      %3814 = vmatmul.mubr.f32.gmra.mrb[0].mxu0 %v2072
      %v3815 = vpop.f32.mrb[0].mxu0
      %v3816 = vadd.f32 %v3746, %v3815
      %v3817 = vpop.f32.mrb[0].mxu0
      %3818 = vdwg.mxu0
      %3819 = vmatprep.subr.mxu0 0.0
      %3820 = vmatpush1.msra.mxu0 %v952
      %3821 = vmatprep.subr.mxu0 0.0
      %3822 = vmatpush1.msra.mxu0 %v953
      %3823 = vmatprep.subr.mxu0 0.0
      %3824 = vmatpush1.msra.mxu0 %v954
      %3825 = vmatprep.subr.mxu0 0.0
      %3826 = vmatpush1.msra.mxu0 %v955
      %3827 = vmatprep.subr.mxu0 0.0
      %3828 = vmatpush1.msra.mxu0 %v956
      %3829 = vmatprep.subr.mxu0 0.0
      %3830 = vmatpush1.msra.mxu0 %v957
      %3831 = vmatprep.subr.mxu0 0.0
      %3832 = vmatpush1.msra.mxu0 %v958
      %3833 = vmatprep.subr.mxu0 0.0
      %3834 = vmatpush1.msra.mxu0 %v959
      %3835 = vmatprep.subr.mxu0 0.0
      %3836 = vmatpush1.msra.mxu0 %v960
      %3837 = vmatprep.subr.mxu0 0.0
      %3838 = vmatpush1.msra.mxu0 %v961
      %3839 = vmatprep.subr.mxu0 0.0
      %3840 = vmatpush1.msra.mxu0 %v962
      %3841 = vmatprep.subr.mxu0 0.0
      %3842 = vmatpush1.msra.mxu0 %v963
      %3843 = vmatprep.subr.mxu0 0.0
      %3844 = vmatpush1.msra.mxu0 %v964
      %3845 = vmatprep.subr.mxu0 0.0
      %3846 = vmatpush1.msra.mxu0 %v965
      %3847 = vmatprep.subr.mxu0 0.0
      %3848 = vmatpush1.msra.mxu0 %v966
      %3849 = vmatprep.subr.mxu0 0.0
      %3850 = vmatpush1.msra.mxu0 %v967
      %3851 = vmatprep.subr.mxu0 0.0
      %3852 = vmatpush1.msra.mxu0 %v968
      %3853 = vmatprep.subr.mxu0 0.0
      %3854 = vmatpush1.msra.mxu0 %v969
      %3855 = vmatprep.subr.mxu0 0.0
      %3856 = vmatpush1.msra.mxu0 %v970
      %3857 = vmatprep.subr.mxu0 0.0
      %3858 = vmatpush1.msra.mxu0 %v971
      %3859 = vmatprep.subr.mxu0 0.0
      %3860 = vmatpush1.msra.mxu0 %v972
      %3861 = vmatprep.subr.mxu0 0.0
      %3862 = vmatpush1.msra.mxu0 %v973
      %3863 = vmatprep.subr.mxu0 0.0
      %3864 = vmatpush1.msra.mxu0 %v974
      %3865 = vmatprep.subr.mxu0 0.0
      %3866 = vmatpush1.msra.mxu0 %v975
      %3867 = vmatprep.subr.mxu0 0.0
      %3868 = vmatpush1.msra.mxu0 %v976
      %3869 = vmatprep.subr.mxu0 0.0
      %3870 = vmatpush1.msra.mxu0 %v977
      %3871 = vmatprep.subr.mxu0 0.0
      %3872 = vmatpush1.msra.mxu0 %v978
      %3873 = vmatprep.subr.mxu0 0.0
      %3874 = vmatpush1.msra.mxu0 %v979
      %3875 = vmatprep.subr.mxu0 0.0
      %3876 = vmatpush1.msra.mxu0 %v980
      %3877 = vmatprep.subr.mxu0 0.0
      %3878 = vmatpush1.msra.mxu0 %v981
      %3879 = vmatprep.subr.mxu0 0.0
      %3880 = vmatpush1.msra.mxu0 %v982
      %3881 = vmatprep.subr.mxu0 0.0
      %3882 = vmatpush1.msra.mxu0 %v983
      %3883 = vmatprep.mubr.f32.mxu0 %v2090
      %3884 = vmatmul.mubr.f32.gmra.mrb[0].mxu0 %v2082
      %v3885 = vpop.f32.mrb[0].mxu0
      %v3886 = vadd.f32 %v3816, %v3885
      %v3887 = vpop.f32.mrb[0].mxu0
      %3888 = vdwg.mxu0
      %3889 = vmatprep.subr.mxu0 0.0
      %3890 = vmatpush1.msra.mxu0 %v984
      %3891 = vmatprep.subr.mxu0 0.0
      %3892 = vmatpush1.msra.mxu0 %v985
      %3893 = vmatprep.subr.mxu0 0.0
      %3894 = vmatpush1.msra.mxu0 %v986
      %3895 = vmatprep.subr.mxu0 0.0
      %3896 = vmatpush1.msra.mxu0 %v987
      %3897 = vmatprep.subr.mxu0 0.0
      %3898 = vmatpush1.msra.mxu0 %v988
      %3899 = vmatprep.subr.mxu0 0.0
      %3900 = vmatpush1.msra.mxu0 %v989
      %3901 = vmatprep.subr.mxu0 0.0
      %3902 = vmatpush1.msra.mxu0 %v990
      %3903 = vmatprep.subr.mxu0 0.0
      %3904 = vmatpush1.msra.mxu0 %v991
      %3905 = vmatprep.subr.mxu0 0.0
      %3906 = vmatpush1.msra.mxu0 %v992
      %3907 = vmatprep.subr.mxu0 0.0
      %3908 = vmatpush1.msra.mxu0 %v993
      %3909 = vmatprep.subr.mxu0 0.0
      %3910 = vmatpush1.msra.mxu0 %v994
      %3911 = vmatprep.subr.mxu0 0.0
      %3912 = vmatpush1.msra.mxu0 %v995
      %3913 = vmatprep.subr.mxu0 0.0
      %3914 = vmatpush1.msra.mxu0 %v996
      %3915 = vmatprep.subr.mxu0 0.0
      %3916 = vmatpush1.msra.mxu0 %v997
      %3917 = vmatprep.subr.mxu0 0.0
      %3918 = vmatpush1.msra.mxu0 %v998
      %3919 = vmatprep.subr.mxu0 0.0
      %3920 = vmatpush1.msra.mxu0 %v999
      %3921 = vmatprep.subr.mxu0 0.0
      %3922 = vmatpush1.msra.mxu0 %v1000
      %3923 = vmatprep.subr.mxu0 0.0
      %3924 = vmatpush1.msra.mxu0 %v1001
      %3925 = vmatprep.subr.mxu0 0.0
      %3926 = vmatpush1.msra.mxu0 %v1002
      %3927 = vmatprep.subr.mxu0 0.0
      %3928 = vmatpush1.msra.mxu0 %v1003
      %3929 = vmatprep.subr.mxu0 0.0
      %3930 = vmatpush1.msra.mxu0 %v1004
      %3931 = vmatprep.subr.mxu0 0.0
      %3932 = vmatpush1.msra.mxu0 %v1005
      %3933 = vmatprep.subr.mxu0 0.0
      %3934 = vmatpush1.msra.mxu0 %v1006
      %3935 = vmatprep.subr.mxu0 0.0
      %3936 = vmatpush1.msra.mxu0 %v1007
      %3937 = vmatprep.subr.mxu0 0.0
      %3938 = vmatpush1.msra.mxu0 %v1008
      %3939 = vmatprep.subr.mxu0 0.0
      %3940 = vmatpush1.msra.mxu0 %v1009
      %3941 = vmatprep.subr.mxu0 0.0
      %3942 = vmatpush1.msra.mxu0 %v1010
      %3943 = vmatprep.subr.mxu0 0.0
      %3944 = vmatpush1.msra.mxu0 %v1011
      %3945 = vmatprep.subr.mxu0 0.0
      %3946 = vmatpush1.msra.mxu0 %v1012
      %3947 = vmatprep.subr.mxu0 0.0
      %3948 = vmatpush1.msra.mxu0 %v1013
      %3949 = vmatprep.subr.mxu0 0.0
      %3950 = vmatpush1.msra.mxu0 %v1014
      %3951 = vmatprep.subr.mxu0 0.0
      %3952 = vmatpush1.msra.mxu0 %v1015
      %3953 = vmatprep.mubr.f32.mxu0 %v2091
      %3954 = vmatmul.mubr.f32.gmra.mrb[0].mxu0 %v2089
      %v3955 = vpop.f32.mrb[0].mxu0
      %v3956 = vadd.f32 %v3886, %v3955
      %v3957 = vpop.f32.mrb[0].mxu0
      %3958 = vdwg.mxu0
      %3959 = vmatprep.subr.mxu0 0.0
      %3960 = vmatpush1.msra.mxu0 %v1016
      %3961 = vmatprep.subr.mxu0 0.0
      %3962 = vmatpush1.msra.mxu0 %v1017
      %3963 = vmatprep.subr.mxu0 0.0
      %3964 = vmatpush1.msra.mxu0 %v1018
      %3965 = vmatprep.subr.mxu0 0.0
      %3966 = vmatpush1.msra.mxu0 %v1019
      %3967 = vmatprep.subr.mxu0 0.0
      %3968 = vmatpush1.msra.mxu0 %v1020
      %3969 = vmatprep.subr.mxu0 0.0
      %3970 = vmatpush1.msra.mxu0 %v1021
      %3971 = vmatprep.subr.mxu0 0.0
      %3972 = vmatpush1.msra.mxu0 %v1022
      %3973 = vmatprep.subr.mxu0 0.0
      %3974 = vmatpush1.msra.mxu0 %v1023
      %3975 = vmatprep.subr.mxu0 0.0
      %3976 = vmatpush1.msra.mxu0 %v1024
      %3977 = vmatprep.subr.mxu0 0.0
      %3978 = vmatpush1.msra.mxu0 %v1025
      %3979 = vmatprep.subr.mxu0 0.0
      %3980 = vmatpush1.msra.mxu0 %v1026
      %3981 = vmatprep.subr.mxu0 0.0
      %3982 = vmatpush1.msra.mxu0 %v1027
      %3983 = vmatprep.subr.mxu0 0.0
      %3984 = vmatpush1.msra.mxu0 %v1028
      %3985 = vmatprep.subr.mxu0 0.0
      %3986 = vmatpush1.msra.mxu0 %v1029
      %3987 = vmatprep.subr.mxu0 0.0
      %3988 = vmatpush1.msra.mxu0 %v1030
      %3989 = vmatprep.subr.mxu0 0.0
      %3990 = vmatpush1.msra.mxu0 %v1031
      %3991 = vmatprep.subr.mxu0 0.0
      %3992 = vmatpush1.msra.mxu0 %v1032
      %3993 = vmatprep.subr.mxu0 0.0
      %3994 = vmatpush1.msra.mxu0 %v1033
      %3995 = vmatprep.subr.mxu0 0.0
      %3996 = vmatpush1.msra.mxu0 %v1034
      %3997 = vmatprep.subr.mxu0 0.0
      %3998 = vmatpush1.msra.mxu0 %v1035
      %3999 = vmatprep.subr.mxu0 0.0
      %4000 = vmatpush1.msra.mxu0 %v1036
      %4001 = vmatprep.subr.mxu0 0.0
      %4002 = vmatpush1.msra.mxu0 %v1037
      %4003 = vmatprep.subr.mxu0 0.0
      %4004 = vmatpush1.msra.mxu0 %v1038
      %4005 = vmatprep.subr.mxu0 0.0
      %4006 = vmatpush1.msra.mxu0 %v1039
      %4007 = vmatprep.subr.mxu0 0.0
      %4008 = vmatpush1.msra.mxu0 %v1040
      %4009 = vmatprep.subr.mxu0 0.0
      %4010 = vmatpush1.msra.mxu0 %v1041
      %4011 = vmatprep.subr.mxu0 0.0
      %4012 = vmatpush1.msra.mxu0 %v1042
      %4013 = vmatprep.subr.mxu0 0.0
      %4014 = vmatpush1.msra.mxu0 %v1043
      %4015 = vmatprep.subr.mxu0 0.0
      %4016 = vmatpush1.msra.mxu0 %v1044
      %4017 = vmatprep.subr.mxu0 0.0
      %4018 = vmatpush1.msra.mxu0 %v1045
      %4019 = vmatprep.subr.mxu0 0.0
      %4020 = vmatpush1.msra.mxu0 %v1046
      %4021 = vmatprep.subr.mxu0 0.0
      %4022 = vmatpush1.msra.mxu0 %v1047
      %4023 = vmatprep.mubr.f32.mxu0 %v2107
      %4024 = vmatmul.mubr.f32.gmra.mrb[0].mxu0 %v2099
      %v4025 = vpop.f32.mrb[0].mxu0
      %v4026 = vadd.f32 %v3956, %v4025
      %v4027 = vpop.f32.mrb[0].mxu0
      %4028 = vdwg.mxu0
      %4029 = vmatprep.subr.mxu0 0.0
      %4030 = vmatpush1.msra.mxu0 %v1048
      %4031 = vmatprep.subr.mxu0 0.0
      %4032 = vmatpush1.msra.mxu0 %v1049
      %4033 = vmatprep.subr.mxu0 0.0
      %4034 = vmatpush1.msra.mxu0 %v1050
      %4035 = vmatprep.subr.mxu0 0.0
      %4036 = vmatpush1.msra.mxu0 %v1051
      %4037 = vmatprep.subr.mxu0 0.0
      %4038 = vmatpush1.msra.mxu0 %v1052
      %4039 = vmatprep.subr.mxu0 0.0
      %4040 = vmatpush1.msra.mxu0 %v1053
      %4041 = vmatprep.subr.mxu0 0.0
      %4042 = vmatpush1.msra.mxu0 %v1054
      %4043 = vmatprep.subr.mxu0 0.0
      %4044 = vmatpush1.msra.mxu0 %v1055
      %4045 = vmatprep.subr.mxu0 0.0
      %4046 = vmatpush1.msra.mxu0 %v1056
      %4047 = vmatprep.subr.mxu0 0.0
      %4048 = vmatpush1.msra.mxu0 %v1057
      %4049 = vmatprep.subr.mxu0 0.0
      %4050 = vmatpush1.msra.mxu0 %v1058
      %4051 = vmatprep.subr.mxu0 0.0
      %4052 = vmatpush1.msra.mxu0 %v1059
      %4053 = vmatprep.subr.mxu0 0.0
      %4054 = vmatpush1.msra.mxu0 %v1060
      %4055 = vmatprep.subr.mxu0 0.0
      %4056 = vmatpush1.msra.mxu0 %v1061
      %4057 = vmatprep.subr.mxu0 0.0
      %4058 = vmatpush1.msra.mxu0 %v1062
      %4059 = vmatprep.subr.mxu0 0.0
      %4060 = vmatpush1.msra.mxu0 %v1063
      %4061 = vmatprep.subr.mxu0 0.0
      %4062 = vmatpush1.msra.mxu0 %v1064
      %4063 = vmatprep.subr.mxu0 0.0
      %4064 = vmatpush1.msra.mxu0 %v1065
      %4065 = vmatprep.subr.mxu0 0.0
      %4066 = vmatpush1.msra.mxu0 %v1066
      %4067 = vmatprep.subr.mxu0 0.0
      %4068 = vmatpush1.msra.mxu0 %v1067
      %4069 = vmatprep.subr.mxu0 0.0
      %4070 = vmatpush1.msra.mxu0 %v1068
      %4071 = vmatprep.subr.mxu0 0.0
      %4072 = vmatpush1.msra.mxu0 %v1069
      %4073 = vmatprep.subr.mxu0 0.0
      %4074 = vmatpush1.msra.mxu0 %v1070
      %4075 = vmatprep.subr.mxu0 0.0
      %4076 = vmatpush1.msra.mxu0 %v1071
      %4077 = vmatprep.subr.mxu0 0.0
      %4078 = vmatpush1.msra.mxu0 %v1072
      %4079 = vmatprep.subr.mxu0 0.0
      %4080 = vmatpush1.msra.mxu0 %v1073
      %4081 = vmatprep.subr.mxu0 0.0
      %4082 = vmatpush1.msra.mxu0 %v1074
      %4083 = vmatprep.subr.mxu0 0.0
      %4084 = vmatpush1.msra.mxu0 %v1075
      %4085 = vmatprep.subr.mxu0 0.0
      %4086 = vmatpush1.msra.mxu0 %v1076
      %4087 = vmatprep.subr.mxu0 0.0
      %4088 = vmatpush1.msra.mxu0 %v1077
      %4089 = vmatprep.subr.mxu0 0.0
      %4090 = vmatpush1.msra.mxu0 %v1078
      %4091 = vmatprep.subr.mxu0 0.0
      %4092 = vmatpush1.msra.mxu0 %v1079
      %4093 = vmatprep.mubr.f32.mxu0 %v2108
      %4094 = vmatmul.mubr.f32.gmra.mrb[0].mxu0 %v2106
      %v4095 = vpop.f32.mrb[0].mxu0
      %v4096 = vadd.f32 %v4026, %v4095
      %v4097 = vpop.f32.mrb[0].mxu0
      %4098 = vdwg.mxu0
      %4099 = vmatprep.subr.mxu0 0.0
      %4100 = vmatpush1.msra.mxu0 %v1080
      %4101 = vmatprep.subr.mxu0 0.0
      %4102 = vmatpush1.msra.mxu0 %v1081
      %4103 = vmatprep.subr.mxu0 0.0
      %4104 = vmatpush1.msra.mxu0 %v1082
      %4105 = vmatprep.subr.mxu0 0.0
      %4106 = vmatpush1.msra.mxu0 %v1083
      %4107 = vmatprep.subr.mxu0 0.0
      %4108 = vmatpush1.msra.mxu0 %v1084
      %4109 = vmatprep.subr.mxu0 0.0
      %4110 = vmatpush1.msra.mxu0 %v1085
      %4111 = vmatprep.subr.mxu0 0.0
      %4112 = vmatpush1.msra.mxu0 %v1086
      %4113 = vmatprep.subr.mxu0 0.0
      %4114 = vmatpush1.msra.mxu0 %v1087
      %4115 = vmatprep.subr.mxu0 0.0
      %4116 = vmatpush1.msra.mxu0 %v1088
      %4117 = vmatprep.subr.mxu0 0.0
      %4118 = vmatpush1.msra.mxu0 %v1089
      %4119 = vmatprep.subr.mxu0 0.0
      %4120 = vmatpush1.msra.mxu0 %v1090
      %4121 = vmatprep.subr.mxu0 0.0
      %4122 = vmatpush1.msra.mxu0 %v1091
      %4123 = vmatprep.subr.mxu0 0.0
      %4124 = vmatpush1.msra.mxu0 %v1092
      %4125 = vmatprep.subr.mxu0 0.0
      %4126 = vmatpush1.msra.mxu0 %v1093
      %4127 = vmatprep.subr.mxu0 0.0
      %4128 = vmatpush1.msra.mxu0 %v1094
      %4129 = vmatprep.subr.mxu0 0.0
      %4130 = vmatpush1.msra.mxu0 %v1095
      %4131 = vmatprep.subr.mxu0 0.0
      %4132 = vmatpush1.msra.mxu0 %v1096
      %4133 = vmatprep.subr.mxu0 0.0
      %4134 = vmatpush1.msra.mxu0 %v1097
      %4135 = vmatprep.subr.mxu0 0.0
      %4136 = vmatpush1.msra.mxu0 %v1098
      %4137 = vmatprep.subr.mxu0 0.0
      %4138 = vmatpush1.msra.mxu0 %v1099
      %4139 = vmatprep.subr.mxu0 0.0
      %4140 = vmatpush1.msra.mxu0 %v1100
      %4141 = vmatprep.subr.mxu0 0.0
      %4142 = vmatpush1.msra.mxu0 %v1101
      %4143 = vmatprep.subr.mxu0 0.0
      %4144 = vmatpush1.msra.mxu0 %v1102
      %4145 = vmatprep.subr.mxu0 0.0
      %4146 = vmatpush1.msra.mxu0 %v1103
      %4147 = vmatprep.subr.mxu0 0.0
      %4148 = vmatpush1.msra.mxu0 %v1104
      %4149 = vmatprep.subr.mxu0 0.0
      %4150 = vmatpush1.msra.mxu0 %v1105
      %4151 = vmatprep.subr.mxu0 0.0
      %4152 = vmatpush1.msra.mxu0 %v1106
      %4153 = vmatprep.subr.mxu0 0.0
      %4154 = vmatpush1.msra.mxu0 %v1107
      %4155 = vmatprep.subr.mxu0 0.0
      %4156 = vmatpush1.msra.mxu0 %v1108
      %4157 = vmatprep.subr.mxu0 0.0
      %4158 = vmatpush1.msra.mxu0 %v1109
      %4159 = vmatprep.subr.mxu0 0.0
      %4160 = vmatpush1.msra.mxu0 %v1110
      %4161 = vmatprep.subr.mxu0 0.0
      %4162 = vmatpush1.msra.mxu0 %v1111
      %4163 = vmatprep.mubr.f32.mxu0 %v2124
      %4164 = vmatmul.mubr.f32.gmra.mrb[0].mxu0 %v2116
      %v4165 = vpop.f32.mrb[0].mxu0
      %v4166 = vadd.f32 %v4096, %v4165
      %v4167 = vpop.f32.mrb[0].mxu0
      %4168 = vdwg.mxu0
      %4169 = vmatprep.subr.mxu0 0.0
      %4170 = vmatpush1.msra.mxu0 %v1112
      %4171 = vmatprep.subr.mxu0 0.0
      %4172 = vmatpush1.msra.mxu0 %v1113
      %4173 = vmatprep.subr.mxu0 0.0
      %4174 = vmatpush1.msra.mxu0 %v1114
      %4175 = vmatprep.subr.mxu0 0.0
      %4176 = vmatpush1.msra.mxu0 %v1115
      %4177 = vmatprep.subr.mxu0 0.0
      %4178 = vmatpush1.msra.mxu0 %v1116
      %4179 = vmatprep.subr.mxu0 0.0
      %4180 = vmatpush1.msra.mxu0 %v1117
      %4181 = vmatprep.subr.mxu0 0.0
      %4182 = vmatpush1.msra.mxu0 %v1118
      %4183 = vmatprep.subr.mxu0 0.0
      %4184 = vmatpush1.msra.mxu0 %v1119
      %4185 = vmatprep.subr.mxu0 0.0
      %4186 = vmatpush1.msra.mxu0 %v1120
      %4187 = vmatprep.subr.mxu0 0.0
      %4188 = vmatpush1.msra.mxu0 %v1121
      %4189 = vmatprep.subr.mxu0 0.0
      %4190 = vmatpush1.msra.mxu0 %v1122
      %4191 = vmatprep.subr.mxu0 0.0
      %4192 = vmatpush1.msra.mxu0 %v1123
      %4193 = vmatprep.subr.mxu0 0.0
      %4194 = vmatpush1.msra.mxu0 %v1124
      %4195 = vmatprep.subr.mxu0 0.0
      %4196 = vmatpush1.msra.mxu0 %v1125
      %4197 = vmatprep.subr.mxu0 0.0
      %4198 = vmatpush1.msra.mxu0 %v1126
      %4199 = vmatprep.subr.mxu0 0.0
      %4200 = vmatpush1.msra.mxu0 %v1127
      %4201 = vmatprep.subr.mxu0 0.0
      %4202 = vmatpush1.msra.mxu0 %v1128
      %4203 = vmatprep.subr.mxu0 0.0
      %4204 = vmatpush1.msra.mxu0 %v1129
      %4205 = vmatprep.subr.mxu0 0.0
      %4206 = vmatpush1.msra.mxu0 %v1130
      %4207 = vmatprep.subr.mxu0 0.0
      %4208 = vmatpush1.msra.mxu0 %v1131
      %4209 = vmatprep.subr.mxu0 0.0
      %4210 = vmatpush1.msra.mxu0 %v1132
      %4211 = vmatprep.subr.mxu0 0.0
      %4212 = vmatpush1.msra.mxu0 %v1133
      %4213 = vmatprep.subr.mxu0 0.0
      %4214 = vmatpush1.msra.mxu0 %v1134
      %4215 = vmatprep.subr.mxu0 0.0
      %4216 = vmatpush1.msra.mxu0 %v1135
      %4217 = vmatprep.subr.mxu0 0.0
      %4218 = vmatpush1.msra.mxu0 %v1136
      %4219 = vmatprep.subr.mxu0 0.0
      %4220 = vmatpush1.msra.mxu0 %v1137
      %4221 = vmatprep.subr.mxu0 0.0
      %4222 = vmatpush1.msra.mxu0 %v1138
      %4223 = vmatprep.subr.mxu0 0.0
      %4224 = vmatpush1.msra.mxu0 %v1139
      %4225 = vmatprep.subr.mxu0 0.0
      %4226 = vmatpush1.msra.mxu0 %v1140
      %4227 = vmatprep.subr.mxu0 0.0
      %4228 = vmatpush1.msra.mxu0 %v1141
      %4229 = vmatprep.subr.mxu0 0.0
      %4230 = vmatpush1.msra.mxu0 %v1142
      %4231 = vmatprep.subr.mxu0 0.0
      %4232 = vmatpush1.msra.mxu0 %v1143
      %4233 = vmatprep.mubr.f32.mxu0 %v2125
      %4234 = vmatmul.mubr.f32.gmra.mrb[0].mxu0 %v2123
      %v4235 = vpop.f32.mrb[0].mxu0
      %v4236 = vadd.f32 %v4166, %v4235
      %v4237 = vpop.f32.mrb[0].mxu0
      %4238 = vdwg.mxu0
      %4239 = vmatprep.subr.mxu0 0.0
      %4240 = vmatpush1.msra.mxu0 %v1144
      %4241 = vmatprep.subr.mxu0 0.0
      %4242 = vmatpush1.msra.mxu0 %v1145
      %4243 = vmatprep.subr.mxu0 0.0
      %4244 = vmatpush1.msra.mxu0 %v1146
      %4245 = vmatprep.subr.mxu0 0.0
      %4246 = vmatpush1.msra.mxu0 %v1147
      %4247 = vmatprep.subr.mxu0 0.0
      %4248 = vmatpush1.msra.mxu0 %v1148
      %4249 = vmatprep.subr.mxu0 0.0
      %4250 = vmatpush1.msra.mxu0 %v1149
      %4251 = vmatprep.subr.mxu0 0.0
      %4252 = vmatpush1.msra.mxu0 %v1150
      %4253 = vmatprep.subr.mxu0 0.0
      %4254 = vmatpush1.msra.mxu0 %v1151
      %4255 = vmatprep.subr.mxu0 0.0
      %4256 = vmatpush1.msra.mxu0 %v1152
      %4257 = vmatprep.subr.mxu0 0.0
      %4258 = vmatpush1.msra.mxu0 %v1153
      %4259 = vmatprep.subr.mxu0 0.0
      %4260 = vmatpush1.msra.mxu0 %v1154
      %4261 = vmatprep.subr.mxu0 0.0
      %4262 = vmatpush1.msra.mxu0 %v1155
      %4263 = vmatprep.subr.mxu0 0.0
      %4264 = vmatpush1.msra.mxu0 %v1156
      %4265 = vmatprep.subr.mxu0 0.0
      %4266 = vmatpush1.msra.mxu0 %v1157
      %4267 = vmatprep.subr.mxu0 0.0
      %4268 = vmatpush1.msra.mxu0 %v1158
      %4269 = vmatprep.subr.mxu0 0.0
      %4270 = vmatpush1.msra.mxu0 %v1159
      %4271 = vmatprep.subr.mxu0 0.0
      %4272 = vmatpush1.msra.mxu0 %v1160
      %4273 = vmatprep.subr.mxu0 0.0
      %4274 = vmatpush1.msra.mxu0 %v1161
      %4275 = vmatprep.subr.mxu0 0.0
      %4276 = vmatpush1.msra.mxu0 %v1162
      %4277 = vmatprep.subr.mxu0 0.0
      %4278 = vmatpush1.msra.mxu0 %v1163
      %4279 = vmatprep.subr.mxu0 0.0
      %4280 = vmatpush1.msra.mxu0 %v1164
      %4281 = vmatprep.subr.mxu0 0.0
      %4282 = vmatpush1.msra.mxu0 %v1165
      %4283 = vmatprep.subr.mxu0 0.0
      %4284 = vmatpush1.msra.mxu0 %v1166
      %4285 = vmatprep.subr.mxu0 0.0
      %4286 = vmatpush1.msra.mxu0 %v1167
      %4287 = vmatprep.subr.mxu0 0.0
      %4288 = vmatpush1.msra.mxu0 %v1168
      %4289 = vmatprep.subr.mxu0 0.0
      %4290 = vmatpush1.msra.mxu0 %v1169
      %4291 = vmatprep.subr.mxu0 0.0
      %4292 = vmatpush1.msra.mxu0 %v1170
      %4293 = vmatprep.subr.mxu0 0.0
      %4294 = vmatpush1.msra.mxu0 %v1171
      %4295 = vmatprep.subr.mxu0 0.0
      %4296 = vmatpush1.msra.mxu0 %v1172
      %4297 = vmatprep.subr.mxu0 0.0
      %4298 = vmatpush1.msra.mxu0 %v1173
      %4299 = vmatprep.subr.mxu0 0.0
      %4300 = vmatpush1.msra.mxu0 %v1174
      %4301 = vmatprep.subr.mxu0 0.0
      %4302 = vmatpush1.msra.mxu0 %v1175
      %4303 = vmatprep.mubr.f32.mxu0 %v2141
      %4304 = vmatmul.mubr.f32.gmra.mrb[0].mxu0 %v2133
      %v4305 = vpop.f32.mrb[0].mxu0
      %v4306 = vadd.f32 %v4236, %v4305
      %v4307 = vpop.f32.mrb[0].mxu0
      %4308 = vdwg.mxu0
      %4309 = vmatprep.subr.mxu0 0.0
      %4310 = vmatpush1.msra.mxu0 %v1176
      %4311 = vmatprep.subr.mxu0 0.0
      %4312 = vmatpush1.msra.mxu0 %v1177
      %4313 = vmatprep.subr.mxu0 0.0
      %4314 = vmatpush1.msra.mxu0 %v1178
      %4315 = vmatprep.subr.mxu0 0.0
      %4316 = vmatpush1.msra.mxu0 %v1179
      %4317 = vmatprep.subr.mxu0 0.0
      %4318 = vmatpush1.msra.mxu0 %v1180
      %4319 = vmatprep.subr.mxu0 0.0
      %4320 = vmatpush1.msra.mxu0 %v1181
      %4321 = vmatprep.subr.mxu0 0.0
      %4322 = vmatpush1.msra.mxu0 %v1182
      %4323 = vmatprep.subr.mxu0 0.0
      %4324 = vmatpush1.msra.mxu0 %v1183
      %4325 = vmatprep.subr.mxu0 0.0
      %4326 = vmatpush1.msra.mxu0 %v1184
      %4327 = vmatprep.subr.mxu0 0.0
      %4328 = vmatpush1.msra.mxu0 %v1185
      %4329 = vmatprep.subr.mxu0 0.0
      %4330 = vmatpush1.msra.mxu0 %v1186
      %4331 = vmatprep.subr.mxu0 0.0
      %4332 = vmatpush1.msra.mxu0 %v1187
      %4333 = vmatprep.subr.mxu0 0.0
      %4334 = vmatpush1.msra.mxu0 %v1188
      %4335 = vmatprep.subr.mxu0 0.0
      %4336 = vmatpush1.msra.mxu0 %v1189
      %4337 = vmatprep.subr.mxu0 0.0
      %4338 = vmatpush1.msra.mxu0 %v1190
      %4339 = vmatprep.subr.mxu0 0.0
      %4340 = vmatpush1.msra.mxu0 %v1191
      %4341 = vmatprep.subr.mxu0 0.0
      %4342 = vmatpush1.msra.mxu0 %v1192
      %4343 = vmatprep.subr.mxu0 0.0
      %4344 = vmatpush1.msra.mxu0 %v1193
      %4345 = vmatprep.subr.mxu0 0.0
      %4346 = vmatpush1.msra.mxu0 %v1194
      %4347 = vmatprep.subr.mxu0 0.0
      %4348 = vmatpush1.msra.mxu0 %v1195
      %4349 = vmatprep.subr.mxu0 0.0
      %4350 = vmatpush1.msra.mxu0 %v1196
      %4351 = vmatprep.subr.mxu0 0.0
      %4352 = vmatpush1.msra.mxu0 %v1197
      %4353 = vmatprep.subr.mxu0 0.0
      %4354 = vmatpush1.msra.mxu0 %v1198
      %4355 = vmatprep.subr.mxu0 0.0
      %4356 = vmatpush1.msra.mxu0 %v1199
      %4357 = vmatprep.subr.mxu0 0.0
      %4358 = vmatpush1.msra.mxu0 %v1200
      %4359 = vmatprep.subr.mxu0 0.0
      %4360 = vmatpush1.msra.mxu0 %v1201
      %4361 = vmatprep.subr.mxu0 0.0
      %4362 = vmatpush1.msra.mxu0 %v1202
      %4363 = vmatprep.subr.mxu0 0.0
      %4364 = vmatpush1.msra.mxu0 %v1203
      %4365 = vmatprep.subr.mxu0 0.0
      %4366 = vmatpush1.msra.mxu0 %v1204
      %4367 = vmatprep.subr.mxu0 0.0
      %4368 = vmatpush1.msra.mxu0 %v1205
      %4369 = vmatprep.subr.mxu0 0.0
      %4370 = vmatpush1.msra.mxu0 %v1206
      %4371 = vmatprep.subr.mxu0 0.0
      %4372 = vmatpush1.msra.mxu0 %v1207
      %4373 = vmatprep.mubr.f32.mxu0 %v2142
      %4374 = vmatmul.mubr.f32.gmra.mrb[0].mxu0 %v2140
      %v4375 = vpop.f32.mrb[0].mxu0
      %v4376 = vadd.f32 %v4306, %v4375
      %v4377 = vpop.f32.mrb[0].mxu0
      %4378 = vdwg.mxu0
      %4379 = vmatprep.subr.mxu0 0.0
      %4380 = vmatpush1.msra.mxu0 %v1208
      %4381 = vmatprep.subr.mxu0 0.0
      %4382 = vmatpush1.msra.mxu0 %v1209
      %4383 = vmatprep.subr.mxu0 0.0
      %4384 = vmatpush1.msra.mxu0 %v1210
      %4385 = vmatprep.subr.mxu0 0.0
      %4386 = vmatpush1.msra.mxu0 %v1211
      %4387 = vmatprep.subr.mxu0 0.0
      %4388 = vmatpush1.msra.mxu0 %v1212
      %4389 = vmatprep.subr.mxu0 0.0
      %4390 = vmatpush1.msra.mxu0 %v1213
      %4391 = vmatprep.subr.mxu0 0.0
      %4392 = vmatpush1.msra.mxu0 %v1214
      %4393 = vmatprep.subr.mxu0 0.0
      %4394 = vmatpush1.msra.mxu0 %v1215
      %4395 = vmatprep.subr.mxu0 0.0
      %4396 = vmatpush1.msra.mxu0 %v1216
      %4397 = vmatprep.subr.mxu0 0.0
      %4398 = vmatpush1.msra.mxu0 %v1217
      %4399 = vmatprep.subr.mxu0 0.0
      %4400 = vmatpush1.msra.mxu0 %v1218
      %4401 = vmatprep.subr.mxu0 0.0
      %4402 = vmatpush1.msra.mxu0 %v1219
      %4403 = vmatprep.subr.mxu0 0.0
      %4404 = vmatpush1.msra.mxu0 %v1220
      %4405 = vmatprep.subr.mxu0 0.0
      %4406 = vmatpush1.msra.mxu0 %v1221
      %4407 = vmatprep.subr.mxu0 0.0
      %4408 = vmatpush1.msra.mxu0 %v1222
      %4409 = vmatprep.subr.mxu0 0.0
      %4410 = vmatpush1.msra.mxu0 %v1223
      %4411 = vmatprep.subr.mxu0 0.0
      %4412 = vmatpush1.msra.mxu0 %v1224
      %4413 = vmatprep.subr.mxu0 0.0
      %4414 = vmatpush1.msra.mxu0 %v1225
      %4415 = vmatprep.subr.mxu0 0.0
      %4416 = vmatpush1.msra.mxu0 %v1226
      %4417 = vmatprep.subr.mxu0 0.0
      %4418 = vmatpush1.msra.mxu0 %v1227
      %4419 = vmatprep.subr.mxu0 0.0
      %4420 = vmatpush1.msra.mxu0 %v1228
      %4421 = vmatprep.subr.mxu0 0.0
      %4422 = vmatpush1.msra.mxu0 %v1229
      %4423 = vmatprep.subr.mxu0 0.0
      %4424 = vmatpush1.msra.mxu0 %v1230
      %4425 = vmatprep.subr.mxu0 0.0
      %4426 = vmatpush1.msra.mxu0 %v1231
      %4427 = vmatprep.subr.mxu0 0.0
      %4428 = vmatpush1.msra.mxu0 %v1232
      %4429 = vmatprep.subr.mxu0 0.0
      %4430 = vmatpush1.msra.mxu0 %v1233
      %4431 = vmatprep.subr.mxu0 0.0
      %4432 = vmatpush1.msra.mxu0 %v1234
      %4433 = vmatprep.subr.mxu0 0.0
      %4434 = vmatpush1.msra.mxu0 %v1235
      %4435 = vmatprep.subr.mxu0 0.0
      %4436 = vmatpush1.msra.mxu0 %v1236
      %4437 = vmatprep.subr.mxu0 0.0
      %4438 = vmatpush1.msra.mxu0 %v1237
      %4439 = vmatprep.subr.mxu0 0.0
      %4440 = vmatpush1.msra.mxu0 %v1238
      %4441 = vmatprep.subr.mxu0 0.0
      %4442 = vmatpush1.msra.mxu0 %v1239
      %4443 = vmatprep.mubr.f32.mxu0 %v2158
      %4444 = vmatmul.mubr.f32.gmra.mrb[0].mxu0 %v2150
      %v4445 = vpop.f32.mrb[0].mxu0
      %v4446 = vadd.f32 %v4376, %v4445
      %v4447 = vpop.f32.mrb[0].mxu0
      %4448 = vdwg.mxu0
      %4449 = vmatprep.subr.mxu0 0.0
      %4450 = vmatpush1.msra.mxu0 %v1240
      %4451 = vmatprep.subr.mxu0 0.0
      %4452 = vmatpush1.msra.mxu0 %v1241
      %4453 = vmatprep.subr.mxu0 0.0
      %4454 = vmatpush1.msra.mxu0 %v1242
      %4455 = vmatprep.subr.mxu0 0.0
      %4456 = vmatpush1.msra.mxu0 %v1243
      %4457 = vmatprep.subr.mxu0 0.0
      %4458 = vmatpush1.msra.mxu0 %v1244
      %4459 = vmatprep.subr.mxu0 0.0
      %4460 = vmatpush1.msra.mxu0 %v1245
      %4461 = vmatprep.subr.mxu0 0.0
      %4462 = vmatpush1.msra.mxu0 %v1246
      %4463 = vmatprep.subr.mxu0 0.0
      %4464 = vmatpush1.msra.mxu0 %v1247
      %4465 = vmatprep.subr.mxu0 0.0
      %4466 = vmatpush1.msra.mxu0 %v1248
      %4467 = vmatprep.subr.mxu0 0.0
      %4468 = vmatpush1.msra.mxu0 %v1249
      %4469 = vmatprep.subr.mxu0 0.0
      %4470 = vmatpush1.msra.mxu0 %v1250
      %4471 = vmatprep.subr.mxu0 0.0
      %4472 = vmatpush1.msra.mxu0 %v1251
      %4473 = vmatprep.subr.mxu0 0.0
      %4474 = vmatpush1.msra.mxu0 %v1252
      %4475 = vmatprep.subr.mxu0 0.0
      %4476 = vmatpush1.msra.mxu0 %v1253
      %4477 = vmatprep.subr.mxu0 0.0
      %4478 = vmatpush1.msra.mxu0 %v1254
      %4479 = vmatprep.subr.mxu0 0.0
      %4480 = vmatpush1.msra.mxu0 %v1255
      %4481 = vmatprep.subr.mxu0 0.0
      %4482 = vmatpush1.msra.mxu0 %v1256
      %4483 = vmatprep.subr.mxu0 0.0
      %4484 = vmatpush1.msra.mxu0 %v1257
      %4485 = vmatprep.subr.mxu0 0.0
      %4486 = vmatpush1.msra.mxu0 %v1258
      %4487 = vmatprep.subr.mxu0 0.0
      %4488 = vmatpush1.msra.mxu0 %v1259
      %4489 = vmatprep.subr.mxu0 0.0
      %4490 = vmatpush1.msra.mxu0 %v1260
      %4491 = vmatprep.subr.mxu0 0.0
      %4492 = vmatpush1.msra.mxu0 %v1261
      %4493 = vmatprep.subr.mxu0 0.0
      %4494 = vmatpush1.msra.mxu0 %v1262
      %4495 = vmatprep.subr.mxu0 0.0
      %4496 = vmatpush1.msra.mxu0 %v1263
      %4497 = vmatprep.subr.mxu0 0.0
      %4498 = vmatpush1.msra.mxu0 %v1264
      %4499 = vmatprep.subr.mxu0 0.0
      %4500 = vmatpush1.msra.mxu0 %v1265
      %4501 = vmatprep.subr.mxu0 0.0
      %4502 = vmatpush1.msra.mxu0 %v1266
      %4503 = vmatprep.subr.mxu0 0.0
      %4504 = vmatpush1.msra.mxu0 %v1267
      %4505 = vmatprep.subr.mxu0 0.0
      %4506 = vmatpush1.msra.mxu0 %v1268
      %4507 = vmatprep.subr.mxu0 0.0
      %4508 = vmatpush1.msra.mxu0 %v1269
      %4509 = vmatprep.subr.mxu0 0.0
      %4510 = vmatpush1.msra.mxu0 %v1270
      %4511 = vmatprep.subr.mxu0 0.0
      %4512 = vmatpush1.msra.mxu0 %v1271
      %4513 = vmatprep.mubr.f32.mxu0 %v2159
      %4514 = vmatmul.mubr.f32.gmra.mrb[0].mxu0 %v2157
      %v4515 = vpop.f32.mrb[0].mxu0
      %v4516 = vadd.f32 %v4446, %v4515
      %v4517 = vpop.f32.mrb[0].mxu0
      %4518 = vdwg.mxu0
      %4519 = vmatprep.subr.mxu0 0.0
      %4520 = vmatpush1.msra.mxu0 %v1272
      %4521 = vmatprep.subr.mxu0 0.0
      %4522 = vmatpush1.msra.mxu0 %v1273
      %4523 = vmatprep.subr.mxu0 0.0
      %4524 = vmatpush1.msra.mxu0 %v1274
      %4525 = vmatprep.subr.mxu0 0.0
      %4526 = vmatpush1.msra.mxu0 %v1275
      %4527 = vmatprep.subr.mxu0 0.0
      %4528 = vmatpush1.msra.mxu0 %v1276
      %4529 = vmatprep.subr.mxu0 0.0
      %4530 = vmatpush1.msra.mxu0 %v1277
      %4531 = vmatprep.subr.mxu0 0.0
      %4532 = vmatpush1.msra.mxu0 %v1278
      %4533 = vmatprep.subr.mxu0 0.0
      %4534 = vmatpush1.msra.mxu0 %v1279
      %4535 = vmatprep.subr.mxu0 0.0
      %4536 = vmatpush1.msra.mxu0 %v1280
      %4537 = vmatprep.subr.mxu0 0.0
      %4538 = vmatpush1.msra.mxu0 %v1281
      %4539 = vmatprep.subr.mxu0 0.0
      %4540 = vmatpush1.msra.mxu0 %v1282
      %4541 = vmatprep.subr.mxu0 0.0
      %4542 = vmatpush1.msra.mxu0 %v1283
      %4543 = vmatprep.subr.mxu0 0.0
      %4544 = vmatpush1.msra.mxu0 %v1284
      %4545 = vmatprep.subr.mxu0 0.0
      %4546 = vmatpush1.msra.mxu0 %v1285
      %4547 = vmatprep.subr.mxu0 0.0
      %4548 = vmatpush1.msra.mxu0 %v1286
      %4549 = vmatprep.subr.mxu0 0.0
      %4550 = vmatpush1.msra.mxu0 %v1287
      %4551 = vmatprep.subr.mxu0 0.0
      %4552 = vmatpush1.msra.mxu0 %v1288
      %4553 = vmatprep.subr.mxu0 0.0
      %4554 = vmatpush1.msra.mxu0 %v1289
      %4555 = vmatprep.subr.mxu0 0.0
      %4556 = vmatpush1.msra.mxu0 %v1290
      %4557 = vmatprep.subr.mxu0 0.0
      %4558 = vmatpush1.msra.mxu0 %v1291
      %4559 = vmatprep.subr.mxu0 0.0
      %4560 = vmatpush1.msra.mxu0 %v1292
      %4561 = vmatprep.subr.mxu0 0.0
      %4562 = vmatpush1.msra.mxu0 %v1293
      %4563 = vmatprep.subr.mxu0 0.0
      %4564 = vmatpush1.msra.mxu0 %v1294
      %4565 = vmatprep.subr.mxu0 0.0
      %4566 = vmatpush1.msra.mxu0 %v1295
      %4567 = vmatprep.subr.mxu0 0.0
      %4568 = vmatpush1.msra.mxu0 %v1296
      %4569 = vmatprep.subr.mxu0 0.0
      %4570 = vmatpush1.msra.mxu0 %v1297
      %4571 = vmatprep.subr.mxu0 0.0
      %4572 = vmatpush1.msra.mxu0 %v1298
      %4573 = vmatprep.subr.mxu0 0.0
      %4574 = vmatpush1.msra.mxu0 %v1299
      %4575 = vmatprep.subr.mxu0 0.0
      %4576 = vmatpush1.msra.mxu0 %v1300
      %4577 = vmatprep.subr.mxu0 0.0
      %4578 = vmatpush1.msra.mxu0 %v1301
      %4579 = vmatprep.subr.mxu0 0.0
      %4580 = vmatpush1.msra.mxu0 %v1302
      %4581 = vmatprep.subr.mxu0 0.0
      %4582 = vmatpush1.msra.mxu0 %v1303
      %4583 = vmatprep.mubr.f32.mxu0 %v2175
      %4584 = vmatmul.mubr.f32.gmra.mrb[0].mxu0 %v2167
      %v4585 = vpop.f32.mrb[0].mxu0
      %v4586 = vadd.f32 %v4516, %v4585
      %v4587 = vpop.f32.mrb[0].mxu0
      %4588 = vdwg.mxu0
      %4589 = vmatprep.subr.mxu0 0.0
      %4590 = vmatpush1.msra.mxu0 %v1304
      %4591 = vmatprep.subr.mxu0 0.0
      %4592 = vmatpush1.msra.mxu0 %v1305
      %4593 = vmatprep.subr.mxu0 0.0
      %4594 = vmatpush1.msra.mxu0 %v1306
      %4595 = vmatprep.subr.mxu0 0.0
      %4596 = vmatpush1.msra.mxu0 %v1307
      %4597 = vmatprep.subr.mxu0 0.0
      %4598 = vmatpush1.msra.mxu0 %v1308
      %4599 = vmatprep.subr.mxu0 0.0
      %4600 = vmatpush1.msra.mxu0 %v1309
      %4601 = vmatprep.subr.mxu0 0.0
      %4602 = vmatpush1.msra.mxu0 %v1310
      %4603 = vmatprep.subr.mxu0 0.0
      %4604 = vmatpush1.msra.mxu0 %v1311
      %4605 = vmatprep.subr.mxu0 0.0
      %4606 = vmatpush1.msra.mxu0 %v1312
      %4607 = vmatprep.subr.mxu0 0.0
      %4608 = vmatpush1.msra.mxu0 %v1313
      %4609 = vmatprep.subr.mxu0 0.0
      %4610 = vmatpush1.msra.mxu0 %v1314
      %4611 = vmatprep.subr.mxu0 0.0
      %4612 = vmatpush1.msra.mxu0 %v1315
      %4613 = vmatprep.subr.mxu0 0.0
      %4614 = vmatpush1.msra.mxu0 %v1316
      %4615 = vmatprep.subr.mxu0 0.0
      %4616 = vmatpush1.msra.mxu0 %v1317
      %4617 = vmatprep.subr.mxu0 0.0
      %4618 = vmatpush1.msra.mxu0 %v1318
      %4619 = vmatprep.subr.mxu0 0.0
      %4620 = vmatpush1.msra.mxu0 %v1319
      %4621 = vmatprep.subr.mxu0 0.0
      %4622 = vmatpush1.msra.mxu0 %v1320
      %4623 = vmatprep.subr.mxu0 0.0
      %4624 = vmatpush1.msra.mxu0 %v1321
      %4625 = vmatprep.subr.mxu0 0.0
      %4626 = vmatpush1.msra.mxu0 %v1322
      %4627 = vmatprep.subr.mxu0 0.0
      %4628 = vmatpush1.msra.mxu0 %v1323
      %4629 = vmatprep.subr.mxu0 0.0
      %4630 = vmatpush1.msra.mxu0 %v1324
      %4631 = vmatprep.subr.mxu0 0.0
      %4632 = vmatpush1.msra.mxu0 %v1325
      %4633 = vmatprep.subr.mxu0 0.0
      %4634 = vmatpush1.msra.mxu0 %v1326
      %4635 = vmatprep.subr.mxu0 0.0
      %4636 = vmatpush1.msra.mxu0 %v1327
      %4637 = vmatprep.subr.mxu0 0.0
      %4638 = vmatpush1.msra.mxu0 %v1328
      %4639 = vmatprep.subr.mxu0 0.0
      %4640 = vmatpush1.msra.mxu0 %v1329
      %4641 = vmatprep.subr.mxu0 0.0
      %4642 = vmatpush1.msra.mxu0 %v1330
      %4643 = vmatprep.subr.mxu0 0.0
      %4644 = vmatpush1.msra.mxu0 %v1331
      %4645 = vmatprep.subr.mxu0 0.0
      %4646 = vmatpush1.msra.mxu0 %v1332
      %4647 = vmatprep.subr.mxu0 0.0
      %4648 = vmatpush1.msra.mxu0 %v1333
      %4649 = vmatprep.subr.mxu0 0.0
      %4650 = vmatpush1.msra.mxu0 %v1334
      %4651 = vmatprep.subr.mxu0 0.0
      %4652 = vmatpush1.msra.mxu0 %v1335
      %4653 = vmatprep.mubr.f32.mxu0 %v2176
      %4654 = vmatmul.mubr.f32.gmra.mrb[0].mxu0 %v2174
      %v4655 = vpop.f32.mrb[0].mxu0
      %v4656 = vadd.f32 %v4586, %v4655
      %v4657 = vpop.f32.mrb[0].mxu0
      %4658 = vdwg.mxu0
      %4659 = vmatprep.subr.mxu0 0.0
      %4660 = vmatpush1.msra.mxu0 %v1336
      %4661 = vmatprep.subr.mxu0 0.0
      %4662 = vmatpush1.msra.mxu0 %v1337
      %4663 = vmatprep.subr.mxu0 0.0
      %4664 = vmatpush1.msra.mxu0 %v1338
      %4665 = vmatprep.subr.mxu0 0.0
      %4666 = vmatpush1.msra.mxu0 %v1339
      %4667 = vmatprep.subr.mxu0 0.0
      %4668 = vmatpush1.msra.mxu0 %v1340
      %4669 = vmatprep.subr.mxu0 0.0
      %4670 = vmatpush1.msra.mxu0 %v1341
      %4671 = vmatprep.subr.mxu0 0.0
      %4672 = vmatpush1.msra.mxu0 %v1342
      %4673 = vmatprep.subr.mxu0 0.0
      %4674 = vmatpush1.msra.mxu0 %v1343
      %4675 = vmatprep.subr.mxu0 0.0
      %4676 = vmatpush1.msra.mxu0 %v1344
      %4677 = vmatprep.subr.mxu0 0.0
      %4678 = vmatpush1.msra.mxu0 %v1345
      %4679 = vmatprep.subr.mxu0 0.0
      %4680 = vmatpush1.msra.mxu0 %v1346
      %4681 = vmatprep.subr.mxu0 0.0
      %4682 = vmatpush1.msra.mxu0 %v1347
      %4683 = vmatprep.subr.mxu0 0.0
      %4684 = vmatpush1.msra.mxu0 %v1348
      %4685 = vmatprep.subr.mxu0 0.0
      %4686 = vmatpush1.msra.mxu0 %v1349
      %4687 = vmatprep.subr.mxu0 0.0
      %4688 = vmatpush1.msra.mxu0 %v1350
      %4689 = vmatprep.subr.mxu0 0.0
      %4690 = vmatpush1.msra.mxu0 %v1351
      %4691 = vmatprep.subr.mxu0 0.0
      %4692 = vmatpush1.msra.mxu0 %v1352
      %4693 = vmatprep.subr.mxu0 0.0
      %4694 = vmatpush1.msra.mxu0 %v1353
      %4695 = vmatprep.subr.mxu0 0.0
      %4696 = vmatpush1.msra.mxu0 %v1354
      %4697 = vmatprep.subr.mxu0 0.0
      %4698 = vmatpush1.msra.mxu0 %v1355
      %4699 = vmatprep.subr.mxu0 0.0
      %4700 = vmatpush1.msra.mxu0 %v1356
      %4701 = vmatprep.subr.mxu0 0.0
      %4702 = vmatpush1.msra.mxu0 %v1357
      %4703 = vmatprep.subr.mxu0 0.0
      %4704 = vmatpush1.msra.mxu0 %v1358
      %4705 = vmatprep.subr.mxu0 0.0
      %4706 = vmatpush1.msra.mxu0 %v1359
      %4707 = vmatprep.subr.mxu0 0.0
      %4708 = vmatpush1.msra.mxu0 %v1360
      %4709 = vmatprep.subr.mxu0 0.0
      %4710 = vmatpush1.msra.mxu0 %v1361
      %4711 = vmatprep.subr.mxu0 0.0
      %4712 = vmatpush1.msra.mxu0 %v1362
      %4713 = vmatprep.subr.mxu0 0.0
      %4714 = vmatpush1.msra.mxu0 %v1363
      %4715 = vmatprep.subr.mxu0 0.0
      %4716 = vmatpush1.msra.mxu0 %v1364
      %4717 = vmatprep.subr.mxu0 0.0
      %4718 = vmatpush1.msra.mxu0 %v1365
      %4719 = vmatprep.subr.mxu0 0.0
      %4720 = vmatpush1.msra.mxu0 %v1366
      %4721 = vmatprep.subr.mxu0 0.0
      %4722 = vmatpush1.msra.mxu0 %v1367
      %4723 = vmatprep.mubr.f32.mxu0 %v2192
      %4724 = vmatmul.mubr.f32.gmra.mrb[0].mxu0 %v2184
      %v4725 = vpop.f32.mrb[0].mxu0
      %v4726 = vadd.f32 %v4656, %v4725
      %v4727 = vpop.f32.mrb[0].mxu0
      %4728 = vdwg.mxu0
      %4729 = vmatprep.subr.mxu0 0.0
      %4730 = vmatpush1.msra.mxu0 %v1368
      %4731 = vmatprep.subr.mxu0 0.0
      %4732 = vmatpush1.msra.mxu0 %v1369
      %4733 = vmatprep.subr.mxu0 0.0
      %4734 = vmatpush1.msra.mxu0 %v1370
      %4735 = vmatprep.subr.mxu0 0.0
      %4736 = vmatpush1.msra.mxu0 %v1371
      %4737 = vmatprep.subr.mxu0 0.0
      %4738 = vmatpush1.msra.mxu0 %v1372
      %4739 = vmatprep.subr.mxu0 0.0
      %4740 = vmatpush1.msra.mxu0 %v1373
      %4741 = vmatprep.subr.mxu0 0.0
      %4742 = vmatpush1.msra.mxu0 %v1374
      %4743 = vmatprep.subr.mxu0 0.0
      %4744 = vmatpush1.msra.mxu0 %v1375
      %4745 = vmatprep.subr.mxu0 0.0
      %4746 = vmatpush1.msra.mxu0 %v1376
      %4747 = vmatprep.subr.mxu0 0.0
      %4748 = vmatpush1.msra.mxu0 %v1377
      %4749 = vmatprep.subr.mxu0 0.0
      %4750 = vmatpush1.msra.mxu0 %v1378
      %4751 = vmatprep.subr.mxu0 0.0
      %4752 = vmatpush1.msra.mxu0 %v1379
      %4753 = vmatprep.subr.mxu0 0.0
      %4754 = vmatpush1.msra.mxu0 %v1380
      %4755 = vmatprep.subr.mxu0 0.0
      %4756 = vmatpush1.msra.mxu0 %v1381
      %4757 = vmatprep.subr.mxu0 0.0
      %4758 = vmatpush1.msra.mxu0 %v1382
      %4759 = vmatprep.subr.mxu0 0.0
      %4760 = vmatpush1.msra.mxu0 %v1383
      %4761 = vmatprep.subr.mxu0 0.0
      %4762 = vmatpush1.msra.mxu0 %v1384
      %4763 = vmatprep.subr.mxu0 0.0
      %4764 = vmatpush1.msra.mxu0 %v1385
      %4765 = vmatprep.subr.mxu0 0.0
      %4766 = vmatpush1.msra.mxu0 %v1386
      %4767 = vmatprep.subr.mxu0 0.0
      %4768 = vmatpush1.msra.mxu0 %v1387
      %4769 = vmatprep.subr.mxu0 0.0
      %4770 = vmatpush1.msra.mxu0 %v1388
      %4771 = vmatprep.subr.mxu0 0.0
      %4772 = vmatpush1.msra.mxu0 %v1389
      %4773 = vmatprep.subr.mxu0 0.0
      %4774 = vmatpush1.msra.mxu0 %v1390
      %4775 = vmatprep.subr.mxu0 0.0
      %4776 = vmatpush1.msra.mxu0 %v1391
      %4777 = vmatprep.subr.mxu0 0.0
      %4778 = vmatpush1.msra.mxu0 %v1392
      %4779 = vmatprep.subr.mxu0 0.0
      %4780 = vmatpush1.msra.mxu0 %v1393
      %4781 = vmatprep.subr.mxu0 0.0
      %4782 = vmatpush1.msra.mxu0 %v1394
      %4783 = vmatprep.subr.mxu0 0.0
      %4784 = vmatpush1.msra.mxu0 %v1395
      %4785 = vmatprep.subr.mxu0 0.0
      %4786 = vmatpush1.msra.mxu0 %v1396
      %4787 = vmatprep.subr.mxu0 0.0
      %4788 = vmatpush1.msra.mxu0 %v1397
      %4789 = vmatprep.subr.mxu0 0.0
      %4790 = vmatpush1.msra.mxu0 %v1398
      %4791 = vmatprep.subr.mxu0 0.0
      %4792 = vmatpush1.msra.mxu0 %v1399
      %4793 = vmatprep.mubr.f32.mxu0 %v2193
      %4794 = vmatmul.mubr.f32.gmra.mrb[0].mxu0 %v2191
      %v4795 = vpop.f32.mrb[0].mxu0
      %v4796 = vadd.f32 %v4726, %v4795
      %v4797 = vpop.f32.mrb[0].mxu0
      %4798 = vdwg.mxu0
      %4799 = vmatprep.subr.mxu0 0.0
      %4800 = vmatpush1.msra.mxu0 %v1400
      %4801 = vmatprep.subr.mxu0 0.0
      %4802 = vmatpush1.msra.mxu0 %v1401
      %4803 = vmatprep.subr.mxu0 0.0
      %4804 = vmatpush1.msra.mxu0 %v1402
      %4805 = vmatprep.subr.mxu0 0.0
      %4806 = vmatpush1.msra.mxu0 %v1403
      %4807 = vmatprep.subr.mxu0 0.0
      %4808 = vmatpush1.msra.mxu0 %v1404
      %4809 = vmatprep.subr.mxu0 0.0
      %4810 = vmatpush1.msra.mxu0 %v1405
      %4811 = vmatprep.subr.mxu0 0.0
      %4812 = vmatpush1.msra.mxu0 %v1406
      %4813 = vmatprep.subr.mxu0 0.0
      %4814 = vmatpush1.msra.mxu0 %v1407
      %4815 = vmatprep.subr.mxu0 0.0
      %4816 = vmatpush1.msra.mxu0 %v1408
      %4817 = vmatprep.subr.mxu0 0.0
      %4818 = vmatpush1.msra.mxu0 %v1409
      %4819 = vmatprep.subr.mxu0 0.0
      %4820 = vmatpush1.msra.mxu0 %v1410
      %4821 = vmatprep.subr.mxu0 0.0
      %4822 = vmatpush1.msra.mxu0 %v1411
      %4823 = vmatprep.subr.mxu0 0.0
      %4824 = vmatpush1.msra.mxu0 %v1412
      %4825 = vmatprep.subr.mxu0 0.0
      %4826 = vmatpush1.msra.mxu0 %v1413
      %4827 = vmatprep.subr.mxu0 0.0
      %4828 = vmatpush1.msra.mxu0 %v1414
      %4829 = vmatprep.subr.mxu0 0.0
      %4830 = vmatpush1.msra.mxu0 %v1415
      %4831 = vmatprep.subr.mxu0 0.0
      %4832 = vmatpush1.msra.mxu0 %v1416
      %4833 = vmatprep.subr.mxu0 0.0
      %4834 = vmatpush1.msra.mxu0 %v1417
      %4835 = vmatprep.subr.mxu0 0.0
      %4836 = vmatpush1.msra.mxu0 %v1418
      %4837 = vmatprep.subr.mxu0 0.0
      %4838 = vmatpush1.msra.mxu0 %v1419
      %4839 = vmatprep.subr.mxu0 0.0
      %4840 = vmatpush1.msra.mxu0 %v1420
      %4841 = vmatprep.subr.mxu0 0.0
      %4842 = vmatpush1.msra.mxu0 %v1421
      %4843 = vmatprep.subr.mxu0 0.0
      %4844 = vmatpush1.msra.mxu0 %v1422
      %4845 = vmatprep.subr.mxu0 0.0
      %4846 = vmatpush1.msra.mxu0 %v1423
      %4847 = vmatprep.subr.mxu0 0.0
      %4848 = vmatpush1.msra.mxu0 %v1424
      %4849 = vmatprep.subr.mxu0 0.0
      %4850 = vmatpush1.msra.mxu0 %v1425
      %4851 = vmatprep.subr.mxu0 0.0
      %4852 = vmatpush1.msra.mxu0 %v1426
      %4853 = vmatprep.subr.mxu0 0.0
      %4854 = vmatpush1.msra.mxu0 %v1427
      %4855 = vmatprep.subr.mxu0 0.0
      %4856 = vmatpush1.msra.mxu0 %v1428
      %4857 = vmatprep.subr.mxu0 0.0
      %4858 = vmatpush1.msra.mxu0 %v1429
      %4859 = vmatprep.subr.mxu0 0.0
      %4860 = vmatpush1.msra.mxu0 %v1430
      %4861 = vmatprep.subr.mxu0 0.0
      %4862 = vmatpush1.msra.mxu0 %v1431
      %4863 = vmatprep.mubr.f32.mxu0 %v2209
      %4864 = vmatmul.mubr.f32.gmra.mrb[0].mxu0 %v2201
      %v4865 = vpop.f32.mrb[0].mxu0
      %v4866 = vadd.f32 %v4796, %v4865
      %v4867 = vpop.f32.mrb[0].mxu0
      %4868 = vdwg.mxu0
      %4869 = vmatprep.subr.mxu0 0.0
      %4870 = vmatpush1.msra.mxu0 %v1432
      %4871 = vmatprep.subr.mxu0 0.0
      %4872 = vmatpush1.msra.mxu0 %v1433
      %4873 = vmatprep.subr.mxu0 0.0
      %4874 = vmatpush1.msra.mxu0 %v1434
      %4875 = vmatprep.subr.mxu0 0.0
      %4876 = vmatpush1.msra.mxu0 %v1435
      %4877 = vmatprep.subr.mxu0 0.0
      %4878 = vmatpush1.msra.mxu0 %v1436
      %4879 = vmatprep.subr.mxu0 0.0
      %4880 = vmatpush1.msra.mxu0 %v1437
      %4881 = vmatprep.subr.mxu0 0.0
      %4882 = vmatpush1.msra.mxu0 %v1438
      %4883 = vmatprep.subr.mxu0 0.0
      %4884 = vmatpush1.msra.mxu0 %v1439
      %4885 = vmatprep.subr.mxu0 0.0
      %4886 = vmatpush1.msra.mxu0 %v1440
      %4887 = vmatprep.subr.mxu0 0.0
      %4888 = vmatpush1.msra.mxu0 %v1441
      %4889 = vmatprep.subr.mxu0 0.0
      %4890 = vmatpush1.msra.mxu0 %v1442
      %4891 = vmatprep.subr.mxu0 0.0
      %4892 = vmatpush1.msra.mxu0 %v1443
      %4893 = vmatprep.subr.mxu0 0.0
      %4894 = vmatpush1.msra.mxu0 %v1444
      %4895 = vmatprep.subr.mxu0 0.0
      %4896 = vmatpush1.msra.mxu0 %v1445
      %4897 = vmatprep.subr.mxu0 0.0
      %4898 = vmatpush1.msra.mxu0 %v1446
      %4899 = vmatprep.subr.mxu0 0.0
      %4900 = vmatpush1.msra.mxu0 %v1447
      %4901 = vmatprep.subr.mxu0 0.0
      %4902 = vmatpush1.msra.mxu0 %v1448
      %4903 = vmatprep.subr.mxu0 0.0
      %4904 = vmatpush1.msra.mxu0 %v1449
      %4905 = vmatprep.subr.mxu0 0.0
      %4906 = vmatpush1.msra.mxu0 %v1450
      %4907 = vmatprep.subr.mxu0 0.0
      %4908 = vmatpush1.msra.mxu0 %v1451
      %4909 = vmatprep.subr.mxu0 0.0
      %4910 = vmatpush1.msra.mxu0 %v1452
      %4911 = vmatprep.subr.mxu0 0.0
      %4912 = vmatpush1.msra.mxu0 %v1453
      %4913 = vmatprep.subr.mxu0 0.0
      %4914 = vmatpush1.msra.mxu0 %v1454
      %4915 = vmatprep.subr.mxu0 0.0
      %4916 = vmatpush1.msra.mxu0 %v1455
      %4917 = vmatprep.subr.mxu0 0.0
      %4918 = vmatpush1.msra.mxu0 %v1456
      %4919 = vmatprep.subr.mxu0 0.0
      %4920 = vmatpush1.msra.mxu0 %v1457
      %4921 = vmatprep.subr.mxu0 0.0
      %4922 = vmatpush1.msra.mxu0 %v1458
      %4923 = vmatprep.subr.mxu0 0.0
      %4924 = vmatpush1.msra.mxu0 %v1459
      %4925 = vmatprep.subr.mxu0 0.0
      %4926 = vmatpush1.msra.mxu0 %v1460
      %4927 = vmatprep.subr.mxu0 0.0
      %4928 = vmatpush1.msra.mxu0 %v1461
      %4929 = vmatprep.subr.mxu0 0.0
      %4930 = vmatpush1.msra.mxu0 %v1462
      %4931 = vmatprep.subr.mxu0 0.0
      %4932 = vmatpush1.msra.mxu0 %v1463
      %4933 = vmatprep.mubr.f32.mxu0 %v2210
      %4934 = vmatmul.mubr.f32.gmra.mrb[0].mxu0 %v2208
      %v4935 = vpop.f32.mrb[0].mxu0
      %v4936 = vadd.f32 %v4866, %v4935
      %v4937 = vpop.f32.mrb[0].mxu0
      %4938 = vdwg.mxu0
      %4939 = vmatprep.subr.mxu0 0.0
      %4940 = vmatpush1.msra.mxu0 %v1464
      %4941 = vmatprep.subr.mxu0 0.0
      %4942 = vmatpush1.msra.mxu0 %v1465
      %4943 = vmatprep.subr.mxu0 0.0
      %4944 = vmatpush1.msra.mxu0 %v1466
      %4945 = vmatprep.subr.mxu0 0.0
      %4946 = vmatpush1.msra.mxu0 %v1467
      %4947 = vmatprep.subr.mxu0 0.0
      %4948 = vmatpush1.msra.mxu0 %v1468
      %4949 = vmatprep.subr.mxu0 0.0
      %4950 = vmatpush1.msra.mxu0 %v1469
      %4951 = vmatprep.subr.mxu0 0.0
      %4952 = vmatpush1.msra.mxu0 %v1470
      %4953 = vmatprep.subr.mxu0 0.0
      %4954 = vmatpush1.msra.mxu0 %v1471
      %4955 = vmatprep.subr.mxu0 0.0
      %4956 = vmatpush1.msra.mxu0 %v1472
      %4957 = vmatprep.subr.mxu0 0.0
      %4958 = vmatpush1.msra.mxu0 %v1473
      %4959 = vmatprep.subr.mxu0 0.0
      %4960 = vmatpush1.msra.mxu0 %v1474
      %4961 = vmatprep.subr.mxu0 0.0
      %4962 = vmatpush1.msra.mxu0 %v1475
      %4963 = vmatprep.subr.mxu0 0.0
      %4964 = vmatpush1.msra.mxu0 %v1476
      %4965 = vmatprep.subr.mxu0 0.0
      %4966 = vmatpush1.msra.mxu0 %v1477
      %4967 = vmatprep.subr.mxu0 0.0
      %4968 = vmatpush1.msra.mxu0 %v1478
      %4969 = vmatprep.subr.mxu0 0.0
      %4970 = vmatpush1.msra.mxu0 %v1479
      %4971 = vmatprep.subr.mxu0 0.0
      %4972 = vmatpush1.msra.mxu0 %v1480
      %4973 = vmatprep.subr.mxu0 0.0
      %4974 = vmatpush1.msra.mxu0 %v1481
      %4975 = vmatprep.subr.mxu0 0.0
      %4976 = vmatpush1.msra.mxu0 %v1482
      %4977 = vmatprep.subr.mxu0 0.0
      %4978 = vmatpush1.msra.mxu0 %v1483
      %4979 = vmatprep.subr.mxu0 0.0
      %4980 = vmatpush1.msra.mxu0 %v1484
      %4981 = vmatprep.subr.mxu0 0.0
      %4982 = vmatpush1.msra.mxu0 %v1485
      %4983 = vmatprep.subr.mxu0 0.0
      %4984 = vmatpush1.msra.mxu0 %v1486
      %4985 = vmatprep.subr.mxu0 0.0
      %4986 = vmatpush1.msra.mxu0 %v1487
      %4987 = vmatprep.subr.mxu0 0.0
      %4988 = vmatpush1.msra.mxu0 %v1488
      %4989 = vmatprep.subr.mxu0 0.0
      %4990 = vmatpush1.msra.mxu0 %v1489
      %4991 = vmatprep.subr.mxu0 0.0
      %4992 = vmatpush1.msra.mxu0 %v1490
      %4993 = vmatprep.subr.mxu0 0.0
      %4994 = vmatpush1.msra.mxu0 %v1491
      %4995 = vmatprep.subr.mxu0 0.0
      %4996 = vmatpush1.msra.mxu0 %v1492
      %4997 = vmatprep.subr.mxu0 0.0
      %4998 = vmatpush1.msra.mxu0 %v1493
      %4999 = vmatprep.subr.mxu0 0.0
      %5000 = vmatpush1.msra.mxu0 %v1494
      %5001 = vmatprep.subr.mxu0 0.0
      %5002 = vmatpush1.msra.mxu0 %v1495
      %5003 = vmatprep.mubr.f32.mxu0 %v2226
      %5004 = vmatmul.mubr.f32.gmra.mrb[0].mxu0 %v2218
      %v5005 = vpop.f32.mrb[0].mxu0
      %v5006 = vadd.f32 %v4936, %v5005
      %v5007 = vpop.f32.mrb[0].mxu0
      %5008 = vdwg.mxu0
      %5009 = vmatprep.subr.mxu0 0.0
      %5010 = vmatpush1.msra.mxu0 %v1496
      %5011 = vmatprep.subr.mxu0 0.0
      %5012 = vmatpush1.msra.mxu0 %v1497
      %5013 = vmatprep.subr.mxu0 0.0
      %5014 = vmatpush1.msra.mxu0 %v1498
      %5015 = vmatprep.subr.mxu0 0.0
      %5016 = vmatpush1.msra.mxu0 %v1499
      %5017 = vmatprep.subr.mxu0 0.0
      %5018 = vmatpush1.msra.mxu0 %v1500
      %5019 = vmatprep.subr.mxu0 0.0
      %5020 = vmatpush1.msra.mxu0 %v1501
      %5021 = vmatprep.subr.mxu0 0.0
      %5022 = vmatpush1.msra.mxu0 %v1502
      %5023 = vmatprep.subr.mxu0 0.0
      %5024 = vmatpush1.msra.mxu0 %v1503
      %5025 = vmatprep.subr.mxu0 0.0
      %5026 = vmatpush1.msra.mxu0 %v1504
      %5027 = vmatprep.subr.mxu0 0.0
      %5028 = vmatpush1.msra.mxu0 %v1505
      %5029 = vmatprep.subr.mxu0 0.0
      %5030 = vmatpush1.msra.mxu0 %v1506
      %5031 = vmatprep.subr.mxu0 0.0
      %5032 = vmatpush1.msra.mxu0 %v1507
      %5033 = vmatprep.subr.mxu0 0.0
      %5034 = vmatpush1.msra.mxu0 %v1508
      %5035 = vmatprep.subr.mxu0 0.0
      %5036 = vmatpush1.msra.mxu0 %v1509
      %5037 = vmatprep.subr.mxu0 0.0
      %5038 = vmatpush1.msra.mxu0 %v1510
      %5039 = vmatprep.subr.mxu0 0.0
      %5040 = vmatpush1.msra.mxu0 %v1511
      %5041 = vmatprep.subr.mxu0 0.0
      %5042 = vmatpush1.msra.mxu0 %v1512
      %5043 = vmatprep.subr.mxu0 0.0
      %5044 = vmatpush1.msra.mxu0 %v1513
      %5045 = vmatprep.subr.mxu0 0.0
      %5046 = vmatpush1.msra.mxu0 %v1514
      %5047 = vmatprep.subr.mxu0 0.0
      %5048 = vmatpush1.msra.mxu0 %v1515
      %5049 = vmatprep.subr.mxu0 0.0
      %5050 = vmatpush1.msra.mxu0 %v1516
      %5051 = vmatprep.subr.mxu0 0.0
      %5052 = vmatpush1.msra.mxu0 %v1517
      %5053 = vmatprep.subr.mxu0 0.0
      %5054 = vmatpush1.msra.mxu0 %v1518
      %5055 = vmatprep.subr.mxu0 0.0
      %5056 = vmatpush1.msra.mxu0 %v1519
      %5057 = vmatprep.subr.mxu0 0.0
      %5058 = vmatpush1.msra.mxu0 %v1520
      %5059 = vmatprep.subr.mxu0 0.0
      %5060 = vmatpush1.msra.mxu0 %v1521
      %5061 = vmatprep.subr.mxu0 0.0
      %5062 = vmatpush1.msra.mxu0 %v1522
      %5063 = vmatprep.subr.mxu0 0.0
      %5064 = vmatpush1.msra.mxu0 %v1523
      %5065 = vmatprep.subr.mxu0 0.0
      %5066 = vmatpush1.msra.mxu0 %v1524
      %5067 = vmatprep.subr.mxu0 0.0
      %5068 = vmatpush1.msra.mxu0 %v1525
      %5069 = vmatprep.subr.mxu0 0.0
      %5070 = vmatpush1.msra.mxu0 %v1526
      %5071 = vmatprep.subr.mxu0 0.0
      %5072 = vmatpush1.msra.mxu0 %v1527
      %5073 = vmatprep.mubr.f32.mxu0 %v2227
      %5074 = vmatmul.mubr.f32.gmra.mrb[0].mxu0 %v2225
      %v5075 = vpop.f32.mrb[0].mxu0
      %v5076 = vadd.f32 %v5006, %v5075
      %v5077 = vpop.f32.mrb[0].mxu0
      %5078 = vdwg.mxu0
      %5079 = vmatprep.subr.mxu0 0.0
      %5080 = vmatpush1.msra.mxu0 %v1528
      %5081 = vmatprep.subr.mxu0 0.0
      %5082 = vmatpush1.msra.mxu0 %v1529
      %5083 = vmatprep.subr.mxu0 0.0
      %5084 = vmatpush1.msra.mxu0 %v1530
      %5085 = vmatprep.subr.mxu0 0.0
      %5086 = vmatpush1.msra.mxu0 %v1531
      %5087 = vmatprep.subr.mxu0 0.0
      %5088 = vmatpush1.msra.mxu0 %v1532
      %5089 = vmatprep.subr.mxu0 0.0
      %5090 = vmatpush1.msra.mxu0 %v1533
      %5091 = vmatprep.subr.mxu0 0.0
      %5092 = vmatpush1.msra.mxu0 %v1534
      %5093 = vmatprep.subr.mxu0 0.0
      %5094 = vmatpush1.msra.mxu0 %v1535
      %5095 = vmatprep.subr.mxu0 0.0
      %5096 = vmatpush1.msra.mxu0 %v1536
      %5097 = vmatprep.subr.mxu0 0.0
      %5098 = vmatpush1.msra.mxu0 %v1537
      %5099 = vmatprep.subr.mxu0 0.0
      %5100 = vmatpush1.msra.mxu0 %v1538
      %5101 = vmatprep.subr.mxu0 0.0
      %5102 = vmatpush1.msra.mxu0 %v1539
      %5103 = vmatprep.subr.mxu0 0.0
      %5104 = vmatpush1.msra.mxu0 %v1540
      %5105 = vmatprep.subr.mxu0 0.0
      %5106 = vmatpush1.msra.mxu0 %v1541
      %5107 = vmatprep.subr.mxu0 0.0
      %5108 = vmatpush1.msra.mxu0 %v1542
      %5109 = vmatprep.subr.mxu0 0.0
      %5110 = vmatpush1.msra.mxu0 %v1543
      %5111 = vmatprep.subr.mxu0 0.0
      %5112 = vmatpush1.msra.mxu0 %v1544
      %5113 = vmatprep.subr.mxu0 0.0
      %5114 = vmatpush1.msra.mxu0 %v1545
      %5115 = vmatprep.subr.mxu0 0.0
      %5116 = vmatpush1.msra.mxu0 %v1546
      %5117 = vmatprep.subr.mxu0 0.0
      %5118 = vmatpush1.msra.mxu0 %v1547
      %5119 = vmatprep.subr.mxu0 0.0
      %5120 = vmatpush1.msra.mxu0 %v1548
      %5121 = vmatprep.subr.mxu0 0.0
      %5122 = vmatpush1.msra.mxu0 %v1549
      %5123 = vmatprep.subr.mxu0 0.0
      %5124 = vmatpush1.msra.mxu0 %v1550
      %5125 = vmatprep.subr.mxu0 0.0
      %5126 = vmatpush1.msra.mxu0 %v1551
      %5127 = vmatprep.subr.mxu0 0.0
      %5128 = vmatpush1.msra.mxu0 %v1552
      %5129 = vmatprep.subr.mxu0 0.0
      %5130 = vmatpush1.msra.mxu0 %v1553
      %5131 = vmatprep.subr.mxu0 0.0
      %5132 = vmatpush1.msra.mxu0 %v1554
      %5133 = vmatprep.subr.mxu0 0.0
      %5134 = vmatpush1.msra.mxu0 %v1555
      %5135 = vmatprep.subr.mxu0 0.0
      %5136 = vmatpush1.msra.mxu0 %v1556
      %5137 = vmatprep.subr.mxu0 0.0
      %5138 = vmatpush1.msra.mxu0 %v1557
      %5139 = vmatprep.subr.mxu0 0.0
      %5140 = vmatpush1.msra.mxu0 %v1558
      %5141 = vmatprep.subr.mxu0 0.0
      %5142 = vmatpush1.msra.mxu0 %v1559
      %5143 = vmatprep.mubr.f32.mxu0 %v2243
      %5144 = vmatmul.mubr.f32.gmra.mrb[0].mxu0 %v2235
      %v5145 = vpop.f32.mrb[0].mxu0
      %v5146 = vadd.f32 %v5076, %v5145
      %v5147 = vpop.f32.mrb[0].mxu0
      %5148 = vdwg.mxu0
      %5149 = vmatprep.subr.mxu0 0.0
      %5150 = vmatpush1.msra.mxu0 %v1560
      %5151 = vmatprep.subr.mxu0 0.0
      %5152 = vmatpush1.msra.mxu0 %v1561
      %5153 = vmatprep.subr.mxu0 0.0
      %5154 = vmatpush1.msra.mxu0 %v1562
      %5155 = vmatprep.subr.mxu0 0.0
      %5156 = vmatpush1.msra.mxu0 %v1563
      %5157 = vmatprep.subr.mxu0 0.0
      %5158 = vmatpush1.msra.mxu0 %v1564
      %5159 = vmatprep.subr.mxu0 0.0
      %5160 = vmatpush1.msra.mxu0 %v1565
      %5161 = vmatprep.subr.mxu0 0.0
      %5162 = vmatpush1.msra.mxu0 %v1566
      %5163 = vmatprep.subr.mxu0 0.0
      %5164 = vmatpush1.msra.mxu0 %v1567
      %5165 = vmatprep.subr.mxu0 0.0
      %5166 = vmatpush1.msra.mxu0 %v1568
      %5167 = vmatprep.subr.mxu0 0.0
      %5168 = vmatpush1.msra.mxu0 %v1569
      %5169 = vmatprep.subr.mxu0 0.0
      %5170 = vmatpush1.msra.mxu0 %v1570
      %5171 = vmatprep.subr.mxu0 0.0
      %5172 = vmatpush1.msra.mxu0 %v1571
      %5173 = vmatprep.subr.mxu0 0.0
      %5174 = vmatpush1.msra.mxu0 %v1572
      %5175 = vmatprep.subr.mxu0 0.0
      %5176 = vmatpush1.msra.mxu0 %v1573
      %5177 = vmatprep.subr.mxu0 0.0
      %5178 = vmatpush1.msra.mxu0 %v1574
      %5179 = vmatprep.subr.mxu0 0.0
      %5180 = vmatpush1.msra.mxu0 %v1575
      %5181 = vmatprep.subr.mxu0 0.0
      %5182 = vmatpush1.msra.mxu0 %v1576
      %5183 = vmatprep.subr.mxu0 0.0
      %5184 = vmatpush1.msra.mxu0 %v1577
      %5185 = vmatprep.subr.mxu0 0.0
      %5186 = vmatpush1.msra.mxu0 %v1578
      %5187 = vmatprep.subr.mxu0 0.0
      %5188 = vmatpush1.msra.mxu0 %v1579
      %5189 = vmatprep.subr.mxu0 0.0
      %5190 = vmatpush1.msra.mxu0 %v1580
      %5191 = vmatprep.subr.mxu0 0.0
      %5192 = vmatpush1.msra.mxu0 %v1581
      %5193 = vmatprep.subr.mxu0 0.0
      %5194 = vmatpush1.msra.mxu0 %v1582
      %5195 = vmatprep.subr.mxu0 0.0
      %5196 = vmatpush1.msra.mxu0 %v1583
      %5197 = vmatprep.subr.mxu0 0.0
      %5198 = vmatpush1.msra.mxu0 %v1584
      %5199 = vmatprep.subr.mxu0 0.0
      %5200 = vmatpush1.msra.mxu0 %v1585
      %5201 = vmatprep.subr.mxu0 0.0
      %5202 = vmatpush1.msra.mxu0 %v1586
      %5203 = vmatprep.subr.mxu0 0.0
      %5204 = vmatpush1.msra.mxu0 %v1587
      %5205 = vmatprep.subr.mxu0 0.0
      %5206 = vmatpush1.msra.mxu0 %v1588
      %5207 = vmatprep.subr.mxu0 0.0
      %5208 = vmatpush1.msra.mxu0 %v1589
      %5209 = vmatprep.subr.mxu0 0.0
      %5210 = vmatpush1.msra.mxu0 %v1590
      %5211 = vmatprep.subr.mxu0 0.0
      %5212 = vmatpush1.msra.mxu0 %v1591
      %5213 = vmatprep.mubr.f32.mxu0 %v2244
      %5214 = vmatmul.mubr.f32.gmra.mrb[0].mxu0 %v2242
      %v5215 = vpop.f32.mrb[0].mxu0
      %v5216 = vadd.f32 %v5146, %v5215
      %v5217 = vpop.f32.mrb[0].mxu0
      %5218 = vdwg.mxu0
      %5219 = vmatprep.subr.mxu0 0.0
      %5220 = vmatpush1.msra.mxu0 %v1592
      %5221 = vmatprep.subr.mxu0 0.0
      %5222 = vmatpush1.msra.mxu0 %v1593
      %5223 = vmatprep.subr.mxu0 0.0
      %5224 = vmatpush1.msra.mxu0 %v1594
      %5225 = vmatprep.subr.mxu0 0.0
      %5226 = vmatpush1.msra.mxu0 %v1595
      %5227 = vmatprep.subr.mxu0 0.0
      %5228 = vmatpush1.msra.mxu0 %v1596
      %5229 = vmatprep.subr.mxu0 0.0
      %5230 = vmatpush1.msra.mxu0 %v1597
      %5231 = vmatprep.subr.mxu0 0.0
      %5232 = vmatpush1.msra.mxu0 %v1598
      %5233 = vmatprep.subr.mxu0 0.0
      %5234 = vmatpush1.msra.mxu0 %v1599
      %5235 = vmatprep.subr.mxu0 0.0
      %5236 = vmatpush1.msra.mxu0 %v1600
      %5237 = vmatprep.subr.mxu0 0.0
      %5238 = vmatpush1.msra.mxu0 %v1601
      %5239 = vmatprep.subr.mxu0 0.0
      %5240 = vmatpush1.msra.mxu0 %v1602
      %5241 = vmatprep.subr.mxu0 0.0
      %5242 = vmatpush1.msra.mxu0 %v1603
      %5243 = vmatprep.subr.mxu0 0.0
      %5244 = vmatpush1.msra.mxu0 %v1604
      %5245 = vmatprep.subr.mxu0 0.0
      %5246 = vmatpush1.msra.mxu0 %v1605
      %5247 = vmatprep.subr.mxu0 0.0
      %5248 = vmatpush1.msra.mxu0 %v1606
      %5249 = vmatprep.subr.mxu0 0.0
      %5250 = vmatpush1.msra.mxu0 %v1607
      %5251 = vmatprep.subr.mxu0 0.0
      %5252 = vmatpush1.msra.mxu0 %v1608
      %5253 = vmatprep.subr.mxu0 0.0
      %5254 = vmatpush1.msra.mxu0 %v1609
      %5255 = vmatprep.subr.mxu0 0.0
      %5256 = vmatpush1.msra.mxu0 %v1610
      %5257 = vmatprep.subr.mxu0 0.0
      %5258 = vmatpush1.msra.mxu0 %v1611
      %5259 = vmatprep.subr.mxu0 0.0
      %5260 = vmatpush1.msra.mxu0 %v1612
      %5261 = vmatprep.subr.mxu0 0.0
      %5262 = vmatpush1.msra.mxu0 %v1613
      %5263 = vmatprep.subr.mxu0 0.0
      %5264 = vmatpush1.msra.mxu0 %v1614
      %5265 = vmatprep.subr.mxu0 0.0
      %5266 = vmatpush1.msra.mxu0 %v1615
      %5267 = vmatprep.subr.mxu0 0.0
      %5268 = vmatpush1.msra.mxu0 %v1616
      %5269 = vmatprep.subr.mxu0 0.0
      %5270 = vmatpush1.msra.mxu0 %v1617
      %5271 = vmatprep.subr.mxu0 0.0
      %5272 = vmatpush1.msra.mxu0 %v1618
      %5273 = vmatprep.subr.mxu0 0.0
      %5274 = vmatpush1.msra.mxu0 %v1619
      %5275 = vmatprep.subr.mxu0 0.0
      %5276 = vmatpush1.msra.mxu0 %v1620
      %5277 = vmatprep.subr.mxu0 0.0
      %5278 = vmatpush1.msra.mxu0 %v1621
      %5279 = vmatprep.subr.mxu0 0.0
      %5280 = vmatpush1.msra.mxu0 %v1622
      %5281 = vmatprep.subr.mxu0 0.0
      %5282 = vmatpush1.msra.mxu0 %v1623
      %5283 = vmatprep.mubr.f32.mxu0 %v2260
      %5284 = vmatmul.mubr.f32.gmra.mrb[0].mxu0 %v2252
      %v5285 = vpop.f32.mrb[0].mxu0
      %v5286 = vadd.f32 %v5216, %v5285
      %v5287 = vpop.f32.mrb[0].mxu0
      %5288 = vdwg.mxu0
      %5289 = vmatprep.subr.mxu0 0.0
      %5290 = vmatpush1.msra.mxu0 %v1624
      %5291 = vmatprep.subr.mxu0 0.0
      %5292 = vmatpush1.msra.mxu0 %v1625
      %5293 = vmatprep.subr.mxu0 0.0
      %5294 = vmatpush1.msra.mxu0 %v1626
      %5295 = vmatprep.subr.mxu0 0.0
      %5296 = vmatpush1.msra.mxu0 %v1627
      %5297 = vmatprep.subr.mxu0 0.0
      %5298 = vmatpush1.msra.mxu0 %v1628
      %5299 = vmatprep.subr.mxu0 0.0
      %5300 = vmatpush1.msra.mxu0 %v1629
      %5301 = vmatprep.subr.mxu0 0.0
      %5302 = vmatpush1.msra.mxu0 %v1630
      %5303 = vmatprep.subr.mxu0 0.0
      %5304 = vmatpush1.msra.mxu0 %v1631
      %5305 = vmatprep.subr.mxu0 0.0
      %5306 = vmatpush1.msra.mxu0 %v1632
      %5307 = vmatprep.subr.mxu0 0.0
      %5308 = vmatpush1.msra.mxu0 %v1633
      %5309 = vmatprep.subr.mxu0 0.0
      %5310 = vmatpush1.msra.mxu0 %v1634
      %5311 = vmatprep.subr.mxu0 0.0
      %5312 = vmatpush1.msra.mxu0 %v1635
      %5313 = vmatprep.subr.mxu0 0.0
      %5314 = vmatpush1.msra.mxu0 %v1636
      %5315 = vmatprep.subr.mxu0 0.0
      %5316 = vmatpush1.msra.mxu0 %v1637
      %5317 = vmatprep.subr.mxu0 0.0
      %5318 = vmatpush1.msra.mxu0 %v1638
      %5319 = vmatprep.subr.mxu0 0.0
      %5320 = vmatpush1.msra.mxu0 %v1639
      %5321 = vmatprep.subr.mxu0 0.0
      %5322 = vmatpush1.msra.mxu0 %v1640
      %5323 = vmatprep.subr.mxu0 0.0
      %5324 = vmatpush1.msra.mxu0 %v1641
      %5325 = vmatprep.subr.mxu0 0.0
      %5326 = vmatpush1.msra.mxu0 %v1642
      %5327 = vmatprep.subr.mxu0 0.0
      %5328 = vmatpush1.msra.mxu0 %v1643
      %5329 = vmatprep.subr.mxu0 0.0
      %5330 = vmatpush1.msra.mxu0 %v1644
      %5331 = vmatprep.subr.mxu0 0.0
      %5332 = vmatpush1.msra.mxu0 %v1645
      %5333 = vmatprep.subr.mxu0 0.0
      %5334 = vmatpush1.msra.mxu0 %v1646
      %5335 = vmatprep.subr.mxu0 0.0
      %5336 = vmatpush1.msra.mxu0 %v1647
      %5337 = vmatprep.subr.mxu0 0.0
      %5338 = vmatpush1.msra.mxu0 %v1648
      %5339 = vmatprep.subr.mxu0 0.0
      %5340 = vmatpush1.msra.mxu0 %v1649
      %5341 = vmatprep.subr.mxu0 0.0
      %5342 = vmatpush1.msra.mxu0 %v1650
      %5343 = vmatprep.subr.mxu0 0.0
      %5344 = vmatpush1.msra.mxu0 %v1651
      %5345 = vmatprep.subr.mxu0 0.0
      %5346 = vmatpush1.msra.mxu0 %v1652
      %5347 = vmatprep.subr.mxu0 0.0
      %5348 = vmatpush1.msra.mxu0 %v1653
      %5349 = vmatprep.subr.mxu0 0.0
      %5350 = vmatpush1.msra.mxu0 %v1654
      %5351 = vmatprep.subr.mxu0 0.0
      %5352 = vmatpush1.msra.mxu0 %v1655
      %5353 = vmatprep.mubr.f32.mxu0 %v2261
      %5354 = vmatmul.mubr.f32.gmra.mrb[0].mxu0 %v2259
      %v5355 = vpop.f32.mrb[0].mxu0
      %v5356 = vadd.f32 %v5286, %v5355
      %v5357 = vpop.f32.mrb[0].mxu0
      %5358 = vdwg.mxu0
      %5359 = vmatprep.subr.mxu0 0.0
      %5360 = vmatpush1.msra.mxu0 %v1656
      %5361 = vmatprep.subr.mxu0 0.0
      %5362 = vmatpush1.msra.mxu0 %v1657
      %5363 = vmatprep.subr.mxu0 0.0
      %5364 = vmatpush1.msra.mxu0 %v1658
      %5365 = vmatprep.subr.mxu0 0.0
      %5366 = vmatpush1.msra.mxu0 %v1659
      %5367 = vmatprep.subr.mxu0 0.0
      %5368 = vmatpush1.msra.mxu0 %v1660
      %5369 = vmatprep.subr.mxu0 0.0
      %5370 = vmatpush1.msra.mxu0 %v1661
      %5371 = vmatprep.subr.mxu0 0.0
      %5372 = vmatpush1.msra.mxu0 %v1662
      %5373 = vmatprep.subr.mxu0 0.0
      %5374 = vmatpush1.msra.mxu0 %v1663
      %5375 = vmatprep.subr.mxu0 0.0
      %5376 = vmatpush1.msra.mxu0 %v1664
      %5377 = vmatprep.subr.mxu0 0.0
      %5378 = vmatpush1.msra.mxu0 %v1665
      %5379 = vmatprep.subr.mxu0 0.0
      %5380 = vmatpush1.msra.mxu0 %v1666
      %5381 = vmatprep.subr.mxu0 0.0
      %5382 = vmatpush1.msra.mxu0 %v1667
      %5383 = vmatprep.subr.mxu0 0.0
      %5384 = vmatpush1.msra.mxu0 %v1668
      %5385 = vmatprep.subr.mxu0 0.0
      %5386 = vmatpush1.msra.mxu0 %v1669
      %5387 = vmatprep.subr.mxu0 0.0
      %5388 = vmatpush1.msra.mxu0 %v1670
      %5389 = vmatprep.subr.mxu0 0.0
      %5390 = vmatpush1.msra.mxu0 %v1671
      %5391 = vmatprep.subr.mxu0 0.0
      %5392 = vmatpush1.msra.mxu0 %v1672
      %5393 = vmatprep.subr.mxu0 0.0
      %5394 = vmatpush1.msra.mxu0 %v1673
      %5395 = vmatprep.subr.mxu0 0.0
      %5396 = vmatpush1.msra.mxu0 %v1674
      %5397 = vmatprep.subr.mxu0 0.0
      %5398 = vmatpush1.msra.mxu0 %v1675
      %5399 = vmatprep.subr.mxu0 0.0
      %5400 = vmatpush1.msra.mxu0 %v1676
      %5401 = vmatprep.subr.mxu0 0.0
      %5402 = vmatpush1.msra.mxu0 %v1677
      %5403 = vmatprep.subr.mxu0 0.0
      %5404 = vmatpush1.msra.mxu0 %v1678
      %5405 = vmatprep.subr.mxu0 0.0
      %5406 = vmatpush1.msra.mxu0 %v1679
      %5407 = vmatprep.subr.mxu0 0.0
      %5408 = vmatpush1.msra.mxu0 %v1680
      %5409 = vmatprep.subr.mxu0 0.0
      %5410 = vmatpush1.msra.mxu0 %v1681
      %5411 = vmatprep.subr.mxu0 0.0
      %5412 = vmatpush1.msra.mxu0 %v1682
      %5413 = vmatprep.subr.mxu0 0.0
      %5414 = vmatpush1.msra.mxu0 %v1683
      %5415 = vmatprep.subr.mxu0 0.0
      %5416 = vmatpush1.msra.mxu0 %v1684
      %5417 = vmatprep.subr.mxu0 0.0
      %5418 = vmatpush1.msra.mxu0 %v1685
      %5419 = vmatprep.subr.mxu0 0.0
      %5420 = vmatpush1.msra.mxu0 %v1686
      %5421 = vmatprep.subr.mxu0 0.0
      %5422 = vmatpush1.msra.mxu0 %v1687
      %5423 = vmatprep.mubr.f32.mxu0 %v2277
      %5424 = vmatmul.mubr.f32.gmra.mrb[0].mxu0 %v2269
      %v5425 = vpop.f32.mrb[0].mxu0
      %v5426 = vadd.f32 %v5356, %v5425
      %v5427 = vpop.f32.mrb[0].mxu0
      %5428 = vdwg.mxu0
      %5429 = vmatprep.subr.mxu0 0.0
      %5430 = vmatpush1.msra.mxu0 %v1688
      %5431 = vmatprep.subr.mxu0 0.0
      %5432 = vmatpush1.msra.mxu0 %v1689
      %5433 = vmatprep.subr.mxu0 0.0
      %5434 = vmatpush1.msra.mxu0 %v1690
      %5435 = vmatprep.subr.mxu0 0.0
      %5436 = vmatpush1.msra.mxu0 %v1691
      %5437 = vmatprep.subr.mxu0 0.0
      %5438 = vmatpush1.msra.mxu0 %v1692
      %5439 = vmatprep.subr.mxu0 0.0
      %5440 = vmatpush1.msra.mxu0 %v1693
      %5441 = vmatprep.subr.mxu0 0.0
      %5442 = vmatpush1.msra.mxu0 %v1694
      %5443 = vmatprep.subr.mxu0 0.0
      %5444 = vmatpush1.msra.mxu0 %v1695
      %5445 = vmatprep.subr.mxu0 0.0
      %5446 = vmatpush1.msra.mxu0 %v1696
      %5447 = vmatprep.subr.mxu0 0.0
      %5448 = vmatpush1.msra.mxu0 %v1697
      %5449 = vmatprep.subr.mxu0 0.0
      %5450 = vmatpush1.msra.mxu0 %v1698
      %5451 = vmatprep.subr.mxu0 0.0
      %5452 = vmatpush1.msra.mxu0 %v1699
      %5453 = vmatprep.subr.mxu0 0.0
      %5454 = vmatpush1.msra.mxu0 %v1700
      %5455 = vmatprep.subr.mxu0 0.0
      %5456 = vmatpush1.msra.mxu0 %v1701
      %5457 = vmatprep.subr.mxu0 0.0
      %5458 = vmatpush1.msra.mxu0 %v1702
      %5459 = vmatprep.subr.mxu0 0.0
      %5460 = vmatpush1.msra.mxu0 %v1703
      %5461 = vmatprep.subr.mxu0 0.0
      %5462 = vmatpush1.msra.mxu0 %v1704
      %5463 = vmatprep.subr.mxu0 0.0
      %5464 = vmatpush1.msra.mxu0 %v1705
      %5465 = vmatprep.subr.mxu0 0.0
      %5466 = vmatpush1.msra.mxu0 %v1706
      %5467 = vmatprep.subr.mxu0 0.0
      %5468 = vmatpush1.msra.mxu0 %v1707
      %5469 = vmatprep.subr.mxu0 0.0
      %5470 = vmatpush1.msra.mxu0 %v1708
      %5471 = vmatprep.subr.mxu0 0.0
      %5472 = vmatpush1.msra.mxu0 %v1709
      %5473 = vmatprep.subr.mxu0 0.0
      %5474 = vmatpush1.msra.mxu0 %v1710
      %5475 = vmatprep.subr.mxu0 0.0
      %5476 = vmatpush1.msra.mxu0 %v1711
      %5477 = vmatprep.subr.mxu0 0.0
      %5478 = vmatpush1.msra.mxu0 %v1712
      %5479 = vmatprep.subr.mxu0 0.0
      %5480 = vmatpush1.msra.mxu0 %v1713
      %5481 = vmatprep.subr.mxu0 0.0
      %5482 = vmatpush1.msra.mxu0 %v1714
      %5483 = vmatprep.subr.mxu0 0.0
      %5484 = vmatpush1.msra.mxu0 %v1715
      %5485 = vmatprep.subr.mxu0 0.0
      %5486 = vmatpush1.msra.mxu0 %v1716
      %5487 = vmatprep.subr.mxu0 0.0
      %5488 = vmatpush1.msra.mxu0 %v1717
      %5489 = vmatprep.subr.mxu0 0.0
      %5490 = vmatpush1.msra.mxu0 %v1718
      %5491 = vmatprep.subr.mxu0 0.0
      %5492 = vmatpush1.msra.mxu0 %v1719
      %5493 = vmatprep.mubr.f32.mxu0 %v2278
      %5494 = vmatmul.mubr.f32.gmra.mrb[0].mxu0 %v2276
      %v5495 = vpop.f32.mrb[0].mxu0
      %v5496 = vadd.f32 %v5426, %v5495
      %v5497 = vpop.f32.mrb[0].mxu0
      %5498 = vdwg.mxu0
      %5499 = vmatprep.subr.mxu0 0.0
      %5500 = vmatpush1.msra.mxu0 %v1720
      %5501 = vmatprep.subr.mxu0 0.0
      %5502 = vmatpush1.msra.mxu0 %v1721
      %5503 = vmatprep.subr.mxu0 0.0
      %5504 = vmatpush1.msra.mxu0 %v1722
      %5505 = vmatprep.subr.mxu0 0.0
      %5506 = vmatpush1.msra.mxu0 %v1723
      %5507 = vmatprep.subr.mxu0 0.0
      %5508 = vmatpush1.msra.mxu0 %v1724
      %5509 = vmatprep.subr.mxu0 0.0
      %5510 = vmatpush1.msra.mxu0 %v1725
      %5511 = vmatprep.subr.mxu0 0.0
      %5512 = vmatpush1.msra.mxu0 %v1726
      %5513 = vmatprep.subr.mxu0 0.0
      %5514 = vmatpush1.msra.mxu0 %v1727
      %5515 = vmatprep.subr.mxu0 0.0
      %5516 = vmatpush1.msra.mxu0 %v1728
      %5517 = vmatprep.subr.mxu0 0.0
      %5518 = vmatpush1.msra.mxu0 %v1729
      %5519 = vmatprep.subr.mxu0 0.0
      %5520 = vmatpush1.msra.mxu0 %v1730
      %5521 = vmatprep.subr.mxu0 0.0
      %5522 = vmatpush1.msra.mxu0 %v1731
      %5523 = vmatprep.subr.mxu0 0.0
      %5524 = vmatpush1.msra.mxu0 %v1732
      %5525 = vmatprep.subr.mxu0 0.0
      %5526 = vmatpush1.msra.mxu0 %v1733
      %5527 = vmatprep.subr.mxu0 0.0
      %5528 = vmatpush1.msra.mxu0 %v1734
      %5529 = vmatprep.subr.mxu0 0.0
      %5530 = vmatpush1.msra.mxu0 %v1735
      %5531 = vmatprep.subr.mxu0 0.0
      %5532 = vmatpush1.msra.mxu0 %v1736
      %5533 = vmatprep.subr.mxu0 0.0
      %5534 = vmatpush1.msra.mxu0 %v1737
      %5535 = vmatprep.subr.mxu0 0.0
      %5536 = vmatpush1.msra.mxu0 %v1738
      %5537 = vmatprep.subr.mxu0 0.0
      %5538 = vmatpush1.msra.mxu0 %v1739
      %5539 = vmatprep.subr.mxu0 0.0
      %5540 = vmatpush1.msra.mxu0 %v1740
      %5541 = vmatprep.subr.mxu0 0.0
      %5542 = vmatpush1.msra.mxu0 %v1741
      %5543 = vmatprep.subr.mxu0 0.0
      %5544 = vmatpush1.msra.mxu0 %v1742
      %5545 = vmatprep.subr.mxu0 0.0
      %5546 = vmatpush1.msra.mxu0 %v1743
      %5547 = vmatprep.subr.mxu0 0.0
      %5548 = vmatpush1.msra.mxu0 %v1744
      %5549 = vmatprep.subr.mxu0 0.0
      %5550 = vmatpush1.msra.mxu0 %v1745
      %5551 = vmatprep.subr.mxu0 0.0
      %5552 = vmatpush1.msra.mxu0 %v1746
      %5553 = vmatprep.subr.mxu0 0.0
      %5554 = vmatpush1.msra.mxu0 %v1747
      %5555 = vmatprep.subr.mxu0 0.0
      %5556 = vmatpush1.msra.mxu0 %v1748
      %5557 = vmatprep.subr.mxu0 0.0
      %5558 = vmatpush1.msra.mxu0 %v1749
      %5559 = vmatprep.subr.mxu0 0.0
      %5560 = vmatpush1.msra.mxu0 %v1750
      %5561 = vmatprep.subr.mxu0 0.0
      %5562 = vmatpush1.msra.mxu0 %v1751
      %5563 = vmatprep.mubr.f32.mxu0 %v2294
      %5564 = vmatmul.mubr.f32.gmra.mrb[0].mxu0 %v2286
      %v5565 = vpop.f32.mrb[0].mxu0
      %v5566 = vadd.f32 %v5496, %v5565
      %v5567 = vpop.f32.mrb[0].mxu0
      %5568 = vdwg.mxu0
      %5569 = vmatprep.subr.mxu0 0.0
      %5570 = vmatpush1.msra.mxu0 %v1752
      %5571 = vmatprep.subr.mxu0 0.0
      %5572 = vmatpush1.msra.mxu0 %v1753
      %5573 = vmatprep.subr.mxu0 0.0
      %5574 = vmatpush1.msra.mxu0 %v1754
      %5575 = vmatprep.subr.mxu0 0.0
      %5576 = vmatpush1.msra.mxu0 %v1755
      %5577 = vmatprep.subr.mxu0 0.0
      %5578 = vmatpush1.msra.mxu0 %v1756
      %5579 = vmatprep.subr.mxu0 0.0
      %5580 = vmatpush1.msra.mxu0 %v1757
      %5581 = vmatprep.subr.mxu0 0.0
      %5582 = vmatpush1.msra.mxu0 %v1758
      %5583 = vmatprep.subr.mxu0 0.0
      %5584 = vmatpush1.msra.mxu0 %v1759
      %5585 = vmatprep.subr.mxu0 0.0
      %5586 = vmatpush1.msra.mxu0 %v1760
      %5587 = vmatprep.subr.mxu0 0.0
      %5588 = vmatpush1.msra.mxu0 %v1761
      %5589 = vmatprep.subr.mxu0 0.0
      %5590 = vmatpush1.msra.mxu0 %v1762
      %5591 = vmatprep.subr.mxu0 0.0
      %5592 = vmatpush1.msra.mxu0 %v1763
      %5593 = vmatprep.subr.mxu0 0.0
      %5594 = vmatpush1.msra.mxu0 %v1764
      %5595 = vmatprep.subr.mxu0 0.0
      %5596 = vmatpush1.msra.mxu0 %v1765
      %5597 = vmatprep.subr.mxu0 0.0
      %5598 = vmatpush1.msra.mxu0 %v1766
      %5599 = vmatprep.subr.mxu0 0.0
      %5600 = vmatpush1.msra.mxu0 %v1767
      %5601 = vmatprep.subr.mxu0 0.0
      %5602 = vmatpush1.msra.mxu0 %v1768
      %5603 = vmatprep.subr.mxu0 0.0
      %5604 = vmatpush1.msra.mxu0 %v1769
      %5605 = vmatprep.subr.mxu0 0.0
      %5606 = vmatpush1.msra.mxu0 %v1770
      %5607 = vmatprep.subr.mxu0 0.0
      %5608 = vmatpush1.msra.mxu0 %v1771
      %5609 = vmatprep.subr.mxu0 0.0
      %5610 = vmatpush1.msra.mxu0 %v1772
      %5611 = vmatprep.subr.mxu0 0.0
      %5612 = vmatpush1.msra.mxu0 %v1773
      %5613 = vmatprep.subr.mxu0 0.0
      %5614 = vmatpush1.msra.mxu0 %v1774
      %5615 = vmatprep.subr.mxu0 0.0
      %5616 = vmatpush1.msra.mxu0 %v1775
      %5617 = vmatprep.subr.mxu0 0.0
      %5618 = vmatpush1.msra.mxu0 %v1776
      %5619 = vmatprep.subr.mxu0 0.0
      %5620 = vmatpush1.msra.mxu0 %v1777
      %5621 = vmatprep.subr.mxu0 0.0
      %5622 = vmatpush1.msra.mxu0 %v1778
      %5623 = vmatprep.subr.mxu0 0.0
      %5624 = vmatpush1.msra.mxu0 %v1779
      %5625 = vmatprep.subr.mxu0 0.0
      %5626 = vmatpush1.msra.mxu0 %v1780
      %5627 = vmatprep.subr.mxu0 0.0
      %5628 = vmatpush1.msra.mxu0 %v1781
      %5629 = vmatprep.subr.mxu0 0.0
      %5630 = vmatpush1.msra.mxu0 %v1782
      %5631 = vmatprep.subr.mxu0 0.0
      %5632 = vmatpush1.msra.mxu0 %v1783
      %5633 = vmatprep.mubr.f32.mxu0 %v2295
      %5634 = vmatmul.mubr.f32.gmra.mrb[0].mxu0 %v2293
      %v5635 = vpop.f32.mrb[0].mxu0
      %v5636 = vadd.f32 %v5566, %v5635
      %v5637 = vpop.f32.mrb[0].mxu0
      %5638 = vdwg.mxu0
      %5639 = vmatprep.subr.mxu0 0.0
      %5640 = vmatpush1.msra.mxu0 %v1784
      %5641 = vmatprep.subr.mxu0 0.0
      %5642 = vmatpush1.msra.mxu0 %v1785
      %5643 = vmatprep.subr.mxu0 0.0
      %5644 = vmatpush1.msra.mxu0 %v1786
      %5645 = vmatprep.subr.mxu0 0.0
      %5646 = vmatpush1.msra.mxu0 %v1787
      %5647 = vmatprep.subr.mxu0 0.0
      %5648 = vmatpush1.msra.mxu0 %v1788
      %5649 = vmatprep.subr.mxu0 0.0
      %5650 = vmatpush1.msra.mxu0 %v1789
      %5651 = vmatprep.subr.mxu0 0.0
      %5652 = vmatpush1.msra.mxu0 %v1790
      %5653 = vmatprep.subr.mxu0 0.0
      %5654 = vmatpush1.msra.mxu0 %v1791
      %5655 = vmatprep.subr.mxu0 0.0
      %5656 = vmatpush1.msra.mxu0 %v1792
      %5657 = vmatprep.subr.mxu0 0.0
      %5658 = vmatpush1.msra.mxu0 %v1793
      %5659 = vmatprep.subr.mxu0 0.0
      %5660 = vmatpush1.msra.mxu0 %v1794
      %5661 = vmatprep.subr.mxu0 0.0
      %5662 = vmatpush1.msra.mxu0 %v1795
      %5663 = vmatprep.subr.mxu0 0.0
      %5664 = vmatpush1.msra.mxu0 %v1796
      %5665 = vmatprep.subr.mxu0 0.0
      %5666 = vmatpush1.msra.mxu0 %v1797
      %5667 = vmatprep.subr.mxu0 0.0
      %5668 = vmatpush1.msra.mxu0 %v1798
      %5669 = vmatprep.subr.mxu0 0.0
      %5670 = vmatpush1.msra.mxu0 %v1799
      %5671 = vmatprep.subr.mxu0 0.0
      %5672 = vmatpush1.msra.mxu0 %v1800
      %5673 = vmatprep.subr.mxu0 0.0
      %5674 = vmatpush1.msra.mxu0 %v1801
      %5675 = vmatprep.subr.mxu0 0.0
      %5676 = vmatpush1.msra.mxu0 %v1802
      %5677 = vmatprep.subr.mxu0 0.0
      %5678 = vmatpush1.msra.mxu0 %v1803
      %5679 = vmatprep.subr.mxu0 0.0
      %5680 = vmatpush1.msra.mxu0 %v1804
      %5681 = vmatprep.subr.mxu0 0.0
      %5682 = vmatpush1.msra.mxu0 %v1805
      %5683 = vmatprep.subr.mxu0 0.0
      %5684 = vmatpush1.msra.mxu0 %v1806
      %5685 = vmatprep.subr.mxu0 0.0
      %5686 = vmatpush1.msra.mxu0 %v1807
      %5687 = vmatprep.subr.mxu0 0.0
      %5688 = vmatpush1.msra.mxu0 %v1808
      %5689 = vmatprep.subr.mxu0 0.0
      %5690 = vmatpush1.msra.mxu0 %v1809
      %5691 = vmatprep.subr.mxu0 0.0
      %5692 = vmatpush1.msra.mxu0 %v1810
      %5693 = vmatprep.subr.mxu0 0.0
      %5694 = vmatpush1.msra.mxu0 %v1811
      %5695 = vmatprep.subr.mxu0 0.0
      %5696 = vmatpush1.msra.mxu0 %v1812
      %5697 = vmatprep.subr.mxu0 0.0
      %5698 = vmatpush1.msra.mxu0 %v1813
      %5699 = vmatprep.subr.mxu0 0.0
      %5700 = vmatpush1.msra.mxu0 %v1814
      %5701 = vmatprep.subr.mxu0 0.0
      %5702 = vmatpush1.msra.mxu0 %v1815
      %5703 = vmatprep.mubr.f32.mxu0 %v2311
      %5704 = vmatmul.mubr.f32.gmra.mrb[0].mxu0 %v2303
      %v5705 = vpop.f32.mrb[0].mxu0
      %v5706 = vadd.f32 %v5636, %v5705
      %v5707 = vpop.f32.mrb[0].mxu0
      %5708 = vdwg.mxu0
      %5709 = vmatprep.subr.mxu0 0.0
      %5710 = vmatpush1.msra.mxu0 %v1816
      %5711 = vmatprep.subr.mxu0 0.0
      %5712 = vmatpush1.msra.mxu0 %v1817
      %5713 = vmatprep.subr.mxu0 0.0
      %5714 = vmatpush1.msra.mxu0 %v1818
      %5715 = vmatprep.subr.mxu0 0.0
      %5716 = vmatpush1.msra.mxu0 %v1819
      %5717 = vmatprep.subr.mxu0 0.0
      %5718 = vmatpush1.msra.mxu0 %v1820
      %5719 = vmatprep.subr.mxu0 0.0
      %5720 = vmatpush1.msra.mxu0 %v1821
      %5721 = vmatprep.subr.mxu0 0.0
      %5722 = vmatpush1.msra.mxu0 %v1822
      %5723 = vmatprep.subr.mxu0 0.0
      %5724 = vmatpush1.msra.mxu0 %v1823
      %5725 = vmatprep.subr.mxu0 0.0
      %5726 = vmatpush1.msra.mxu0 %v1824
      %5727 = vmatprep.subr.mxu0 0.0
      %5728 = vmatpush1.msra.mxu0 %v1825
      %5729 = vmatprep.subr.mxu0 0.0
      %5730 = vmatpush1.msra.mxu0 %v1826
      %5731 = vmatprep.subr.mxu0 0.0
      %5732 = vmatpush1.msra.mxu0 %v1827
      %5733 = vmatprep.subr.mxu0 0.0
      %5734 = vmatpush1.msra.mxu0 %v1828
      %5735 = vmatprep.subr.mxu0 0.0
      %5736 = vmatpush1.msra.mxu0 %v1829
      %5737 = vmatprep.subr.mxu0 0.0
      %5738 = vmatpush1.msra.mxu0 %v1830
      %5739 = vmatprep.subr.mxu0 0.0
      %5740 = vmatpush1.msra.mxu0 %v1831
      %5741 = vmatprep.subr.mxu0 0.0
      %5742 = vmatpush1.msra.mxu0 %v1832
      %5743 = vmatprep.subr.mxu0 0.0
      %5744 = vmatpush1.msra.mxu0 %v1833
      %5745 = vmatprep.subr.mxu0 0.0
      %5746 = vmatpush1.msra.mxu0 %v1834
      %5747 = vmatprep.subr.mxu0 0.0
      %5748 = vmatpush1.msra.mxu0 %v1835
      %5749 = vmatprep.subr.mxu0 0.0
      %5750 = vmatpush1.msra.mxu0 %v1836
      %5751 = vmatprep.subr.mxu0 0.0
      %5752 = vmatpush1.msra.mxu0 %v1837
      %5753 = vmatprep.subr.mxu0 0.0
      %5754 = vmatpush1.msra.mxu0 %v1838
      %5755 = vmatprep.subr.mxu0 0.0
      %5756 = vmatpush1.msra.mxu0 %v1839
      %5757 = vmatprep.subr.mxu0 0.0
      %5758 = vmatpush1.msra.mxu0 %v1840
      %5759 = vmatprep.subr.mxu0 0.0
      %5760 = vmatpush1.msra.mxu0 %v1841
      %5761 = vmatprep.subr.mxu0 0.0
      %5762 = vmatpush1.msra.mxu0 %v1842
      %5763 = vmatprep.subr.mxu0 0.0
      %5764 = vmatpush1.msra.mxu0 %v1843
      %5765 = vmatprep.subr.mxu0 0.0
      %5766 = vmatpush1.msra.mxu0 %v1844
      %5767 = vmatprep.subr.mxu0 0.0
      %5768 = vmatpush1.msra.mxu0 %v1845
      %5769 = vmatprep.subr.mxu0 0.0
      %5770 = vmatpush1.msra.mxu0 %v1846
      %5771 = vmatprep.subr.mxu0 0.0
      %5772 = vmatpush1.msra.mxu0 %v1847
      %5773 = vmatprep.mubr.f32.mxu0 %v2312
      %5774 = vmatmul.mubr.f32.gmra.mrb[0].mxu0 %v2310
      %v5775 = vpop.f32.mrb[0].mxu0
      %v5776 = vadd.f32 %v5706, %v5775
      %v5777 = vpop.f32.mrb[0].mxu0
      %5778 = vdwg.mxu0
      %5779 = vmatprep.subr.mxu0 0.0
      %5780 = vmatpush1.msra.mxu0 %v1848
      %5781 = vmatprep.subr.mxu0 0.0
      %5782 = vmatpush1.msra.mxu0 %v1849
      %5783 = vmatprep.subr.mxu0 0.0
      %5784 = vmatpush1.msra.mxu0 %v1850
      %5785 = vmatprep.subr.mxu0 0.0
      %5786 = vmatpush1.msra.mxu0 %v1851
      %5787 = vmatprep.subr.mxu0 0.0
      %5788 = vmatpush1.msra.mxu0 %v1852
      %5789 = vmatprep.subr.mxu0 0.0
      %5790 = vmatpush1.msra.mxu0 %v1853
      %5791 = vmatprep.subr.mxu0 0.0
      %5792 = vmatpush1.msra.mxu0 %v1854
      %5793 = vmatprep.subr.mxu0 0.0
      %5794 = vmatpush1.msra.mxu0 %v1855
      %5795 = vmatprep.subr.mxu0 0.0
      %5796 = vmatpush1.msra.mxu0 %v1856
      %5797 = vmatprep.subr.mxu0 0.0
      %5798 = vmatpush1.msra.mxu0 %v1857
      %5799 = vmatprep.subr.mxu0 0.0
      %5800 = vmatpush1.msra.mxu0 %v1858
      %5801 = vmatprep.subr.mxu0 0.0
      %5802 = vmatpush1.msra.mxu0 %v1859
      %5803 = vmatprep.subr.mxu0 0.0
      %5804 = vmatpush1.msra.mxu0 %v1860
      %5805 = vmatprep.subr.mxu0 0.0
      %5806 = vmatpush1.msra.mxu0 %v1861
      %5807 = vmatprep.subr.mxu0 0.0
      %5808 = vmatpush1.msra.mxu0 %v1862
      %5809 = vmatprep.subr.mxu0 0.0
      %5810 = vmatpush1.msra.mxu0 %v1863
      %5811 = vmatprep.subr.mxu0 0.0
      %5812 = vmatpush1.msra.mxu0 %v1864
      %5813 = vmatprep.subr.mxu0 0.0
      %5814 = vmatpush1.msra.mxu0 %v1865
      %5815 = vmatprep.subr.mxu0 0.0
      %5816 = vmatpush1.msra.mxu0 %v1866
      %5817 = vmatprep.subr.mxu0 0.0
      %5818 = vmatpush1.msra.mxu0 %v1867
      %5819 = vmatprep.subr.mxu0 0.0
      %5820 = vmatpush1.msra.mxu0 %v1868
      %5821 = vmatprep.subr.mxu0 0.0
      %5822 = vmatpush1.msra.mxu0 %v1869
      %5823 = vmatprep.subr.mxu0 0.0
      %5824 = vmatpush1.msra.mxu0 %v1870
      %5825 = vmatprep.subr.mxu0 0.0
      %5826 = vmatpush1.msra.mxu0 %v1871
      %5827 = vmatprep.subr.mxu0 0.0
      %5828 = vmatpush1.msra.mxu0 %v1872
      %5829 = vmatprep.subr.mxu0 0.0
      %5830 = vmatpush1.msra.mxu0 %v1873
      %5831 = vmatprep.subr.mxu0 0.0
      %5832 = vmatpush1.msra.mxu0 %v1874
      %5833 = vmatprep.subr.mxu0 0.0
      %5834 = vmatpush1.msra.mxu0 %v1875
      %5835 = vmatprep.subr.mxu0 0.0
      %5836 = vmatpush1.msra.mxu0 %v1876
      %5837 = vmatprep.subr.mxu0 0.0
      %5838 = vmatpush1.msra.mxu0 %v1877
      %5839 = vmatprep.subr.mxu0 0.0
      %5840 = vmatpush1.msra.mxu0 %v1878
      %5841 = vmatprep.subr.mxu0 0.0
      %5842 = vmatpush1.msra.mxu0 %v1879
      %5843 = vmatprep.mubr.f32.mxu0 %v2320
      %5844 = vmatmul.mubr.f32.gmra.mrb[0].mxu0 %v2319
      %v5845 = vpop.f32.mrb[0].mxu0
      %v5846 = vadd.f32 %v5776, %v5845
      %v5847 = vpop.f32.mrb[0].mxu0
      %5848 = vdwg.mxu0
      %v5849 = vadd.f32 %v286, %v5846
      %vm5850 = vcmask 517120
      %5851 = vst.msk [vmem:[#allocation2] sm:$0x3] %vm5850, %v5849
      %p5852 = scmp.eq.s32.totalorder %s20, 1
      // Predicated region
      $region41: #{conv_nn_forward.5} parent=35 // pred_check
        %p5853 = pneg %p5852
      $region42: #{conv_nn_forward.5} parent=35 // pred_check_branch
        %5855 = sbr.rel (%p5853) target = $region44
      $region43: #{conv_nn_forward.5} parent=35 // pred_region
        %v5856 = vld [vmem:[#allocation2] sm:$0x3]
        %v5857 = vld [vmem:[%s270] sm:$0x1]
        %v5859 = vlaneseq
        %v5860 = vshrl.u32 %v5859, 7
        %v5861 = vsub.s32 0, %v5860
        %v5862 = vrot.slane %v5857, %v5861
        %v5864 = vadd.f32 %v5856, %v5862
        %v5865 = vmax.f32 %v5864, 0.0
        %v5866 = vld [vmem:[%s275] sm:$0xff]
        %v5867 = vld [vmem:[%s275 + $0x8] sm:$0xff]
        %v5868 = vld [vmem:[%s275 + $0x10] sm:$0xff]
        %v5869 = vld [vmem:[%s275 + $0x18] sm:$0xff]
        %v5870 = vld [vmem:[%s275 + $0x20] sm:$0xff]
        %v5871 = vld [vmem:[%s275 + $0x28] sm:$0xff]
        %v5872 = vld [vmem:[%s275 + $0x30] sm:$0xff]
        %v5873 = vld [vmem:[%s275 + $0x38] sm:$0xff]
        %vm5874 = vcmask 523264
        %v5876 = vsel %vm5874, %v5865, 0
        %5878 = vmatprep.subr.mxu0 0.0
        %5879 = vmatpush1.msra.mxu0 %v5866
        %5880 = vmatprep.subr.mxu0 0.0
        %5881 = vmatpush1.msra.mxu0 %v5867
        %5882 = vmatprep.subr.mxu0 0.0
        %5883 = vmatpush1.msra.mxu0 %v5868
        %5884 = vmatprep.subr.mxu0 0.0
        %5885 = vmatpush1.msra.mxu0 %v5869
        %5886 = vmatprep.subr.mxu0 0.0
        %5887 = vmatpush1.msra.mxu0 %v5870
        %5888 = vmatprep.subr.mxu0 0.0
        %5889 = vmatpush1.msra.mxu0 %v5871
        %5890 = vmatprep.subr.mxu0 0.0
        %5891 = vmatpush1.msra.mxu0 %v5872
        %5892 = vmatprep.subr.mxu0 0.0
        %5893 = vmatpush1.msra.mxu0 %v5873
        %5894 = vmatprep.subr.mxu0 0.0
        %5895 = vmatpush1.msra.mxu0 0.0
        %5896 = vmatprep.subr.mxu0 0.0
        %5897 = vmatpush1.msra.mxu0 0.0
        %5898 = vmatprep.subr.mxu0 0.0
        %5899 = vmatpush1.msra.mxu0 0.0
        %5900 = vmatprep.subr.mxu0 0.0
        %5901 = vmatpush1.msra.mxu0 0.0
        %5902 = vmatprep.subr.mxu0 0.0
        %5903 = vmatpush1.msra.mxu0 0.0
        %5904 = vmatprep.subr.mxu0 0.0
        %5905 = vmatpush1.msra.mxu0 0.0
        %5906 = vmatprep.subr.mxu0 0.0
        %5907 = vmatpush1.msra.mxu0 0.0
        %5908 = vmatprep.subr.mxu0 0.0
        %5909 = vmatpush1.msra.mxu0 0.0
        %5910 = vmatprep.subr.mxu0 0.0
        %5911 = vmatpush1.msra.mxu0 0.0
        %5912 = vmatprep.subr.mxu0 0.0
        %5913 = vmatpush1.msra.mxu0 0.0
        %5914 = vmatprep.subr.mxu0 0.0
        %5915 = vmatpush1.msra.mxu0 0.0
        %5916 = vmatprep.subr.mxu0 0.0
        %5917 = vmatpush1.msra.mxu0 0.0
        %5918 = vmatprep.subr.mxu0 0.0
        %5919 = vmatpush1.msra.mxu0 0.0
        %5920 = vmatprep.subr.mxu0 0.0
        %5921 = vmatpush1.msra.mxu0 0.0
        %5922 = vmatprep.subr.mxu0 0.0
        %5923 = vmatpush1.msra.mxu0 0.0
        %5924 = vmatprep.subr.mxu0 0.0
        %5925 = vmatpush1.msra.mxu0 0.0
        %5926 = vmatprep.subr.mxu0 0.0
        %5927 = vmatpush1.msra.mxu0 0.0
        %5928 = vmatprep.subr.mxu0 0.0
        %5929 = vmatpush1.msra.mxu0 0.0
        %5930 = vmatprep.subr.mxu0 0.0
        %5931 = vmatpush1.msra.mxu0 0.0
        %5932 = vmatprep.subr.mxu0 0.0
        %5933 = vmatpush1.msra.mxu0 0.0
        %5934 = vmatprep.subr.mxu0 0.0
        %5935 = vmatpush1.msra.mxu0 0.0
        %5936 = vmatprep.subr.mxu0 0.0
        %5937 = vmatpush1.msra.mxu0 0.0
        %5938 = vmatprep.subr.mxu0 0.0
        %5939 = vmatpush1.msra.mxu0 0.0
        %5940 = vmatprep.subr.mxu0 0.0
        %5941 = vmatpush1.msra.mxu0 0.0
        %5942 = vmatprep.mubr.f32.mxu0 0.0
        %5943 = vmatmul.mubr.f32.gmra.mrb[0].mxu0 %v5876
        %v5944 = vpop.f32.mrb[0].mxu0
        %v5945 = vadd.f32 0.0, %v5944
        %v5946 = vpop.f32.mrb[0].mxu0
        %5947 = vdwg.mxu0
        %vm5948 = vcmask 74752
        %5949 = vst.msk [vmem:[%s279] sm:$0x3] %vm5948, %v5945
      $region44: #{conv_nn_forward.5} parent=35 // pred_fallthru
        _
      %p5950 = scmp.lt.s32.totalorder %s19, 1
      %s5951 = scalar_select %p5950, %s19, 1
      %s5952 = smul.addr %s5951, 2
      %s5953 = scalar_lea.vmem %s4, %s5952
      // Predicated region
      $region45: #{conv_nn_forward.5} parent=35 // pred_check
        %p5954 = pneg %p151
      $region46: #{conv_nn_forward.5} parent=35 // pred_check_branch
        %5956 = sbr.rel (%p5954) target = $region48
      $region47: #{conv_nn_forward.5} parent=35 // pred_region
        _
      $region48: #{conv_nn_forward.5} parent=35 // pred_fallthru
        _
    $region36: #{conv_nn_forward.5} parent=5 // pred_fallthru
      _
    %p5957 = scmp.le.s32.totalorder 2, %s10
    // Predicated region
    $region49: #{conv_nn_forward.5} parent=5 // pred_check
      %p5958 = pneg %p5957
    $region50: #{conv_nn_forward.5} parent=5 // pred_check_branch
      %5960 = sbr.rel (%p5958) target = $region52
    $region51: #{conv_nn_forward.5} parent=5 // pred_region
      %s5961 = ssub.s32 %s10, 2
      // Predicated region
      $region53: #{conv_nn_forward.5} parent=51 // pred_check
        %p5962 = pneg %p157
      $region54: #{conv_nn_forward.5} parent=51 // pred_check_branch
        %5964 = sbr.rel (%p5962) target = $region56
      $region55: #{conv_nn_forward.5} parent=51 // pred_region
        %p5965 = scmp.lt.s32.totalorder %s21, 1
        %s5966 = scalar_select %p5965, %s21, 1
        %s5967 = smul.addr %s5966, 2
        %s5968 = scalar_lea.vmem %s4, %s5967
      $region56: #{conv_nn_forward.5} parent=51 // pred_fallthru
        _
    $region52: #{conv_nn_forward.5} parent=5 // pred_fallthru
      _
  $region6: #{conv_nn_forward.5} parent=0 // loop_footer
    %s14 = sadd.s32 1, %s10
  $region7: #{conv_nn_forward.5} parent=0 // loop_footer_branch
    %9 = sbr.rel target = $region3
  $region8: #{conv_nn_forward.5} parent=0 // loop_exit
    _

</llo_original>
